<compile_context>
chip_gen: v7x
topology: tpu7x:2x2x1
jax: 0.10.0
libtpu: 0.0.40
codegen_flags: <defaults>
</compile_context>

<pallas_src>
import jax
import jax.numpy as jnp
from jax.experimental import pallas as pl
from jax.experimental.pallas import tpu as pltpu


def ftnet_head_kernel(x_ref, w1_ref, b1_ref, w2_ref, b2_ref, out_ref, acc_ref):
    """One (batch-tile, K-tile) step of the fused FtNet head.

    x_ref  : (bt, tk, HW)  feature-map channel tile (f32 or bf16)
    w1_ref : (tk, NB)      bf16 bottleneck weight, pool scale + BN folded in
    b1_ref : (1, NB)       f32 bottleneck bias, BN folded in
    w2_ref : (NB, NP)      bf16 classifier weight, padded to NP lanes
    b2_ref : (1, NP)       f32 classifier bias, padded
    out_ref: (bt, NP)      f32 logits (padded)
    acc_ref: (bt, NB)      f32 VMEM accumulator for the bottleneck pre-activation
    """
    k = pl.program_id(1)

    @pl.when(k == 0)
    def _():
        acc_ref[...] = jnp.zeros_like(acc_ref)

    # AdaptiveAvgPool2d((1,1)) fused with Linear(2048->512): sum over spatial
    # positions (the 1/HW scale is folded into w1_eff), then this K-tile's
    # slice of the (B, C) @ (C, NB) contraction on the MXU, f32 accumulation.
    pooled = jnp.sum(x_ref[...].astype(jnp.float32), axis=-1)          # (bt, tk)
    acc_ref[...] += jnp.dot(pooled.astype(w1_ref.dtype), w1_ref[...],
                            preferred_element_type=jnp.float32)

    @pl.when(k == pl.num_programs(1) - 1)
    def _():
        h = acc_ref[...] + b1_ref[...]        # Linear bias + BatchNorm (folded)
        h = jnp.where(h > 0, h, 0.1 * h)      # LeakyReLU(0.1)
        # Dropout(p=0.5) is identity in eval mode.
        out_ref[...] = (jnp.dot(h.astype(w2_ref.dtype), w2_ref[...],
                                preferred_element_type=jnp.float32)
                        + b2_ref[...])


def fold_params(params, spatial_size, lane_pad=128):
    """One-time algebraic fold (off the per-call critical path):
    pool scale + eval BN folded into Linear1, bf16 cast of both weights,
    classifier padded to a lane-dense width."""
    w1, b1 = params["w1"], params["b1"]
    scale, shift = params["bn_scale"], params["bn_shift"]
    w2, b2 = params["w2"], params["b2"]

    nb = w1.shape[1]
    class_num = w2.shape[1]
    n_pad = ((class_num + lane_pad - 1) // lane_pad) * lane_pad

    w1_eff = (w1 * scale / float(spatial_size)).astype(jnp.bfloat16)
    b1_eff = (b1 * scale + shift).astype(jnp.float32)
    w2_pad = (jnp.zeros((nb, n_pad), jnp.float32)
              .at[:, :class_num].set(w2).astype(jnp.bfloat16))
    b2_pad = jnp.zeros((1, n_pad), jnp.float32).at[:, :class_num].set(b2)

    return {"w1_eff": w1_eff, "b1_eff": b1_eff,
            "w2_pad": w2_pad, "b2_pad": b2_pad,
            "class_num": class_num, "spatial_size": spatial_size}


def _pick_bt(B):
    """Batch tile: split only when it buys something (v7x megacore, VMEM
    bounds at large B); bt must be a multiple of 8 or equal to B (sublane
    rule on the (bt, NP) output block)."""
    if B > 8 and B % 8 == 0:
        return 8
    return B


def _vmem_limit_bytes(bt, tk, HW, NB, NP, x_itemsize):
    """Double-buffered working-set estimate (x lane-padded to 128) + margin."""
    hw_pad = ((HW + 127) // 128) * 128
    x_blk = bt * tk * hw_pad * x_itemsize * 2
    w1_blk = tk * NB * 2 * 2                       # bf16, double-buffered
    w2_blk = NB * NP * 2 * 2
    small = (2 * NB + 2 * NP) * 4 + bt * NP * 4 * 2 + bt * NB * 4
    return int(x_blk + w1_blk + w2_blk + small) + (8 << 20)


def ftnet_forward(x_nchw, folded, *, tk=2048):
    """x_nchw: (B, 2048, H, W) f32 or bf16 feature map (post resnet50 trunk)."""
    B, C, H, W = x_nchw.shape
    HW = H * W
    assert HW == folded["spatial_size"], "params folded for a different H*W"
    tk = min(tk, C)
    assert C % tk == 0

    # Free reshape (no NCHW->NHWC transpose pass): channels on the sublane /
    # grid-tiled axis, spatial positions on lanes.
    x = x_nchw.reshape(B, C, HW)

    w1_eff, b1_eff = folded["w1_eff"], folded["b1_eff"]
    w2_pad, b2_pad = folded["w2_pad"], folded["b2_pad"]
    NB = w1_eff.shape[1]
    NP = w2_pad.shape[1]

    bt = _pick_bt(B)
    assert B % bt == 0

    grid_spec = pltpu.PrefetchScalarGridSpec(
        num_scalar_prefetch=0,
        grid=(B // bt, C // tk),
        in_specs=[
            pl.BlockSpec((bt, tk, HW), lambda i, k: (i, k, 0)),  # x tile
            pl.BlockSpec((tk, NB), lambda i, k: (k, 0)),          # w1 K-tile
            pl.BlockSpec((1, NB), lambda i, k: (0, 0)),           # b1 (resident)
            pl.BlockSpec((NB, NP), lambda i, k: (0, 0)),          # w2 (resident)
            pl.BlockSpec((1, NP), lambda i, k: (0, 0)),           # b2 (resident)
        ],
        out_specs=pl.BlockSpec((bt, NP), lambda i, k: (i, 0)),    # batch-tile out
        scratch_shapes=[pltpu.VMEM((bt, NB), jnp.float32)],
    )

    out_pad = pl.pallas_call(
        ftnet_head_kernel,
        out_shape=jax.ShapeDtypeStruct((B, NP), jnp.float32),
        grid_spec=grid_spec,
        compiler_params=pltpu.CompilerParams(
            # batch tiles are independent; K is a reduction into the resident
            # accumulator/output.
            dimension_semantics=("parallel", "arbitrary"),
            vmem_limit_bytes=_vmem_limit_bytes(bt, tk, HW, NB, NP,
                                               x.dtype.itemsize)),
    )(x, w1_eff, b1_eff, w2_pad, b2_pad)

    return out_pad[:, :folded["class_num"]]


def make_params(key, num_ftrs=2048, num_bottleneck=512, class_num=16):
    k1, k2, k3 = jax.random.split(key, 3)

    # weights_init_kaiming on Linear(2048, 512): kaiming_normal, mode='fan_out'
    # (fan_out = 512, gain = sqrt(2)); bias = 0.  Stored as (in, out); real
    # PyTorch checkpoints ((out, in)) must be transposed before use.
    std_w1 = (2.0 / num_bottleneck) ** 0.5
    w1 = std_w1 * jax.random.normal(k1, (num_ftrs, num_bottleneck), jnp.float32)
    b1 = jnp.zeros((1, num_bottleneck), jnp.float32)

    # weights_init_kaiming on BatchNorm1d(512): weight ~ N(1, 0.02), bias = 0.
    gamma = 1.0 + 0.02 * jax.random.normal(k2, (num_bottleneck,), jnp.float32)
    beta = jnp.zeros((num_bottleneck,), jnp.float32)
    running_mean = jnp.zeros((num_bottleneck,), jnp.float32)
    running_var = jnp.ones((num_bottleneck,), jnp.float32)
    eps = 1e-5
    bn_scale = (gamma / jnp.sqrt(running_var + eps)).reshape(1, num_bottleneck)
    bn_shift = (beta - running_mean * gamma /
                jnp.sqrt(running_var + eps)).reshape(1, num_bottleneck)

    # weights_init_classifier on Linear(512, class_num): N(0, 0.001), bias = 0.
    w2 = 0.001 * jax.random.normal(k3, (num_bottleneck, class_num), jnp.float32)
    b2 = jnp.zeros((1, class_num), jnp.float32)

    return {"w1": w1, "b1": b1, "bn_scale": bn_scale, "bn_shift": bn_shift,
            "w2": w2, "b2": b2}


def reference_forward(x_nchw, params):
    pooled = jnp.mean(x_nchw, axis=(2, 3))                      # (B, C)
    h = pooled @ params["w1"] + params["b1"]
    h = h * params["bn_scale"] + params["bn_shift"]
    h = jnp.where(h > 0, h, 0.1 * h)
    return h @ params["w2"] + params["b2"]


if __name__ == "__main__":
    key = jax.random.PRNGKey(0)
    kx, kp = jax.random.split(key)

    B, C, H, W = 2, 2048, 8, 8          # pre-avgpool resnet50 feature map
    class_num = 16

    x = jax.random.normal(kx, (B, C, H, W), jnp.float32)
    params = make_params(kp, class_num=class_num)
    folded = fold_params(params, spatial_size=H * W)

    out = ftnet_forward(x, folded)
    out = jax.block_until_ready(out)

    ref = reference_forward(x, params)
    assert out.shape == (B, class_num)
    # bf16 weights / bf16 h cast set the precision floor -> relative-error
    # check against the logit scale (stronger than a loose absolute atol).
    rel_err = float(jnp.max(jnp.abs(out - ref)) /
                    (jnp.max(jnp.abs(ref)) + 1e-12))
    assert rel_err < 2e-2, f"relative error {rel_err:.3e} vs f32 reference"

    print("KERNEL_OK")
</pallas_src>

<mosaic_0001>
module attributes {stable_mosaic.version = 11 : i64} {
  func.func @ftnet_head_kernel(%arg0: i32, %arg1: i32, %arg2: memref<2x2048x64xf32, #tpu.memory_space<vmem>>, %arg3: memref<2048x512xbf16, #tpu.memory_space<vmem>>, %arg4: memref<1x512xf32, #tpu.memory_space<vmem>>, %arg5: memref<512x128xbf16, #tpu.memory_space<vmem>>, %arg6: memref<1x128xf32, #tpu.memory_space<vmem>>, %arg7: memref<2x128xf32, #tpu.memory_space<vmem>>, %arg8: memref<2x512xf32, #tpu.memory_space<vmem>>) attributes {dimension_semantics = [#tpu.dimension_semantics<parallel>, #tpu.dimension_semantics<arbitrary>], iteration_bounds = array<i64: 1, 1>, scalar_prefetch = 0 : i64, scratch_operands = 1 : i64, tpu.core_type = #tpu.core_type<tc>, window_params = [{transform_indices = @transform_0, window_bounds = array<i64: 2, 2048, 64>}, {transform_indices = @transform_1, window_bounds = array<i64: 2048, 512>}, {pipeline_mode = #tpu.pipeline_mode<synchronous>, transform_indices = @transform_2, window_bounds = array<i64: 1, 512>}, {pipeline_mode = #tpu.pipeline_mode<synchronous>, transform_indices = @transform_3, window_bounds = array<i64: 512, 128>}, {pipeline_mode = #tpu.pipeline_mode<synchronous>, transform_indices = @transform_4, window_bounds = array<i64: 1, 128>}, {transform_indices = @transform_5, window_bounds = array<i64: 2, 128>}]} {
    %c0_i32 = arith.constant 0 : i32
    %0 = arith.cmpi eq, %arg1, %c0_i32 : i32
    %1 = arith.extui %0 : i1 to i32
    %c0_i32_0 = arith.constant 0 : i32
    %2 = arith.cmpi ne, %1, %c0_i32_0 : i32
    scf.if %2 {
      %cst_12 = arith.constant 0.000000e+00 : f32
      %14 = vector.broadcast %cst_12 : f32 to vector<2x512xf32>
      %c0_13 = arith.constant 0 : index
      %c0_14 = arith.constant 0 : index
      %15 = vector.load %arg8[%c0_13, %c0_14] : memref<2x512xf32, #tpu.memory_space<vmem>>, vector<2x512xf32>
      tpu.vector_store %arg8[%c0_13, %c0_14], %14 {strides = array<i32>} : memref<2x512xf32, #tpu.memory_space<vmem>>, vector<2x512xf32>,
    } else {
    }
    %c0 = arith.constant 0 : index
    %c0_1 = arith.constant 0 : index
    %c0_2 = arith.constant 0 : index
    %3 = vector.load %arg2[%c0, %c0_1, %c0_2] : memref<2x2048x64xf32, #tpu.memory_space<vmem>>, vector<2x2048x64xf32>
    %cst = arith.constant dense<0.000000e+00> : vector<2x2048xf32>
    %4 = vector.multi_reduction <add>, %3, %cst [2] : vector<2x2048x64xf32> to vector<2x2048xf32>
    %c0_3 = arith.constant 0 : index
    %c0_4 = arith.constant 0 : index
    %5 = vector.load %arg8[%c0_3, %c0_4] : memref<2x512xf32, #tpu.memory_space<vmem>>, vector<2x512xf32>
    %6 = arith.truncf %4 : vector<2x2048xf32> to vector<2x2048xbf16>
    %c0_5 = arith.constant 0 : index
    %c0_6 = arith.constant 0 : index
    %7 = vector.load %arg3[%c0_5, %c0_6] : memref<2048x512xbf16, #tpu.memory_space<vmem>>, vector<2048x512xbf16>
    %cst_7 = arith.constant dense<0.000000e+00> : vector<2x512xf32>
    %8 = tpu.matmul %6, %7, %cst_7 {dimension_numbers = #tpu.dot_dimension_numbers<[1], [0], [0], [1], [0, 0, 1, 1], [], []>} : vector<2x2048xbf16>, vector<2048x512xbf16>, vector<2x512xf32> -> vector<2x512xf32>
    %9 = arith.addf %5, %8 : vector<2x512xf32>
    %c0_8 = arith.constant 0 : index
    %c0_9 = arith.constant 0 : index
    %10 = vector.load %arg8[%c0_8, %c0_9] : memref<2x512xf32, #tpu.memory_space<vmem>>, vector<2x512xf32>
    tpu.vector_store %arg8[%c0_8, %c0_9], %9 {strides = array<i32>} : memref<2x512xf32, #tpu.memory_space<vmem>>, vector<2x512xf32>,
    %c0_i32_10 = arith.constant 0 : i32
    %11 = arith.cmpi eq, %arg1, %c0_i32_10 : i32
    %12 = arith.extui %11 : i1 to i32
    %c0_i32_11 = arith.constant 0 : i32
    %13 = arith.cmpi ne, %12, %c0_i32_11 : i32
    scf.if %13 {
      %c0_12 = arith.constant 0 : index
      %c0_13 = arith.constant 0 : index
      %14 = vector.load %arg8[%c0_12, %c0_13] : memref<2x512xf32, #tpu.memory_space<vmem>>, vector<2x512xf32>
      %c0_14 = arith.constant 0 : index
      %c0_15 = arith.constant 0 : index
      %15 = vector.load %arg4[%c0_14, %c0_15] : memref<1x512xf32, #tpu.memory_space<vmem>>, vector<1x512xf32>
      %16 = vector.broadcast %15 : vector<1x512xf32> to vector<2x512xf32>
      %17 = arith.addf %14, %16 : vector<2x512xf32>
      %cst_16 = arith.constant 0.000000e+00 : f32
      %18 = vector.broadcast %cst_16 : f32 to vector<2x512xf32>
      %19 = arith.cmpf ogt, %17, %18 : vector<2x512xf32>
      %cst_17 = arith.constant 1.000000e-01 : f32
      %20 = vector.broadcast %cst_17 : f32 to vector<2x512xf32>
      %21 = arith.mulf %20, %17 : vector<2x512xf32>
      %22 = arith.select %19, %17, %21 : vector<2x512xi1>, vector<2x512xf32>
      %23 = arith.truncf %22 : vector<2x512xf32> to vector<2x512xbf16>
      %c0_18 = arith.constant 0 : index
      %c0_19 = arith.constant 0 : index
      %24 = vector.load %arg5[%c0_18, %c0_19] : memref<512x128xbf16, #tpu.memory_space<vmem>>, vector<512x128xbf16>
      %cst_20 = arith.constant dense<0.000000e+00> : vector<2x128xf32>
      %25 = tpu.matmul %23, %24, %cst_20 {dimension_numbers = #tpu.dot_dimension_numbers<[1], [0], [0], [1], [0, 0, 1, 1], [], []>} : vector<2x512xbf16>, vector<512x128xbf16>, vector<2x128xf32> -> vector<2x128xf32>
      %c0_21 = arith.constant 0 : index
      %c0_22 = arith.constant 0 : index
      %26 = vector.load %arg6[%c0_21, %c0_22] : memref<1x128xf32, #tpu.memory_space<vmem>>, vector<1x128xf32>
      %27 = vector.broadcast %26 : vector<1x128xf32> to vector<2x128xf32>
      %28 = arith.addf %25, %27 : vector<2x128xf32>
      %c0_23 = arith.constant 0 : index
      %c0_24 = arith.constant 0 : index
      %29 = vector.load %arg7[%c0_23, %c0_24] : memref<2x128xf32, #tpu.memory_space<vmem>>, vector<2x128xf32>
      tpu.vector_store %arg7[%c0_23, %c0_24], %28 {strides = array<i32>} : memref<2x128xf32, #tpu.memory_space<vmem>>, vector<2x128xf32>,
    } else {
    }
    return
  }
  func.func @transform_0(%arg0: i32, %arg1: i32) -> (i32, i32, i32) {
    %c0_i32 = arith.constant 0 : i32
    %c0_i32_0 = arith.constant 0 : i32
    return %arg0, %arg1, %c0_i32 : i32, i32, i32
  }
  func.func @transform_1(%arg0: i32, %arg1: i32) -> (i32, i32) {
    %c0_i32 = arith.constant 0 : i32
    %c0_i32_0 = arith.constant 0 : i32
    return %arg1, %c0_i32 : i32, i32
  }
  func.func @transform_2(%arg0: i32, %arg1: i32) -> (i32, i32) {
    %c0_i32 = arith.constant 0 : i32
    %c0_i32_0 = arith.constant 0 : i32
    %c0_i32_1 = arith.constant 0 : i32
    return %c0_i32, %c0_i32_0 : i32, i32
  }
  func.func @transform_3(%arg0: i32, %arg1: i32) -> (i32, i32) {
    %c0_i32 = arith.constant 0 : i32
    %c0_i32_0 = arith.constant 0 : i32
    %c0_i32_1 = arith.constant 0 : i32
    return %c0_i32, %c0_i32_0 : i32, i32
  }
  func.func @transform_4(%arg0: i32, %arg1: i32) -> (i32, i32) {
    %c0_i32 = arith.constant 0 : i32
    %c0_i32_0 = arith.constant 0 : i32
    %c0_i32_1 = arith.constant 0 : i32
    return %c0_i32, %c0_i32_0 : i32, i32
  }
  func.func @transform_5(%arg0: i32, %arg1: i32) -> (i32, i32) {
    %c0_i32 = arith.constant 0 : i32
    %c0_i32_0 = arith.constant 0 : i32
    return %arg0, %c0_i32 : i32, i32
  }
}

</mosaic_0001>

<llo_original>
// kernel: tpu_custom_call.1
$region0: #{tpu_custom_call.1}
  #allocation0 [shape = 'u32[]', space=smem, size = 0x4, offset = 0x4, fixed_abs, tag = 'smem constant byte address 0x4 - core index']
  #allocation1 [shape = 'u32[144,128]{1,0:T(1,128)}', space=vmem, size = 0x12000, scoped, tag = 'internal scratch']
  #allocation2 [shape = 'f32[2,512]{1,0:T(2,128)}', space=vmem, size = 0x1000, scoped, tag = 'scratch operand']
  %s0 = inlined_call_operand.vmem [shape: f32[2,2048,64], index: 0, kind: input, shape index: {}]
  %s1 = inlined_call_operand.vmem [shape: bf16[2048,512], index: 1, kind: input, shape index: {}]
  %s2 = inlined_call_operand.vmem [shape: f32[1,512], index: 2, kind: input, shape index: {}]
  %s3 = inlined_call_operand.vmem [shape: bf16[512,128], index: 3, kind: input, shape index: {}]
  %s4 = inlined_call_operand.vmem [shape: f32[1,128], index: 4, kind: input, shape index: {}]
  %s5 = inlined_call_operand.hbm [shape: f32[2,128], index: 5, kind: output, shape index: {}]
  %s6 = sld [smem:[#allocation0]]
  $region38: #{tpu_custom_call.1} parent=0
    _
  %s8 = ssub.s32 1, %s6
  %s9 = scalar_select 0, %s8, %s6
  $region1: #{tpu_custom_call.1} parent=0
    #allocation3 [shape = 'u8[1024]{0}', space=vmem, size = 0x400, scoped, tag = 'output window, operand 0, single buffered']
    #allocation4 [shape = 's32[1]{0}', space=sflag, size = 0x4, scoped, tag = 'scoped memory for tpu_custom_call.1']
    %10 = vsyncpa [#allocation4], 0
    // Predicated region
    $region2: #{tpu_custom_call.1} parent=1 // pred_check
      _
    $region3: #{tpu_custom_call.1} parent=1 // pred_check_branch
      %12 = sbr.rel (0) target = $region5
    $region4: #{tpu_custom_call.1} parent=1 // pred_region
      _
    $region5: #{tpu_custom_call.1} parent=1 // pred_fallthru
      _
    // Predicated region
    $region6: #{tpu_custom_call.1} parent=1 // pred_check
      _
    $region7: #{tpu_custom_call.1} parent=1 // pred_check_branch
      %14 = sbr.rel (0) target = $region9
    $region8: #{tpu_custom_call.1} parent=1 // pred_region
      _
    $region9: #{tpu_custom_call.1} parent=1 // pred_fallthru
      _
    // Predicated region
    $region10: #{tpu_custom_call.1} parent=1 // pred_check
      _
    $region11: #{tpu_custom_call.1} parent=1 // pred_check_branch
      %16 = sbr.rel (0) target = $region13
    $region12: #{tpu_custom_call.1} parent=1 // pred_region
      _
    $region13: #{tpu_custom_call.1} parent=1 // pred_fallthru
      _
    // Predicated region
    $region14: #{tpu_custom_call.1} parent=1 // pred_check
      _
    $region15: #{tpu_custom_call.1} parent=1 // pred_check_branch
      %18 = sbr.rel (0) target = $region17
    $region16: #{tpu_custom_call.1} parent=1 // pred_region
      _
    $region17: #{tpu_custom_call.1} parent=1 // pred_fallthru
      _
    // Predicated region
    $region18: #{tpu_custom_call.1} parent=1 // pred_check
      _
    $region19: #{tpu_custom_call.1} parent=1 // pred_check_branch
      %20 = sbr.rel (0) target = $region21
    $region20: #{tpu_custom_call.1} parent=1 // pred_region
      _
    $region21: #{tpu_custom_call.1} parent=1 // pred_fallthru
      _
    %p22 = scmp.eq.s32.totalorder 0, 0
    // Predicated region
    $region22: #{tpu_custom_call.1} parent=1 // pred_check
      %p23 = pneg %p22
    $region23: #{tpu_custom_call.1} parent=1 // pred_check_branch
      %25 = sbr.rel (%p23) target = $region25
    $region24: #{tpu_custom_call.1} parent=1 // pred_region
      %26 = vst [vmem:[#allocation2] sm:$0xff] 0.0
    $region25: #{tpu_custom_call.1} parent=1 // pred_fallthru
      _
    %v27 = vld [vmem:[%s0] sm:$0xff]
    %v28 = vld [vmem:[%s0 + $0x8] sm:$0xff]
    %v29 = vld [vmem:[%s0 + $0x10] sm:$0xff]
    %v30 = vld [vmem:[%s0 + $0x18] sm:$0xff]
    %v31 = vld [vmem:[%s0 + $0x20] sm:$0xff]
    %v32 = vld [vmem:[%s0 + $0x28] sm:$0xff]
    %v33 = vld [vmem:[%s0 + $0x30] sm:$0xff]
    %v34 = vld [vmem:[%s0 + $0x38] sm:$0xff]
    %v35 = vld [vmem:[%s0 + $0x40] sm:$0xff]
    %v36 = vld [vmem:[%s0 + $0x48] sm:$0xff]
    %v37 = vld [vmem:[%s0 + $0x50] sm:$0xff]
    %v38 = vld [vmem:[%s0 + $0x58] sm:$0xff]
    %v39 = vld [vmem:[%s0 + $0x60] sm:$0xff]
    %v40 = vld [vmem:[%s0 + $0x68] sm:$0xff]
    %v41 = vld [vmem:[%s0 + $0x70] sm:$0xff]
    %v42 = vld [vmem:[%s0 + $0x78] sm:$0xff]
    %v43 = vld [vmem:[%s0 + $0x80] sm:$0xff]
    %v44 = vld [vmem:[%s0 + $0x88] sm:$0xff]
    %v45 = vld [vmem:[%s0 + $0x90] sm:$0xff]
    %v46 = vld [vmem:[%s0 + $0x98] sm:$0xff]
    %v47 = vld [vmem:[%s0 + $0xa0] sm:$0xff]
    %v48 = vld [vmem:[%s0 + $0xa8] sm:$0xff]
    %v49 = vld [vmem:[%s0 + $0xb0] sm:$0xff]
    %v50 = vld [vmem:[%s0 + $0xb8] sm:$0xff]
    %v51 = vld [vmem:[%s0 + $0xc0] sm:$0xff]
    %v52 = vld [vmem:[%s0 + $0xc8] sm:$0xff]
    %v53 = vld [vmem:[%s0 + $0xd0] sm:$0xff]
    %v54 = vld [vmem:[%s0 + $0xd8] sm:$0xff]
    %v55 = vld [vmem:[%s0 + $0xe0] sm:$0xff]
    %v56 = vld [vmem:[%s0 + $0xe8] sm:$0xff]
    %v57 = vld [vmem:[%s0 + $0xf0] sm:$0xff]
    %v58 = vld [vmem:[%s0 + $0xf8] sm:$0xff]
    %v59 = vld [vmem:[%s0 + $0x100] sm:$0xff]
    %v60 = vld [vmem:[%s0 + $0x108] sm:$0xff]
    %v61 = vld [vmem:[%s0 + $0x110] sm:$0xff]
    %v62 = vld [vmem:[%s0 + $0x118] sm:$0xff]
    %v63 = vld [vmem:[%s0 + $0x120] sm:$0xff]
    %v64 = vld [vmem:[%s0 + $0x128] sm:$0xff]
    %v65 = vld [vmem:[%s0 + $0x130] sm:$0xff]
    %v66 = vld [vmem:[%s0 + $0x138] sm:$0xff]
    %v67 = vld [vmem:[%s0 + $0x140] sm:$0xff]
    %v68 = vld [vmem:[%s0 + $0x148] sm:$0xff]
    %v69 = vld [vmem:[%s0 + $0x150] sm:$0xff]
    %v70 = vld [vmem:[%s0 + $0x158] sm:$0xff]
    %v71 = vld [vmem:[%s0 + $0x160] sm:$0xff]
    %v72 = vld [vmem:[%s0 + $0x168] sm:$0xff]
    %v73 = vld [vmem:[%s0 + $0x170] sm:$0xff]
    %v74 = vld [vmem:[%s0 + $0x178] sm:$0xff]
    %v75 = vld [vmem:[%s0 + $0x180] sm:$0xff]
    %v76 = vld [vmem:[%s0 + $0x188] sm:$0xff]
    %v77 = vld [vmem:[%s0 + $0x190] sm:$0xff]
    %v78 = vld [vmem:[%s0 + $0x198] sm:$0xff]
    %v79 = vld [vmem:[%s0 + $0x1a0] sm:$0xff]
    %v80 = vld [vmem:[%s0 + $0x1a8] sm:$0xff]
    %v81 = vld [vmem:[%s0 + $0x1b0] sm:$0xff]
    %v82 = vld [vmem:[%s0 + $0x1b8] sm:$0xff]
    %v83 = vld [vmem:[%s0 + $0x1c0] sm:$0xff]
    %v84 = vld [vmem:[%s0 + $0x1c8] sm:$0xff]
    %v85 = vld [vmem:[%s0 + $0x1d0] sm:$0xff]
    %v86 = vld [vmem:[%s0 + $0x1d8] sm:$0xff]
    %v87 = vld [vmem:[%s0 + $0x1e0] sm:$0xff]
    %v88 = vld [vmem:[%s0 + $0x1e8] sm:$0xff]
    %v89 = vld [vmem:[%s0 + $0x1f0] sm:$0xff]
    %v90 = vld [vmem:[%s0 + $0x1f8] sm:$0xff]
    %v91 = vld [vmem:[%s0 + $0x200] sm:$0xff]
    %v92 = vld [vmem:[%s0 + $0x208] sm:$0xff]
    %v93 = vld [vmem:[%s0 + $0x210] sm:$0xff]
    %v94 = vld [vmem:[%s0 + $0x218] sm:$0xff]
    %v95 = vld [vmem:[%s0 + $0x220] sm:$0xff]
    %v96 = vld [vmem:[%s0 + $0x228] sm:$0xff]
    %v97 = vld [vmem:[%s0 + $0x230] sm:$0xff]
    %v98 = vld [vmem:[%s0 + $0x238] sm:$0xff]
    %v99 = vld [vmem:[%s0 + $0x240] sm:$0xff]
    %v100 = vld [vmem:[%s0 + $0x248] sm:$0xff]
    %v101 = vld [vmem:[%s0 + $0x250] sm:$0xff]
    %v102 = vld [vmem:[%s0 + $0x258] sm:$0xff]
    %v103 = vld [vmem:[%s0 + $0x260] sm:$0xff]
    %v104 = vld [vmem:[%s0 + $0x268] sm:$0xff]
    %v105 = vld [vmem:[%s0 + $0x270] sm:$0xff]
    %v106 = vld [vmem:[%s0 + $0x278] sm:$0xff]
    %v107 = vld [vmem:[%s0 + $0x280] sm:$0xff]
    %v108 = vld [vmem:[%s0 + $0x288] sm:$0xff]
    %v109 = vld [vmem:[%s0 + $0x290] sm:$0xff]
    %v110 = vld [vmem:[%s0 + $0x298] sm:$0xff]
    %v111 = vld [vmem:[%s0 + $0x2a0] sm:$0xff]
    %v112 = vld [vmem:[%s0 + $0x2a8] sm:$0xff]
    %v113 = vld [vmem:[%s0 + $0x2b0] sm:$0xff]
    %v114 = vld [vmem:[%s0 + $0x2b8] sm:$0xff]
    %v115 = vld [vmem:[%s0 + $0x2c0] sm:$0xff]
    %v116 = vld [vmem:[%s0 + $0x2c8] sm:$0xff]
    %v117 = vld [vmem:[%s0 + $0x2d0] sm:$0xff]
    %v118 = vld [vmem:[%s0 + $0x2d8] sm:$0xff]
    %v119 = vld [vmem:[%s0 + $0x2e0] sm:$0xff]
    %v120 = vld [vmem:[%s0 + $0x2e8] sm:$0xff]
    %v121 = vld [vmem:[%s0 + $0x2f0] sm:$0xff]
    %v122 = vld [vmem:[%s0 + $0x2f8] sm:$0xff]
    %v123 = vld [vmem:[%s0 + $0x300] sm:$0xff]
    %v124 = vld [vmem:[%s0 + $0x308] sm:$0xff]
    %v125 = vld [vmem:[%s0 + $0x310] sm:$0xff]
    %v126 = vld [vmem:[%s0 + $0x318] sm:$0xff]
    %v127 = vld [vmem:[%s0 + $0x320] sm:$0xff]
    %v128 = vld [vmem:[%s0 + $0x328] sm:$0xff]
    %v129 = vld [vmem:[%s0 + $0x330] sm:$0xff]
    %v130 = vld [vmem:[%s0 + $0x338] sm:$0xff]
    %v131 = vld [vmem:[%s0 + $0x340] sm:$0xff]
    %v132 = vld [vmem:[%s0 + $0x348] sm:$0xff]
    %v133 = vld [vmem:[%s0 + $0x350] sm:$0xff]
    %v134 = vld [vmem:[%s0 + $0x358] sm:$0xff]
    %v135 = vld [vmem:[%s0 + $0x360] sm:$0xff]
    %v136 = vld [vmem:[%s0 + $0x368] sm:$0xff]
    %v137 = vld [vmem:[%s0 + $0x370] sm:$0xff]
    %v138 = vld [vmem:[%s0 + $0x378] sm:$0xff]
    %v139 = vld [vmem:[%s0 + $0x380] sm:$0xff]
    %v140 = vld [vmem:[%s0 + $0x388] sm:$0xff]
    %v141 = vld [vmem:[%s0 + $0x390] sm:$0xff]
    %v142 = vld [vmem:[%s0 + $0x398] sm:$0xff]
    %v143 = vld [vmem:[%s0 + $0x3a0] sm:$0xff]
    %v144 = vld [vmem:[%s0 + $0x3a8] sm:$0xff]
    %v145 = vld [vmem:[%s0 + $0x3b0] sm:$0xff]
    %v146 = vld [vmem:[%s0 + $0x3b8] sm:$0xff]
    %v147 = vld [vmem:[%s0 + $0x3c0] sm:$0xff]
    %v148 = vld [vmem:[%s0 + $0x3c8] sm:$0xff]
    %v149 = vld [vmem:[%s0 + $0x3d0] sm:$0xff]
    %v150 = vld [vmem:[%s0 + $0x3d8] sm:$0xff]
    %v151 = vld [vmem:[%s0 + $0x3e0] sm:$0xff]
    %v152 = vld [vmem:[%s0 + $0x3e8] sm:$0xff]
    %v153 = vld [vmem:[%s0 + $0x3f0] sm:$0xff]
    %v154 = vld [vmem:[%s0 + $0x3f8] sm:$0xff]
    %v155 = vld [vmem:[%s0 + $0x400] sm:$0xff]
    %v156 = vld [vmem:[%s0 + $0x408] sm:$0xff]
    %v157 = vld [vmem:[%s0 + $0x410] sm:$0xff]
    %v158 = vld [vmem:[%s0 + $0x418] sm:$0xff]
    %v159 = vld [vmem:[%s0 + $0x420] sm:$0xff]
    %v160 = vld [vmem:[%s0 + $0x428] sm:$0xff]
    %v161 = vld [vmem:[%s0 + $0x430] sm:$0xff]
    %v162 = vld [vmem:[%s0 + $0x438] sm:$0xff]
    %v163 = vld [vmem:[%s0 + $0x440] sm:$0xff]
    %v164 = vld [vmem:[%s0 + $0x448] sm:$0xff]
    %v165 = vld [vmem:[%s0 + $0x450] sm:$0xff]
    %v166 = vld [vmem:[%s0 + $0x458] sm:$0xff]
    %v167 = vld [vmem:[%s0 + $0x460] sm:$0xff]
    %v168 = vld [vmem:[%s0 + $0x468] sm:$0xff]
    %v169 = vld [vmem:[%s0 + $0x470] sm:$0xff]
    %v170 = vld [vmem:[%s0 + $0x478] sm:$0xff]
    %v171 = vld [vmem:[%s0 + $0x480] sm:$0xff]
    %v172 = vld [vmem:[%s0 + $0x488] sm:$0xff]
    %v173 = vld [vmem:[%s0 + $0x490] sm:$0xff]
    %v174 = vld [vmem:[%s0 + $0x498] sm:$0xff]
    %v175 = vld [vmem:[%s0 + $0x4a0] sm:$0xff]
    %v176 = vld [vmem:[%s0 + $0x4a8] sm:$0xff]
    %v177 = vld [vmem:[%s0 + $0x4b0] sm:$0xff]
    %v178 = vld [vmem:[%s0 + $0x4b8] sm:$0xff]
    %v179 = vld [vmem:[%s0 + $0x4c0] sm:$0xff]
    %v180 = vld [vmem:[%s0 + $0x4c8] sm:$0xff]
    %v181 = vld [vmem:[%s0 + $0x4d0] sm:$0xff]
    %v182 = vld [vmem:[%s0 + $0x4d8] sm:$0xff]
    %v183 = vld [vmem:[%s0 + $0x4e0] sm:$0xff]
    %v184 = vld [vmem:[%s0 + $0x4e8] sm:$0xff]
    %v185 = vld [vmem:[%s0 + $0x4f0] sm:$0xff]
    %v186 = vld [vmem:[%s0 + $0x4f8] sm:$0xff]
    %v187 = vld [vmem:[%s0 + $0x500] sm:$0xff]
    %v188 = vld [vmem:[%s0 + $0x508] sm:$0xff]
    %v189 = vld [vmem:[%s0 + $0x510] sm:$0xff]
    %v190 = vld [vmem:[%s0 + $0x518] sm:$0xff]
    %v191 = vld [vmem:[%s0 + $0x520] sm:$0xff]
    %v192 = vld [vmem:[%s0 + $0x528] sm:$0xff]
    %v193 = vld [vmem:[%s0 + $0x530] sm:$0xff]
    %v194 = vld [vmem:[%s0 + $0x538] sm:$0xff]
    %v195 = vld [vmem:[%s0 + $0x540] sm:$0xff]
    %v196 = vld [vmem:[%s0 + $0x548] sm:$0xff]
    %v197 = vld [vmem:[%s0 + $0x550] sm:$0xff]
    %v198 = vld [vmem:[%s0 + $0x558] sm:$0xff]
    %v199 = vld [vmem:[%s0 + $0x560] sm:$0xff]
    %v200 = vld [vmem:[%s0 + $0x568] sm:$0xff]
    %v201 = vld [vmem:[%s0 + $0x570] sm:$0xff]
    %v202 = vld [vmem:[%s0 + $0x578] sm:$0xff]
    %v203 = vld [vmem:[%s0 + $0x580] sm:$0xff]
    %v204 = vld [vmem:[%s0 + $0x588] sm:$0xff]
    %v205 = vld [vmem:[%s0 + $0x590] sm:$0xff]
    %v206 = vld [vmem:[%s0 + $0x598] sm:$0xff]
    %v207 = vld [vmem:[%s0 + $0x5a0] sm:$0xff]
    %v208 = vld [vmem:[%s0 + $0x5a8] sm:$0xff]
    %v209 = vld [vmem:[%s0 + $0x5b0] sm:$0xff]
    %v210 = vld [vmem:[%s0 + $0x5b8] sm:$0xff]
    %v211 = vld [vmem:[%s0 + $0x5c0] sm:$0xff]
    %v212 = vld [vmem:[%s0 + $0x5c8] sm:$0xff]
    %v213 = vld [vmem:[%s0 + $0x5d0] sm:$0xff]
    %v214 = vld [vmem:[%s0 + $0x5d8] sm:$0xff]
    %v215 = vld [vmem:[%s0 + $0x5e0] sm:$0xff]
    %v216 = vld [vmem:[%s0 + $0x5e8] sm:$0xff]
    %v217 = vld [vmem:[%s0 + $0x5f0] sm:$0xff]
    %v218 = vld [vmem:[%s0 + $0x5f8] sm:$0xff]
    %v219 = vld [vmem:[%s0 + $0x600] sm:$0xff]
    %v220 = vld [vmem:[%s0 + $0x608] sm:$0xff]
    %v221 = vld [vmem:[%s0 + $0x610] sm:$0xff]
    %v222 = vld [vmem:[%s0 + $0x618] sm:$0xff]
    %v223 = vld [vmem:[%s0 + $0x620] sm:$0xff]
    %v224 = vld [vmem:[%s0 + $0x628] sm:$0xff]
    %v225 = vld [vmem:[%s0 + $0x630] sm:$0xff]
    %v226 = vld [vmem:[%s0 + $0x638] sm:$0xff]
    %v227 = vld [vmem:[%s0 + $0x640] sm:$0xff]
    %v228 = vld [vmem:[%s0 + $0x648] sm:$0xff]
    %v229 = vld [vmem:[%s0 + $0x650] sm:$0xff]
    %v230 = vld [vmem:[%s0 + $0x658] sm:$0xff]
    %v231 = vld [vmem:[%s0 + $0x660] sm:$0xff]
    %v232 = vld [vmem:[%s0 + $0x668] sm:$0xff]
    %v233 = vld [vmem:[%s0 + $0x670] sm:$0xff]
    %v234 = vld [vmem:[%s0 + $0x678] sm:$0xff]
    %v235 = vld [vmem:[%s0 + $0x680] sm:$0xff]
    %v236 = vld [vmem:[%s0 + $0x688] sm:$0xff]
    %v237 = vld [vmem:[%s0 + $0x690] sm:$0xff]
    %v238 = vld [vmem:[%s0 + $0x698] sm:$0xff]
    %v239 = vld [vmem:[%s0 + $0x6a0] sm:$0xff]
    %v240 = vld [vmem:[%s0 + $0x6a8] sm:$0xff]
    %v241 = vld [vmem:[%s0 + $0x6b0] sm:$0xff]
    %v242 = vld [vmem:[%s0 + $0x6b8] sm:$0xff]
    %v243 = vld [vmem:[%s0 + $0x6c0] sm:$0xff]
    %v244 = vld [vmem:[%s0 + $0x6c8] sm:$0xff]
    %v245 = vld [vmem:[%s0 + $0x6d0] sm:$0xff]
    %v246 = vld [vmem:[%s0 + $0x6d8] sm:$0xff]
    %v247 = vld [vmem:[%s0 + $0x6e0] sm:$0xff]
    %v248 = vld [vmem:[%s0 + $0x6e8] sm:$0xff]
    %v249 = vld [vmem:[%s0 + $0x6f0] sm:$0xff]
    %v250 = vld [vmem:[%s0 + $0x6f8] sm:$0xff]
    %v251 = vld [vmem:[%s0 + $0x700] sm:$0xff]
    %v252 = vld [vmem:[%s0 + $0x708] sm:$0xff]
    %v253 = vld [vmem:[%s0 + $0x710] sm:$0xff]
    %v254 = vld [vmem:[%s0 + $0x718] sm:$0xff]
    %v255 = vld [vmem:[%s0 + $0x720] sm:$0xff]
    %v256 = vld [vmem:[%s0 + $0x728] sm:$0xff]
    %v257 = vld [vmem:[%s0 + $0x730] sm:$0xff]
    %v258 = vld [vmem:[%s0 + $0x738] sm:$0xff]
    %v259 = vld [vmem:[%s0 + $0x740] sm:$0xff]
    %v260 = vld [vmem:[%s0 + $0x748] sm:$0xff]
    %v261 = vld [vmem:[%s0 + $0x750] sm:$0xff]
    %v262 = vld [vmem:[%s0 + $0x758] sm:$0xff]
    %v263 = vld [vmem:[%s0 + $0x760] sm:$0xff]
    %v264 = vld [vmem:[%s0 + $0x768] sm:$0xff]
    %v265 = vld [vmem:[%s0 + $0x770] sm:$0xff]
    %v266 = vld [vmem:[%s0 + $0x778] sm:$0xff]
    %v267 = vld [vmem:[%s0 + $0x780] sm:$0xff]
    %v268 = vld [vmem:[%s0 + $0x788] sm:$0xff]
    %v269 = vld [vmem:[%s0 + $0x790] sm:$0xff]
    %v270 = vld [vmem:[%s0 + $0x798] sm:$0xff]
    %v271 = vld [vmem:[%s0 + $0x7a0] sm:$0xff]
    %v272 = vld [vmem:[%s0 + $0x7a8] sm:$0xff]
    %v273 = vld [vmem:[%s0 + $0x7b0] sm:$0xff]
    %v274 = vld [vmem:[%s0 + $0x7b8] sm:$0xff]
    %v275 = vld [vmem:[%s0 + $0x7c0] sm:$0xff]
    %v276 = vld [vmem:[%s0 + $0x7c8] sm:$0xff]
    %v277 = vld [vmem:[%s0 + $0x7d0] sm:$0xff]
    %v278 = vld [vmem:[%s0 + $0x7d8] sm:$0xff]
    %v279 = vld [vmem:[%s0 + $0x7e0] sm:$0xff]
    %v280 = vld [vmem:[%s0 + $0x7e8] sm:$0xff]
    %v281 = vld [vmem:[%s0 + $0x7f0] sm:$0xff]
    %v282 = vld [vmem:[%s0 + $0x7f8] sm:$0xff]
    %v283 = vld [vmem:[%s0 + $0x800] sm:$0xff]
    %v284 = vld [vmem:[%s0 + $0x808] sm:$0xff]
    %v285 = vld [vmem:[%s0 + $0x810] sm:$0xff]
    %v286 = vld [vmem:[%s0 + $0x818] sm:$0xff]
    %v287 = vld [vmem:[%s0 + $0x820] sm:$0xff]
    %v288 = vld [vmem:[%s0 + $0x828] sm:$0xff]
    %v289 = vld [vmem:[%s0 + $0x830] sm:$0xff]
    %v290 = vld [vmem:[%s0 + $0x838] sm:$0xff]
    %v291 = vld [vmem:[%s0 + $0x840] sm:$0xff]
    %v292 = vld [vmem:[%s0 + $0x848] sm:$0xff]
    %v293 = vld [vmem:[%s0 + $0x850] sm:$0xff]
    %v294 = vld [vmem:[%s0 + $0x858] sm:$0xff]
    %v295 = vld [vmem:[%s0 + $0x860] sm:$0xff]
    %v296 = vld [vmem:[%s0 + $0x868] sm:$0xff]
    %v297 = vld [vmem:[%s0 + $0x870] sm:$0xff]
    %v298 = vld [vmem:[%s0 + $0x878] sm:$0xff]
    %v299 = vld [vmem:[%s0 + $0x880] sm:$0xff]
    %v300 = vld [vmem:[%s0 + $0x888] sm:$0xff]
    %v301 = vld [vmem:[%s0 + $0x890] sm:$0xff]
    %v302 = vld [vmem:[%s0 + $0x898] sm:$0xff]
    %v303 = vld [vmem:[%s0 + $0x8a0] sm:$0xff]
    %v304 = vld [vmem:[%s0 + $0x8a8] sm:$0xff]
    %v305 = vld [vmem:[%s0 + $0x8b0] sm:$0xff]
    %v306 = vld [vmem:[%s0 + $0x8b8] sm:$0xff]
    %v307 = vld [vmem:[%s0 + $0x8c0] sm:$0xff]
    %v308 = vld [vmem:[%s0 + $0x8c8] sm:$0xff]
    %v309 = vld [vmem:[%s0 + $0x8d0] sm:$0xff]
    %v310 = vld [vmem:[%s0 + $0x8d8] sm:$0xff]
    %v311 = vld [vmem:[%s0 + $0x8e0] sm:$0xff]
    %v312 = vld [vmem:[%s0 + $0x8e8] sm:$0xff]
    %v313 = vld [vmem:[%s0 + $0x8f0] sm:$0xff]
    %v314 = vld [vmem:[%s0 + $0x8f8] sm:$0xff]
    %v315 = vld [vmem:[%s0 + $0x900] sm:$0xff]
    %v316 = vld [vmem:[%s0 + $0x908] sm:$0xff]
    %v317 = vld [vmem:[%s0 + $0x910] sm:$0xff]
    %v318 = vld [vmem:[%s0 + $0x918] sm:$0xff]
    %v319 = vld [vmem:[%s0 + $0x920] sm:$0xff]
    %v320 = vld [vmem:[%s0 + $0x928] sm:$0xff]
    %v321 = vld [vmem:[%s0 + $0x930] sm:$0xff]
    %v322 = vld [vmem:[%s0 + $0x938] sm:$0xff]
    %v323 = vld [vmem:[%s0 + $0x940] sm:$0xff]
    %v324 = vld [vmem:[%s0 + $0x948] sm:$0xff]
    %v325 = vld [vmem:[%s0 + $0x950] sm:$0xff]
    %v326 = vld [vmem:[%s0 + $0x958] sm:$0xff]
    %v327 = vld [vmem:[%s0 + $0x960] sm:$0xff]
    %v328 = vld [vmem:[%s0 + $0x968] sm:$0xff]
    %v329 = vld [vmem:[%s0 + $0x970] sm:$0xff]
    %v330 = vld [vmem:[%s0 + $0x978] sm:$0xff]
    %v331 = vld [vmem:[%s0 + $0x980] sm:$0xff]
    %v332 = vld [vmem:[%s0 + $0x988] sm:$0xff]
    %v333 = vld [vmem:[%s0 + $0x990] sm:$0xff]
    %v334 = vld [vmem:[%s0 + $0x998] sm:$0xff]
    %v335 = vld [vmem:[%s0 + $0x9a0] sm:$0xff]
    %v336 = vld [vmem:[%s0 + $0x9a8] sm:$0xff]
    %v337 = vld [vmem:[%s0 + $0x9b0] sm:$0xff]
    %v338 = vld [vmem:[%s0 + $0x9b8] sm:$0xff]
    %v339 = vld [vmem:[%s0 + $0x9c0] sm:$0xff]
    %v340 = vld [vmem:[%s0 + $0x9c8] sm:$0xff]
    %v341 = vld [vmem:[%s0 + $0x9d0] sm:$0xff]
    %v342 = vld [vmem:[%s0 + $0x9d8] sm:$0xff]
    %v343 = vld [vmem:[%s0 + $0x9e0] sm:$0xff]
    %v344 = vld [vmem:[%s0 + $0x9e8] sm:$0xff]
    %v345 = vld [vmem:[%s0 + $0x9f0] sm:$0xff]
    %v346 = vld [vmem:[%s0 + $0x9f8] sm:$0xff]
    %v347 = vld [vmem:[%s0 + $0xa00] sm:$0xff]
    %v348 = vld [vmem:[%s0 + $0xa08] sm:$0xff]
    %v349 = vld [vmem:[%s0 + $0xa10] sm:$0xff]
    %v350 = vld [vmem:[%s0 + $0xa18] sm:$0xff]
    %v351 = vld [vmem:[%s0 + $0xa20] sm:$0xff]
    %v352 = vld [vmem:[%s0 + $0xa28] sm:$0xff]
    %v353 = vld [vmem:[%s0 + $0xa30] sm:$0xff]
    %v354 = vld [vmem:[%s0 + $0xa38] sm:$0xff]
    %v355 = vld [vmem:[%s0 + $0xa40] sm:$0xff]
    %v356 = vld [vmem:[%s0 + $0xa48] sm:$0xff]
    %v357 = vld [vmem:[%s0 + $0xa50] sm:$0xff]
    %v358 = vld [vmem:[%s0 + $0xa58] sm:$0xff]
    %v359 = vld [vmem:[%s0 + $0xa60] sm:$0xff]
    %v360 = vld [vmem:[%s0 + $0xa68] sm:$0xff]
    %v361 = vld [vmem:[%s0 + $0xa70] sm:$0xff]
    %v362 = vld [vmem:[%s0 + $0xa78] sm:$0xff]
    %v363 = vld [vmem:[%s0 + $0xa80] sm:$0xff]
    %v364 = vld [vmem:[%s0 + $0xa88] sm:$0xff]
    %v365 = vld [vmem:[%s0 + $0xa90] sm:$0xff]
    %v366 = vld [vmem:[%s0 + $0xa98] sm:$0xff]
    %v367 = vld [vmem:[%s0 + $0xaa0] sm:$0xff]
    %v368 = vld [vmem:[%s0 + $0xaa8] sm:$0xff]
    %v369 = vld [vmem:[%s0 + $0xab0] sm:$0xff]
    %v370 = vld [vmem:[%s0 + $0xab8] sm:$0xff]
    %v371 = vld [vmem:[%s0 + $0xac0] sm:$0xff]
    %v372 = vld [vmem:[%s0 + $0xac8] sm:$0xff]
    %v373 = vld [vmem:[%s0 + $0xad0] sm:$0xff]
    %v374 = vld [vmem:[%s0 + $0xad8] sm:$0xff]
    %v375 = vld [vmem:[%s0 + $0xae0] sm:$0xff]
    %v376 = vld [vmem:[%s0 + $0xae8] sm:$0xff]
    %v377 = vld [vmem:[%s0 + $0xaf0] sm:$0xff]
    %v378 = vld [vmem:[%s0 + $0xaf8] sm:$0xff]
    %v379 = vld [vmem:[%s0 + $0xb00] sm:$0xff]
    %v380 = vld [vmem:[%s0 + $0xb08] sm:$0xff]
    %v381 = vld [vmem:[%s0 + $0xb10] sm:$0xff]
    %v382 = vld [vmem:[%s0 + $0xb18] sm:$0xff]
    %v383 = vld [vmem:[%s0 + $0xb20] sm:$0xff]
    %v384 = vld [vmem:[%s0 + $0xb28] sm:$0xff]
    %v385 = vld [vmem:[%s0 + $0xb30] sm:$0xff]
    %v386 = vld [vmem:[%s0 + $0xb38] sm:$0xff]
    %v387 = vld [vmem:[%s0 + $0xb40] sm:$0xff]
    %v388 = vld [vmem:[%s0 + $0xb48] sm:$0xff]
    %v389 = vld [vmem:[%s0 + $0xb50] sm:$0xff]
    %v390 = vld [vmem:[%s0 + $0xb58] sm:$0xff]
    %v391 = vld [vmem:[%s0 + $0xb60] sm:$0xff]
    %v392 = vld [vmem:[%s0 + $0xb68] sm:$0xff]
    %v393 = vld [vmem:[%s0 + $0xb70] sm:$0xff]
    %v394 = vld [vmem:[%s0 + $0xb78] sm:$0xff]
    %v395 = vld [vmem:[%s0 + $0xb80] sm:$0xff]
    %v396 = vld [vmem:[%s0 + $0xb88] sm:$0xff]
    %v397 = vld [vmem:[%s0 + $0xb90] sm:$0xff]
    %v398 = vld [vmem:[%s0 + $0xb98] sm:$0xff]
    %v399 = vld [vmem:[%s0 + $0xba0] sm:$0xff]
    %v400 = vld [vmem:[%s0 + $0xba8] sm:$0xff]
    %v401 = vld [vmem:[%s0 + $0xbb0] sm:$0xff]
    %v402 = vld [vmem:[%s0 + $0xbb8] sm:$0xff]
    %v403 = vld [vmem:[%s0 + $0xbc0] sm:$0xff]
    %v404 = vld [vmem:[%s0 + $0xbc8] sm:$0xff]
    %v405 = vld [vmem:[%s0 + $0xbd0] sm:$0xff]
    %v406 = vld [vmem:[%s0 + $0xbd8] sm:$0xff]
    %v407 = vld [vmem:[%s0 + $0xbe0] sm:$0xff]
    %v408 = vld [vmem:[%s0 + $0xbe8] sm:$0xff]
    %v409 = vld [vmem:[%s0 + $0xbf0] sm:$0xff]
    %v410 = vld [vmem:[%s0 + $0xbf8] sm:$0xff]
    %v411 = vld [vmem:[%s0 + $0xc00] sm:$0xff]
    %v412 = vld [vmem:[%s0 + $0xc08] sm:$0xff]
    %v413 = vld [vmem:[%s0 + $0xc10] sm:$0xff]
    %v414 = vld [vmem:[%s0 + $0xc18] sm:$0xff]
    %v415 = vld [vmem:[%s0 + $0xc20] sm:$0xff]
    %v416 = vld [vmem:[%s0 + $0xc28] sm:$0xff]
    %v417 = vld [vmem:[%s0 + $0xc30] sm:$0xff]
    %v418 = vld [vmem:[%s0 + $0xc38] sm:$0xff]
    %v419 = vld [vmem:[%s0 + $0xc40] sm:$0xff]
    %v420 = vld [vmem:[%s0 + $0xc48] sm:$0xff]
    %v421 = vld [vmem:[%s0 + $0xc50] sm:$0xff]
    %v422 = vld [vmem:[%s0 + $0xc58] sm:$0xff]
    %v423 = vld [vmem:[%s0 + $0xc60] sm:$0xff]
    %v424 = vld [vmem:[%s0 + $0xc68] sm:$0xff]
    %v425 = vld [vmem:[%s0 + $0xc70] sm:$0xff]
    %v426 = vld [vmem:[%s0 + $0xc78] sm:$0xff]
    %v427 = vld [vmem:[%s0 + $0xc80] sm:$0xff]
    %v428 = vld [vmem:[%s0 + $0xc88] sm:$0xff]
    %v429 = vld [vmem:[%s0 + $0xc90] sm:$0xff]
    %v430 = vld [vmem:[%s0 + $0xc98] sm:$0xff]
    %v431 = vld [vmem:[%s0 + $0xca0] sm:$0xff]
    %v432 = vld [vmem:[%s0 + $0xca8] sm:$0xff]
    %v433 = vld [vmem:[%s0 + $0xcb0] sm:$0xff]
    %v434 = vld [vmem:[%s0 + $0xcb8] sm:$0xff]
    %v435 = vld [vmem:[%s0 + $0xcc0] sm:$0xff]
    %v436 = vld [vmem:[%s0 + $0xcc8] sm:$0xff]
    %v437 = vld [vmem:[%s0 + $0xcd0] sm:$0xff]
    %v438 = vld [vmem:[%s0 + $0xcd8] sm:$0xff]
    %v439 = vld [vmem:[%s0 + $0xce0] sm:$0xff]
    %v440 = vld [vmem:[%s0 + $0xce8] sm:$0xff]
    %v441 = vld [vmem:[%s0 + $0xcf0] sm:$0xff]
    %v442 = vld [vmem:[%s0 + $0xcf8] sm:$0xff]
    %v443 = vld [vmem:[%s0 + $0xd00] sm:$0xff]
    %v444 = vld [vmem:[%s0 + $0xd08] sm:$0xff]
    %v445 = vld [vmem:[%s0 + $0xd10] sm:$0xff]
    %v446 = vld [vmem:[%s0 + $0xd18] sm:$0xff]
    %v447 = vld [vmem:[%s0 + $0xd20] sm:$0xff]
    %v448 = vld [vmem:[%s0 + $0xd28] sm:$0xff]
    %v449 = vld [vmem:[%s0 + $0xd30] sm:$0xff]
    %v450 = vld [vmem:[%s0 + $0xd38] sm:$0xff]
    %v451 = vld [vmem:[%s0 + $0xd40] sm:$0xff]
    %v452 = vld [vmem:[%s0 + $0xd48] sm:$0xff]
    %v453 = vld [vmem:[%s0 + $0xd50] sm:$0xff]
    %v454 = vld [vmem:[%s0 + $0xd58] sm:$0xff]
    %v455 = vld [vmem:[%s0 + $0xd60] sm:$0xff]
    %v456 = vld [vmem:[%s0 + $0xd68] sm:$0xff]
    %v457 = vld [vmem:[%s0 + $0xd70] sm:$0xff]
    %v458 = vld [vmem:[%s0 + $0xd78] sm:$0xff]
    %v459 = vld [vmem:[%s0 + $0xd80] sm:$0xff]
    %v460 = vld [vmem:[%s0 + $0xd88] sm:$0xff]
    %v461 = vld [vmem:[%s0 + $0xd90] sm:$0xff]
    %v462 = vld [vmem:[%s0 + $0xd98] sm:$0xff]
    %v463 = vld [vmem:[%s0 + $0xda0] sm:$0xff]
    %v464 = vld [vmem:[%s0 + $0xda8] sm:$0xff]
    %v465 = vld [vmem:[%s0 + $0xdb0] sm:$0xff]
    %v466 = vld [vmem:[%s0 + $0xdb8] sm:$0xff]
    %v467 = vld [vmem:[%s0 + $0xdc0] sm:$0xff]
    %v468 = vld [vmem:[%s0 + $0xdc8] sm:$0xff]
    %v469 = vld [vmem:[%s0 + $0xdd0] sm:$0xff]
    %v470 = vld [vmem:[%s0 + $0xdd8] sm:$0xff]
    %v471 = vld [vmem:[%s0 + $0xde0] sm:$0xff]
    %v472 = vld [vmem:[%s0 + $0xde8] sm:$0xff]
    %v473 = vld [vmem:[%s0 + $0xdf0] sm:$0xff]
    %v474 = vld [vmem:[%s0 + $0xdf8] sm:$0xff]
    %v475 = vld [vmem:[%s0 + $0xe00] sm:$0xff]
    %v476 = vld [vmem:[%s0 + $0xe08] sm:$0xff]
    %v477 = vld [vmem:[%s0 + $0xe10] sm:$0xff]
    %v478 = vld [vmem:[%s0 + $0xe18] sm:$0xff]
    %v479 = vld [vmem:[%s0 + $0xe20] sm:$0xff]
    %v480 = vld [vmem:[%s0 + $0xe28] sm:$0xff]
    %v481 = vld [vmem:[%s0 + $0xe30] sm:$0xff]
    %v482 = vld [vmem:[%s0 + $0xe38] sm:$0xff]
    %v483 = vld [vmem:[%s0 + $0xe40] sm:$0xff]
    %v484 = vld [vmem:[%s0 + $0xe48] sm:$0xff]
    %v485 = vld [vmem:[%s0 + $0xe50] sm:$0xff]
    %v486 = vld [vmem:[%s0 + $0xe58] sm:$0xff]
    %v487 = vld [vmem:[%s0 + $0xe60] sm:$0xff]
    %v488 = vld [vmem:[%s0 + $0xe68] sm:$0xff]
    %v489 = vld [vmem:[%s0 + $0xe70] sm:$0xff]
    %v490 = vld [vmem:[%s0 + $0xe78] sm:$0xff]
    %v491 = vld [vmem:[%s0 + $0xe80] sm:$0xff]
    %v492 = vld [vmem:[%s0 + $0xe88] sm:$0xff]
    %v493 = vld [vmem:[%s0 + $0xe90] sm:$0xff]
    %v494 = vld [vmem:[%s0 + $0xe98] sm:$0xff]
    %v495 = vld [vmem:[%s0 + $0xea0] sm:$0xff]
    %v496 = vld [vmem:[%s0 + $0xea8] sm:$0xff]
    %v497 = vld [vmem:[%s0 + $0xeb0] sm:$0xff]
    %v498 = vld [vmem:[%s0 + $0xeb8] sm:$0xff]
    %v499 = vld [vmem:[%s0 + $0xec0] sm:$0xff]
    %v500 = vld [vmem:[%s0 + $0xec8] sm:$0xff]
    %v501 = vld [vmem:[%s0 + $0xed0] sm:$0xff]
    %v502 = vld [vmem:[%s0 + $0xed8] sm:$0xff]
    %v503 = vld [vmem:[%s0 + $0xee0] sm:$0xff]
    %v504 = vld [vmem:[%s0 + $0xee8] sm:$0xff]
    %v505 = vld [vmem:[%s0 + $0xef0] sm:$0xff]
    %v506 = vld [vmem:[%s0 + $0xef8] sm:$0xff]
    %v507 = vld [vmem:[%s0 + $0xf00] sm:$0xff]
    %v508 = vld [vmem:[%s0 + $0xf08] sm:$0xff]
    %v509 = vld [vmem:[%s0 + $0xf10] sm:$0xff]
    %v510 = vld [vmem:[%s0 + $0xf18] sm:$0xff]
    %v511 = vld [vmem:[%s0 + $0xf20] sm:$0xff]
    %v512 = vld [vmem:[%s0 + $0xf28] sm:$0xff]
    %v513 = vld [vmem:[%s0 + $0xf30] sm:$0xff]
    %v514 = vld [vmem:[%s0 + $0xf38] sm:$0xff]
    %v515 = vld [vmem:[%s0 + $0xf40] sm:$0xff]
    %v516 = vld [vmem:[%s0 + $0xf48] sm:$0xff]
    %v517 = vld [vmem:[%s0 + $0xf50] sm:$0xff]
    %v518 = vld [vmem:[%s0 + $0xf58] sm:$0xff]
    %v519 = vld [vmem:[%s0 + $0xf60] sm:$0xff]
    %v520 = vld [vmem:[%s0 + $0xf68] sm:$0xff]
    %v521 = vld [vmem:[%s0 + $0xf70] sm:$0xff]
    %v522 = vld [vmem:[%s0 + $0xf78] sm:$0xff]
    %v523 = vld [vmem:[%s0 + $0xf80] sm:$0xff]
    %v524 = vld [vmem:[%s0 + $0xf88] sm:$0xff]
    %v525 = vld [vmem:[%s0 + $0xf90] sm:$0xff]
    %v526 = vld [vmem:[%s0 + $0xf98] sm:$0xff]
    %v527 = vld [vmem:[%s0 + $0xfa0] sm:$0xff]
    %v528 = vld [vmem:[%s0 + $0xfa8] sm:$0xff]
    %v529 = vld [vmem:[%s0 + $0xfb0] sm:$0xff]
    %v530 = vld [vmem:[%s0 + $0xfb8] sm:$0xff]
    %v531 = vld [vmem:[%s0 + $0xfc0] sm:$0xff]
    %v532 = vld [vmem:[%s0 + $0xfc8] sm:$0xff]
    %v533 = vld [vmem:[%s0 + $0xfd0] sm:$0xff]
    %v534 = vld [vmem:[%s0 + $0xfd8] sm:$0xff]
    %v535 = vld [vmem:[%s0 + $0xfe0] sm:$0xff]
    %v536 = vld [vmem:[%s0 + $0xfe8] sm:$0xff]
    %v537 = vld [vmem:[%s0 + $0xff0] sm:$0xff]
    %v538 = vld [vmem:[%s0 + $0xff8] sm:$0xff]
    %vm539 = vcmask 523264
    %v540 = vsel %vm539, %v27, 0.0
    %541 = vadd.xlane.f32.xlu0 %v540
    %v542 = vpop.xlane.xlu0 %541
    %v543 = vsel %vm539, %v28, 0.0
    %544 = vadd.xlane.f32.xlu0 %v543
    %v545 = vpop.xlane.xlu0 %544
    %v546 = vsel %vm539, %v29, 0.0
    %547 = vadd.xlane.f32.xlu0 %v546
    %v548 = vpop.xlane.xlu0 %547
    %v549 = vsel %vm539, %v30, 0.0
    %550 = vadd.xlane.f32.xlu0 %v549
    %v551 = vpop.xlane.xlu0 %550
    %v552 = vsel %vm539, %v31, 0.0
    %553 = vadd.xlane.f32.xlu0 %v552
    %v554 = vpop.xlane.xlu0 %553
    %v555 = vsel %vm539, %v32, 0.0
    %556 = vadd.xlane.f32.xlu0 %v555
    %v557 = vpop.xlane.xlu0 %556
    %v558 = vsel %vm539, %v33, 0.0
    %559 = vadd.xlane.f32.xlu0 %v558
    %v560 = vpop.xlane.xlu0 %559
    %v561 = vsel %vm539, %v34, 0.0
    %562 = vadd.xlane.f32.xlu0 %v561
    %v563 = vpop.xlane.xlu0 %562
    %v564 = vsel %vm539, %v35, 0.0
    %565 = vadd.xlane.f32.xlu0 %v564
    %v566 = vpop.xlane.xlu0 %565
    %v567 = vsel %vm539, %v36, 0.0
    %568 = vadd.xlane.f32.xlu0 %v567
    %v569 = vpop.xlane.xlu0 %568
    %v570 = vsel %vm539, %v37, 0.0
    %571 = vadd.xlane.f32.xlu0 %v570
    %v572 = vpop.xlane.xlu0 %571
    %v573 = vsel %vm539, %v38, 0.0
    %574 = vadd.xlane.f32.xlu0 %v573
    %v575 = vpop.xlane.xlu0 %574
    %v576 = vsel %vm539, %v39, 0.0
    %577 = vadd.xlane.f32.xlu0 %v576
    %v578 = vpop.xlane.xlu0 %577
    %v579 = vsel %vm539, %v40, 0.0
    %580 = vadd.xlane.f32.xlu0 %v579
    %v581 = vpop.xlane.xlu0 %580
    %v582 = vsel %vm539, %v41, 0.0
    %583 = vadd.xlane.f32.xlu0 %v582
    %v584 = vpop.xlane.xlu0 %583
    %v585 = vsel %vm539, %v42, 0.0
    %586 = vadd.xlane.f32.xlu0 %v585
    %v587 = vpop.xlane.xlu0 %586
    %v588 = vsel %vm539, %v43, 0.0
    %589 = vadd.xlane.f32.xlu0 %v588
    %v590 = vpop.xlane.xlu0 %589
    %v591 = vsel %vm539, %v44, 0.0
    %592 = vadd.xlane.f32.xlu0 %v591
    %v593 = vpop.xlane.xlu0 %592
    %v594 = vsel %vm539, %v45, 0.0
    %595 = vadd.xlane.f32.xlu0 %v594
    %v596 = vpop.xlane.xlu0 %595
    %v597 = vsel %vm539, %v46, 0.0
    %598 = vadd.xlane.f32.xlu0 %v597
    %v599 = vpop.xlane.xlu0 %598
    %v600 = vsel %vm539, %v47, 0.0
    %601 = vadd.xlane.f32.xlu0 %v600
    %v602 = vpop.xlane.xlu0 %601
    %v603 = vsel %vm539, %v48, 0.0
    %604 = vadd.xlane.f32.xlu0 %v603
    %v605 = vpop.xlane.xlu0 %604
    %v606 = vsel %vm539, %v49, 0.0
    %607 = vadd.xlane.f32.xlu0 %v606
    %v608 = vpop.xlane.xlu0 %607
    %v609 = vsel %vm539, %v50, 0.0
    %610 = vadd.xlane.f32.xlu0 %v609
    %v611 = vpop.xlane.xlu0 %610
    %v612 = vsel %vm539, %v51, 0.0
    %613 = vadd.xlane.f32.xlu0 %v612
    %v614 = vpop.xlane.xlu0 %613
    %v615 = vsel %vm539, %v52, 0.0
    %616 = vadd.xlane.f32.xlu0 %v615
    %v617 = vpop.xlane.xlu0 %616
    %v618 = vsel %vm539, %v53, 0.0
    %619 = vadd.xlane.f32.xlu0 %v618
    %v620 = vpop.xlane.xlu0 %619
    %v621 = vsel %vm539, %v54, 0.0
    %622 = vadd.xlane.f32.xlu0 %v621
    %v623 = vpop.xlane.xlu0 %622
    %v624 = vsel %vm539, %v55, 0.0
    %625 = vadd.xlane.f32.xlu0 %v624
    %v626 = vpop.xlane.xlu0 %625
    %v627 = vsel %vm539, %v56, 0.0
    %628 = vadd.xlane.f32.xlu0 %v627
    %v629 = vpop.xlane.xlu0 %628
    %v630 = vsel %vm539, %v57, 0.0
    %631 = vadd.xlane.f32.xlu0 %v630
    %v632 = vpop.xlane.xlu0 %631
    %v633 = vsel %vm539, %v58, 0.0
    %634 = vadd.xlane.f32.xlu0 %v633
    %v635 = vpop.xlane.xlu0 %634
    %v636 = vsel %vm539, %v59, 0.0
    %637 = vadd.xlane.f32.xlu0 %v636
    %v638 = vpop.xlane.xlu0 %637
    %v639 = vsel %vm539, %v60, 0.0
    %640 = vadd.xlane.f32.xlu0 %v639
    %v641 = vpop.xlane.xlu0 %640
    %v642 = vsel %vm539, %v61, 0.0
    %643 = vadd.xlane.f32.xlu0 %v642
    %v644 = vpop.xlane.xlu0 %643
    %v645 = vsel %vm539, %v62, 0.0
    %646 = vadd.xlane.f32.xlu0 %v645
    %v647 = vpop.xlane.xlu0 %646
    %v648 = vsel %vm539, %v63, 0.0
    %649 = vadd.xlane.f32.xlu0 %v648
    %v650 = vpop.xlane.xlu0 %649
    %v651 = vsel %vm539, %v64, 0.0
    %652 = vadd.xlane.f32.xlu0 %v651
    %v653 = vpop.xlane.xlu0 %652
    %v654 = vsel %vm539, %v65, 0.0
    %655 = vadd.xlane.f32.xlu0 %v654
    %v656 = vpop.xlane.xlu0 %655
    %v657 = vsel %vm539, %v66, 0.0
    %658 = vadd.xlane.f32.xlu0 %v657
    %v659 = vpop.xlane.xlu0 %658
    %v660 = vsel %vm539, %v67, 0.0
    %661 = vadd.xlane.f32.xlu0 %v660
    %v662 = vpop.xlane.xlu0 %661
    %v663 = vsel %vm539, %v68, 0.0
    %664 = vadd.xlane.f32.xlu0 %v663
    %v665 = vpop.xlane.xlu0 %664
    %v666 = vsel %vm539, %v69, 0.0
    %667 = vadd.xlane.f32.xlu0 %v666
    %v668 = vpop.xlane.xlu0 %667
    %v669 = vsel %vm539, %v70, 0.0
    %670 = vadd.xlane.f32.xlu0 %v669
    %v671 = vpop.xlane.xlu0 %670
    %v672 = vsel %vm539, %v71, 0.0
    %673 = vadd.xlane.f32.xlu0 %v672
    %v674 = vpop.xlane.xlu0 %673
    %v675 = vsel %vm539, %v72, 0.0
    %676 = vadd.xlane.f32.xlu0 %v675
    %v677 = vpop.xlane.xlu0 %676
    %v678 = vsel %vm539, %v73, 0.0
    %679 = vadd.xlane.f32.xlu0 %v678
    %v680 = vpop.xlane.xlu0 %679
    %v681 = vsel %vm539, %v74, 0.0
    %682 = vadd.xlane.f32.xlu0 %v681
    %v683 = vpop.xlane.xlu0 %682
    %v684 = vsel %vm539, %v75, 0.0
    %685 = vadd.xlane.f32.xlu0 %v684
    %v686 = vpop.xlane.xlu0 %685
    %v687 = vsel %vm539, %v76, 0.0
    %688 = vadd.xlane.f32.xlu0 %v687
    %v689 = vpop.xlane.xlu0 %688
    %v690 = vsel %vm539, %v77, 0.0
    %691 = vadd.xlane.f32.xlu0 %v690
    %v692 = vpop.xlane.xlu0 %691
    %v693 = vsel %vm539, %v78, 0.0
    %694 = vadd.xlane.f32.xlu0 %v693
    %v695 = vpop.xlane.xlu0 %694
    %v696 = vsel %vm539, %v79, 0.0
    %697 = vadd.xlane.f32.xlu0 %v696
    %v698 = vpop.xlane.xlu0 %697
    %v699 = vsel %vm539, %v80, 0.0
    %700 = vadd.xlane.f32.xlu0 %v699
    %v701 = vpop.xlane.xlu0 %700
    %v702 = vsel %vm539, %v81, 0.0
    %703 = vadd.xlane.f32.xlu0 %v702
    %v704 = vpop.xlane.xlu0 %703
    %v705 = vsel %vm539, %v82, 0.0
    %706 = vadd.xlane.f32.xlu0 %v705
    %v707 = vpop.xlane.xlu0 %706
    %v708 = vsel %vm539, %v83, 0.0
    %709 = vadd.xlane.f32.xlu0 %v708
    %v710 = vpop.xlane.xlu0 %709
    %v711 = vsel %vm539, %v84, 0.0
    %712 = vadd.xlane.f32.xlu0 %v711
    %v713 = vpop.xlane.xlu0 %712
    %v714 = vsel %vm539, %v85, 0.0
    %715 = vadd.xlane.f32.xlu0 %v714
    %v716 = vpop.xlane.xlu0 %715
    %v717 = vsel %vm539, %v86, 0.0
    %718 = vadd.xlane.f32.xlu0 %v717
    %v719 = vpop.xlane.xlu0 %718
    %v720 = vsel %vm539, %v87, 0.0
    %721 = vadd.xlane.f32.xlu0 %v720
    %v722 = vpop.xlane.xlu0 %721
    %v723 = vsel %vm539, %v88, 0.0
    %724 = vadd.xlane.f32.xlu0 %v723
    %v725 = vpop.xlane.xlu0 %724
    %v726 = vsel %vm539, %v89, 0.0
    %727 = vadd.xlane.f32.xlu0 %v726
    %v728 = vpop.xlane.xlu0 %727
    %v729 = vsel %vm539, %v90, 0.0
    %730 = vadd.xlane.f32.xlu0 %v729
    %v731 = vpop.xlane.xlu0 %730
    %v732 = vsel %vm539, %v91, 0.0
    %733 = vadd.xlane.f32.xlu0 %v732
    %v734 = vpop.xlane.xlu0 %733
    %v735 = vsel %vm539, %v92, 0.0
    %736 = vadd.xlane.f32.xlu0 %v735
    %v737 = vpop.xlane.xlu0 %736
    %v738 = vsel %vm539, %v93, 0.0
    %739 = vadd.xlane.f32.xlu0 %v738
    %v740 = vpop.xlane.xlu0 %739
    %v741 = vsel %vm539, %v94, 0.0
    %742 = vadd.xlane.f32.xlu0 %v741
    %v743 = vpop.xlane.xlu0 %742
    %v744 = vsel %vm539, %v95, 0.0
    %745 = vadd.xlane.f32.xlu0 %v744
    %v746 = vpop.xlane.xlu0 %745
    %v747 = vsel %vm539, %v96, 0.0
    %748 = vadd.xlane.f32.xlu0 %v747
    %v749 = vpop.xlane.xlu0 %748
    %v750 = vsel %vm539, %v97, 0.0
    %751 = vadd.xlane.f32.xlu0 %v750
    %v752 = vpop.xlane.xlu0 %751
    %v753 = vsel %vm539, %v98, 0.0
    %754 = vadd.xlane.f32.xlu0 %v753
    %v755 = vpop.xlane.xlu0 %754
    %v756 = vsel %vm539, %v99, 0.0
    %757 = vadd.xlane.f32.xlu0 %v756
    %v758 = vpop.xlane.xlu0 %757
    %v759 = vsel %vm539, %v100, 0.0
    %760 = vadd.xlane.f32.xlu0 %v759
    %v761 = vpop.xlane.xlu0 %760
    %v762 = vsel %vm539, %v101, 0.0
    %763 = vadd.xlane.f32.xlu0 %v762
    %v764 = vpop.xlane.xlu0 %763
    %v765 = vsel %vm539, %v102, 0.0
    %766 = vadd.xlane.f32.xlu0 %v765
    %v767 = vpop.xlane.xlu0 %766
    %v768 = vsel %vm539, %v103, 0.0
    %769 = vadd.xlane.f32.xlu0 %v768
    %v770 = vpop.xlane.xlu0 %769
    %v771 = vsel %vm539, %v104, 0.0
    %772 = vadd.xlane.f32.xlu0 %v771
    %v773 = vpop.xlane.xlu0 %772
    %v774 = vsel %vm539, %v105, 0.0
    %775 = vadd.xlane.f32.xlu0 %v774
    %v776 = vpop.xlane.xlu0 %775
    %v777 = vsel %vm539, %v106, 0.0
    %778 = vadd.xlane.f32.xlu0 %v777
    %v779 = vpop.xlane.xlu0 %778
    %v780 = vsel %vm539, %v107, 0.0
    %781 = vadd.xlane.f32.xlu0 %v780
    %v782 = vpop.xlane.xlu0 %781
    %v783 = vsel %vm539, %v108, 0.0
    %784 = vadd.xlane.f32.xlu0 %v783
    %v785 = vpop.xlane.xlu0 %784
    %v786 = vsel %vm539, %v109, 0.0
    %787 = vadd.xlane.f32.xlu0 %v786
    %v788 = vpop.xlane.xlu0 %787
    %v789 = vsel %vm539, %v110, 0.0
    %790 = vadd.xlane.f32.xlu0 %v789
    %v791 = vpop.xlane.xlu0 %790
    %v792 = vsel %vm539, %v111, 0.0
    %793 = vadd.xlane.f32.xlu0 %v792
    %v794 = vpop.xlane.xlu0 %793
    %v795 = vsel %vm539, %v112, 0.0
    %796 = vadd.xlane.f32.xlu0 %v795
    %v797 = vpop.xlane.xlu0 %796
    %v798 = vsel %vm539, %v113, 0.0
    %799 = vadd.xlane.f32.xlu0 %v798
    %v800 = vpop.xlane.xlu0 %799
    %v801 = vsel %vm539, %v114, 0.0
    %802 = vadd.xlane.f32.xlu0 %v801
    %v803 = vpop.xlane.xlu0 %802
    %v804 = vsel %vm539, %v115, 0.0
    %805 = vadd.xlane.f32.xlu0 %v804
    %v806 = vpop.xlane.xlu0 %805
    %v807 = vsel %vm539, %v116, 0.0
    %808 = vadd.xlane.f32.xlu0 %v807
    %v809 = vpop.xlane.xlu0 %808
    %v810 = vsel %vm539, %v117, 0.0
    %811 = vadd.xlane.f32.xlu0 %v810
    %v812 = vpop.xlane.xlu0 %811
    %v813 = vsel %vm539, %v118, 0.0
    %814 = vadd.xlane.f32.xlu0 %v813
    %v815 = vpop.xlane.xlu0 %814
    %v816 = vsel %vm539, %v119, 0.0
    %817 = vadd.xlane.f32.xlu0 %v816
    %v818 = vpop.xlane.xlu0 %817
    %v819 = vsel %vm539, %v120, 0.0
    %820 = vadd.xlane.f32.xlu0 %v819
    %v821 = vpop.xlane.xlu0 %820
    %v822 = vsel %vm539, %v121, 0.0
    %823 = vadd.xlane.f32.xlu0 %v822
    %v824 = vpop.xlane.xlu0 %823
    %v825 = vsel %vm539, %v122, 0.0
    %826 = vadd.xlane.f32.xlu0 %v825
    %v827 = vpop.xlane.xlu0 %826
    %v828 = vsel %vm539, %v123, 0.0
    %829 = vadd.xlane.f32.xlu0 %v828
    %v830 = vpop.xlane.xlu0 %829
    %v831 = vsel %vm539, %v124, 0.0
    %832 = vadd.xlane.f32.xlu0 %v831
    %v833 = vpop.xlane.xlu0 %832
    %v834 = vsel %vm539, %v125, 0.0
    %835 = vadd.xlane.f32.xlu0 %v834
    %v836 = vpop.xlane.xlu0 %835
    %v837 = vsel %vm539, %v126, 0.0
    %838 = vadd.xlane.f32.xlu0 %v837
    %v839 = vpop.xlane.xlu0 %838
    %v840 = vsel %vm539, %v127, 0.0
    %841 = vadd.xlane.f32.xlu0 %v840
    %v842 = vpop.xlane.xlu0 %841
    %v843 = vsel %vm539, %v128, 0.0
    %844 = vadd.xlane.f32.xlu0 %v843
    %v845 = vpop.xlane.xlu0 %844
    %v846 = vsel %vm539, %v129, 0.0
    %847 = vadd.xlane.f32.xlu0 %v846
    %v848 = vpop.xlane.xlu0 %847
    %v849 = vsel %vm539, %v130, 0.0
    %850 = vadd.xlane.f32.xlu0 %v849
    %v851 = vpop.xlane.xlu0 %850
    %v852 = vsel %vm539, %v131, 0.0
    %853 = vadd.xlane.f32.xlu0 %v852
    %v854 = vpop.xlane.xlu0 %853
    %v855 = vsel %vm539, %v132, 0.0
    %856 = vadd.xlane.f32.xlu0 %v855
    %v857 = vpop.xlane.xlu0 %856
    %v858 = vsel %vm539, %v133, 0.0
    %859 = vadd.xlane.f32.xlu0 %v858
    %v860 = vpop.xlane.xlu0 %859
    %v861 = vsel %vm539, %v134, 0.0
    %862 = vadd.xlane.f32.xlu0 %v861
    %v863 = vpop.xlane.xlu0 %862
    %v864 = vsel %vm539, %v135, 0.0
    %865 = vadd.xlane.f32.xlu0 %v864
    %v866 = vpop.xlane.xlu0 %865
    %v867 = vsel %vm539, %v136, 0.0
    %868 = vadd.xlane.f32.xlu0 %v867
    %v869 = vpop.xlane.xlu0 %868
    %v870 = vsel %vm539, %v137, 0.0
    %871 = vadd.xlane.f32.xlu0 %v870
    %v872 = vpop.xlane.xlu0 %871
    %v873 = vsel %vm539, %v138, 0.0
    %874 = vadd.xlane.f32.xlu0 %v873
    %v875 = vpop.xlane.xlu0 %874
    %v876 = vsel %vm539, %v139, 0.0
    %877 = vadd.xlane.f32.xlu0 %v876
    %v878 = vpop.xlane.xlu0 %877
    %v879 = vsel %vm539, %v140, 0.0
    %880 = vadd.xlane.f32.xlu0 %v879
    %v881 = vpop.xlane.xlu0 %880
    %v882 = vsel %vm539, %v141, 0.0
    %883 = vadd.xlane.f32.xlu0 %v882
    %v884 = vpop.xlane.xlu0 %883
    %v885 = vsel %vm539, %v142, 0.0
    %886 = vadd.xlane.f32.xlu0 %v885
    %v887 = vpop.xlane.xlu0 %886
    %v888 = vsel %vm539, %v143, 0.0
    %889 = vadd.xlane.f32.xlu0 %v888
    %v890 = vpop.xlane.xlu0 %889
    %v891 = vsel %vm539, %v144, 0.0
    %892 = vadd.xlane.f32.xlu0 %v891
    %v893 = vpop.xlane.xlu0 %892
    %v894 = vsel %vm539, %v145, 0.0
    %895 = vadd.xlane.f32.xlu0 %v894
    %v896 = vpop.xlane.xlu0 %895
    %v897 = vsel %vm539, %v146, 0.0
    %898 = vadd.xlane.f32.xlu0 %v897
    %v899 = vpop.xlane.xlu0 %898
    %v900 = vsel %vm539, %v147, 0.0
    %901 = vadd.xlane.f32.xlu0 %v900
    %v902 = vpop.xlane.xlu0 %901
    %v903 = vsel %vm539, %v148, 0.0
    %904 = vadd.xlane.f32.xlu0 %v903
    %v905 = vpop.xlane.xlu0 %904
    %v906 = vsel %vm539, %v149, 0.0
    %907 = vadd.xlane.f32.xlu0 %v906
    %v908 = vpop.xlane.xlu0 %907
    %v909 = vsel %vm539, %v150, 0.0
    %910 = vadd.xlane.f32.xlu0 %v909
    %v911 = vpop.xlane.xlu0 %910
    %v912 = vsel %vm539, %v151, 0.0
    %913 = vadd.xlane.f32.xlu0 %v912
    %v914 = vpop.xlane.xlu0 %913
    %v915 = vsel %vm539, %v152, 0.0
    %916 = vadd.xlane.f32.xlu0 %v915
    %v917 = vpop.xlane.xlu0 %916
    %v918 = vsel %vm539, %v153, 0.0
    %919 = vadd.xlane.f32.xlu0 %v918
    %v920 = vpop.xlane.xlu0 %919
    %v921 = vsel %vm539, %v154, 0.0
    %922 = vadd.xlane.f32.xlu0 %v921
    %v923 = vpop.xlane.xlu0 %922
    %v924 = vsel %vm539, %v155, 0.0
    %925 = vadd.xlane.f32.xlu0 %v924
    %v926 = vpop.xlane.xlu0 %925
    %v927 = vsel %vm539, %v156, 0.0
    %928 = vadd.xlane.f32.xlu0 %v927
    %v929 = vpop.xlane.xlu0 %928
    %v930 = vsel %vm539, %v157, 0.0
    %931 = vadd.xlane.f32.xlu0 %v930
    %v932 = vpop.xlane.xlu0 %931
    %v933 = vsel %vm539, %v158, 0.0
    %934 = vadd.xlane.f32.xlu0 %v933
    %v935 = vpop.xlane.xlu0 %934
    %v936 = vsel %vm539, %v159, 0.0
    %937 = vadd.xlane.f32.xlu0 %v936
    %v938 = vpop.xlane.xlu0 %937
    %v939 = vsel %vm539, %v160, 0.0
    %940 = vadd.xlane.f32.xlu0 %v939
    %v941 = vpop.xlane.xlu0 %940
    %v942 = vsel %vm539, %v161, 0.0
    %943 = vadd.xlane.f32.xlu0 %v942
    %v944 = vpop.xlane.xlu0 %943
    %v945 = vsel %vm539, %v162, 0.0
    %946 = vadd.xlane.f32.xlu0 %v945
    %v947 = vpop.xlane.xlu0 %946
    %v948 = vsel %vm539, %v163, 0.0
    %949 = vadd.xlane.f32.xlu0 %v948
    %v950 = vpop.xlane.xlu0 %949
    %v951 = vsel %vm539, %v164, 0.0
    %952 = vadd.xlane.f32.xlu0 %v951
    %v953 = vpop.xlane.xlu0 %952
    %v954 = vsel %vm539, %v165, 0.0
    %955 = vadd.xlane.f32.xlu0 %v954
    %v956 = vpop.xlane.xlu0 %955
    %v957 = vsel %vm539, %v166, 0.0
    %958 = vadd.xlane.f32.xlu0 %v957
    %v959 = vpop.xlane.xlu0 %958
    %v960 = vsel %vm539, %v167, 0.0
    %961 = vadd.xlane.f32.xlu0 %v960
    %v962 = vpop.xlane.xlu0 %961
    %v963 = vsel %vm539, %v168, 0.0
    %964 = vadd.xlane.f32.xlu0 %v963
    %v965 = vpop.xlane.xlu0 %964
    %v966 = vsel %vm539, %v169, 0.0
    %967 = vadd.xlane.f32.xlu0 %v966
    %v968 = vpop.xlane.xlu0 %967
    %v969 = vsel %vm539, %v170, 0.0
    %970 = vadd.xlane.f32.xlu0 %v969
    %v971 = vpop.xlane.xlu0 %970
    %v972 = vsel %vm539, %v171, 0.0
    %973 = vadd.xlane.f32.xlu0 %v972
    %v974 = vpop.xlane.xlu0 %973
    %v975 = vsel %vm539, %v172, 0.0
    %976 = vadd.xlane.f32.xlu0 %v975
    %v977 = vpop.xlane.xlu0 %976
    %v978 = vsel %vm539, %v173, 0.0
    %979 = vadd.xlane.f32.xlu0 %v978
    %v980 = vpop.xlane.xlu0 %979
    %v981 = vsel %vm539, %v174, 0.0
    %982 = vadd.xlane.f32.xlu0 %v981
    %v983 = vpop.xlane.xlu0 %982
    %v984 = vsel %vm539, %v175, 0.0
    %985 = vadd.xlane.f32.xlu0 %v984
    %v986 = vpop.xlane.xlu0 %985
    %v987 = vsel %vm539, %v176, 0.0
    %988 = vadd.xlane.f32.xlu0 %v987
    %v989 = vpop.xlane.xlu0 %988
    %v990 = vsel %vm539, %v177, 0.0
    %991 = vadd.xlane.f32.xlu0 %v990
    %v992 = vpop.xlane.xlu0 %991
    %v993 = vsel %vm539, %v178, 0.0
    %994 = vadd.xlane.f32.xlu0 %v993
    %v995 = vpop.xlane.xlu0 %994
    %v996 = vsel %vm539, %v179, 0.0
    %997 = vadd.xlane.f32.xlu0 %v996
    %v998 = vpop.xlane.xlu0 %997
    %v999 = vsel %vm539, %v180, 0.0
    %1000 = vadd.xlane.f32.xlu0 %v999
    %v1001 = vpop.xlane.xlu0 %1000
    %v1002 = vsel %vm539, %v181, 0.0
    %1003 = vadd.xlane.f32.xlu0 %v1002
    %v1004 = vpop.xlane.xlu0 %1003
    %v1005 = vsel %vm539, %v182, 0.0
    %1006 = vadd.xlane.f32.xlu0 %v1005
    %v1007 = vpop.xlane.xlu0 %1006
    %v1008 = vsel %vm539, %v183, 0.0
    %1009 = vadd.xlane.f32.xlu0 %v1008
    %v1010 = vpop.xlane.xlu0 %1009
    %v1011 = vsel %vm539, %v184, 0.0
    %1012 = vadd.xlane.f32.xlu0 %v1011
    %v1013 = vpop.xlane.xlu0 %1012
    %v1014 = vsel %vm539, %v185, 0.0
    %1015 = vadd.xlane.f32.xlu0 %v1014
    %v1016 = vpop.xlane.xlu0 %1015
    %v1017 = vsel %vm539, %v186, 0.0
    %1018 = vadd.xlane.f32.xlu0 %v1017
    %v1019 = vpop.xlane.xlu0 %1018
    %v1020 = vsel %vm539, %v187, 0.0
    %1021 = vadd.xlane.f32.xlu0 %v1020
    %v1022 = vpop.xlane.xlu0 %1021
    %v1023 = vsel %vm539, %v188, 0.0
    %1024 = vadd.xlane.f32.xlu0 %v1023
    %v1025 = vpop.xlane.xlu0 %1024
    %v1026 = vsel %vm539, %v189, 0.0
    %1027 = vadd.xlane.f32.xlu0 %v1026
    %v1028 = vpop.xlane.xlu0 %1027
    %v1029 = vsel %vm539, %v190, 0.0
    %1030 = vadd.xlane.f32.xlu0 %v1029
    %v1031 = vpop.xlane.xlu0 %1030
    %v1032 = vsel %vm539, %v191, 0.0
    %1033 = vadd.xlane.f32.xlu0 %v1032
    %v1034 = vpop.xlane.xlu0 %1033
    %v1035 = vsel %vm539, %v192, 0.0
    %1036 = vadd.xlane.f32.xlu0 %v1035
    %v1037 = vpop.xlane.xlu0 %1036
    %v1038 = vsel %vm539, %v193, 0.0
    %1039 = vadd.xlane.f32.xlu0 %v1038
    %v1040 = vpop.xlane.xlu0 %1039
    %v1041 = vsel %vm539, %v194, 0.0
    %1042 = vadd.xlane.f32.xlu0 %v1041
    %v1043 = vpop.xlane.xlu0 %1042
    %v1044 = vsel %vm539, %v195, 0.0
    %1045 = vadd.xlane.f32.xlu0 %v1044
    %v1046 = vpop.xlane.xlu0 %1045
    %v1047 = vsel %vm539, %v196, 0.0
    %1048 = vadd.xlane.f32.xlu0 %v1047
    %v1049 = vpop.xlane.xlu0 %1048
    %v1050 = vsel %vm539, %v197, 0.0
    %1051 = vadd.xlane.f32.xlu0 %v1050
    %v1052 = vpop.xlane.xlu0 %1051
    %v1053 = vsel %vm539, %v198, 0.0
    %1054 = vadd.xlane.f32.xlu0 %v1053
    %v1055 = vpop.xlane.xlu0 %1054
    %v1056 = vsel %vm539, %v199, 0.0
    %1057 = vadd.xlane.f32.xlu0 %v1056
    %v1058 = vpop.xlane.xlu0 %1057
    %v1059 = vsel %vm539, %v200, 0.0
    %1060 = vadd.xlane.f32.xlu0 %v1059
    %v1061 = vpop.xlane.xlu0 %1060
    %v1062 = vsel %vm539, %v201, 0.0
    %1063 = vadd.xlane.f32.xlu0 %v1062
    %v1064 = vpop.xlane.xlu0 %1063
    %v1065 = vsel %vm539, %v202, 0.0
    %1066 = vadd.xlane.f32.xlu0 %v1065
    %v1067 = vpop.xlane.xlu0 %1066
    %v1068 = vsel %vm539, %v203, 0.0
    %1069 = vadd.xlane.f32.xlu0 %v1068
    %v1070 = vpop.xlane.xlu0 %1069
    %v1071 = vsel %vm539, %v204, 0.0
    %1072 = vadd.xlane.f32.xlu0 %v1071
    %v1073 = vpop.xlane.xlu0 %1072
    %v1074 = vsel %vm539, %v205, 0.0
    %1075 = vadd.xlane.f32.xlu0 %v1074
    %v1076 = vpop.xlane.xlu0 %1075
    %v1077 = vsel %vm539, %v206, 0.0
    %1078 = vadd.xlane.f32.xlu0 %v1077
    %v1079 = vpop.xlane.xlu0 %1078
    %v1080 = vsel %vm539, %v207, 0.0
    %1081 = vadd.xlane.f32.xlu0 %v1080
    %v1082 = vpop.xlane.xlu0 %1081
    %v1083 = vsel %vm539, %v208, 0.0
    %1084 = vadd.xlane.f32.xlu0 %v1083
    %v1085 = vpop.xlane.xlu0 %1084
    %v1086 = vsel %vm539, %v209, 0.0
    %1087 = vadd.xlane.f32.xlu0 %v1086
    %v1088 = vpop.xlane.xlu0 %1087
    %v1089 = vsel %vm539, %v210, 0.0
    %1090 = vadd.xlane.f32.xlu0 %v1089
    %v1091 = vpop.xlane.xlu0 %1090
    %v1092 = vsel %vm539, %v211, 0.0
    %1093 = vadd.xlane.f32.xlu0 %v1092
    %v1094 = vpop.xlane.xlu0 %1093
    %v1095 = vsel %vm539, %v212, 0.0
    %1096 = vadd.xlane.f32.xlu0 %v1095
    %v1097 = vpop.xlane.xlu0 %1096
    %v1098 = vsel %vm539, %v213, 0.0
    %1099 = vadd.xlane.f32.xlu0 %v1098
    %v1100 = vpop.xlane.xlu0 %1099
    %v1101 = vsel %vm539, %v214, 0.0
    %1102 = vadd.xlane.f32.xlu0 %v1101
    %v1103 = vpop.xlane.xlu0 %1102
    %v1104 = vsel %vm539, %v215, 0.0
    %1105 = vadd.xlane.f32.xlu0 %v1104
    %v1106 = vpop.xlane.xlu0 %1105
    %v1107 = vsel %vm539, %v216, 0.0
    %1108 = vadd.xlane.f32.xlu0 %v1107
    %v1109 = vpop.xlane.xlu0 %1108
    %v1110 = vsel %vm539, %v217, 0.0
    %1111 = vadd.xlane.f32.xlu0 %v1110
    %v1112 = vpop.xlane.xlu0 %1111
    %v1113 = vsel %vm539, %v218, 0.0
    %1114 = vadd.xlane.f32.xlu0 %v1113
    %v1115 = vpop.xlane.xlu0 %1114
    %v1116 = vsel %vm539, %v219, 0.0
    %1117 = vadd.xlane.f32.xlu0 %v1116
    %v1118 = vpop.xlane.xlu0 %1117
    %v1119 = vsel %vm539, %v220, 0.0
    %1120 = vadd.xlane.f32.xlu0 %v1119
    %v1121 = vpop.xlane.xlu0 %1120
    %v1122 = vsel %vm539, %v221, 0.0
    %1123 = vadd.xlane.f32.xlu0 %v1122
    %v1124 = vpop.xlane.xlu0 %1123
    %v1125 = vsel %vm539, %v222, 0.0
    %1126 = vadd.xlane.f32.xlu0 %v1125
    %v1127 = vpop.xlane.xlu0 %1126
    %v1128 = vsel %vm539, %v223, 0.0
    %1129 = vadd.xlane.f32.xlu0 %v1128
    %v1130 = vpop.xlane.xlu0 %1129
    %v1131 = vsel %vm539, %v224, 0.0
    %1132 = vadd.xlane.f32.xlu0 %v1131
    %v1133 = vpop.xlane.xlu0 %1132
    %v1134 = vsel %vm539, %v225, 0.0
    %1135 = vadd.xlane.f32.xlu0 %v1134
    %v1136 = vpop.xlane.xlu0 %1135
    %v1137 = vsel %vm539, %v226, 0.0
    %1138 = vadd.xlane.f32.xlu0 %v1137
    %v1139 = vpop.xlane.xlu0 %1138
    %v1140 = vsel %vm539, %v227, 0.0
    %1141 = vadd.xlane.f32.xlu0 %v1140
    %v1142 = vpop.xlane.xlu0 %1141
    %v1143 = vsel %vm539, %v228, 0.0
    %1144 = vadd.xlane.f32.xlu0 %v1143
    %v1145 = vpop.xlane.xlu0 %1144
    %v1146 = vsel %vm539, %v229, 0.0
    %1147 = vadd.xlane.f32.xlu0 %v1146
    %v1148 = vpop.xlane.xlu0 %1147
    %v1149 = vsel %vm539, %v230, 0.0
    %1150 = vadd.xlane.f32.xlu0 %v1149
    %v1151 = vpop.xlane.xlu0 %1150
    %v1152 = vsel %vm539, %v231, 0.0
    %1153 = vadd.xlane.f32.xlu0 %v1152
    %v1154 = vpop.xlane.xlu0 %1153
    %v1155 = vsel %vm539, %v232, 0.0
    %1156 = vadd.xlane.f32.xlu0 %v1155
    %v1157 = vpop.xlane.xlu0 %1156
    %v1158 = vsel %vm539, %v233, 0.0
    %1159 = vadd.xlane.f32.xlu0 %v1158
    %v1160 = vpop.xlane.xlu0 %1159
    %v1161 = vsel %vm539, %v234, 0.0
    %1162 = vadd.xlane.f32.xlu0 %v1161
    %v1163 = vpop.xlane.xlu0 %1162
    %v1164 = vsel %vm539, %v235, 0.0
    %1165 = vadd.xlane.f32.xlu0 %v1164
    %v1166 = vpop.xlane.xlu0 %1165
    %v1167 = vsel %vm539, %v236, 0.0
    %1168 = vadd.xlane.f32.xlu0 %v1167
    %v1169 = vpop.xlane.xlu0 %1168
    %v1170 = vsel %vm539, %v237, 0.0
    %1171 = vadd.xlane.f32.xlu0 %v1170
    %v1172 = vpop.xlane.xlu0 %1171
    %v1173 = vsel %vm539, %v238, 0.0
    %1174 = vadd.xlane.f32.xlu0 %v1173
    %v1175 = vpop.xlane.xlu0 %1174
    %v1176 = vsel %vm539, %v239, 0.0
    %1177 = vadd.xlane.f32.xlu0 %v1176
    %v1178 = vpop.xlane.xlu0 %1177
    %v1179 = vsel %vm539, %v240, 0.0
    %1180 = vadd.xlane.f32.xlu0 %v1179
    %v1181 = vpop.xlane.xlu0 %1180
    %v1182 = vsel %vm539, %v241, 0.0
    %1183 = vadd.xlane.f32.xlu0 %v1182
    %v1184 = vpop.xlane.xlu0 %1183
    %v1185 = vsel %vm539, %v242, 0.0
    %1186 = vadd.xlane.f32.xlu0 %v1185
    %v1187 = vpop.xlane.xlu0 %1186
    %v1188 = vsel %vm539, %v243, 0.0
    %1189 = vadd.xlane.f32.xlu0 %v1188
    %v1190 = vpop.xlane.xlu0 %1189
    %v1191 = vsel %vm539, %v244, 0.0
    %1192 = vadd.xlane.f32.xlu0 %v1191
    %v1193 = vpop.xlane.xlu0 %1192
    %v1194 = vsel %vm539, %v245, 0.0
    %1195 = vadd.xlane.f32.xlu0 %v1194
    %v1196 = vpop.xlane.xlu0 %1195
    %v1197 = vsel %vm539, %v246, 0.0
    %1198 = vadd.xlane.f32.xlu0 %v1197
    %v1199 = vpop.xlane.xlu0 %1198
    %v1200 = vsel %vm539, %v247, 0.0
    %1201 = vadd.xlane.f32.xlu0 %v1200
    %v1202 = vpop.xlane.xlu0 %1201
    %v1203 = vsel %vm539, %v248, 0.0
    %1204 = vadd.xlane.f32.xlu0 %v1203
    %v1205 = vpop.xlane.xlu0 %1204
    %v1206 = vsel %vm539, %v249, 0.0
    %1207 = vadd.xlane.f32.xlu0 %v1206
    %v1208 = vpop.xlane.xlu0 %1207
    %v1209 = vsel %vm539, %v250, 0.0
    %1210 = vadd.xlane.f32.xlu0 %v1209
    %v1211 = vpop.xlane.xlu0 %1210
    %v1212 = vsel %vm539, %v251, 0.0
    %1213 = vadd.xlane.f32.xlu0 %v1212
    %v1214 = vpop.xlane.xlu0 %1213
    %v1215 = vsel %vm539, %v252, 0.0
    %1216 = vadd.xlane.f32.xlu0 %v1215
    %v1217 = vpop.xlane.xlu0 %1216
    %v1218 = vsel %vm539, %v253, 0.0
    %1219 = vadd.xlane.f32.xlu0 %v1218
    %v1220 = vpop.xlane.xlu0 %1219
    %v1221 = vsel %vm539, %v254, 0.0
    %1222 = vadd.xlane.f32.xlu0 %v1221
    %v1223 = vpop.xlane.xlu0 %1222
    %v1224 = vsel %vm539, %v255, 0.0
    %1225 = vadd.xlane.f32.xlu0 %v1224
    %v1226 = vpop.xlane.xlu0 %1225
    %v1227 = vsel %vm539, %v256, 0.0
    %1228 = vadd.xlane.f32.xlu0 %v1227
    %v1229 = vpop.xlane.xlu0 %1228
    %v1230 = vsel %vm539, %v257, 0.0
    %1231 = vadd.xlane.f32.xlu0 %v1230
    %v1232 = vpop.xlane.xlu0 %1231
    %v1233 = vsel %vm539, %v258, 0.0
    %1234 = vadd.xlane.f32.xlu0 %v1233
    %v1235 = vpop.xlane.xlu0 %1234
    %v1236 = vsel %vm539, %v259, 0.0
    %1237 = vadd.xlane.f32.xlu0 %v1236
    %v1238 = vpop.xlane.xlu0 %1237
    %v1239 = vsel %vm539, %v260, 0.0
    %1240 = vadd.xlane.f32.xlu0 %v1239
    %v1241 = vpop.xlane.xlu0 %1240
    %v1242 = vsel %vm539, %v261, 0.0
    %1243 = vadd.xlane.f32.xlu0 %v1242
    %v1244 = vpop.xlane.xlu0 %1243
    %v1245 = vsel %vm539, %v262, 0.0
    %1246 = vadd.xlane.f32.xlu0 %v1245
    %v1247 = vpop.xlane.xlu0 %1246
    %v1248 = vsel %vm539, %v263, 0.0
    %1249 = vadd.xlane.f32.xlu0 %v1248
    %v1250 = vpop.xlane.xlu0 %1249
    %v1251 = vsel %vm539, %v264, 0.0
    %1252 = vadd.xlane.f32.xlu0 %v1251
    %v1253 = vpop.xlane.xlu0 %1252
    %v1254 = vsel %vm539, %v265, 0.0
    %1255 = vadd.xlane.f32.xlu0 %v1254
    %v1256 = vpop.xlane.xlu0 %1255
    %v1257 = vsel %vm539, %v266, 0.0
    %1258 = vadd.xlane.f32.xlu0 %v1257
    %v1259 = vpop.xlane.xlu0 %1258
    %v1260 = vsel %vm539, %v267, 0.0
    %1261 = vadd.xlane.f32.xlu0 %v1260
    %v1262 = vpop.xlane.xlu0 %1261
    %v1263 = vsel %vm539, %v268, 0.0
    %1264 = vadd.xlane.f32.xlu0 %v1263
    %v1265 = vpop.xlane.xlu0 %1264
    %v1266 = vsel %vm539, %v269, 0.0
    %1267 = vadd.xlane.f32.xlu0 %v1266
    %v1268 = vpop.xlane.xlu0 %1267
    %v1269 = vsel %vm539, %v270, 0.0
    %1270 = vadd.xlane.f32.xlu0 %v1269
    %v1271 = vpop.xlane.xlu0 %1270
    %v1272 = vsel %vm539, %v271, 0.0
    %1273 = vadd.xlane.f32.xlu0 %v1272
    %v1274 = vpop.xlane.xlu0 %1273
    %v1275 = vsel %vm539, %v272, 0.0
    %1276 = vadd.xlane.f32.xlu0 %v1275
    %v1277 = vpop.xlane.xlu0 %1276
    %v1278 = vsel %vm539, %v273, 0.0
    %1279 = vadd.xlane.f32.xlu0 %v1278
    %v1280 = vpop.xlane.xlu0 %1279
    %v1281 = vsel %vm539, %v274, 0.0
    %1282 = vadd.xlane.f32.xlu0 %v1281
    %v1283 = vpop.xlane.xlu0 %1282
    %v1284 = vsel %vm539, %v275, 0.0
    %1285 = vadd.xlane.f32.xlu0 %v1284
    %v1286 = vpop.xlane.xlu0 %1285
    %v1287 = vsel %vm539, %v276, 0.0
    %1288 = vadd.xlane.f32.xlu0 %v1287
    %v1289 = vpop.xlane.xlu0 %1288
    %v1290 = vsel %vm539, %v277, 0.0
    %1291 = vadd.xlane.f32.xlu0 %v1290
    %v1292 = vpop.xlane.xlu0 %1291
    %v1293 = vsel %vm539, %v278, 0.0
    %1294 = vadd.xlane.f32.xlu0 %v1293
    %v1295 = vpop.xlane.xlu0 %1294
    %v1296 = vsel %vm539, %v279, 0.0
    %1297 = vadd.xlane.f32.xlu0 %v1296
    %v1298 = vpop.xlane.xlu0 %1297
    %v1299 = vsel %vm539, %v280, 0.0
    %1300 = vadd.xlane.f32.xlu0 %v1299
    %v1301 = vpop.xlane.xlu0 %1300
    %v1302 = vsel %vm539, %v281, 0.0
    %1303 = vadd.xlane.f32.xlu0 %v1302
    %v1304 = vpop.xlane.xlu0 %1303
    %v1305 = vsel %vm539, %v282, 0.0
    %1306 = vadd.xlane.f32.xlu0 %v1305
    %v1307 = vpop.xlane.xlu0 %1306
    %v1308 = vsel %vm539, %v283, 0.0
    %1309 = vadd.xlane.f32.xlu0 %v1308
    %v1310 = vpop.xlane.xlu0 %1309
    %v1311 = vsel %vm539, %v284, 0.0
    %1312 = vadd.xlane.f32.xlu0 %v1311
    %v1313 = vpop.xlane.xlu0 %1312
    %v1314 = vsel %vm539, %v285, 0.0
    %1315 = vadd.xlane.f32.xlu0 %v1314
    %v1316 = vpop.xlane.xlu0 %1315
    %v1317 = vsel %vm539, %v286, 0.0
    %1318 = vadd.xlane.f32.xlu0 %v1317
    %v1319 = vpop.xlane.xlu0 %1318
    %v1320 = vsel %vm539, %v287, 0.0
    %1321 = vadd.xlane.f32.xlu0 %v1320
    %v1322 = vpop.xlane.xlu0 %1321
    %v1323 = vsel %vm539, %v288, 0.0
    %1324 = vadd.xlane.f32.xlu0 %v1323
    %v1325 = vpop.xlane.xlu0 %1324
    %v1326 = vsel %vm539, %v289, 0.0
    %1327 = vadd.xlane.f32.xlu0 %v1326
    %v1328 = vpop.xlane.xlu0 %1327
    %v1329 = vsel %vm539, %v290, 0.0
    %1330 = vadd.xlane.f32.xlu0 %v1329
    %v1331 = vpop.xlane.xlu0 %1330
    %v1332 = vsel %vm539, %v291, 0.0
    %1333 = vadd.xlane.f32.xlu0 %v1332
    %v1334 = vpop.xlane.xlu0 %1333
    %v1335 = vsel %vm539, %v292, 0.0
    %1336 = vadd.xlane.f32.xlu0 %v1335
    %v1337 = vpop.xlane.xlu0 %1336
    %v1338 = vsel %vm539, %v293, 0.0
    %1339 = vadd.xlane.f32.xlu0 %v1338
    %v1340 = vpop.xlane.xlu0 %1339
    %v1341 = vsel %vm539, %v294, 0.0
    %1342 = vadd.xlane.f32.xlu0 %v1341
    %v1343 = vpop.xlane.xlu0 %1342
    %v1344 = vsel %vm539, %v295, 0.0
    %1345 = vadd.xlane.f32.xlu0 %v1344
    %v1346 = vpop.xlane.xlu0 %1345
    %v1347 = vsel %vm539, %v296, 0.0
    %1348 = vadd.xlane.f32.xlu0 %v1347
    %v1349 = vpop.xlane.xlu0 %1348
    %v1350 = vsel %vm539, %v297, 0.0
    %1351 = vadd.xlane.f32.xlu0 %v1350
    %v1352 = vpop.xlane.xlu0 %1351
    %v1353 = vsel %vm539, %v298, 0.0
    %1354 = vadd.xlane.f32.xlu0 %v1353
    %v1355 = vpop.xlane.xlu0 %1354
    %v1356 = vsel %vm539, %v299, 0.0
    %1357 = vadd.xlane.f32.xlu0 %v1356
    %v1358 = vpop.xlane.xlu0 %1357
    %v1359 = vsel %vm539, %v300, 0.0
    %1360 = vadd.xlane.f32.xlu0 %v1359
    %v1361 = vpop.xlane.xlu0 %1360
    %v1362 = vsel %vm539, %v301, 0.0
    %1363 = vadd.xlane.f32.xlu0 %v1362
    %v1364 = vpop.xlane.xlu0 %1363
    %v1365 = vsel %vm539, %v302, 0.0
    %1366 = vadd.xlane.f32.xlu0 %v1365
    %v1367 = vpop.xlane.xlu0 %1366
    %v1368 = vsel %vm539, %v303, 0.0
    %1369 = vadd.xlane.f32.xlu0 %v1368
    %v1370 = vpop.xlane.xlu0 %1369
    %v1371 = vsel %vm539, %v304, 0.0
    %1372 = vadd.xlane.f32.xlu0 %v1371
    %v1373 = vpop.xlane.xlu0 %1372
    %v1374 = vsel %vm539, %v305, 0.0
    %1375 = vadd.xlane.f32.xlu0 %v1374
    %v1376 = vpop.xlane.xlu0 %1375
    %v1377 = vsel %vm539, %v306, 0.0
    %1378 = vadd.xlane.f32.xlu0 %v1377
    %v1379 = vpop.xlane.xlu0 %1378
    %v1380 = vsel %vm539, %v307, 0.0
    %1381 = vadd.xlane.f32.xlu0 %v1380
    %v1382 = vpop.xlane.xlu0 %1381
    %v1383 = vsel %vm539, %v308, 0.0
    %1384 = vadd.xlane.f32.xlu0 %v1383
    %v1385 = vpop.xlane.xlu0 %1384
    %v1386 = vsel %vm539, %v309, 0.0
    %1387 = vadd.xlane.f32.xlu0 %v1386
    %v1388 = vpop.xlane.xlu0 %1387
    %v1389 = vsel %vm539, %v310, 0.0
    %1390 = vadd.xlane.f32.xlu0 %v1389
    %v1391 = vpop.xlane.xlu0 %1390
    %v1392 = vsel %vm539, %v311, 0.0
    %1393 = vadd.xlane.f32.xlu0 %v1392
    %v1394 = vpop.xlane.xlu0 %1393
    %v1395 = vsel %vm539, %v312, 0.0
    %1396 = vadd.xlane.f32.xlu0 %v1395
    %v1397 = vpop.xlane.xlu0 %1396
    %v1398 = vsel %vm539, %v313, 0.0
    %1399 = vadd.xlane.f32.xlu0 %v1398
    %v1400 = vpop.xlane.xlu0 %1399
    %v1401 = vsel %vm539, %v314, 0.0
    %1402 = vadd.xlane.f32.xlu0 %v1401
    %v1403 = vpop.xlane.xlu0 %1402
    %v1404 = vsel %vm539, %v315, 0.0
    %1405 = vadd.xlane.f32.xlu0 %v1404
    %v1406 = vpop.xlane.xlu0 %1405
    %v1407 = vsel %vm539, %v316, 0.0
    %1408 = vadd.xlane.f32.xlu0 %v1407
    %v1409 = vpop.xlane.xlu0 %1408
    %v1410 = vsel %vm539, %v317, 0.0
    %1411 = vadd.xlane.f32.xlu0 %v1410
    %v1412 = vpop.xlane.xlu0 %1411
    %v1413 = vsel %vm539, %v318, 0.0
    %1414 = vadd.xlane.f32.xlu0 %v1413
    %v1415 = vpop.xlane.xlu0 %1414
    %v1416 = vsel %vm539, %v319, 0.0
    %1417 = vadd.xlane.f32.xlu0 %v1416
    %v1418 = vpop.xlane.xlu0 %1417
    %v1419 = vsel %vm539, %v320, 0.0
    %1420 = vadd.xlane.f32.xlu0 %v1419
    %v1421 = vpop.xlane.xlu0 %1420
    %v1422 = vsel %vm539, %v321, 0.0
    %1423 = vadd.xlane.f32.xlu0 %v1422
    %v1424 = vpop.xlane.xlu0 %1423
    %v1425 = vsel %vm539, %v322, 0.0
    %1426 = vadd.xlane.f32.xlu0 %v1425
    %v1427 = vpop.xlane.xlu0 %1426
    %v1428 = vsel %vm539, %v323, 0.0
    %1429 = vadd.xlane.f32.xlu0 %v1428
    %v1430 = vpop.xlane.xlu0 %1429
    %v1431 = vsel %vm539, %v324, 0.0
    %1432 = vadd.xlane.f32.xlu0 %v1431
    %v1433 = vpop.xlane.xlu0 %1432
    %v1434 = vsel %vm539, %v325, 0.0
    %1435 = vadd.xlane.f32.xlu0 %v1434
    %v1436 = vpop.xlane.xlu0 %1435
    %v1437 = vsel %vm539, %v326, 0.0
    %1438 = vadd.xlane.f32.xlu0 %v1437
    %v1439 = vpop.xlane.xlu0 %1438
    %v1440 = vsel %vm539, %v327, 0.0
    %1441 = vadd.xlane.f32.xlu0 %v1440
    %v1442 = vpop.xlane.xlu0 %1441
    %v1443 = vsel %vm539, %v328, 0.0
    %1444 = vadd.xlane.f32.xlu0 %v1443
    %v1445 = vpop.xlane.xlu0 %1444
    %v1446 = vsel %vm539, %v329, 0.0
    %1447 = vadd.xlane.f32.xlu0 %v1446
    %v1448 = vpop.xlane.xlu0 %1447
    %v1449 = vsel %vm539, %v330, 0.0
    %1450 = vadd.xlane.f32.xlu0 %v1449
    %v1451 = vpop.xlane.xlu0 %1450
    %v1452 = vsel %vm539, %v331, 0.0
    %1453 = vadd.xlane.f32.xlu0 %v1452
    %v1454 = vpop.xlane.xlu0 %1453
    %v1455 = vsel %vm539, %v332, 0.0
    %1456 = vadd.xlane.f32.xlu0 %v1455
    %v1457 = vpop.xlane.xlu0 %1456
    %v1458 = vsel %vm539, %v333, 0.0
    %1459 = vadd.xlane.f32.xlu0 %v1458
    %v1460 = vpop.xlane.xlu0 %1459
    %v1461 = vsel %vm539, %v334, 0.0
    %1462 = vadd.xlane.f32.xlu0 %v1461
    %v1463 = vpop.xlane.xlu0 %1462
    %v1464 = vsel %vm539, %v335, 0.0
    %1465 = vadd.xlane.f32.xlu0 %v1464
    %v1466 = vpop.xlane.xlu0 %1465
    %v1467 = vsel %vm539, %v336, 0.0
    %1468 = vadd.xlane.f32.xlu0 %v1467
    %v1469 = vpop.xlane.xlu0 %1468
    %v1470 = vsel %vm539, %v337, 0.0
    %1471 = vadd.xlane.f32.xlu0 %v1470
    %v1472 = vpop.xlane.xlu0 %1471
    %v1473 = vsel %vm539, %v338, 0.0
    %1474 = vadd.xlane.f32.xlu0 %v1473
    %v1475 = vpop.xlane.xlu0 %1474
    %v1476 = vsel %vm539, %v339, 0.0
    %1477 = vadd.xlane.f32.xlu0 %v1476
    %v1478 = vpop.xlane.xlu0 %1477
    %v1479 = vsel %vm539, %v340, 0.0
    %1480 = vadd.xlane.f32.xlu0 %v1479
    %v1481 = vpop.xlane.xlu0 %1480
    %v1482 = vsel %vm539, %v341, 0.0
    %1483 = vadd.xlane.f32.xlu0 %v1482
    %v1484 = vpop.xlane.xlu0 %1483
    %v1485 = vsel %vm539, %v342, 0.0
    %1486 = vadd.xlane.f32.xlu0 %v1485
    %v1487 = vpop.xlane.xlu0 %1486
    %v1488 = vsel %vm539, %v343, 0.0
    %1489 = vadd.xlane.f32.xlu0 %v1488
    %v1490 = vpop.xlane.xlu0 %1489
    %v1491 = vsel %vm539, %v344, 0.0
    %1492 = vadd.xlane.f32.xlu0 %v1491
    %v1493 = vpop.xlane.xlu0 %1492
    %v1494 = vsel %vm539, %v345, 0.0
    %1495 = vadd.xlane.f32.xlu0 %v1494
    %v1496 = vpop.xlane.xlu0 %1495
    %v1497 = vsel %vm539, %v346, 0.0
    %1498 = vadd.xlane.f32.xlu0 %v1497
    %v1499 = vpop.xlane.xlu0 %1498
    %v1500 = vsel %vm539, %v347, 0.0
    %1501 = vadd.xlane.f32.xlu0 %v1500
    %v1502 = vpop.xlane.xlu0 %1501
    %v1503 = vsel %vm539, %v348, 0.0
    %1504 = vadd.xlane.f32.xlu0 %v1503
    %v1505 = vpop.xlane.xlu0 %1504
    %v1506 = vsel %vm539, %v349, 0.0
    %1507 = vadd.xlane.f32.xlu0 %v1506
    %v1508 = vpop.xlane.xlu0 %1507
    %v1509 = vsel %vm539, %v350, 0.0
    %1510 = vadd.xlane.f32.xlu0 %v1509
    %v1511 = vpop.xlane.xlu0 %1510
    %v1512 = vsel %vm539, %v351, 0.0
    %1513 = vadd.xlane.f32.xlu0 %v1512
    %v1514 = vpop.xlane.xlu0 %1513
    %v1515 = vsel %vm539, %v352, 0.0
    %1516 = vadd.xlane.f32.xlu0 %v1515
    %v1517 = vpop.xlane.xlu0 %1516
    %v1518 = vsel %vm539, %v353, 0.0
    %1519 = vadd.xlane.f32.xlu0 %v1518
    %v1520 = vpop.xlane.xlu0 %1519
    %v1521 = vsel %vm539, %v354, 0.0
    %1522 = vadd.xlane.f32.xlu0 %v1521
    %v1523 = vpop.xlane.xlu0 %1522
    %v1524 = vsel %vm539, %v355, 0.0
    %1525 = vadd.xlane.f32.xlu0 %v1524
    %v1526 = vpop.xlane.xlu0 %1525
    %v1527 = vsel %vm539, %v356, 0.0
    %1528 = vadd.xlane.f32.xlu0 %v1527
    %v1529 = vpop.xlane.xlu0 %1528
    %v1530 = vsel %vm539, %v357, 0.0
    %1531 = vadd.xlane.f32.xlu0 %v1530
    %v1532 = vpop.xlane.xlu0 %1531
    %v1533 = vsel %vm539, %v358, 0.0
    %1534 = vadd.xlane.f32.xlu0 %v1533
    %v1535 = vpop.xlane.xlu0 %1534
    %v1536 = vsel %vm539, %v359, 0.0
    %1537 = vadd.xlane.f32.xlu0 %v1536
    %v1538 = vpop.xlane.xlu0 %1537
    %v1539 = vsel %vm539, %v360, 0.0
    %1540 = vadd.xlane.f32.xlu0 %v1539
    %v1541 = vpop.xlane.xlu0 %1540
    %v1542 = vsel %vm539, %v361, 0.0
    %1543 = vadd.xlane.f32.xlu0 %v1542
    %v1544 = vpop.xlane.xlu0 %1543
    %v1545 = vsel %vm539, %v362, 0.0
    %1546 = vadd.xlane.f32.xlu0 %v1545
    %v1547 = vpop.xlane.xlu0 %1546
    %v1548 = vsel %vm539, %v363, 0.0
    %1549 = vadd.xlane.f32.xlu0 %v1548
    %v1550 = vpop.xlane.xlu0 %1549
    %v1551 = vsel %vm539, %v364, 0.0
    %1552 = vadd.xlane.f32.xlu0 %v1551
    %v1553 = vpop.xlane.xlu0 %1552
    %v1554 = vsel %vm539, %v365, 0.0
    %1555 = vadd.xlane.f32.xlu0 %v1554
    %v1556 = vpop.xlane.xlu0 %1555
    %v1557 = vsel %vm539, %v366, 0.0
    %1558 = vadd.xlane.f32.xlu0 %v1557
    %v1559 = vpop.xlane.xlu0 %1558
    %v1560 = vsel %vm539, %v367, 0.0
    %1561 = vadd.xlane.f32.xlu0 %v1560
    %v1562 = vpop.xlane.xlu0 %1561
    %v1563 = vsel %vm539, %v368, 0.0
    %1564 = vadd.xlane.f32.xlu0 %v1563
    %v1565 = vpop.xlane.xlu0 %1564
    %v1566 = vsel %vm539, %v369, 0.0
    %1567 = vadd.xlane.f32.xlu0 %v1566
    %v1568 = vpop.xlane.xlu0 %1567
    %v1569 = vsel %vm539, %v370, 0.0
    %1570 = vadd.xlane.f32.xlu0 %v1569
    %v1571 = vpop.xlane.xlu0 %1570
    %v1572 = vsel %vm539, %v371, 0.0
    %1573 = vadd.xlane.f32.xlu0 %v1572
    %v1574 = vpop.xlane.xlu0 %1573
    %v1575 = vsel %vm539, %v372, 0.0
    %1576 = vadd.xlane.f32.xlu0 %v1575
    %v1577 = vpop.xlane.xlu0 %1576
    %v1578 = vsel %vm539, %v373, 0.0
    %1579 = vadd.xlane.f32.xlu0 %v1578
    %v1580 = vpop.xlane.xlu0 %1579
    %v1581 = vsel %vm539, %v374, 0.0
    %1582 = vadd.xlane.f32.xlu0 %v1581
    %v1583 = vpop.xlane.xlu0 %1582
    %v1584 = vsel %vm539, %v375, 0.0
    %1585 = vadd.xlane.f32.xlu0 %v1584
    %v1586 = vpop.xlane.xlu0 %1585
    %v1587 = vsel %vm539, %v376, 0.0
    %1588 = vadd.xlane.f32.xlu0 %v1587
    %v1589 = vpop.xlane.xlu0 %1588
    %v1590 = vsel %vm539, %v377, 0.0
    %1591 = vadd.xlane.f32.xlu0 %v1590
    %v1592 = vpop.xlane.xlu0 %1591
    %v1593 = vsel %vm539, %v378, 0.0
    %1594 = vadd.xlane.f32.xlu0 %v1593
    %v1595 = vpop.xlane.xlu0 %1594
    %v1596 = vsel %vm539, %v379, 0.0
    %1597 = vadd.xlane.f32.xlu0 %v1596
    %v1598 = vpop.xlane.xlu0 %1597
    %v1599 = vsel %vm539, %v380, 0.0
    %1600 = vadd.xlane.f32.xlu0 %v1599
    %v1601 = vpop.xlane.xlu0 %1600
    %v1602 = vsel %vm539, %v381, 0.0
    %1603 = vadd.xlane.f32.xlu0 %v1602
    %v1604 = vpop.xlane.xlu0 %1603
    %v1605 = vsel %vm539, %v382, 0.0
    %1606 = vadd.xlane.f32.xlu0 %v1605
    %v1607 = vpop.xlane.xlu0 %1606
    %v1608 = vsel %vm539, %v383, 0.0
    %1609 = vadd.xlane.f32.xlu0 %v1608
    %v1610 = vpop.xlane.xlu0 %1609
    %v1611 = vsel %vm539, %v384, 0.0
    %1612 = vadd.xlane.f32.xlu0 %v1611
    %v1613 = vpop.xlane.xlu0 %1612
    %v1614 = vsel %vm539, %v385, 0.0
    %1615 = vadd.xlane.f32.xlu0 %v1614
    %v1616 = vpop.xlane.xlu0 %1615
    %v1617 = vsel %vm539, %v386, 0.0
    %1618 = vadd.xlane.f32.xlu0 %v1617
    %v1619 = vpop.xlane.xlu0 %1618
    %v1620 = vsel %vm539, %v387, 0.0
    %1621 = vadd.xlane.f32.xlu0 %v1620
    %v1622 = vpop.xlane.xlu0 %1621
    %v1623 = vsel %vm539, %v388, 0.0
    %1624 = vadd.xlane.f32.xlu0 %v1623
    %v1625 = vpop.xlane.xlu0 %1624
    %v1626 = vsel %vm539, %v389, 0.0
    %1627 = vadd.xlane.f32.xlu0 %v1626
    %v1628 = vpop.xlane.xlu0 %1627
    %v1629 = vsel %vm539, %v390, 0.0
    %1630 = vadd.xlane.f32.xlu0 %v1629
    %v1631 = vpop.xlane.xlu0 %1630
    %v1632 = vsel %vm539, %v391, 0.0
    %1633 = vadd.xlane.f32.xlu0 %v1632
    %v1634 = vpop.xlane.xlu0 %1633
    %v1635 = vsel %vm539, %v392, 0.0
    %1636 = vadd.xlane.f32.xlu0 %v1635
    %v1637 = vpop.xlane.xlu0 %1636
    %v1638 = vsel %vm539, %v393, 0.0
    %1639 = vadd.xlane.f32.xlu0 %v1638
    %v1640 = vpop.xlane.xlu0 %1639
    %v1641 = vsel %vm539, %v394, 0.0
    %1642 = vadd.xlane.f32.xlu0 %v1641
    %v1643 = vpop.xlane.xlu0 %1642
    %v1644 = vsel %vm539, %v395, 0.0
    %1645 = vadd.xlane.f32.xlu0 %v1644
    %v1646 = vpop.xlane.xlu0 %1645
    %v1647 = vsel %vm539, %v396, 0.0
    %1648 = vadd.xlane.f32.xlu0 %v1647
    %v1649 = vpop.xlane.xlu0 %1648
    %v1650 = vsel %vm539, %v397, 0.0
    %1651 = vadd.xlane.f32.xlu0 %v1650
    %v1652 = vpop.xlane.xlu0 %1651
    %v1653 = vsel %vm539, %v398, 0.0
    %1654 = vadd.xlane.f32.xlu0 %v1653
    %v1655 = vpop.xlane.xlu0 %1654
    %v1656 = vsel %vm539, %v399, 0.0
    %1657 = vadd.xlane.f32.xlu0 %v1656
    %v1658 = vpop.xlane.xlu0 %1657
    %v1659 = vsel %vm539, %v400, 0.0
    %1660 = vadd.xlane.f32.xlu0 %v1659
    %v1661 = vpop.xlane.xlu0 %1660
    %v1662 = vsel %vm539, %v401, 0.0
    %1663 = vadd.xlane.f32.xlu0 %v1662
    %v1664 = vpop.xlane.xlu0 %1663
    %v1665 = vsel %vm539, %v402, 0.0
    %1666 = vadd.xlane.f32.xlu0 %v1665
    %v1667 = vpop.xlane.xlu0 %1666
    %v1668 = vsel %vm539, %v403, 0.0
    %1669 = vadd.xlane.f32.xlu0 %v1668
    %v1670 = vpop.xlane.xlu0 %1669
    %v1671 = vsel %vm539, %v404, 0.0
    %1672 = vadd.xlane.f32.xlu0 %v1671
    %v1673 = vpop.xlane.xlu0 %1672
    %v1674 = vsel %vm539, %v405, 0.0
    %1675 = vadd.xlane.f32.xlu0 %v1674
    %v1676 = vpop.xlane.xlu0 %1675
    %v1677 = vsel %vm539, %v406, 0.0
    %1678 = vadd.xlane.f32.xlu0 %v1677
    %v1679 = vpop.xlane.xlu0 %1678
    %v1680 = vsel %vm539, %v407, 0.0
    %1681 = vadd.xlane.f32.xlu0 %v1680
    %v1682 = vpop.xlane.xlu0 %1681
    %v1683 = vsel %vm539, %v408, 0.0
    %1684 = vadd.xlane.f32.xlu0 %v1683
    %v1685 = vpop.xlane.xlu0 %1684
    %v1686 = vsel %vm539, %v409, 0.0
    %1687 = vadd.xlane.f32.xlu0 %v1686
    %v1688 = vpop.xlane.xlu0 %1687
    %v1689 = vsel %vm539, %v410, 0.0
    %1690 = vadd.xlane.f32.xlu0 %v1689
    %v1691 = vpop.xlane.xlu0 %1690
    %v1692 = vsel %vm539, %v411, 0.0
    %1693 = vadd.xlane.f32.xlu0 %v1692
    %v1694 = vpop.xlane.xlu0 %1693
    %v1695 = vsel %vm539, %v412, 0.0
    %1696 = vadd.xlane.f32.xlu0 %v1695
    %v1697 = vpop.xlane.xlu0 %1696
    %v1698 = vsel %vm539, %v413, 0.0
    %1699 = vadd.xlane.f32.xlu0 %v1698
    %v1700 = vpop.xlane.xlu0 %1699
    %v1701 = vsel %vm539, %v414, 0.0
    %1702 = vadd.xlane.f32.xlu0 %v1701
    %v1703 = vpop.xlane.xlu0 %1702
    %v1704 = vsel %vm539, %v415, 0.0
    %1705 = vadd.xlane.f32.xlu0 %v1704
    %v1706 = vpop.xlane.xlu0 %1705
    %v1707 = vsel %vm539, %v416, 0.0
    %1708 = vadd.xlane.f32.xlu0 %v1707
    %v1709 = vpop.xlane.xlu0 %1708
    %v1710 = vsel %vm539, %v417, 0.0
    %1711 = vadd.xlane.f32.xlu0 %v1710
    %v1712 = vpop.xlane.xlu0 %1711
    %v1713 = vsel %vm539, %v418, 0.0
    %1714 = vadd.xlane.f32.xlu0 %v1713
    %v1715 = vpop.xlane.xlu0 %1714
    %v1716 = vsel %vm539, %v419, 0.0
    %1717 = vadd.xlane.f32.xlu0 %v1716
    %v1718 = vpop.xlane.xlu0 %1717
    %v1719 = vsel %vm539, %v420, 0.0
    %1720 = vadd.xlane.f32.xlu0 %v1719
    %v1721 = vpop.xlane.xlu0 %1720
    %v1722 = vsel %vm539, %v421, 0.0
    %1723 = vadd.xlane.f32.xlu0 %v1722
    %v1724 = vpop.xlane.xlu0 %1723
    %v1725 = vsel %vm539, %v422, 0.0
    %1726 = vadd.xlane.f32.xlu0 %v1725
    %v1727 = vpop.xlane.xlu0 %1726
    %v1728 = vsel %vm539, %v423, 0.0
    %1729 = vadd.xlane.f32.xlu0 %v1728
    %v1730 = vpop.xlane.xlu0 %1729
    %v1731 = vsel %vm539, %v424, 0.0
    %1732 = vadd.xlane.f32.xlu0 %v1731
    %v1733 = vpop.xlane.xlu0 %1732
    %v1734 = vsel %vm539, %v425, 0.0
    %1735 = vadd.xlane.f32.xlu0 %v1734
    %v1736 = vpop.xlane.xlu0 %1735
    %v1737 = vsel %vm539, %v426, 0.0
    %1738 = vadd.xlane.f32.xlu0 %v1737
    %v1739 = vpop.xlane.xlu0 %1738
    %v1740 = vsel %vm539, %v427, 0.0
    %1741 = vadd.xlane.f32.xlu0 %v1740
    %v1742 = vpop.xlane.xlu0 %1741
    %v1743 = vsel %vm539, %v428, 0.0
    %1744 = vadd.xlane.f32.xlu0 %v1743
    %v1745 = vpop.xlane.xlu0 %1744
    %v1746 = vsel %vm539, %v429, 0.0
    %1747 = vadd.xlane.f32.xlu0 %v1746
    %v1748 = vpop.xlane.xlu0 %1747
    %v1749 = vsel %vm539, %v430, 0.0
    %1750 = vadd.xlane.f32.xlu0 %v1749
    %v1751 = vpop.xlane.xlu0 %1750
    %v1752 = vsel %vm539, %v431, 0.0
    %1753 = vadd.xlane.f32.xlu0 %v1752
    %v1754 = vpop.xlane.xlu0 %1753
    %v1755 = vsel %vm539, %v432, 0.0
    %1756 = vadd.xlane.f32.xlu0 %v1755
    %v1757 = vpop.xlane.xlu0 %1756
    %v1758 = vsel %vm539, %v433, 0.0
    %1759 = vadd.xlane.f32.xlu0 %v1758
    %v1760 = vpop.xlane.xlu0 %1759
    %v1761 = vsel %vm539, %v434, 0.0
    %1762 = vadd.xlane.f32.xlu0 %v1761
    %v1763 = vpop.xlane.xlu0 %1762
    %v1764 = vsel %vm539, %v435, 0.0
    %1765 = vadd.xlane.f32.xlu0 %v1764
    %v1766 = vpop.xlane.xlu0 %1765
    %v1767 = vsel %vm539, %v436, 0.0
    %1768 = vadd.xlane.f32.xlu0 %v1767
    %v1769 = vpop.xlane.xlu0 %1768
    %v1770 = vsel %vm539, %v437, 0.0
    %1771 = vadd.xlane.f32.xlu0 %v1770
    %v1772 = vpop.xlane.xlu0 %1771
    %v1773 = vsel %vm539, %v438, 0.0
    %1774 = vadd.xlane.f32.xlu0 %v1773
    %v1775 = vpop.xlane.xlu0 %1774
    %v1776 = vsel %vm539, %v439, 0.0
    %1777 = vadd.xlane.f32.xlu0 %v1776
    %v1778 = vpop.xlane.xlu0 %1777
    %v1779 = vsel %vm539, %v440, 0.0
    %1780 = vadd.xlane.f32.xlu0 %v1779
    %v1781 = vpop.xlane.xlu0 %1780
    %v1782 = vsel %vm539, %v441, 0.0
    %1783 = vadd.xlane.f32.xlu0 %v1782
    %v1784 = vpop.xlane.xlu0 %1783
    %v1785 = vsel %vm539, %v442, 0.0
    %1786 = vadd.xlane.f32.xlu0 %v1785
    %v1787 = vpop.xlane.xlu0 %1786
    %v1788 = vsel %vm539, %v443, 0.0
    %1789 = vadd.xlane.f32.xlu0 %v1788
    %v1790 = vpop.xlane.xlu0 %1789
    %v1791 = vsel %vm539, %v444, 0.0
    %1792 = vadd.xlane.f32.xlu0 %v1791
    %v1793 = vpop.xlane.xlu0 %1792
    %v1794 = vsel %vm539, %v445, 0.0
    %1795 = vadd.xlane.f32.xlu0 %v1794
    %v1796 = vpop.xlane.xlu0 %1795
    %v1797 = vsel %vm539, %v446, 0.0
    %1798 = vadd.xlane.f32.xlu0 %v1797
    %v1799 = vpop.xlane.xlu0 %1798
    %v1800 = vsel %vm539, %v447, 0.0
    %1801 = vadd.xlane.f32.xlu0 %v1800
    %v1802 = vpop.xlane.xlu0 %1801
    %v1803 = vsel %vm539, %v448, 0.0
    %1804 = vadd.xlane.f32.xlu0 %v1803
    %v1805 = vpop.xlane.xlu0 %1804
    %v1806 = vsel %vm539, %v449, 0.0
    %1807 = vadd.xlane.f32.xlu0 %v1806
    %v1808 = vpop.xlane.xlu0 %1807
    %v1809 = vsel %vm539, %v450, 0.0
    %1810 = vadd.xlane.f32.xlu0 %v1809
    %v1811 = vpop.xlane.xlu0 %1810
    %v1812 = vsel %vm539, %v451, 0.0
    %1813 = vadd.xlane.f32.xlu0 %v1812
    %v1814 = vpop.xlane.xlu0 %1813
    %v1815 = vsel %vm539, %v452, 0.0
    %1816 = vadd.xlane.f32.xlu0 %v1815
    %v1817 = vpop.xlane.xlu0 %1816
    %v1818 = vsel %vm539, %v453, 0.0
    %1819 = vadd.xlane.f32.xlu0 %v1818
    %v1820 = vpop.xlane.xlu0 %1819
    %v1821 = vsel %vm539, %v454, 0.0
    %1822 = vadd.xlane.f32.xlu0 %v1821
    %v1823 = vpop.xlane.xlu0 %1822
    %v1824 = vsel %vm539, %v455, 0.0
    %1825 = vadd.xlane.f32.xlu0 %v1824
    %v1826 = vpop.xlane.xlu0 %1825
    %v1827 = vsel %vm539, %v456, 0.0
    %1828 = vadd.xlane.f32.xlu0 %v1827
    %v1829 = vpop.xlane.xlu0 %1828
    %v1830 = vsel %vm539, %v457, 0.0
    %1831 = vadd.xlane.f32.xlu0 %v1830
    %v1832 = vpop.xlane.xlu0 %1831
    %v1833 = vsel %vm539, %v458, 0.0
    %1834 = vadd.xlane.f32.xlu0 %v1833
    %v1835 = vpop.xlane.xlu0 %1834
    %v1836 = vsel %vm539, %v459, 0.0
    %1837 = vadd.xlane.f32.xlu0 %v1836
    %v1838 = vpop.xlane.xlu0 %1837
    %v1839 = vsel %vm539, %v460, 0.0
    %1840 = vadd.xlane.f32.xlu0 %v1839
    %v1841 = vpop.xlane.xlu0 %1840
    %v1842 = vsel %vm539, %v461, 0.0
    %1843 = vadd.xlane.f32.xlu0 %v1842
    %v1844 = vpop.xlane.xlu0 %1843
    %v1845 = vsel %vm539, %v462, 0.0
    %1846 = vadd.xlane.f32.xlu0 %v1845
    %v1847 = vpop.xlane.xlu0 %1846
    %v1848 = vsel %vm539, %v463, 0.0
    %1849 = vadd.xlane.f32.xlu0 %v1848
    %v1850 = vpop.xlane.xlu0 %1849
    %v1851 = vsel %vm539, %v464, 0.0
    %1852 = vadd.xlane.f32.xlu0 %v1851
    %v1853 = vpop.xlane.xlu0 %1852
    %v1854 = vsel %vm539, %v465, 0.0
    %1855 = vadd.xlane.f32.xlu0 %v1854
    %v1856 = vpop.xlane.xlu0 %1855
    %v1857 = vsel %vm539, %v466, 0.0
    %1858 = vadd.xlane.f32.xlu0 %v1857
    %v1859 = vpop.xlane.xlu0 %1858
    %v1860 = vsel %vm539, %v467, 0.0
    %1861 = vadd.xlane.f32.xlu0 %v1860
    %v1862 = vpop.xlane.xlu0 %1861
    %v1863 = vsel %vm539, %v468, 0.0
    %1864 = vadd.xlane.f32.xlu0 %v1863
    %v1865 = vpop.xlane.xlu0 %1864
    %v1866 = vsel %vm539, %v469, 0.0
    %1867 = vadd.xlane.f32.xlu0 %v1866
    %v1868 = vpop.xlane.xlu0 %1867
    %v1869 = vsel %vm539, %v470, 0.0
    %1870 = vadd.xlane.f32.xlu0 %v1869
    %v1871 = vpop.xlane.xlu0 %1870
    %v1872 = vsel %vm539, %v471, 0.0
    %1873 = vadd.xlane.f32.xlu0 %v1872
    %v1874 = vpop.xlane.xlu0 %1873
    %v1875 = vsel %vm539, %v472, 0.0
    %1876 = vadd.xlane.f32.xlu0 %v1875
    %v1877 = vpop.xlane.xlu0 %1876
    %v1878 = vsel %vm539, %v473, 0.0
    %1879 = vadd.xlane.f32.xlu0 %v1878
    %v1880 = vpop.xlane.xlu0 %1879
    %v1881 = vsel %vm539, %v474, 0.0
    %1882 = vadd.xlane.f32.xlu0 %v1881
    %v1883 = vpop.xlane.xlu0 %1882
    %v1884 = vsel %vm539, %v475, 0.0
    %1885 = vadd.xlane.f32.xlu0 %v1884
    %v1886 = vpop.xlane.xlu0 %1885
    %v1887 = vsel %vm539, %v476, 0.0
    %1888 = vadd.xlane.f32.xlu0 %v1887
    %v1889 = vpop.xlane.xlu0 %1888
    %v1890 = vsel %vm539, %v477, 0.0
    %1891 = vadd.xlane.f32.xlu0 %v1890
    %v1892 = vpop.xlane.xlu0 %1891
    %v1893 = vsel %vm539, %v478, 0.0
    %1894 = vadd.xlane.f32.xlu0 %v1893
    %v1895 = vpop.xlane.xlu0 %1894
    %v1896 = vsel %vm539, %v479, 0.0
    %1897 = vadd.xlane.f32.xlu0 %v1896
    %v1898 = vpop.xlane.xlu0 %1897
    %v1899 = vsel %vm539, %v480, 0.0
    %1900 = vadd.xlane.f32.xlu0 %v1899
    %v1901 = vpop.xlane.xlu0 %1900
    %v1902 = vsel %vm539, %v481, 0.0
    %1903 = vadd.xlane.f32.xlu0 %v1902
    %v1904 = vpop.xlane.xlu0 %1903
    %v1905 = vsel %vm539, %v482, 0.0
    %1906 = vadd.xlane.f32.xlu0 %v1905
    %v1907 = vpop.xlane.xlu0 %1906
    %v1908 = vsel %vm539, %v483, 0.0
    %1909 = vadd.xlane.f32.xlu0 %v1908
    %v1910 = vpop.xlane.xlu0 %1909
    %v1911 = vsel %vm539, %v484, 0.0
    %1912 = vadd.xlane.f32.xlu0 %v1911
    %v1913 = vpop.xlane.xlu0 %1912
    %v1914 = vsel %vm539, %v485, 0.0
    %1915 = vadd.xlane.f32.xlu0 %v1914
    %v1916 = vpop.xlane.xlu0 %1915
    %v1917 = vsel %vm539, %v486, 0.0
    %1918 = vadd.xlane.f32.xlu0 %v1917
    %v1919 = vpop.xlane.xlu0 %1918
    %v1920 = vsel %vm539, %v487, 0.0
    %1921 = vadd.xlane.f32.xlu0 %v1920
    %v1922 = vpop.xlane.xlu0 %1921
    %v1923 = vsel %vm539, %v488, 0.0
    %1924 = vadd.xlane.f32.xlu0 %v1923
    %v1925 = vpop.xlane.xlu0 %1924
    %v1926 = vsel %vm539, %v489, 0.0
    %1927 = vadd.xlane.f32.xlu0 %v1926
    %v1928 = vpop.xlane.xlu0 %1927
    %v1929 = vsel %vm539, %v490, 0.0
    %1930 = vadd.xlane.f32.xlu0 %v1929
    %v1931 = vpop.xlane.xlu0 %1930
    %v1932 = vsel %vm539, %v491, 0.0
    %1933 = vadd.xlane.f32.xlu0 %v1932
    %v1934 = vpop.xlane.xlu0 %1933
    %v1935 = vsel %vm539, %v492, 0.0
    %1936 = vadd.xlane.f32.xlu0 %v1935
    %v1937 = vpop.xlane.xlu0 %1936
    %v1938 = vsel %vm539, %v493, 0.0
    %1939 = vadd.xlane.f32.xlu0 %v1938
    %v1940 = vpop.xlane.xlu0 %1939
    %v1941 = vsel %vm539, %v494, 0.0
    %1942 = vadd.xlane.f32.xlu0 %v1941
    %v1943 = vpop.xlane.xlu0 %1942
    %v1944 = vsel %vm539, %v495, 0.0
    %1945 = vadd.xlane.f32.xlu0 %v1944
    %v1946 = vpop.xlane.xlu0 %1945
    %v1947 = vsel %vm539, %v496, 0.0
    %1948 = vadd.xlane.f32.xlu0 %v1947
    %v1949 = vpop.xlane.xlu0 %1948
    %v1950 = vsel %vm539, %v497, 0.0
    %1951 = vadd.xlane.f32.xlu0 %v1950
    %v1952 = vpop.xlane.xlu0 %1951
    %v1953 = vsel %vm539, %v498, 0.0
    %1954 = vadd.xlane.f32.xlu0 %v1953
    %v1955 = vpop.xlane.xlu0 %1954
    %v1956 = vsel %vm539, %v499, 0.0
    %1957 = vadd.xlane.f32.xlu0 %v1956
    %v1958 = vpop.xlane.xlu0 %1957
    %v1959 = vsel %vm539, %v500, 0.0
    %1960 = vadd.xlane.f32.xlu0 %v1959
    %v1961 = vpop.xlane.xlu0 %1960
    %v1962 = vsel %vm539, %v501, 0.0
    %1963 = vadd.xlane.f32.xlu0 %v1962
    %v1964 = vpop.xlane.xlu0 %1963
    %v1965 = vsel %vm539, %v502, 0.0
    %1966 = vadd.xlane.f32.xlu0 %v1965
    %v1967 = vpop.xlane.xlu0 %1966
    %v1968 = vsel %vm539, %v503, 0.0
    %1969 = vadd.xlane.f32.xlu0 %v1968
    %v1970 = vpop.xlane.xlu0 %1969
    %v1971 = vsel %vm539, %v504, 0.0
    %1972 = vadd.xlane.f32.xlu0 %v1971
    %v1973 = vpop.xlane.xlu0 %1972
    %v1974 = vsel %vm539, %v505, 0.0
    %1975 = vadd.xlane.f32.xlu0 %v1974
    %v1976 = vpop.xlane.xlu0 %1975
    %v1977 = vsel %vm539, %v506, 0.0
    %1978 = vadd.xlane.f32.xlu0 %v1977
    %v1979 = vpop.xlane.xlu0 %1978
    %v1980 = vsel %vm539, %v507, 0.0
    %1981 = vadd.xlane.f32.xlu0 %v1980
    %v1982 = vpop.xlane.xlu0 %1981
    %v1983 = vsel %vm539, %v508, 0.0
    %1984 = vadd.xlane.f32.xlu0 %v1983
    %v1985 = vpop.xlane.xlu0 %1984
    %v1986 = vsel %vm539, %v509, 0.0
    %1987 = vadd.xlane.f32.xlu0 %v1986
    %v1988 = vpop.xlane.xlu0 %1987
    %v1989 = vsel %vm539, %v510, 0.0
    %1990 = vadd.xlane.f32.xlu0 %v1989
    %v1991 = vpop.xlane.xlu0 %1990
    %v1992 = vsel %vm539, %v511, 0.0
    %1993 = vadd.xlane.f32.xlu0 %v1992
    %v1994 = vpop.xlane.xlu0 %1993
    %v1995 = vsel %vm539, %v512, 0.0
    %1996 = vadd.xlane.f32.xlu0 %v1995
    %v1997 = vpop.xlane.xlu0 %1996
    %v1998 = vsel %vm539, %v513, 0.0
    %1999 = vadd.xlane.f32.xlu0 %v1998
    %v2000 = vpop.xlane.xlu0 %1999
    %v2001 = vsel %vm539, %v514, 0.0
    %2002 = vadd.xlane.f32.xlu0 %v2001
    %v2003 = vpop.xlane.xlu0 %2002
    %v2004 = vsel %vm539, %v515, 0.0
    %2005 = vadd.xlane.f32.xlu0 %v2004
    %v2006 = vpop.xlane.xlu0 %2005
    %v2007 = vsel %vm539, %v516, 0.0
    %2008 = vadd.xlane.f32.xlu0 %v2007
    %v2009 = vpop.xlane.xlu0 %2008
    %v2010 = vsel %vm539, %v517, 0.0
    %2011 = vadd.xlane.f32.xlu0 %v2010
    %v2012 = vpop.xlane.xlu0 %2011
    %v2013 = vsel %vm539, %v518, 0.0
    %2014 = vadd.xlane.f32.xlu0 %v2013
    %v2015 = vpop.xlane.xlu0 %2014
    %v2016 = vsel %vm539, %v519, 0.0
    %2017 = vadd.xlane.f32.xlu0 %v2016
    %v2018 = vpop.xlane.xlu0 %2017
    %v2019 = vsel %vm539, %v520, 0.0
    %2020 = vadd.xlane.f32.xlu0 %v2019
    %v2021 = vpop.xlane.xlu0 %2020
    %v2022 = vsel %vm539, %v521, 0.0
    %2023 = vadd.xlane.f32.xlu0 %v2022
    %v2024 = vpop.xlane.xlu0 %2023
    %v2025 = vsel %vm539, %v522, 0.0
    %2026 = vadd.xlane.f32.xlu0 %v2025
    %v2027 = vpop.xlane.xlu0 %2026
    %v2028 = vsel %vm539, %v523, 0.0
    %2029 = vadd.xlane.f32.xlu0 %v2028
    %v2030 = vpop.xlane.xlu0 %2029
    %v2031 = vsel %vm539, %v524, 0.0
    %2032 = vadd.xlane.f32.xlu0 %v2031
    %v2033 = vpop.xlane.xlu0 %2032
    %v2034 = vsel %vm539, %v525, 0.0
    %2035 = vadd.xlane.f32.xlu0 %v2034
    %v2036 = vpop.xlane.xlu0 %2035
    %v2037 = vsel %vm539, %v526, 0.0
    %2038 = vadd.xlane.f32.xlu0 %v2037
    %v2039 = vpop.xlane.xlu0 %2038
    %v2040 = vsel %vm539, %v527, 0.0
    %2041 = vadd.xlane.f32.xlu0 %v2040
    %v2042 = vpop.xlane.xlu0 %2041
    %v2043 = vsel %vm539, %v528, 0.0
    %2044 = vadd.xlane.f32.xlu0 %v2043
    %v2045 = vpop.xlane.xlu0 %2044
    %v2046 = vsel %vm539, %v529, 0.0
    %2047 = vadd.xlane.f32.xlu0 %v2046
    %v2048 = vpop.xlane.xlu0 %2047
    %v2049 = vsel %vm539, %v530, 0.0
    %2050 = vadd.xlane.f32.xlu0 %v2049
    %v2051 = vpop.xlane.xlu0 %2050
    %v2052 = vsel %vm539, %v531, 0.0
    %2053 = vadd.xlane.f32.xlu0 %v2052
    %v2054 = vpop.xlane.xlu0 %2053
    %v2055 = vsel %vm539, %v532, 0.0
    %2056 = vadd.xlane.f32.xlu0 %v2055
    %v2057 = vpop.xlane.xlu0 %2056
    %v2058 = vsel %vm539, %v533, 0.0
    %2059 = vadd.xlane.f32.xlu0 %v2058
    %v2060 = vpop.xlane.xlu0 %2059
    %v2061 = vsel %vm539, %v534, 0.0
    %2062 = vadd.xlane.f32.xlu0 %v2061
    %v2063 = vpop.xlane.xlu0 %2062
    %v2064 = vsel %vm539, %v535, 0.0
    %2065 = vadd.xlane.f32.xlu0 %v2064
    %v2066 = vpop.xlane.xlu0 %2065
    %v2067 = vsel %vm539, %v536, 0.0
    %2068 = vadd.xlane.f32.xlu0 %v2067
    %v2069 = vpop.xlane.xlu0 %2068
    %v2070 = vsel %vm539, %v537, 0.0
    %2071 = vadd.xlane.f32.xlu0 %v2070
    %v2072 = vpop.xlane.xlu0 %2071
    %v2073 = vsel %vm539, %v538, 0.0
    %2074 = vadd.xlane.f32.xlu0 %v2073
    %v2075 = vpop.xlane.xlu0 %2074
    %v2076 = vld [vmem:[#allocation2] sm:$0xff]
    %v2077 = vpack.c.bf16 %v545, %v542
    %v2078 = vpack.c.bf16 %v551, %v548
    %v2079 = vpack.c.bf16 %v557, %v554
    %v2080 = vpack.c.bf16 %v563, %v560
    %v2081 = vpack.c.bf16 %v569, %v566
    %v2082 = vpack.c.bf16 %v575, %v572
    %v2083 = vpack.c.bf16 %v581, %v578
    %v2084 = vpack.c.bf16 %v587, %v584
    %v2085 = vpack.c.bf16 %v593, %v590
    %v2086 = vpack.c.bf16 %v599, %v596
    %v2087 = vpack.c.bf16 %v605, %v602
    %v2088 = vpack.c.bf16 %v611, %v608
    %v2089 = vpack.c.bf16 %v617, %v614
    %v2090 = vpack.c.bf16 %v623, %v620
    %v2091 = vpack.c.bf16 %v629, %v626
    %v2092 = vpack.c.bf16 %v635, %v632
    %v2093 = vpack.c.bf16 %v641, %v638
    %v2094 = vpack.c.bf16 %v647, %v644
    %v2095 = vpack.c.bf16 %v653, %v650
    %v2096 = vpack.c.bf16 %v659, %v656
    %v2097 = vpack.c.bf16 %v665, %v662
    %v2098 = vpack.c.bf16 %v671, %v668
    %v2099 = vpack.c.bf16 %v677, %v674
    %v2100 = vpack.c.bf16 %v683, %v680
    %v2101 = vpack.c.bf16 %v689, %v686
    %v2102 = vpack.c.bf16 %v695, %v692
    %v2103 = vpack.c.bf16 %v701, %v698
    %v2104 = vpack.c.bf16 %v707, %v704
    %v2105 = vpack.c.bf16 %v713, %v710
    %v2106 = vpack.c.bf16 %v719, %v716
    %v2107 = vpack.c.bf16 %v725, %v722
    %v2108 = vpack.c.bf16 %v731, %v728
    %v2109 = vpack.c.bf16 %v737, %v734
    %v2110 = vpack.c.bf16 %v743, %v740
    %v2111 = vpack.c.bf16 %v749, %v746
    %v2112 = vpack.c.bf16 %v755, %v752
    %v2113 = vpack.c.bf16 %v761, %v758
    %v2114 = vpack.c.bf16 %v767, %v764
    %v2115 = vpack.c.bf16 %v773, %v770
    %v2116 = vpack.c.bf16 %v779, %v776
    %v2117 = vpack.c.bf16 %v785, %v782
    %v2118 = vpack.c.bf16 %v791, %v788
    %v2119 = vpack.c.bf16 %v797, %v794
    %v2120 = vpack.c.bf16 %v803, %v800
    %v2121 = vpack.c.bf16 %v809, %v806
    %v2122 = vpack.c.bf16 %v815, %v812
    %v2123 = vpack.c.bf16 %v821, %v818
    %v2124 = vpack.c.bf16 %v827, %v824
    %v2125 = vpack.c.bf16 %v833, %v830
    %v2126 = vpack.c.bf16 %v839, %v836
    %v2127 = vpack.c.bf16 %v845, %v842
    %v2128 = vpack.c.bf16 %v851, %v848
    %v2129 = vpack.c.bf16 %v857, %v854
    %v2130 = vpack.c.bf16 %v863, %v860
    %v2131 = vpack.c.bf16 %v869, %v866
    %v2132 = vpack.c.bf16 %v875, %v872
    %v2133 = vpack.c.bf16 %v881, %v878
    %v2134 = vpack.c.bf16 %v887, %v884
    %v2135 = vpack.c.bf16 %v893, %v890
    %v2136 = vpack.c.bf16 %v899, %v896
    %v2137 = vpack.c.bf16 %v905, %v902
    %v2138 = vpack.c.bf16 %v911, %v908
    %v2139 = vpack.c.bf16 %v917, %v914
    %v2140 = vpack.c.bf16 %v923, %v920
    %v2141 = vpack.c.bf16 %v929, %v926
    %v2142 = vpack.c.bf16 %v935, %v932
    %v2143 = vpack.c.bf16 %v941, %v938
    %v2144 = vpack.c.bf16 %v947, %v944
    %v2145 = vpack.c.bf16 %v953, %v950
    %v2146 = vpack.c.bf16 %v959, %v956
    %v2147 = vpack.c.bf16 %v965, %v962
    %v2148 = vpack.c.bf16 %v971, %v968
    %v2149 = vpack.c.bf16 %v977, %v974
    %v2150 = vpack.c.bf16 %v983, %v980
    %v2151 = vpack.c.bf16 %v989, %v986
    %v2152 = vpack.c.bf16 %v995, %v992
    %v2153 = vpack.c.bf16 %v1001, %v998
    %v2154 = vpack.c.bf16 %v1007, %v1004
    %v2155 = vpack.c.bf16 %v1013, %v1010
    %v2156 = vpack.c.bf16 %v1019, %v1016
    %v2157 = vpack.c.bf16 %v1025, %v1022
    %v2158 = vpack.c.bf16 %v1031, %v1028
    %v2159 = vpack.c.bf16 %v1037, %v1034
    %v2160 = vpack.c.bf16 %v1043, %v1040
    %v2161 = vpack.c.bf16 %v1049, %v1046
    %v2162 = vpack.c.bf16 %v1055, %v1052
    %v2163 = vpack.c.bf16 %v1061, %v1058
    %v2164 = vpack.c.bf16 %v1067, %v1064
    %v2165 = vpack.c.bf16 %v1073, %v1070
    %v2166 = vpack.c.bf16 %v1079, %v1076
    %v2167 = vpack.c.bf16 %v1085, %v1082
    %v2168 = vpack.c.bf16 %v1091, %v1088
    %v2169 = vpack.c.bf16 %v1097, %v1094
    %v2170 = vpack.c.bf16 %v1103, %v1100
    %v2171 = vpack.c.bf16 %v1109, %v1106
    %v2172 = vpack.c.bf16 %v1115, %v1112
    %v2173 = vpack.c.bf16 %v1121, %v1118
    %v2174 = vpack.c.bf16 %v1127, %v1124
    %v2175 = vpack.c.bf16 %v1133, %v1130
    %v2176 = vpack.c.bf16 %v1139, %v1136
    %v2177 = vpack.c.bf16 %v1145, %v1142
    %v2178 = vpack.c.bf16 %v1151, %v1148
    %v2179 = vpack.c.bf16 %v1157, %v1154
    %v2180 = vpack.c.bf16 %v1163, %v1160
    %v2181 = vpack.c.bf16 %v1169, %v1166
    %v2182 = vpack.c.bf16 %v1175, %v1172
    %v2183 = vpack.c.bf16 %v1181, %v1178
    %v2184 = vpack.c.bf16 %v1187, %v1184
    %v2185 = vpack.c.bf16 %v1193, %v1190
    %v2186 = vpack.c.bf16 %v1199, %v1196
    %v2187 = vpack.c.bf16 %v1205, %v1202
    %v2188 = vpack.c.bf16 %v1211, %v1208
    %v2189 = vpack.c.bf16 %v1217, %v1214
    %v2190 = vpack.c.bf16 %v1223, %v1220
    %v2191 = vpack.c.bf16 %v1229, %v1226
    %v2192 = vpack.c.bf16 %v1235, %v1232
    %v2193 = vpack.c.bf16 %v1241, %v1238
    %v2194 = vpack.c.bf16 %v1247, %v1244
    %v2195 = vpack.c.bf16 %v1253, %v1250
    %v2196 = vpack.c.bf16 %v1259, %v1256
    %v2197 = vpack.c.bf16 %v1265, %v1262
    %v2198 = vpack.c.bf16 %v1271, %v1268
    %v2199 = vpack.c.bf16 %v1277, %v1274
    %v2200 = vpack.c.bf16 %v1283, %v1280
    %v2201 = vpack.c.bf16 %v1289, %v1286
    %v2202 = vpack.c.bf16 %v1295, %v1292
    %v2203 = vpack.c.bf16 %v1301, %v1298
    %v2204 = vpack.c.bf16 %v1307, %v1304
    %v2205 = vpack.c.bf16 %v1313, %v1310
    %v2206 = vpack.c.bf16 %v1319, %v1316
    %v2207 = vpack.c.bf16 %v1325, %v1322
    %v2208 = vpack.c.bf16 %v1331, %v1328
    %v2209 = vpack.c.bf16 %v1337, %v1334
    %v2210 = vpack.c.bf16 %v1343, %v1340
    %v2211 = vpack.c.bf16 %v1349, %v1346
    %v2212 = vpack.c.bf16 %v1355, %v1352
    %v2213 = vpack.c.bf16 %v1361, %v1358
    %v2214 = vpack.c.bf16 %v1367, %v1364
    %v2215 = vpack.c.bf16 %v1373, %v1370
    %v2216 = vpack.c.bf16 %v1379, %v1376
    %v2217 = vpack.c.bf16 %v1385, %v1382
    %v2218 = vpack.c.bf16 %v1391, %v1388
    %v2219 = vpack.c.bf16 %v1397, %v1394
    %v2220 = vpack.c.bf16 %v1403, %v1400
    %v2221 = vpack.c.bf16 %v1409, %v1406
    %v2222 = vpack.c.bf16 %v1415, %v1412
    %v2223 = vpack.c.bf16 %v1421, %v1418
    %v2224 = vpack.c.bf16 %v1427, %v1424
    %v2225 = vpack.c.bf16 %v1433, %v1430
    %v2226 = vpack.c.bf16 %v1439, %v1436
    %v2227 = vpack.c.bf16 %v1445, %v1442
    %v2228 = vpack.c.bf16 %v1451, %v1448
    %v2229 = vpack.c.bf16 %v1457, %v1454
    %v2230 = vpack.c.bf16 %v1463, %v1460
    %v2231 = vpack.c.bf16 %v1469, %v1466
    %v2232 = vpack.c.bf16 %v1475, %v1472
    %v2233 = vpack.c.bf16 %v1481, %v1478
    %v2234 = vpack.c.bf16 %v1487, %v1484
    %v2235 = vpack.c.bf16 %v1493, %v1490
    %v2236 = vpack.c.bf16 %v1499, %v1496
    %v2237 = vpack.c.bf16 %v1505, %v1502
    %v2238 = vpack.c.bf16 %v1511, %v1508
    %v2239 = vpack.c.bf16 %v1517, %v1514
    %v2240 = vpack.c.bf16 %v1523, %v1520
    %v2241 = vpack.c.bf16 %v1529, %v1526
    %v2242 = vpack.c.bf16 %v1535, %v1532
    %v2243 = vpack.c.bf16 %v1541, %v1538
    %v2244 = vpack.c.bf16 %v1547, %v1544
    %v2245 = vpack.c.bf16 %v1553, %v1550
    %v2246 = vpack.c.bf16 %v1559, %v1556
    %v2247 = vpack.c.bf16 %v1565, %v1562
    %v2248 = vpack.c.bf16 %v1571, %v1568
    %v2249 = vpack.c.bf16 %v1577, %v1574
    %v2250 = vpack.c.bf16 %v1583, %v1580
    %v2251 = vpack.c.bf16 %v1589, %v1586
    %v2252 = vpack.c.bf16 %v1595, %v1592
    %v2253 = vpack.c.bf16 %v1601, %v1598
    %v2254 = vpack.c.bf16 %v1607, %v1604
    %v2255 = vpack.c.bf16 %v1613, %v1610
    %v2256 = vpack.c.bf16 %v1619, %v1616
    %v2257 = vpack.c.bf16 %v1625, %v1622
    %v2258 = vpack.c.bf16 %v1631, %v1628
    %v2259 = vpack.c.bf16 %v1637, %v1634
    %v2260 = vpack.c.bf16 %v1643, %v1640
    %v2261 = vpack.c.bf16 %v1649, %v1646
    %v2262 = vpack.c.bf16 %v1655, %v1652
    %v2263 = vpack.c.bf16 %v1661, %v1658
    %v2264 = vpack.c.bf16 %v1667, %v1664
    %v2265 = vpack.c.bf16 %v1673, %v1670
    %v2266 = vpack.c.bf16 %v1679, %v1676
    %v2267 = vpack.c.bf16 %v1685, %v1682
    %v2268 = vpack.c.bf16 %v1691, %v1688
    %v2269 = vpack.c.bf16 %v1697, %v1694
    %v2270 = vpack.c.bf16 %v1703, %v1700
    %v2271 = vpack.c.bf16 %v1709, %v1706
    %v2272 = vpack.c.bf16 %v1715, %v1712
    %v2273 = vpack.c.bf16 %v1721, %v1718
    %v2274 = vpack.c.bf16 %v1727, %v1724
    %v2275 = vpack.c.bf16 %v1733, %v1730
    %v2276 = vpack.c.bf16 %v1739, %v1736
    %v2277 = vpack.c.bf16 %v1745, %v1742
    %v2278 = vpack.c.bf16 %v1751, %v1748
    %v2279 = vpack.c.bf16 %v1757, %v1754
    %v2280 = vpack.c.bf16 %v1763, %v1760
    %v2281 = vpack.c.bf16 %v1769, %v1766
    %v2282 = vpack.c.bf16 %v1775, %v1772
    %v2283 = vpack.c.bf16 %v1781, %v1778
    %v2284 = vpack.c.bf16 %v1787, %v1784
    %v2285 = vpack.c.bf16 %v1793, %v1790
    %v2286 = vpack.c.bf16 %v1799, %v1796
    %v2287 = vpack.c.bf16 %v1805, %v1802
    %v2288 = vpack.c.bf16 %v1811, %v1808
    %v2289 = vpack.c.bf16 %v1817, %v1814
    %v2290 = vpack.c.bf16 %v1823, %v1820
    %v2291 = vpack.c.bf16 %v1829, %v1826
    %v2292 = vpack.c.bf16 %v1835, %v1832
    %v2293 = vpack.c.bf16 %v1841, %v1838
    %v2294 = vpack.c.bf16 %v1847, %v1844
    %v2295 = vpack.c.bf16 %v1853, %v1850
    %v2296 = vpack.c.bf16 %v1859, %v1856
    %v2297 = vpack.c.bf16 %v1865, %v1862
    %v2298 = vpack.c.bf16 %v1871, %v1868
    %v2299 = vpack.c.bf16 %v1877, %v1874
    %v2300 = vpack.c.bf16 %v1883, %v1880
    %v2301 = vpack.c.bf16 %v1889, %v1886
    %v2302 = vpack.c.bf16 %v1895, %v1892
    %v2303 = vpack.c.bf16 %v1901, %v1898
    %v2304 = vpack.c.bf16 %v1907, %v1904
    %v2305 = vpack.c.bf16 %v1913, %v1910
    %v2306 = vpack.c.bf16 %v1919, %v1916
    %v2307 = vpack.c.bf16 %v1925, %v1922
    %v2308 = vpack.c.bf16 %v1931, %v1928
    %v2309 = vpack.c.bf16 %v1937, %v1934
    %v2310 = vpack.c.bf16 %v1943, %v1940
    %v2311 = vpack.c.bf16 %v1949, %v1946
    %v2312 = vpack.c.bf16 %v1955, %v1952
    %v2313 = vpack.c.bf16 %v1961, %v1958
    %v2314 = vpack.c.bf16 %v1967, %v1964
    %v2315 = vpack.c.bf16 %v1973, %v1970
    %v2316 = vpack.c.bf16 %v1979, %v1976
    %v2317 = vpack.c.bf16 %v1985, %v1982
    %v2318 = vpack.c.bf16 %v1991, %v1988
    %v2319 = vpack.c.bf16 %v1997, %v1994
    %v2320 = vpack.c.bf16 %v2003, %v2000
    %v2321 = vpack.c.bf16 %v2009, %v2006
    %v2322 = vpack.c.bf16 %v2015, %v2012
    %v2323 = vpack.c.bf16 %v2021, %v2018
    %v2324 = vpack.c.bf16 %v2027, %v2024
    %v2325 = vpack.c.bf16 %v2033, %v2030
    %v2326 = vpack.c.bf16 %v2039, %v2036
    %v2327 = vpack.c.bf16 %v2045, %v2042
    %v2328 = vpack.c.bf16 %v2051, %v2048
    %v2329 = vpack.c.bf16 %v2057, %v2054
    %v2330 = vpack.c.bf16 %v2063, %v2060
    %v2331 = vpack.c.bf16 %v2069, %v2066
    %v2332 = vpack.c.bf16 %v2075, %v2072
    %v2333 = vld [vmem:[%s1] sm:$0xff]
    %v2334 = vld [vmem:[%s1 + $0x8] sm:$0xff]
    %v2335 = vld [vmem:[%s1 + $0x10] sm:$0xff]
    %v2336 = vld [vmem:[%s1 + $0x18] sm:$0xff]
    %v2337 = vld [vmem:[%s1 + $0x20] sm:$0xff]
    %v2338 = vld [vmem:[%s1 + $0x28] sm:$0xff]
    %v2339 = vld [vmem:[%s1 + $0x30] sm:$0xff]
    %v2340 = vld [vmem:[%s1 + $0x38] sm:$0xff]
    %v2341 = vld [vmem:[%s1 + $0x40] sm:$0xff]
    %v2342 = vld [vmem:[%s1 + $0x48] sm:$0xff]
    %v2343 = vld [vmem:[%s1 + $0x50] sm:$0xff]
    %v2344 = vld [vmem:[%s1 + $0x58] sm:$0xff]
    %v2345 = vld [vmem:[%s1 + $0x60] sm:$0xff]
    %v2346 = vld [vmem:[%s1 + $0x68] sm:$0xff]
    %v2347 = vld [vmem:[%s1 + $0x70] sm:$0xff]
    %v2348 = vld [vmem:[%s1 + $0x78] sm:$0xff]
    %v2349 = vld [vmem:[%s1 + $0x80] sm:$0xff]
    %v2350 = vld [vmem:[%s1 + $0x88] sm:$0xff]
    %v2351 = vld [vmem:[%s1 + $0x90] sm:$0xff]
    %v2352 = vld [vmem:[%s1 + $0x98] sm:$0xff]
    %v2353 = vld [vmem:[%s1 + $0xa0] sm:$0xff]
    %v2354 = vld [vmem:[%s1 + $0xa8] sm:$0xff]
    %v2355 = vld [vmem:[%s1 + $0xb0] sm:$0xff]
    %v2356 = vld [vmem:[%s1 + $0xb8] sm:$0xff]
    %v2357 = vld [vmem:[%s1 + $0xc0] sm:$0xff]
    %v2358 = vld [vmem:[%s1 + $0xc8] sm:$0xff]
    %v2359 = vld [vmem:[%s1 + $0xd0] sm:$0xff]
    %v2360 = vld [vmem:[%s1 + $0xd8] sm:$0xff]
    %v2361 = vld [vmem:[%s1 + $0xe0] sm:$0xff]
    %v2362 = vld [vmem:[%s1 + $0xe8] sm:$0xff]
    %v2363 = vld [vmem:[%s1 + $0xf0] sm:$0xff]
    %v2364 = vld [vmem:[%s1 + $0xf8] sm:$0xff]
    %v2365 = vld [vmem:[%s1 + $0x100] sm:$0xff]
    %v2366 = vld [vmem:[%s1 + $0x108] sm:$0xff]
    %v2367 = vld [vmem:[%s1 + $0x110] sm:$0xff]
    %v2368 = vld [vmem:[%s1 + $0x118] sm:$0xff]
    %v2369 = vld [vmem:[%s1 + $0x120] sm:$0xff]
    %v2370 = vld [vmem:[%s1 + $0x128] sm:$0xff]
    %v2371 = vld [vmem:[%s1 + $0x130] sm:$0xff]
    %v2372 = vld [vmem:[%s1 + $0x138] sm:$0xff]
    %v2373 = vld [vmem:[%s1 + $0x140] sm:$0xff]
    %v2374 = vld [vmem:[%s1 + $0x148] sm:$0xff]
    %v2375 = vld [vmem:[%s1 + $0x150] sm:$0xff]
    %v2376 = vld [vmem:[%s1 + $0x158] sm:$0xff]
    %v2377 = vld [vmem:[%s1 + $0x160] sm:$0xff]
    %v2378 = vld [vmem:[%s1 + $0x168] sm:$0xff]
    %v2379 = vld [vmem:[%s1 + $0x170] sm:$0xff]
    %v2380 = vld [vmem:[%s1 + $0x178] sm:$0xff]
    %v2381 = vld [vmem:[%s1 + $0x180] sm:$0xff]
    %v2382 = vld [vmem:[%s1 + $0x188] sm:$0xff]
    %v2383 = vld [vmem:[%s1 + $0x190] sm:$0xff]
    %v2384 = vld [vmem:[%s1 + $0x198] sm:$0xff]
    %v2385 = vld [vmem:[%s1 + $0x1a0] sm:$0xff]
    %v2386 = vld [vmem:[%s1 + $0x1a8] sm:$0xff]
    %v2387 = vld [vmem:[%s1 + $0x1b0] sm:$0xff]
    %v2388 = vld [vmem:[%s1 + $0x1b8] sm:$0xff]
    %v2389 = vld [vmem:[%s1 + $0x1c0] sm:$0xff]
    %v2390 = vld [vmem:[%s1 + $0x1c8] sm:$0xff]
    %v2391 = vld [vmem:[%s1 + $0x1d0] sm:$0xff]
    %v2392 = vld [vmem:[%s1 + $0x1d8] sm:$0xff]
    %v2393 = vld [vmem:[%s1 + $0x1e0] sm:$0xff]
    %v2394 = vld [vmem:[%s1 + $0x1e8] sm:$0xff]
    %v2395 = vld [vmem:[%s1 + $0x1f0] sm:$0xff]
    %v2396 = vld [vmem:[%s1 + $0x1f8] sm:$0xff]
    %v2397 = vld [vmem:[%s1 + $0x200] sm:$0xff]
    %v2398 = vld [vmem:[%s1 + $0x208] sm:$0xff]
    %v2399 = vld [vmem:[%s1 + $0x210] sm:$0xff]
    %v2400 = vld [vmem:[%s1 + $0x218] sm:$0xff]
    %v2401 = vld [vmem:[%s1 + $0x220] sm:$0xff]
    %v2402 = vld [vmem:[%s1 + $0x228] sm:$0xff]
    %v2403 = vld [vmem:[%s1 + $0x230] sm:$0xff]
    %v2404 = vld [vmem:[%s1 + $0x238] sm:$0xff]
    %v2405 = vld [vmem:[%s1 + $0x240] sm:$0xff]
    %v2406 = vld [vmem:[%s1 + $0x248] sm:$0xff]
    %v2407 = vld [vmem:[%s1 + $0x250] sm:$0xff]
    %v2408 = vld [vmem:[%s1 + $0x258] sm:$0xff]
    %v2409 = vld [vmem:[%s1 + $0x260] sm:$0xff]
    %v2410 = vld [vmem:[%s1 + $0x268] sm:$0xff]
    %v2411 = vld [vmem:[%s1 + $0x270] sm:$0xff]
    %v2412 = vld [vmem:[%s1 + $0x278] sm:$0xff]
    %v2413 = vld [vmem:[%s1 + $0x280] sm:$0xff]
    %v2414 = vld [vmem:[%s1 + $0x288] sm:$0xff]
    %v2415 = vld [vmem:[%s1 + $0x290] sm:$0xff]
    %v2416 = vld [vmem:[%s1 + $0x298] sm:$0xff]
    %v2417 = vld [vmem:[%s1 + $0x2a0] sm:$0xff]
    %v2418 = vld [vmem:[%s1 + $0x2a8] sm:$0xff]
    %v2419 = vld [vmem:[%s1 + $0x2b0] sm:$0xff]
    %v2420 = vld [vmem:[%s1 + $0x2b8] sm:$0xff]
    %v2421 = vld [vmem:[%s1 + $0x2c0] sm:$0xff]
    %v2422 = vld [vmem:[%s1 + $0x2c8] sm:$0xff]
    %v2423 = vld [vmem:[%s1 + $0x2d0] sm:$0xff]
    %v2424 = vld [vmem:[%s1 + $0x2d8] sm:$0xff]
    %v2425 = vld [vmem:[%s1 + $0x2e0] sm:$0xff]
    %v2426 = vld [vmem:[%s1 + $0x2e8] sm:$0xff]
    %v2427 = vld [vmem:[%s1 + $0x2f0] sm:$0xff]
    %v2428 = vld [vmem:[%s1 + $0x2f8] sm:$0xff]
    %v2429 = vld [vmem:[%s1 + $0x300] sm:$0xff]
    %v2430 = vld [vmem:[%s1 + $0x308] sm:$0xff]
    %v2431 = vld [vmem:[%s1 + $0x310] sm:$0xff]
    %v2432 = vld [vmem:[%s1 + $0x318] sm:$0xff]
    %v2433 = vld [vmem:[%s1 + $0x320] sm:$0xff]
    %v2434 = vld [vmem:[%s1 + $0x328] sm:$0xff]
    %v2435 = vld [vmem:[%s1 + $0x330] sm:$0xff]
    %v2436 = vld [vmem:[%s1 + $0x338] sm:$0xff]
    %v2437 = vld [vmem:[%s1 + $0x340] sm:$0xff]
    %v2438 = vld [vmem:[%s1 + $0x348] sm:$0xff]
    %v2439 = vld [vmem:[%s1 + $0x350] sm:$0xff]
    %v2440 = vld [vmem:[%s1 + $0x358] sm:$0xff]
    %v2441 = vld [vmem:[%s1 + $0x360] sm:$0xff]
    %v2442 = vld [vmem:[%s1 + $0x368] sm:$0xff]
    %v2443 = vld [vmem:[%s1 + $0x370] sm:$0xff]
    %v2444 = vld [vmem:[%s1 + $0x378] sm:$0xff]
    %v2445 = vld [vmem:[%s1 + $0x380] sm:$0xff]
    %v2446 = vld [vmem:[%s1 + $0x388] sm:$0xff]
    %v2447 = vld [vmem:[%s1 + $0x390] sm:$0xff]
    %v2448 = vld [vmem:[%s1 + $0x398] sm:$0xff]
    %v2449 = vld [vmem:[%s1 + $0x3a0] sm:$0xff]
    %v2450 = vld [vmem:[%s1 + $0x3a8] sm:$0xff]
    %v2451 = vld [vmem:[%s1 + $0x3b0] sm:$0xff]
    %v2452 = vld [vmem:[%s1 + $0x3b8] sm:$0xff]
    %v2453 = vld [vmem:[%s1 + $0x3c0] sm:$0xff]
    %v2454 = vld [vmem:[%s1 + $0x3c8] sm:$0xff]
    %v2455 = vld [vmem:[%s1 + $0x3d0] sm:$0xff]
    %v2456 = vld [vmem:[%s1 + $0x3d8] sm:$0xff]
    %v2457 = vld [vmem:[%s1 + $0x3e0] sm:$0xff]
    %v2458 = vld [vmem:[%s1 + $0x3e8] sm:$0xff]
    %v2459 = vld [vmem:[%s1 + $0x3f0] sm:$0xff]
    %v2460 = vld [vmem:[%s1 + $0x3f8] sm:$0xff]
    %v2461 = vld [vmem:[%s1 + $0x400] sm:$0xff]
    %v2462 = vld [vmem:[%s1 + $0x408] sm:$0xff]
    %v2463 = vld [vmem:[%s1 + $0x410] sm:$0xff]
    %v2464 = vld [vmem:[%s1 + $0x418] sm:$0xff]
    %v2465 = vld [vmem:[%s1 + $0x420] sm:$0xff]
    %v2466 = vld [vmem:[%s1 + $0x428] sm:$0xff]
    %v2467 = vld [vmem:[%s1 + $0x430] sm:$0xff]
    %v2468 = vld [vmem:[%s1 + $0x438] sm:$0xff]
    %v2469 = vld [vmem:[%s1 + $0x440] sm:$0xff]
    %v2470 = vld [vmem:[%s1 + $0x448] sm:$0xff]
    %v2471 = vld [vmem:[%s1 + $0x450] sm:$0xff]
    %v2472 = vld [vmem:[%s1 + $0x458] sm:$0xff]
    %v2473 = vld [vmem:[%s1 + $0x460] sm:$0xff]
    %v2474 = vld [vmem:[%s1 + $0x468] sm:$0xff]
    %v2475 = vld [vmem:[%s1 + $0x470] sm:$0xff]
    %v2476 = vld [vmem:[%s1 + $0x478] sm:$0xff]
    %v2477 = vld [vmem:[%s1 + $0x480] sm:$0xff]
    %v2478 = vld [vmem:[%s1 + $0x488] sm:$0xff]
    %v2479 = vld [vmem:[%s1 + $0x490] sm:$0xff]
    %v2480 = vld [vmem:[%s1 + $0x498] sm:$0xff]
    %v2481 = vld [vmem:[%s1 + $0x4a0] sm:$0xff]
    %v2482 = vld [vmem:[%s1 + $0x4a8] sm:$0xff]
    %v2483 = vld [vmem:[%s1 + $0x4b0] sm:$0xff]
    %v2484 = vld [vmem:[%s1 + $0x4b8] sm:$0xff]
    %v2485 = vld [vmem:[%s1 + $0x4c0] sm:$0xff]
    %v2486 = vld [vmem:[%s1 + $0x4c8] sm:$0xff]
    %v2487 = vld [vmem:[%s1 + $0x4d0] sm:$0xff]
    %v2488 = vld [vmem:[%s1 + $0x4d8] sm:$0xff]
    %v2489 = vld [vmem:[%s1 + $0x4e0] sm:$0xff]
    %v2490 = vld [vmem:[%s1 + $0x4e8] sm:$0xff]
    %v2491 = vld [vmem:[%s1 + $0x4f0] sm:$0xff]
    %v2492 = vld [vmem:[%s1 + $0x4f8] sm:$0xff]
    %v2493 = vld [vmem:[%s1 + $0x500] sm:$0xff]
    %v2494 = vld [vmem:[%s1 + $0x508] sm:$0xff]
    %v2495 = vld [vmem:[%s1 + $0x510] sm:$0xff]
    %v2496 = vld [vmem:[%s1 + $0x518] sm:$0xff]
    %v2497 = vld [vmem:[%s1 + $0x520] sm:$0xff]
    %v2498 = vld [vmem:[%s1 + $0x528] sm:$0xff]
    %v2499 = vld [vmem:[%s1 + $0x530] sm:$0xff]
    %v2500 = vld [vmem:[%s1 + $0x538] sm:$0xff]
    %v2501 = vld [vmem:[%s1 + $0x540] sm:$0xff]
    %v2502 = vld [vmem:[%s1 + $0x548] sm:$0xff]
    %v2503 = vld [vmem:[%s1 + $0x550] sm:$0xff]
    %v2504 = vld [vmem:[%s1 + $0x558] sm:$0xff]
    %v2505 = vld [vmem:[%s1 + $0x560] sm:$0xff]
    %v2506 = vld [vmem:[%s1 + $0x568] sm:$0xff]
    %v2507 = vld [vmem:[%s1 + $0x570] sm:$0xff]
    %v2508 = vld [vmem:[%s1 + $0x578] sm:$0xff]
    %v2509 = vld [vmem:[%s1 + $0x580] sm:$0xff]
    %v2510 = vld [vmem:[%s1 + $0x588] sm:$0xff]
    %v2511 = vld [vmem:[%s1 + $0x590] sm:$0xff]
    %v2512 = vld [vmem:[%s1 + $0x598] sm:$0xff]
    %v2513 = vld [vmem:[%s1 + $0x5a0] sm:$0xff]
    %v2514 = vld [vmem:[%s1 + $0x5a8] sm:$0xff]
    %v2515 = vld [vmem:[%s1 + $0x5b0] sm:$0xff]
    %v2516 = vld [vmem:[%s1 + $0x5b8] sm:$0xff]
    %v2517 = vld [vmem:[%s1 + $0x5c0] sm:$0xff]
    %v2518 = vld [vmem:[%s1 + $0x5c8] sm:$0xff]
    %v2519 = vld [vmem:[%s1 + $0x5d0] sm:$0xff]
    %v2520 = vld [vmem:[%s1 + $0x5d8] sm:$0xff]
    %v2521 = vld [vmem:[%s1 + $0x5e0] sm:$0xff]
    %v2522 = vld [vmem:[%s1 + $0x5e8] sm:$0xff]
    %v2523 = vld [vmem:[%s1 + $0x5f0] sm:$0xff]
    %v2524 = vld [vmem:[%s1 + $0x5f8] sm:$0xff]
    %v2525 = vld [vmem:[%s1 + $0x600] sm:$0xff]
    %v2526 = vld [vmem:[%s1 + $0x608] sm:$0xff]
    %v2527 = vld [vmem:[%s1 + $0x610] sm:$0xff]
    %v2528 = vld [vmem:[%s1 + $0x618] sm:$0xff]
    %v2529 = vld [vmem:[%s1 + $0x620] sm:$0xff]
    %v2530 = vld [vmem:[%s1 + $0x628] sm:$0xff]
    %v2531 = vld [vmem:[%s1 + $0x630] sm:$0xff]
    %v2532 = vld [vmem:[%s1 + $0x638] sm:$0xff]
    %v2533 = vld [vmem:[%s1 + $0x640] sm:$0xff]
    %v2534 = vld [vmem:[%s1 + $0x648] sm:$0xff]
    %v2535 = vld [vmem:[%s1 + $0x650] sm:$0xff]
    %v2536 = vld [vmem:[%s1 + $0x658] sm:$0xff]
    %v2537 = vld [vmem:[%s1 + $0x660] sm:$0xff]
    %v2538 = vld [vmem:[%s1 + $0x668] sm:$0xff]
    %v2539 = vld [vmem:[%s1 + $0x670] sm:$0xff]
    %v2540 = vld [vmem:[%s1 + $0x678] sm:$0xff]
    %v2541 = vld [vmem:[%s1 + $0x680] sm:$0xff]
    %v2542 = vld [vmem:[%s1 + $0x688] sm:$0xff]
    %v2543 = vld [vmem:[%s1 + $0x690] sm:$0xff]
    %v2544 = vld [vmem:[%s1 + $0x698] sm:$0xff]
    %v2545 = vld [vmem:[%s1 + $0x6a0] sm:$0xff]
    %v2546 = vld [vmem:[%s1 + $0x6a8] sm:$0xff]
    %v2547 = vld [vmem:[%s1 + $0x6b0] sm:$0xff]
    %v2548 = vld [vmem:[%s1 + $0x6b8] sm:$0xff]
    %v2549 = vld [vmem:[%s1 + $0x6c0] sm:$0xff]
    %v2550 = vld [vmem:[%s1 + $0x6c8] sm:$0xff]
    %v2551 = vld [vmem:[%s1 + $0x6d0] sm:$0xff]
    %v2552 = vld [vmem:[%s1 + $0x6d8] sm:$0xff]
    %v2553 = vld [vmem:[%s1 + $0x6e0] sm:$0xff]
    %v2554 = vld [vmem:[%s1 + $0x6e8] sm:$0xff]
    %v2555 = vld [vmem:[%s1 + $0x6f0] sm:$0xff]
    %v2556 = vld [vmem:[%s1 + $0x6f8] sm:$0xff]
    %v2557 = vld [vmem:[%s1 + $0x700] sm:$0xff]
    %v2558 = vld [vmem:[%s1 + $0x708] sm:$0xff]
    %v2559 = vld [vmem:[%s1 + $0x710] sm:$0xff]
    %v2560 = vld [vmem:[%s1 + $0x718] sm:$0xff]
    %v2561 = vld [vmem:[%s1 + $0x720] sm:$0xff]
    %v2562 = vld [vmem:[%s1 + $0x728] sm:$0xff]
    %v2563 = vld [vmem:[%s1 + $0x730] sm:$0xff]
    %v2564 = vld [vmem:[%s1 + $0x738] sm:$0xff]
    %v2565 = vld [vmem:[%s1 + $0x740] sm:$0xff]
    %v2566 = vld [vmem:[%s1 + $0x748] sm:$0xff]
    %v2567 = vld [vmem:[%s1 + $0x750] sm:$0xff]
    %v2568 = vld [vmem:[%s1 + $0x758] sm:$0xff]
    %v2569 = vld [vmem:[%s1 + $0x760] sm:$0xff]
    %v2570 = vld [vmem:[%s1 + $0x768] sm:$0xff]
    %v2571 = vld [vmem:[%s1 + $0x770] sm:$0xff]
    %v2572 = vld [vmem:[%s1 + $0x778] sm:$0xff]
    %v2573 = vld [vmem:[%s1 + $0x780] sm:$0xff]
    %v2574 = vld [vmem:[%s1 + $0x788] sm:$0xff]
    %v2575 = vld [vmem:[%s1 + $0x790] sm:$0xff]
    %v2576 = vld [vmem:[%s1 + $0x798] sm:$0xff]
    %v2577 = vld [vmem:[%s1 + $0x7a0] sm:$0xff]
    %v2578 = vld [vmem:[%s1 + $0x7a8] sm:$0xff]
    %v2579 = vld [vmem:[%s1 + $0x7b0] sm:$0xff]
    %v2580 = vld [vmem:[%s1 + $0x7b8] sm:$0xff]
    %v2581 = vld [vmem:[%s1 + $0x7c0] sm:$0xff]
    %v2582 = vld [vmem:[%s1 + $0x7c8] sm:$0xff]
    %v2583 = vld [vmem:[%s1 + $0x7d0] sm:$0xff]
    %v2584 = vld [vmem:[%s1 + $0x7d8] sm:$0xff]
    %v2585 = vld [vmem:[%s1 + $0x7e0] sm:$0xff]
    %v2586 = vld [vmem:[%s1 + $0x7e8] sm:$0xff]
    %v2587 = vld [vmem:[%s1 + $0x7f0] sm:$0xff]
    %v2588 = vld [vmem:[%s1 + $0x7f8] sm:$0xff]
    %v2589 = vld [vmem:[%s1 + $0x800] sm:$0xff]
    %v2590 = vld [vmem:[%s1 + $0x808] sm:$0xff]
    %v2591 = vld [vmem:[%s1 + $0x810] sm:$0xff]
    %v2592 = vld [vmem:[%s1 + $0x818] sm:$0xff]
    %v2593 = vld [vmem:[%s1 + $0x820] sm:$0xff]
    %v2594 = vld [vmem:[%s1 + $0x828] sm:$0xff]
    %v2595 = vld [vmem:[%s1 + $0x830] sm:$0xff]
    %v2596 = vld [vmem:[%s1 + $0x838] sm:$0xff]
    %v2597 = vld [vmem:[%s1 + $0x840] sm:$0xff]
    %v2598 = vld [vmem:[%s1 + $0x848] sm:$0xff]
    %v2599 = vld [vmem:[%s1 + $0x850] sm:$0xff]
    %v2600 = vld [vmem:[%s1 + $0x858] sm:$0xff]
    %v2601 = vld [vmem:[%s1 + $0x860] sm:$0xff]
    %v2602 = vld [vmem:[%s1 + $0x868] sm:$0xff]
    %v2603 = vld [vmem:[%s1 + $0x870] sm:$0xff]
    %v2604 = vld [vmem:[%s1 + $0x878] sm:$0xff]
    %v2605 = vld [vmem:[%s1 + $0x880] sm:$0xff]
    %v2606 = vld [vmem:[%s1 + $0x888] sm:$0xff]
    %v2607 = vld [vmem:[%s1 + $0x890] sm:$0xff]
    %v2608 = vld [vmem:[%s1 + $0x898] sm:$0xff]
    %v2609 = vld [vmem:[%s1 + $0x8a0] sm:$0xff]
    %v2610 = vld [vmem:[%s1 + $0x8a8] sm:$0xff]
    %v2611 = vld [vmem:[%s1 + $0x8b0] sm:$0xff]
    %v2612 = vld [vmem:[%s1 + $0x8b8] sm:$0xff]
    %v2613 = vld [vmem:[%s1 + $0x8c0] sm:$0xff]
    %v2614 = vld [vmem:[%s1 + $0x8c8] sm:$0xff]
    %v2615 = vld [vmem:[%s1 + $0x8d0] sm:$0xff]
    %v2616 = vld [vmem:[%s1 + $0x8d8] sm:$0xff]
    %v2617 = vld [vmem:[%s1 + $0x8e0] sm:$0xff]
    %v2618 = vld [vmem:[%s1 + $0x8e8] sm:$0xff]
    %v2619 = vld [vmem:[%s1 + $0x8f0] sm:$0xff]
    %v2620 = vld [vmem:[%s1 + $0x8f8] sm:$0xff]
    %v2621 = vld [vmem:[%s1 + $0x900] sm:$0xff]
    %v2622 = vld [vmem:[%s1 + $0x908] sm:$0xff]
    %v2623 = vld [vmem:[%s1 + $0x910] sm:$0xff]
    %v2624 = vld [vmem:[%s1 + $0x918] sm:$0xff]
    %v2625 = vld [vmem:[%s1 + $0x920] sm:$0xff]
    %v2626 = vld [vmem:[%s1 + $0x928] sm:$0xff]
    %v2627 = vld [vmem:[%s1 + $0x930] sm:$0xff]
    %v2628 = vld [vmem:[%s1 + $0x938] sm:$0xff]
    %v2629 = vld [vmem:[%s1 + $0x940] sm:$0xff]
    %v2630 = vld [vmem:[%s1 + $0x948] sm:$0xff]
    %v2631 = vld [vmem:[%s1 + $0x950] sm:$0xff]
    %v2632 = vld [vmem:[%s1 + $0x958] sm:$0xff]
    %v2633 = vld [vmem:[%s1 + $0x960] sm:$0xff]
    %v2634 = vld [vmem:[%s1 + $0x968] sm:$0xff]
    %v2635 = vld [vmem:[%s1 + $0x970] sm:$0xff]
    %v2636 = vld [vmem:[%s1 + $0x978] sm:$0xff]
    %v2637 = vld [vmem:[%s1 + $0x980] sm:$0xff]
    %v2638 = vld [vmem:[%s1 + $0x988] sm:$0xff]
    %v2639 = vld [vmem:[%s1 + $0x990] sm:$0xff]
    %v2640 = vld [vmem:[%s1 + $0x998] sm:$0xff]
    %v2641 = vld [vmem:[%s1 + $0x9a0] sm:$0xff]
    %v2642 = vld [vmem:[%s1 + $0x9a8] sm:$0xff]
    %v2643 = vld [vmem:[%s1 + $0x9b0] sm:$0xff]
    %v2644 = vld [vmem:[%s1 + $0x9b8] sm:$0xff]
    %v2645 = vld [vmem:[%s1 + $0x9c0] sm:$0xff]
    %v2646 = vld [vmem:[%s1 + $0x9c8] sm:$0xff]
    %v2647 = vld [vmem:[%s1 + $0x9d0] sm:$0xff]
    %v2648 = vld [vmem:[%s1 + $0x9d8] sm:$0xff]
    %v2649 = vld [vmem:[%s1 + $0x9e0] sm:$0xff]
    %v2650 = vld [vmem:[%s1 + $0x9e8] sm:$0xff]
    %v2651 = vld [vmem:[%s1 + $0x9f0] sm:$0xff]
    %v2652 = vld [vmem:[%s1 + $0x9f8] sm:$0xff]
    %v2653 = vld [vmem:[%s1 + $0xa00] sm:$0xff]
    %v2654 = vld [vmem:[%s1 + $0xa08] sm:$0xff]
    %v2655 = vld [vmem:[%s1 + $0xa10] sm:$0xff]
    %v2656 = vld [vmem:[%s1 + $0xa18] sm:$0xff]
    %v2657 = vld [vmem:[%s1 + $0xa20] sm:$0xff]
    %v2658 = vld [vmem:[%s1 + $0xa28] sm:$0xff]
    %v2659 = vld [vmem:[%s1 + $0xa30] sm:$0xff]
    %v2660 = vld [vmem:[%s1 + $0xa38] sm:$0xff]
    %v2661 = vld [vmem:[%s1 + $0xa40] sm:$0xff]
    %v2662 = vld [vmem:[%s1 + $0xa48] sm:$0xff]
    %v2663 = vld [vmem:[%s1 + $0xa50] sm:$0xff]
    %v2664 = vld [vmem:[%s1 + $0xa58] sm:$0xff]
    %v2665 = vld [vmem:[%s1 + $0xa60] sm:$0xff]
    %v2666 = vld [vmem:[%s1 + $0xa68] sm:$0xff]
    %v2667 = vld [vmem:[%s1 + $0xa70] sm:$0xff]
    %v2668 = vld [vmem:[%s1 + $0xa78] sm:$0xff]
    %v2669 = vld [vmem:[%s1 + $0xa80] sm:$0xff]
    %v2670 = vld [vmem:[%s1 + $0xa88] sm:$0xff]
    %v2671 = vld [vmem:[%s1 + $0xa90] sm:$0xff]
    %v2672 = vld [vmem:[%s1 + $0xa98] sm:$0xff]
    %v2673 = vld [vmem:[%s1 + $0xaa0] sm:$0xff]
    %v2674 = vld [vmem:[%s1 + $0xaa8] sm:$0xff]
    %v2675 = vld [vmem:[%s1 + $0xab0] sm:$0xff]
    %v2676 = vld [vmem:[%s1 + $0xab8] sm:$0xff]
    %v2677 = vld [vmem:[%s1 + $0xac0] sm:$0xff]
    %v2678 = vld [vmem:[%s1 + $0xac8] sm:$0xff]
    %v2679 = vld [vmem:[%s1 + $0xad0] sm:$0xff]
    %v2680 = vld [vmem:[%s1 + $0xad8] sm:$0xff]
    %v2681 = vld [vmem:[%s1 + $0xae0] sm:$0xff]
    %v2682 = vld [vmem:[%s1 + $0xae8] sm:$0xff]
    %v2683 = vld [vmem:[%s1 + $0xaf0] sm:$0xff]
    %v2684 = vld [vmem:[%s1 + $0xaf8] sm:$0xff]
    %v2685 = vld [vmem:[%s1 + $0xb00] sm:$0xff]
    %v2686 = vld [vmem:[%s1 + $0xb08] sm:$0xff]
    %v2687 = vld [vmem:[%s1 + $0xb10] sm:$0xff]
    %v2688 = vld [vmem:[%s1 + $0xb18] sm:$0xff]
    %v2689 = vld [vmem:[%s1 + $0xb20] sm:$0xff]
    %v2690 = vld [vmem:[%s1 + $0xb28] sm:$0xff]
    %v2691 = vld [vmem:[%s1 + $0xb30] sm:$0xff]
    %v2692 = vld [vmem:[%s1 + $0xb38] sm:$0xff]
    %v2693 = vld [vmem:[%s1 + $0xb40] sm:$0xff]
    %v2694 = vld [vmem:[%s1 + $0xb48] sm:$0xff]
    %v2695 = vld [vmem:[%s1 + $0xb50] sm:$0xff]
    %v2696 = vld [vmem:[%s1 + $0xb58] sm:$0xff]
    %v2697 = vld [vmem:[%s1 + $0xb60] sm:$0xff]
    %v2698 = vld [vmem:[%s1 + $0xb68] sm:$0xff]
    %v2699 = vld [vmem:[%s1 + $0xb70] sm:$0xff]
    %v2700 = vld [vmem:[%s1 + $0xb78] sm:$0xff]
    %v2701 = vld [vmem:[%s1 + $0xb80] sm:$0xff]
    %v2702 = vld [vmem:[%s1 + $0xb88] sm:$0xff]
    %v2703 = vld [vmem:[%s1 + $0xb90] sm:$0xff]
    %v2704 = vld [vmem:[%s1 + $0xb98] sm:$0xff]
    %v2705 = vld [vmem:[%s1 + $0xba0] sm:$0xff]
    %v2706 = vld [vmem:[%s1 + $0xba8] sm:$0xff]
    %v2707 = vld [vmem:[%s1 + $0xbb0] sm:$0xff]
    %v2708 = vld [vmem:[%s1 + $0xbb8] sm:$0xff]
    %v2709 = vld [vmem:[%s1 + $0xbc0] sm:$0xff]
    %v2710 = vld [vmem:[%s1 + $0xbc8] sm:$0xff]
    %v2711 = vld [vmem:[%s1 + $0xbd0] sm:$0xff]
    %v2712 = vld [vmem:[%s1 + $0xbd8] sm:$0xff]
    %v2713 = vld [vmem:[%s1 + $0xbe0] sm:$0xff]
    %v2714 = vld [vmem:[%s1 + $0xbe8] sm:$0xff]
    %v2715 = vld [vmem:[%s1 + $0xbf0] sm:$0xff]
    %v2716 = vld [vmem:[%s1 + $0xbf8] sm:$0xff]
    %v2717 = vld [vmem:[%s1 + $0xc00] sm:$0xff]
    %v2718 = vld [vmem:[%s1 + $0xc08] sm:$0xff]
    %v2719 = vld [vmem:[%s1 + $0xc10] sm:$0xff]
    %v2720 = vld [vmem:[%s1 + $0xc18] sm:$0xff]
    %v2721 = vld [vmem:[%s1 + $0xc20] sm:$0xff]
    %v2722 = vld [vmem:[%s1 + $0xc28] sm:$0xff]
    %v2723 = vld [vmem:[%s1 + $0xc30] sm:$0xff]
    %v2724 = vld [vmem:[%s1 + $0xc38] sm:$0xff]
    %v2725 = vld [vmem:[%s1 + $0xc40] sm:$0xff]
    %v2726 = vld [vmem:[%s1 + $0xc48] sm:$0xff]
    %v2727 = vld [vmem:[%s1 + $0xc50] sm:$0xff]
    %v2728 = vld [vmem:[%s1 + $0xc58] sm:$0xff]
    %v2729 = vld [vmem:[%s1 + $0xc60] sm:$0xff]
    %v2730 = vld [vmem:[%s1 + $0xc68] sm:$0xff]
    %v2731 = vld [vmem:[%s1 + $0xc70] sm:$0xff]
    %v2732 = vld [vmem:[%s1 + $0xc78] sm:$0xff]
    %v2733 = vld [vmem:[%s1 + $0xc80] sm:$0xff]
    %v2734 = vld [vmem:[%s1 + $0xc88] sm:$0xff]
    %v2735 = vld [vmem:[%s1 + $0xc90] sm:$0xff]
    %v2736 = vld [vmem:[%s1 + $0xc98] sm:$0xff]
    %v2737 = vld [vmem:[%s1 + $0xca0] sm:$0xff]
    %v2738 = vld [vmem:[%s1 + $0xca8] sm:$0xff]
    %v2739 = vld [vmem:[%s1 + $0xcb0] sm:$0xff]
    %v2740 = vld [vmem:[%s1 + $0xcb8] sm:$0xff]
    %v2741 = vld [vmem:[%s1 + $0xcc0] sm:$0xff]
    %v2742 = vld [vmem:[%s1 + $0xcc8] sm:$0xff]
    %v2743 = vld [vmem:[%s1 + $0xcd0] sm:$0xff]
    %v2744 = vld [vmem:[%s1 + $0xcd8] sm:$0xff]
    %v2745 = vld [vmem:[%s1 + $0xce0] sm:$0xff]
    %v2746 = vld [vmem:[%s1 + $0xce8] sm:$0xff]
    %v2747 = vld [vmem:[%s1 + $0xcf0] sm:$0xff]
    %v2748 = vld [vmem:[%s1 + $0xcf8] sm:$0xff]
    %v2749 = vld [vmem:[%s1 + $0xd00] sm:$0xff]
    %v2750 = vld [vmem:[%s1 + $0xd08] sm:$0xff]
    %v2751 = vld [vmem:[%s1 + $0xd10] sm:$0xff]
    %v2752 = vld [vmem:[%s1 + $0xd18] sm:$0xff]
    %v2753 = vld [vmem:[%s1 + $0xd20] sm:$0xff]
    %v2754 = vld [vmem:[%s1 + $0xd28] sm:$0xff]
    %v2755 = vld [vmem:[%s1 + $0xd30] sm:$0xff]
    %v2756 = vld [vmem:[%s1 + $0xd38] sm:$0xff]
    %v2757 = vld [vmem:[%s1 + $0xd40] sm:$0xff]
    %v2758 = vld [vmem:[%s1 + $0xd48] sm:$0xff]
    %v2759 = vld [vmem:[%s1 + $0xd50] sm:$0xff]
    %v2760 = vld [vmem:[%s1 + $0xd58] sm:$0xff]
    %v2761 = vld [vmem:[%s1 + $0xd60] sm:$0xff]
    %v2762 = vld [vmem:[%s1 + $0xd68] sm:$0xff]
    %v2763 = vld [vmem:[%s1 + $0xd70] sm:$0xff]
    %v2764 = vld [vmem:[%s1 + $0xd78] sm:$0xff]
    %v2765 = vld [vmem:[%s1 + $0xd80] sm:$0xff]
    %v2766 = vld [vmem:[%s1 + $0xd88] sm:$0xff]
    %v2767 = vld [vmem:[%s1 + $0xd90] sm:$0xff]
    %v2768 = vld [vmem:[%s1 + $0xd98] sm:$0xff]
    %v2769 = vld [vmem:[%s1 + $0xda0] sm:$0xff]
    %v2770 = vld [vmem:[%s1 + $0xda8] sm:$0xff]
    %v2771 = vld [vmem:[%s1 + $0xdb0] sm:$0xff]
    %v2772 = vld [vmem:[%s1 + $0xdb8] sm:$0xff]
    %v2773 = vld [vmem:[%s1 + $0xdc0] sm:$0xff]
    %v2774 = vld [vmem:[%s1 + $0xdc8] sm:$0xff]
    %v2775 = vld [vmem:[%s1 + $0xdd0] sm:$0xff]
    %v2776 = vld [vmem:[%s1 + $0xdd8] sm:$0xff]
    %v2777 = vld [vmem:[%s1 + $0xde0] sm:$0xff]
    %v2778 = vld [vmem:[%s1 + $0xde8] sm:$0xff]
    %v2779 = vld [vmem:[%s1 + $0xdf0] sm:$0xff]
    %v2780 = vld [vmem:[%s1 + $0xdf8] sm:$0xff]
    %v2781 = vld [vmem:[%s1 + $0xe00] sm:$0xff]
    %v2782 = vld [vmem:[%s1 + $0xe08] sm:$0xff]
    %v2783 = vld [vmem:[%s1 + $0xe10] sm:$0xff]
    %v2784 = vld [vmem:[%s1 + $0xe18] sm:$0xff]
    %v2785 = vld [vmem:[%s1 + $0xe20] sm:$0xff]
    %v2786 = vld [vmem:[%s1 + $0xe28] sm:$0xff]
    %v2787 = vld [vmem:[%s1 + $0xe30] sm:$0xff]
    %v2788 = vld [vmem:[%s1 + $0xe38] sm:$0xff]
    %v2789 = vld [vmem:[%s1 + $0xe40] sm:$0xff]
    %v2790 = vld [vmem:[%s1 + $0xe48] sm:$0xff]
    %v2791 = vld [vmem:[%s1 + $0xe50] sm:$0xff]
    %v2792 = vld [vmem:[%s1 + $0xe58] sm:$0xff]
    %v2793 = vld [vmem:[%s1 + $0xe60] sm:$0xff]
    %v2794 = vld [vmem:[%s1 + $0xe68] sm:$0xff]
    %v2795 = vld [vmem:[%s1 + $0xe70] sm:$0xff]
    %v2796 = vld [vmem:[%s1 + $0xe78] sm:$0xff]
    %v2797 = vld [vmem:[%s1 + $0xe80] sm:$0xff]
    %v2798 = vld [vmem:[%s1 + $0xe88] sm:$0xff]
    %v2799 = vld [vmem:[%s1 + $0xe90] sm:$0xff]
    %v2800 = vld [vmem:[%s1 + $0xe98] sm:$0xff]
    %v2801 = vld [vmem:[%s1 + $0xea0] sm:$0xff]
    %v2802 = vld [vmem:[%s1 + $0xea8] sm:$0xff]
    %v2803 = vld [vmem:[%s1 + $0xeb0] sm:$0xff]
    %v2804 = vld [vmem:[%s1 + $0xeb8] sm:$0xff]
    %v2805 = vld [vmem:[%s1 + $0xec0] sm:$0xff]
    %v2806 = vld [vmem:[%s1 + $0xec8] sm:$0xff]
    %v2807 = vld [vmem:[%s1 + $0xed0] sm:$0xff]
    %v2808 = vld [vmem:[%s1 + $0xed8] sm:$0xff]
    %v2809 = vld [vmem:[%s1 + $0xee0] sm:$0xff]
    %v2810 = vld [vmem:[%s1 + $0xee8] sm:$0xff]
    %v2811 = vld [vmem:[%s1 + $0xef0] sm:$0xff]
    %v2812 = vld [vmem:[%s1 + $0xef8] sm:$0xff]
    %v2813 = vld [vmem:[%s1 + $0xf00] sm:$0xff]
    %v2814 = vld [vmem:[%s1 + $0xf08] sm:$0xff]
    %v2815 = vld [vmem:[%s1 + $0xf10] sm:$0xff]
    %v2816 = vld [vmem:[%s1 + $0xf18] sm:$0xff]
    %v2817 = vld [vmem:[%s1 + $0xf20] sm:$0xff]
    %v2818 = vld [vmem:[%s1 + $0xf28] sm:$0xff]
    %v2819 = vld [vmem:[%s1 + $0xf30] sm:$0xff]
    %v2820 = vld [vmem:[%s1 + $0xf38] sm:$0xff]
    %v2821 = vld [vmem:[%s1 + $0xf40] sm:$0xff]
    %v2822 = vld [vmem:[%s1 + $0xf48] sm:$0xff]
    %v2823 = vld [vmem:[%s1 + $0xf50] sm:$0xff]
    %v2824 = vld [vmem:[%s1 + $0xf58] sm:$0xff]
    %v2825 = vld [vmem:[%s1 + $0xf60] sm:$0xff]
    %v2826 = vld [vmem:[%s1 + $0xf68] sm:$0xff]
    %v2827 = vld [vmem:[%s1 + $0xf70] sm:$0xff]
    %v2828 = vld [vmem:[%s1 + $0xf78] sm:$0xff]
    %v2829 = vld [vmem:[%s1 + $0xf80] sm:$0xff]
    %v2830 = vld [vmem:[%s1 + $0xf88] sm:$0xff]
    %v2831 = vld [vmem:[%s1 + $0xf90] sm:$0xff]
    %v2832 = vld [vmem:[%s1 + $0xf98] sm:$0xff]
    %v2833 = vld [vmem:[%s1 + $0xfa0] sm:$0xff]
    %v2834 = vld [vmem:[%s1 + $0xfa8] sm:$0xff]
    %v2835 = vld [vmem:[%s1 + $0xfb0] sm:$0xff]
    %v2836 = vld [vmem:[%s1 + $0xfb8] sm:$0xff]
    %v2837 = vld [vmem:[%s1 + $0xfc0] sm:$0xff]
    %v2838 = vld [vmem:[%s1 + $0xfc8] sm:$0xff]
    %v2839 = vld [vmem:[%s1 + $0xfd0] sm:$0xff]
    %v2840 = vld [vmem:[%s1 + $0xfd8] sm:$0xff]
    %v2841 = vld [vmem:[%s1 + $0xfe0] sm:$0xff]
    %v2842 = vld [vmem:[%s1 + $0xfe8] sm:$0xff]
    %v2843 = vld [vmem:[%s1 + $0xff0] sm:$0xff]
    %v2844 = vld [vmem:[%s1 + $0xff8] sm:$0xff]
    %v3101 = vunpack.c.l.b16 %v2077
    %v3102 = vunpack.c.h.b16 %v2077
    %v3103 = vunpack.c.l.b16 %v2078
    %v3104 = vunpack.c.h.b16 %v2078
    %v3105 = vunpack.c.l.b16 %v2079
    %v3106 = vunpack.c.h.b16 %v2079
    %v3107 = vunpack.c.l.b16 %v2080
    %v3108 = vunpack.c.h.b16 %v2080
    %v3109 = vunpack.c.l.b16 %v2081
    %v3110 = vunpack.c.h.b16 %v2081
    %v3111 = vunpack.c.l.b16 %v2082
    %v3112 = vunpack.c.h.b16 %v2082
    %v3113 = vunpack.c.l.b16 %v2083
    %v3114 = vunpack.c.h.b16 %v2083
    %v3115 = vunpack.c.l.b16 %v2084
    %v3116 = vunpack.c.h.b16 %v2084
    %v3117 = vunpack.c.l.b16 %v2085
    %v3118 = vunpack.c.h.b16 %v2085
    %v3119 = vunpack.c.l.b16 %v2086
    %v3120 = vunpack.c.h.b16 %v2086
    %v3121 = vunpack.c.l.b16 %v2087
    %v3122 = vunpack.c.h.b16 %v2087
    %v3123 = vunpack.c.l.b16 %v2088
    %v3124 = vunpack.c.h.b16 %v2088
    %v3125 = vunpack.c.l.b16 %v2089
    %v3126 = vunpack.c.h.b16 %v2089
    %v3127 = vunpack.c.l.b16 %v2090
    %v3128 = vunpack.c.h.b16 %v2090
    %v3129 = vunpack.c.l.b16 %v2091
    %v3130 = vunpack.c.h.b16 %v2091
    %v3131 = vunpack.c.l.b16 %v2092
    %v3132 = vunpack.c.h.b16 %v2092
    %v3133 = vunpack.c.l.b16 %v2093
    %v3134 = vunpack.c.h.b16 %v2093
    %v3135 = vunpack.c.l.b16 %v2094
    %v3136 = vunpack.c.h.b16 %v2094
    %v3137 = vunpack.c.l.b16 %v2095
    %v3138 = vunpack.c.h.b16 %v2095
    %v3139 = vunpack.c.l.b16 %v2096
    %v3140 = vunpack.c.h.b16 %v2096
    %v3141 = vunpack.c.l.b16 %v2097
    %v3142 = vunpack.c.h.b16 %v2097
    %v3143 = vunpack.c.l.b16 %v2098
    %v3144 = vunpack.c.h.b16 %v2098
    %v3145 = vunpack.c.l.b16 %v2099
    %v3146 = vunpack.c.h.b16 %v2099
    %v3147 = vunpack.c.l.b16 %v2100
    %v3148 = vunpack.c.h.b16 %v2100
    %v3149 = vunpack.c.l.b16 %v2101
    %v3150 = vunpack.c.h.b16 %v2101
    %v3151 = vunpack.c.l.b16 %v2102
    %v3152 = vunpack.c.h.b16 %v2102
    %v3153 = vunpack.c.l.b16 %v2103
    %v3154 = vunpack.c.h.b16 %v2103
    %v3155 = vunpack.c.l.b16 %v2104
    %v3156 = vunpack.c.h.b16 %v2104
    %v3157 = vunpack.c.l.b16 %v2105
    %v3158 = vunpack.c.h.b16 %v2105
    %v3159 = vunpack.c.l.b16 %v2106
    %v3160 = vunpack.c.h.b16 %v2106
    %v3161 = vunpack.c.l.b16 %v2107
    %v3162 = vunpack.c.h.b16 %v2107
    %v3163 = vunpack.c.l.b16 %v2108
    %v3164 = vunpack.c.h.b16 %v2108
    %v3165 = vunpack.c.l.b16 %v2109
    %v3166 = vunpack.c.h.b16 %v2109
    %v3167 = vunpack.c.l.b16 %v2110
    %v3168 = vunpack.c.h.b16 %v2110
    %v3169 = vunpack.c.l.b16 %v2111
    %v3170 = vunpack.c.h.b16 %v2111
    %v3171 = vunpack.c.l.b16 %v2112
    %v3172 = vunpack.c.h.b16 %v2112
    %v3173 = vunpack.c.l.b16 %v2113
    %v3174 = vunpack.c.h.b16 %v2113
    %v3175 = vunpack.c.l.b16 %v2114
    %v3176 = vunpack.c.h.b16 %v2114
    %v3177 = vunpack.c.l.b16 %v2115
    %v3178 = vunpack.c.h.b16 %v2115
    %v3179 = vunpack.c.l.b16 %v2116
    %v3180 = vunpack.c.h.b16 %v2116
    %v3181 = vunpack.c.l.b16 %v2117
    %v3182 = vunpack.c.h.b16 %v2117
    %v3183 = vunpack.c.l.b16 %v2118
    %v3184 = vunpack.c.h.b16 %v2118
    %v3185 = vunpack.c.l.b16 %v2119
    %v3186 = vunpack.c.h.b16 %v2119
    %v3187 = vunpack.c.l.b16 %v2120
    %v3188 = vunpack.c.h.b16 %v2120
    %v3189 = vunpack.c.l.b16 %v2121
    %v3190 = vunpack.c.h.b16 %v2121
    %v3191 = vunpack.c.l.b16 %v2122
    %v3192 = vunpack.c.h.b16 %v2122
    %v3193 = vunpack.c.l.b16 %v2123
    %v3194 = vunpack.c.h.b16 %v2123
    %v3195 = vunpack.c.l.b16 %v2124
    %v3196 = vunpack.c.h.b16 %v2124
    %v3197 = vunpack.c.l.b16 %v2125
    %v3198 = vunpack.c.h.b16 %v2125
    %v3199 = vunpack.c.l.b16 %v2126
    %v3200 = vunpack.c.h.b16 %v2126
    %v3201 = vunpack.c.l.b16 %v2127
    %v3202 = vunpack.c.h.b16 %v2127
    %v3203 = vunpack.c.l.b16 %v2128
    %v3204 = vunpack.c.h.b16 %v2128
    %v3205 = vunpack.c.l.b16 %v2129
    %v3206 = vunpack.c.h.b16 %v2129
    %v3207 = vunpack.c.l.b16 %v2130
    %v3208 = vunpack.c.h.b16 %v2130
    %v3209 = vunpack.c.l.b16 %v2131
    %v3210 = vunpack.c.h.b16 %v2131
    %v3211 = vunpack.c.l.b16 %v2132
    %v3212 = vunpack.c.h.b16 %v2132
    %v3213 = vunpack.c.l.b16 %v2133
    %v3214 = vunpack.c.h.b16 %v2133
    %v3215 = vunpack.c.l.b16 %v2134
    %v3216 = vunpack.c.h.b16 %v2134
    %v3217 = vunpack.c.l.b16 %v2135
    %v3218 = vunpack.c.h.b16 %v2135
    %v3219 = vunpack.c.l.b16 %v2136
    %v3220 = vunpack.c.h.b16 %v2136
    %v3221 = vunpack.c.l.b16 %v2137
    %v3222 = vunpack.c.h.b16 %v2137
    %v3223 = vunpack.c.l.b16 %v2138
    %v3224 = vunpack.c.h.b16 %v2138
    %v3225 = vunpack.c.l.b16 %v2139
    %v3226 = vunpack.c.h.b16 %v2139
    %v3227 = vunpack.c.l.b16 %v2140
    %v3228 = vunpack.c.h.b16 %v2140
    %v3229 = vunpack.c.l.b16 %v2141
    %v3230 = vunpack.c.h.b16 %v2141
    %v3231 = vunpack.c.l.b16 %v2142
    %v3232 = vunpack.c.h.b16 %v2142
    %v3233 = vunpack.c.l.b16 %v2143
    %v3234 = vunpack.c.h.b16 %v2143
    %v3235 = vunpack.c.l.b16 %v2144
    %v3236 = vunpack.c.h.b16 %v2144
    %v3237 = vunpack.c.l.b16 %v2145
    %v3238 = vunpack.c.h.b16 %v2145
    %v3239 = vunpack.c.l.b16 %v2146
    %v3240 = vunpack.c.h.b16 %v2146
    %v3241 = vunpack.c.l.b16 %v2147
    %v3242 = vunpack.c.h.b16 %v2147
    %v3243 = vunpack.c.l.b16 %v2148
    %v3244 = vunpack.c.h.b16 %v2148
    %v3245 = vunpack.c.l.b16 %v2149
    %v3246 = vunpack.c.h.b16 %v2149
    %v3247 = vunpack.c.l.b16 %v2150
    %v3248 = vunpack.c.h.b16 %v2150
    %v3249 = vunpack.c.l.b16 %v2151
    %v3250 = vunpack.c.h.b16 %v2151
    %v3251 = vunpack.c.l.b16 %v2152
    %v3252 = vunpack.c.h.b16 %v2152
    %v3253 = vunpack.c.l.b16 %v2153
    %v3254 = vunpack.c.h.b16 %v2153
    %v3255 = vunpack.c.l.b16 %v2154
    %v3256 = vunpack.c.h.b16 %v2154
    %v3257 = vunpack.c.l.b16 %v2155
    %v3258 = vunpack.c.h.b16 %v2155
    %v3259 = vunpack.c.l.b16 %v2156
    %v3260 = vunpack.c.h.b16 %v2156
    %v3261 = vunpack.c.l.b16 %v2157
    %v3262 = vunpack.c.h.b16 %v2157
    %v3263 = vunpack.c.l.b16 %v2158
    %v3264 = vunpack.c.h.b16 %v2158
    %v3265 = vunpack.c.l.b16 %v2159
    %v3266 = vunpack.c.h.b16 %v2159
    %v3267 = vunpack.c.l.b16 %v2160
    %v3268 = vunpack.c.h.b16 %v2160
    %v3269 = vunpack.c.l.b16 %v2161
    %v3270 = vunpack.c.h.b16 %v2161
    %v3271 = vunpack.c.l.b16 %v2162
    %v3272 = vunpack.c.h.b16 %v2162
    %v3273 = vunpack.c.l.b16 %v2163
    %v3274 = vunpack.c.h.b16 %v2163
    %v3275 = vunpack.c.l.b16 %v2164
    %v3276 = vunpack.c.h.b16 %v2164
    %v3277 = vunpack.c.l.b16 %v2165
    %v3278 = vunpack.c.h.b16 %v2165
    %v3279 = vunpack.c.l.b16 %v2166
    %v3280 = vunpack.c.h.b16 %v2166
    %v3281 = vunpack.c.l.b16 %v2167
    %v3282 = vunpack.c.h.b16 %v2167
    %v3283 = vunpack.c.l.b16 %v2168
    %v3284 = vunpack.c.h.b16 %v2168
    %v3285 = vunpack.c.l.b16 %v2169
    %v3286 = vunpack.c.h.b16 %v2169
    %v3287 = vunpack.c.l.b16 %v2170
    %v3288 = vunpack.c.h.b16 %v2170
    %v3289 = vunpack.c.l.b16 %v2171
    %v3290 = vunpack.c.h.b16 %v2171
    %v3291 = vunpack.c.l.b16 %v2172
    %v3292 = vunpack.c.h.b16 %v2172
    %v3293 = vunpack.c.l.b16 %v2173
    %v3294 = vunpack.c.h.b16 %v2173
    %v3295 = vunpack.c.l.b16 %v2174
    %v3296 = vunpack.c.h.b16 %v2174
    %v3297 = vunpack.c.l.b16 %v2175
    %v3298 = vunpack.c.h.b16 %v2175
    %v3299 = vunpack.c.l.b16 %v2176
    %v3300 = vunpack.c.h.b16 %v2176
    %v3301 = vunpack.c.l.b16 %v2177
    %v3302 = vunpack.c.h.b16 %v2177
    %v3303 = vunpack.c.l.b16 %v2178
    %v3304 = vunpack.c.h.b16 %v2178
    %v3305 = vunpack.c.l.b16 %v2179
    %v3306 = vunpack.c.h.b16 %v2179
    %v3307 = vunpack.c.l.b16 %v2180
    %v3308 = vunpack.c.h.b16 %v2180
    %v3309 = vunpack.c.l.b16 %v2181
    %v3310 = vunpack.c.h.b16 %v2181
    %v3311 = vunpack.c.l.b16 %v2182
    %v3312 = vunpack.c.h.b16 %v2182
    %v3313 = vunpack.c.l.b16 %v2183
    %v3314 = vunpack.c.h.b16 %v2183
    %v3315 = vunpack.c.l.b16 %v2184
    %v3316 = vunpack.c.h.b16 %v2184
    %v3317 = vunpack.c.l.b16 %v2185
    %v3318 = vunpack.c.h.b16 %v2185
    %v3319 = vunpack.c.l.b16 %v2186
    %v3320 = vunpack.c.h.b16 %v2186
    %v3321 = vunpack.c.l.b16 %v2187
    %v3322 = vunpack.c.h.b16 %v2187
    %v3323 = vunpack.c.l.b16 %v2188
    %v3324 = vunpack.c.h.b16 %v2188
    %v3325 = vunpack.c.l.b16 %v2189
    %v3326 = vunpack.c.h.b16 %v2189
    %v3327 = vunpack.c.l.b16 %v2190
    %v3328 = vunpack.c.h.b16 %v2190
    %v3329 = vunpack.c.l.b16 %v2191
    %v3330 = vunpack.c.h.b16 %v2191
    %v3331 = vunpack.c.l.b16 %v2192
    %v3332 = vunpack.c.h.b16 %v2192
    %v3333 = vunpack.c.l.b16 %v2193
    %v3334 = vunpack.c.h.b16 %v2193
    %v3335 = vunpack.c.l.b16 %v2194
    %v3336 = vunpack.c.h.b16 %v2194
    %v3337 = vunpack.c.l.b16 %v2195
    %v3338 = vunpack.c.h.b16 %v2195
    %v3339 = vunpack.c.l.b16 %v2196
    %v3340 = vunpack.c.h.b16 %v2196
    %v3341 = vunpack.c.l.b16 %v2197
    %v3342 = vunpack.c.h.b16 %v2197
    %v3343 = vunpack.c.l.b16 %v2198
    %v3344 = vunpack.c.h.b16 %v2198
    %v3345 = vunpack.c.l.b16 %v2199
    %v3346 = vunpack.c.h.b16 %v2199
    %v3347 = vunpack.c.l.b16 %v2200
    %v3348 = vunpack.c.h.b16 %v2200
    %v3349 = vunpack.c.l.b16 %v2201
    %v3350 = vunpack.c.h.b16 %v2201
    %v3351 = vunpack.c.l.b16 %v2202
    %v3352 = vunpack.c.h.b16 %v2202
    %v3353 = vunpack.c.l.b16 %v2203
    %v3354 = vunpack.c.h.b16 %v2203
    %v3355 = vunpack.c.l.b16 %v2204
    %v3356 = vunpack.c.h.b16 %v2204
    %v3357 = vunpack.c.l.b16 %v2205
    %v3358 = vunpack.c.h.b16 %v2205
    %v3359 = vunpack.c.l.b16 %v2206
    %v3360 = vunpack.c.h.b16 %v2206
    %v3361 = vunpack.c.l.b16 %v2207
    %v3362 = vunpack.c.h.b16 %v2207
    %v3363 = vunpack.c.l.b16 %v2208
    %v3364 = vunpack.c.h.b16 %v2208
    %v3365 = vunpack.c.l.b16 %v2209
    %v3366 = vunpack.c.h.b16 %v2209
    %v3367 = vunpack.c.l.b16 %v2210
    %v3368 = vunpack.c.h.b16 %v2210
    %v3369 = vunpack.c.l.b16 %v2211
    %v3370 = vunpack.c.h.b16 %v2211
    %v3371 = vunpack.c.l.b16 %v2212
    %v3372 = vunpack.c.h.b16 %v2212
    %v3373 = vunpack.c.l.b16 %v2213
    %v3374 = vunpack.c.h.b16 %v2213
    %v3375 = vunpack.c.l.b16 %v2214
    %v3376 = vunpack.c.h.b16 %v2214
    %v3377 = vunpack.c.l.b16 %v2215
    %v3378 = vunpack.c.h.b16 %v2215
    %v3379 = vunpack.c.l.b16 %v2216
    %v3380 = vunpack.c.h.b16 %v2216
    %v3381 = vunpack.c.l.b16 %v2217
    %v3382 = vunpack.c.h.b16 %v2217
    %v3383 = vunpack.c.l.b16 %v2218
    %v3384 = vunpack.c.h.b16 %v2218
    %v3385 = vunpack.c.l.b16 %v2219
    %v3386 = vunpack.c.h.b16 %v2219
    %v3387 = vunpack.c.l.b16 %v2220
    %v3388 = vunpack.c.h.b16 %v2220
    %v3389 = vunpack.c.l.b16 %v2221
    %v3390 = vunpack.c.h.b16 %v2221
    %v3391 = vunpack.c.l.b16 %v2222
    %v3392 = vunpack.c.h.b16 %v2222
    %v3393 = vunpack.c.l.b16 %v2223
    %v3394 = vunpack.c.h.b16 %v2223
    %v3395 = vunpack.c.l.b16 %v2224
    %v3396 = vunpack.c.h.b16 %v2224
    %v3397 = vunpack.c.l.b16 %v2225
    %v3398 = vunpack.c.h.b16 %v2225
    %v3399 = vunpack.c.l.b16 %v2226
    %v3400 = vunpack.c.h.b16 %v2226
    %v3401 = vunpack.c.l.b16 %v2227
    %v3402 = vunpack.c.h.b16 %v2227
    %v3403 = vunpack.c.l.b16 %v2228
    %v3404 = vunpack.c.h.b16 %v2228
    %v3405 = vunpack.c.l.b16 %v2229
    %v3406 = vunpack.c.h.b16 %v2229
    %v3407 = vunpack.c.l.b16 %v2230
    %v3408 = vunpack.c.h.b16 %v2230
    %v3409 = vunpack.c.l.b16 %v2231
    %v3410 = vunpack.c.h.b16 %v2231
    %v3411 = vunpack.c.l.b16 %v2232
    %v3412 = vunpack.c.h.b16 %v2232
    %v3413 = vunpack.c.l.b16 %v2233
    %v3414 = vunpack.c.h.b16 %v2233
    %v3415 = vunpack.c.l.b16 %v2234
    %v3416 = vunpack.c.h.b16 %v2234
    %v3417 = vunpack.c.l.b16 %v2235
    %v3418 = vunpack.c.h.b16 %v2235
    %v3419 = vunpack.c.l.b16 %v2236
    %v3420 = vunpack.c.h.b16 %v2236
    %v3421 = vunpack.c.l.b16 %v2237
    %v3422 = vunpack.c.h.b16 %v2237
    %v3423 = vunpack.c.l.b16 %v2238
    %v3424 = vunpack.c.h.b16 %v2238
    %v3425 = vunpack.c.l.b16 %v2239
    %v3426 = vunpack.c.h.b16 %v2239
    %v3427 = vunpack.c.l.b16 %v2240
    %v3428 = vunpack.c.h.b16 %v2240
    %v3429 = vunpack.c.l.b16 %v2241
    %v3430 = vunpack.c.h.b16 %v2241
    %v3431 = vunpack.c.l.b16 %v2242
    %v3432 = vunpack.c.h.b16 %v2242
    %v3433 = vunpack.c.l.b16 %v2243
    %v3434 = vunpack.c.h.b16 %v2243
    %v3435 = vunpack.c.l.b16 %v2244
    %v3436 = vunpack.c.h.b16 %v2244
    %v3437 = vunpack.c.l.b16 %v2245
    %v3438 = vunpack.c.h.b16 %v2245
    %v3439 = vunpack.c.l.b16 %v2246
    %v3440 = vunpack.c.h.b16 %v2246
    %v3441 = vunpack.c.l.b16 %v2247
    %v3442 = vunpack.c.h.b16 %v2247
    %v3443 = vunpack.c.l.b16 %v2248
    %v3444 = vunpack.c.h.b16 %v2248
    %v3445 = vunpack.c.l.b16 %v2249
    %v3446 = vunpack.c.h.b16 %v2249
    %v3447 = vunpack.c.l.b16 %v2250
    %v3448 = vunpack.c.h.b16 %v2250
    %v3449 = vunpack.c.l.b16 %v2251
    %v3450 = vunpack.c.h.b16 %v2251
    %v3451 = vunpack.c.l.b16 %v2252
    %v3452 = vunpack.c.h.b16 %v2252
    %v3453 = vunpack.c.l.b16 %v2253
    %v3454 = vunpack.c.h.b16 %v2253
    %v3455 = vunpack.c.l.b16 %v2254
    %v3456 = vunpack.c.h.b16 %v2254
    %v3457 = vunpack.c.l.b16 %v2255
    %v3458 = vunpack.c.h.b16 %v2255
    %v3459 = vunpack.c.l.b16 %v2256
    %v3460 = vunpack.c.h.b16 %v2256
    %v3461 = vunpack.c.l.b16 %v2257
    %v3462 = vunpack.c.h.b16 %v2257
    %v3463 = vunpack.c.l.b16 %v2258
    %v3464 = vunpack.c.h.b16 %v2258
    %v3465 = vunpack.c.l.b16 %v2259
    %v3466 = vunpack.c.h.b16 %v2259
    %v3467 = vunpack.c.l.b16 %v2260
    %v3468 = vunpack.c.h.b16 %v2260
    %v3469 = vunpack.c.l.b16 %v2261
    %v3470 = vunpack.c.h.b16 %v2261
    %v3471 = vunpack.c.l.b16 %v2262
    %v3472 = vunpack.c.h.b16 %v2262
    %v3473 = vunpack.c.l.b16 %v2263
    %v3474 = vunpack.c.h.b16 %v2263
    %v3475 = vunpack.c.l.b16 %v2264
    %v3476 = vunpack.c.h.b16 %v2264
    %v3477 = vunpack.c.l.b16 %v2265
    %v3478 = vunpack.c.h.b16 %v2265
    %v3479 = vunpack.c.l.b16 %v2266
    %v3480 = vunpack.c.h.b16 %v2266
    %v3481 = vunpack.c.l.b16 %v2267
    %v3482 = vunpack.c.h.b16 %v2267
    %v3483 = vunpack.c.l.b16 %v2268
    %v3484 = vunpack.c.h.b16 %v2268
    %v3485 = vunpack.c.l.b16 %v2269
    %v3486 = vunpack.c.h.b16 %v2269
    %v3487 = vunpack.c.l.b16 %v2270
    %v3488 = vunpack.c.h.b16 %v2270
    %v3489 = vunpack.c.l.b16 %v2271
    %v3490 = vunpack.c.h.b16 %v2271
    %v3491 = vunpack.c.l.b16 %v2272
    %v3492 = vunpack.c.h.b16 %v2272
    %v3493 = vunpack.c.l.b16 %v2273
    %v3494 = vunpack.c.h.b16 %v2273
    %v3495 = vunpack.c.l.b16 %v2274
    %v3496 = vunpack.c.h.b16 %v2274
    %v3497 = vunpack.c.l.b16 %v2275
    %v3498 = vunpack.c.h.b16 %v2275
    %v3499 = vunpack.c.l.b16 %v2276
    %v3500 = vunpack.c.h.b16 %v2276
    %v3501 = vunpack.c.l.b16 %v2277
    %v3502 = vunpack.c.h.b16 %v2277
    %v3503 = vunpack.c.l.b16 %v2278
    %v3504 = vunpack.c.h.b16 %v2278
    %v3505 = vunpack.c.l.b16 %v2279
    %v3506 = vunpack.c.h.b16 %v2279
    %v3507 = vunpack.c.l.b16 %v2280
    %v3508 = vunpack.c.h.b16 %v2280
    %v3509 = vunpack.c.l.b16 %v2281
    %v3510 = vunpack.c.h.b16 %v2281
    %v3511 = vunpack.c.l.b16 %v2282
    %v3512 = vunpack.c.h.b16 %v2282
    %v3513 = vunpack.c.l.b16 %v2283
    %v3514 = vunpack.c.h.b16 %v2283
    %v3515 = vunpack.c.l.b16 %v2284
    %v3516 = vunpack.c.h.b16 %v2284
    %v3517 = vunpack.c.l.b16 %v2285
    %v3518 = vunpack.c.h.b16 %v2285
    %v3519 = vunpack.c.l.b16 %v2286
    %v3520 = vunpack.c.h.b16 %v2286
    %v3521 = vunpack.c.l.b16 %v2287
    %v3522 = vunpack.c.h.b16 %v2287
    %v3523 = vunpack.c.l.b16 %v2288
    %v3524 = vunpack.c.h.b16 %v2288
    %v3525 = vunpack.c.l.b16 %v2289
    %v3526 = vunpack.c.h.b16 %v2289
    %v3527 = vunpack.c.l.b16 %v2290
    %v3528 = vunpack.c.h.b16 %v2290
    %v3529 = vunpack.c.l.b16 %v2291
    %v3530 = vunpack.c.h.b16 %v2291
    %v3531 = vunpack.c.l.b16 %v2292
    %v3532 = vunpack.c.h.b16 %v2292
    %v3533 = vunpack.c.l.b16 %v2293
    %v3534 = vunpack.c.h.b16 %v2293
    %v3535 = vunpack.c.l.b16 %v2294
    %v3536 = vunpack.c.h.b16 %v2294
    %v3537 = vunpack.c.l.b16 %v2295
    %v3538 = vunpack.c.h.b16 %v2295
    %v3539 = vunpack.c.l.b16 %v2296
    %v3540 = vunpack.c.h.b16 %v2296
    %v3541 = vunpack.c.l.b16 %v2297
    %v3542 = vunpack.c.h.b16 %v2297
    %v3543 = vunpack.c.l.b16 %v2298
    %v3544 = vunpack.c.h.b16 %v2298
    %v3545 = vunpack.c.l.b16 %v2299
    %v3546 = vunpack.c.h.b16 %v2299
    %v3547 = vunpack.c.l.b16 %v2300
    %v3548 = vunpack.c.h.b16 %v2300
    %v3549 = vunpack.c.l.b16 %v2301
    %v3550 = vunpack.c.h.b16 %v2301
    %v3551 = vunpack.c.l.b16 %v2302
    %v3552 = vunpack.c.h.b16 %v2302
    %v3553 = vunpack.c.l.b16 %v2303
    %v3554 = vunpack.c.h.b16 %v2303
    %v3555 = vunpack.c.l.b16 %v2304
    %v3556 = vunpack.c.h.b16 %v2304
    %v3557 = vunpack.c.l.b16 %v2305
    %v3558 = vunpack.c.h.b16 %v2305
    %v3559 = vunpack.c.l.b16 %v2306
    %v3560 = vunpack.c.h.b16 %v2306
    %v3561 = vunpack.c.l.b16 %v2307
    %v3562 = vunpack.c.h.b16 %v2307
    %v3563 = vunpack.c.l.b16 %v2308
    %v3564 = vunpack.c.h.b16 %v2308
    %v3565 = vunpack.c.l.b16 %v2309
    %v3566 = vunpack.c.h.b16 %v2309
    %v3567 = vunpack.c.l.b16 %v2310
    %v3568 = vunpack.c.h.b16 %v2310
    %v3569 = vunpack.c.l.b16 %v2311
    %v3570 = vunpack.c.h.b16 %v2311
    %v3571 = vunpack.c.l.b16 %v2312
    %v3572 = vunpack.c.h.b16 %v2312
    %v3573 = vunpack.c.l.b16 %v2313
    %v3574 = vunpack.c.h.b16 %v2313
    %v3575 = vunpack.c.l.b16 %v2314
    %v3576 = vunpack.c.h.b16 %v2314
    %v3577 = vunpack.c.l.b16 %v2315
    %v3578 = vunpack.c.h.b16 %v2315
    %v3579 = vunpack.c.l.b16 %v2316
    %v3580 = vunpack.c.h.b16 %v2316
    %v3581 = vunpack.c.l.b16 %v2317
    %v3582 = vunpack.c.h.b16 %v2317
    %v3583 = vunpack.c.l.b16 %v2318
    %v3584 = vunpack.c.h.b16 %v2318
    %v3585 = vunpack.c.l.b16 %v2319
    %v3586 = vunpack.c.h.b16 %v2319
    %v3587 = vunpack.c.l.b16 %v2320
    %v3588 = vunpack.c.h.b16 %v2320
    %v3589 = vunpack.c.l.b16 %v2321
    %v3590 = vunpack.c.h.b16 %v2321
    %v3591 = vunpack.c.l.b16 %v2322
    %v3592 = vunpack.c.h.b16 %v2322
    %v3593 = vunpack.c.l.b16 %v2323
    %v3594 = vunpack.c.h.b16 %v2323
    %v3595 = vunpack.c.l.b16 %v2324
    %v3596 = vunpack.c.h.b16 %v2324
    %v3597 = vunpack.c.l.b16 %v2325
    %v3598 = vunpack.c.h.b16 %v2325
    %v3599 = vunpack.c.l.b16 %v2326
    %v3600 = vunpack.c.h.b16 %v2326
    %v3601 = vunpack.c.l.b16 %v2327
    %v3602 = vunpack.c.h.b16 %v2327
    %v3603 = vunpack.c.l.b16 %v2328
    %v3604 = vunpack.c.h.b16 %v2328
    %v3605 = vunpack.c.l.b16 %v2329
    %v3606 = vunpack.c.h.b16 %v2329
    %v3607 = vunpack.c.l.b16 %v2330
    %v3608 = vunpack.c.h.b16 %v2330
    %v3609 = vunpack.c.l.b16 %v2331
    %v3610 = vunpack.c.h.b16 %v2331
    %v3611 = vunpack.c.l.b16 %v2332
    %v3612 = vunpack.c.h.b16 %v2332
    %v3613 = vlaneseq
    %v3614 = vand.u32 %v3613, 127
    %v3615 = vlaneseq
    %v3616 = vshrl.u32 %v3615, 7
    %v3617 = vsub.s32 %v3614, %v3616
    %v3618 = vrot.slane %v3101, %v3617
    %v3619 = vadd.s32 %v3614, 4294967288
    %v3620 = vlaneseq
    %v3621 = vshrl.u32 %v3620, 7
    %v3622 = vsub.s32 %v3619, %v3621
    %v3623 = vrot.slane %v3102, %v3622
    %vm3624 = vcmask 130112
    %v3625 = vsel %vm3624, %v3623, %v3618
    %v3626 = vadd.s32 %v3614, 4294967280
    %v3627 = vlaneseq
    %v3628 = vshrl.u32 %v3627, 7
    %v3629 = vsub.s32 %v3626, %v3628
    %v3630 = vrot.slane %v3103, %v3629
    %vm3631 = vcmask 195712
    %v3632 = vsel %vm3631, %v3630, %v3625
    %v3633 = vadd.s32 %v3614, 4294967272
    %v3634 = vlaneseq
    %v3635 = vshrl.u32 %v3634, 7
    %v3636 = vsub.s32 %v3633, %v3635
    %v3637 = vrot.slane %v3104, %v3636
    %vm3638 = vcmask 261312
    %v3639 = vsel %vm3638, %v3637, %v3632
    %v3640 = vadd.s32 %v3614, 4294967264
    %v3641 = vlaneseq
    %v3642 = vshrl.u32 %v3641, 7
    %v3643 = vsub.s32 %v3640, %v3642
    %v3644 = vrot.slane %v3105, %v3643
    %vm3645 = vcmask 326912
    %v3646 = vsel %vm3645, %v3644, %v3639
    %v3647 = vadd.s32 %v3614, 4294967256
    %v3648 = vlaneseq
    %v3649 = vshrl.u32 %v3648, 7
    %v3650 = vsub.s32 %v3647, %v3649
    %v3651 = vrot.slane %v3106, %v3650
    %vm3652 = vcmask 392512
    %v3653 = vsel %vm3652, %v3651, %v3646
    %v3654 = vadd.s32 %v3614, 4294967248
    %v3655 = vlaneseq
    %v3656 = vshrl.u32 %v3655, 7
    %v3657 = vsub.s32 %v3654, %v3656
    %v3658 = vrot.slane %v3107, %v3657
    %vm3659 = vcmask 458112
    %v3660 = vsel %vm3659, %v3658, %v3653
    %v3661 = vadd.s32 %v3614, 4294967240
    %v3662 = vlaneseq
    %v3663 = vshrl.u32 %v3662, 7
    %v3664 = vsub.s32 %v3661, %v3663
    %v3665 = vrot.slane %v3108, %v3664
    %vm3666 = vcmask 523712
    %v3667 = vsel %vm3666, %v3665, %v3660
    %v3668 = vadd.s32 %v3614, 4294967232
    %v3669 = vlaneseq
    %v3670 = vshrl.u32 %v3669, 7
    %v3671 = vsub.s32 %v3668, %v3670
    %v3672 = vrot.slane %v3109, %v3671
    %vm3673 = vcmask 589312
    %v3674 = vsel %vm3673, %v3672, %v3667
    %v3675 = vadd.s32 %v3614, 4294967224
    %v3676 = vlaneseq
    %v3677 = vshrl.u32 %v3676, 7
    %v3678 = vsub.s32 %v3675, %v3677
    %v3679 = vrot.slane %v3110, %v3678
    %vm3680 = vcmask 654912
    %v3681 = vsel %vm3680, %v3679, %v3674
    %v3682 = vadd.s32 %v3614, 4294967216
    %v3683 = vlaneseq
    %v3684 = vshrl.u32 %v3683, 7
    %v3685 = vsub.s32 %v3682, %v3684
    %v3686 = vrot.slane %v3111, %v3685
    %vm3687 = vcmask 720512
    %v3688 = vsel %vm3687, %v3686, %v3681
    %v3689 = vadd.s32 %v3614, 4294967208
    %v3690 = vlaneseq
    %v3691 = vshrl.u32 %v3690, 7
    %v3692 = vsub.s32 %v3689, %v3691
    %v3693 = vrot.slane %v3112, %v3692
    %vm3694 = vcmask 786112
    %v3695 = vsel %vm3694, %v3693, %v3688
    %v3696 = vadd.s32 %v3614, 4294967200
    %v3697 = vlaneseq
    %v3698 = vshrl.u32 %v3697, 7
    %v3699 = vsub.s32 %v3696, %v3698
    %v3700 = vrot.slane %v3113, %v3699
    %vm3701 = vcmask 851712
    %v3702 = vsel %vm3701, %v3700, %v3695
    %v3703 = vadd.s32 %v3614, 4294967192
    %v3704 = vlaneseq
    %v3705 = vshrl.u32 %v3704, 7
    %v3706 = vsub.s32 %v3703, %v3705
    %v3707 = vrot.slane %v3114, %v3706
    %vm3708 = vcmask 917312
    %v3709 = vsel %vm3708, %v3707, %v3702
    %v3710 = vadd.s32 %v3614, 4294967184
    %v3711 = vlaneseq
    %v3712 = vshrl.u32 %v3711, 7
    %v3713 = vsub.s32 %v3710, %v3712
    %v3714 = vrot.slane %v3115, %v3713
    %vm3715 = vcmask 982912
    %v3716 = vsel %vm3715, %v3714, %v3709
    %v3717 = vadd.s32 %v3614, 4294967176
    %v3718 = vlaneseq
    %v3719 = vshrl.u32 %v3718, 7
    %v3720 = vsub.s32 %v3717, %v3719
    %v3721 = vrot.slane %v3116, %v3720
    %vm3722 = vcmask 1048512
    %v3723 = vsel %vm3722, %v3721, %v3716
    %v3724 = vlaneseq
    %v3725 = vshrl.u32 %v3724, 7
    %v3726 = vsub.s32 %v3614, %v3725
    %v3727 = vrot.slane %v3117, %v3726
    %v3728 = vlaneseq
    %v3729 = vshrl.u32 %v3728, 7
    %v3730 = vsub.s32 %v3619, %v3729
    %v3731 = vrot.slane %v3118, %v3730
    %v3732 = vsel %vm3624, %v3731, %v3727
    %v3733 = vlaneseq
    %v3734 = vshrl.u32 %v3733, 7
    %v3735 = vsub.s32 %v3626, %v3734
    %v3736 = vrot.slane %v3119, %v3735
    %v3737 = vsel %vm3631, %v3736, %v3732
    %v3738 = vlaneseq
    %v3739 = vshrl.u32 %v3738, 7
    %v3740 = vsub.s32 %v3633, %v3739
    %v3741 = vrot.slane %v3120, %v3740
    %v3742 = vsel %vm3638, %v3741, %v3737
    %v3743 = vlaneseq
    %v3744 = vshrl.u32 %v3743, 7
    %v3745 = vsub.s32 %v3640, %v3744
    %v3746 = vrot.slane %v3121, %v3745
    %v3747 = vsel %vm3645, %v3746, %v3742
    %v3748 = vlaneseq
    %v3749 = vshrl.u32 %v3748, 7
    %v3750 = vsub.s32 %v3647, %v3749
    %v3751 = vrot.slane %v3122, %v3750
    %v3752 = vsel %vm3652, %v3751, %v3747
    %v3753 = vlaneseq
    %v3754 = vshrl.u32 %v3753, 7
    %v3755 = vsub.s32 %v3654, %v3754
    %v3756 = vrot.slane %v3123, %v3755
    %v3757 = vsel %vm3659, %v3756, %v3752
    %v3758 = vlaneseq
    %v3759 = vshrl.u32 %v3758, 7
    %v3760 = vsub.s32 %v3661, %v3759
    %v3761 = vrot.slane %v3124, %v3760
    %v3762 = vsel %vm3666, %v3761, %v3757
    %v3763 = vlaneseq
    %v3764 = vshrl.u32 %v3763, 7
    %v3765 = vsub.s32 %v3668, %v3764
    %v3766 = vrot.slane %v3125, %v3765
    %v3767 = vsel %vm3673, %v3766, %v3762
    %v3768 = vlaneseq
    %v3769 = vshrl.u32 %v3768, 7
    %v3770 = vsub.s32 %v3675, %v3769
    %v3771 = vrot.slane %v3126, %v3770
    %v3772 = vsel %vm3680, %v3771, %v3767
    %v3773 = vlaneseq
    %v3774 = vshrl.u32 %v3773, 7
    %v3775 = vsub.s32 %v3682, %v3774
    %v3776 = vrot.slane %v3127, %v3775
    %v3777 = vsel %vm3687, %v3776, %v3772
    %v3778 = vlaneseq
    %v3779 = vshrl.u32 %v3778, 7
    %v3780 = vsub.s32 %v3689, %v3779
    %v3781 = vrot.slane %v3128, %v3780
    %v3782 = vsel %vm3694, %v3781, %v3777
    %v3783 = vlaneseq
    %v3784 = vshrl.u32 %v3783, 7
    %v3785 = vsub.s32 %v3696, %v3784
    %v3786 = vrot.slane %v3129, %v3785
    %v3787 = vsel %vm3701, %v3786, %v3782
    %v3788 = vlaneseq
    %v3789 = vshrl.u32 %v3788, 7
    %v3790 = vsub.s32 %v3703, %v3789
    %v3791 = vrot.slane %v3130, %v3790
    %v3792 = vsel %vm3708, %v3791, %v3787
    %v3793 = vlaneseq
    %v3794 = vshrl.u32 %v3793, 7
    %v3795 = vsub.s32 %v3710, %v3794
    %v3796 = vrot.slane %v3131, %v3795
    %v3797 = vsel %vm3715, %v3796, %v3792
    %v3798 = vlaneseq
    %v3799 = vshrl.u32 %v3798, 7
    %v3800 = vsub.s32 %v3717, %v3799
    %v3801 = vrot.slane %v3132, %v3800
    %v3802 = vsel %vm3722, %v3801, %v3797
    %v3803 = vlaneseq
    %v3804 = vshrl.u32 %v3803, 7
    %v3805 = vsub.s32 %v3614, %v3804
    %v3806 = vrot.slane %v3133, %v3805
    %v3807 = vlaneseq
    %v3808 = vshrl.u32 %v3807, 7
    %v3809 = vsub.s32 %v3619, %v3808
    %v3810 = vrot.slane %v3134, %v3809
    %v3811 = vsel %vm3624, %v3810, %v3806
    %v3812 = vlaneseq
    %v3813 = vshrl.u32 %v3812, 7
    %v3814 = vsub.s32 %v3626, %v3813
    %v3815 = vrot.slane %v3135, %v3814
    %v3816 = vsel %vm3631, %v3815, %v3811
    %v3817 = vlaneseq
    %v3818 = vshrl.u32 %v3817, 7
    %v3819 = vsub.s32 %v3633, %v3818
    %v3820 = vrot.slane %v3136, %v3819
    %v3821 = vsel %vm3638, %v3820, %v3816
    %v3822 = vlaneseq
    %v3823 = vshrl.u32 %v3822, 7
    %v3824 = vsub.s32 %v3640, %v3823
    %v3825 = vrot.slane %v3137, %v3824
    %v3826 = vsel %vm3645, %v3825, %v3821
    %v3827 = vlaneseq
    %v3828 = vshrl.u32 %v3827, 7
    %v3829 = vsub.s32 %v3647, %v3828
    %v3830 = vrot.slane %v3138, %v3829
    %v3831 = vsel %vm3652, %v3830, %v3826
    %v3832 = vlaneseq
    %v3833 = vshrl.u32 %v3832, 7
    %v3834 = vsub.s32 %v3654, %v3833
    %v3835 = vrot.slane %v3139, %v3834
    %v3836 = vsel %vm3659, %v3835, %v3831
    %v3837 = vlaneseq
    %v3838 = vshrl.u32 %v3837, 7
    %v3839 = vsub.s32 %v3661, %v3838
    %v3840 = vrot.slane %v3140, %v3839
    %v3841 = vsel %vm3666, %v3840, %v3836
    %v3842 = vlaneseq
    %v3843 = vshrl.u32 %v3842, 7
    %v3844 = vsub.s32 %v3668, %v3843
    %v3845 = vrot.slane %v3141, %v3844
    %v3846 = vsel %vm3673, %v3845, %v3841
    %v3847 = vlaneseq
    %v3848 = vshrl.u32 %v3847, 7
    %v3849 = vsub.s32 %v3675, %v3848
    %v3850 = vrot.slane %v3142, %v3849
    %v3851 = vsel %vm3680, %v3850, %v3846
    %v3852 = vlaneseq
    %v3853 = vshrl.u32 %v3852, 7
    %v3854 = vsub.s32 %v3682, %v3853
    %v3855 = vrot.slane %v3143, %v3854
    %v3856 = vsel %vm3687, %v3855, %v3851
    %v3857 = vlaneseq
    %v3858 = vshrl.u32 %v3857, 7
    %v3859 = vsub.s32 %v3689, %v3858
    %v3860 = vrot.slane %v3144, %v3859
    %v3861 = vsel %vm3694, %v3860, %v3856
    %v3862 = vlaneseq
    %v3863 = vshrl.u32 %v3862, 7
    %v3864 = vsub.s32 %v3696, %v3863
    %v3865 = vrot.slane %v3145, %v3864
    %v3866 = vsel %vm3701, %v3865, %v3861
    %v3867 = vlaneseq
    %v3868 = vshrl.u32 %v3867, 7
    %v3869 = vsub.s32 %v3703, %v3868
    %v3870 = vrot.slane %v3146, %v3869
    %v3871 = vsel %vm3708, %v3870, %v3866
    %v3872 = vlaneseq
    %v3873 = vshrl.u32 %v3872, 7
    %v3874 = vsub.s32 %v3710, %v3873
    %v3875 = vrot.slane %v3147, %v3874
    %v3876 = vsel %vm3715, %v3875, %v3871
    %v3877 = vlaneseq
    %v3878 = vshrl.u32 %v3877, 7
    %v3879 = vsub.s32 %v3717, %v3878
    %v3880 = vrot.slane %v3148, %v3879
    %v3881 = vsel %vm3722, %v3880, %v3876
    %v3882 = vlaneseq
    %v3883 = vshrl.u32 %v3882, 7
    %v3884 = vsub.s32 %v3614, %v3883
    %v3885 = vrot.slane %v3149, %v3884
    %v3886 = vlaneseq
    %v3887 = vshrl.u32 %v3886, 7
    %v3888 = vsub.s32 %v3619, %v3887
    %v3889 = vrot.slane %v3150, %v3888
    %v3890 = vsel %vm3624, %v3889, %v3885
    %v3891 = vlaneseq
    %v3892 = vshrl.u32 %v3891, 7
    %v3893 = vsub.s32 %v3626, %v3892
    %v3894 = vrot.slane %v3151, %v3893
    %v3895 = vsel %vm3631, %v3894, %v3890
    %v3896 = vlaneseq
    %v3897 = vshrl.u32 %v3896, 7
    %v3898 = vsub.s32 %v3633, %v3897
    %v3899 = vrot.slane %v3152, %v3898
    %v3900 = vsel %vm3638, %v3899, %v3895
    %v3901 = vlaneseq
    %v3902 = vshrl.u32 %v3901, 7
    %v3903 = vsub.s32 %v3640, %v3902
    %v3904 = vrot.slane %v3153, %v3903
    %v3905 = vsel %vm3645, %v3904, %v3900
    %v3906 = vlaneseq
    %v3907 = vshrl.u32 %v3906, 7
    %v3908 = vsub.s32 %v3647, %v3907
    %v3909 = vrot.slane %v3154, %v3908
    %v3910 = vsel %vm3652, %v3909, %v3905
    %v3911 = vlaneseq
    %v3912 = vshrl.u32 %v3911, 7
    %v3913 = vsub.s32 %v3654, %v3912
    %v3914 = vrot.slane %v3155, %v3913
    %v3915 = vsel %vm3659, %v3914, %v3910
    %v3916 = vlaneseq
    %v3917 = vshrl.u32 %v3916, 7
    %v3918 = vsub.s32 %v3661, %v3917
    %v3919 = vrot.slane %v3156, %v3918
    %v3920 = vsel %vm3666, %v3919, %v3915
    %v3921 = vlaneseq
    %v3922 = vshrl.u32 %v3921, 7
    %v3923 = vsub.s32 %v3668, %v3922
    %v3924 = vrot.slane %v3157, %v3923
    %v3925 = vsel %vm3673, %v3924, %v3920
    %v3926 = vlaneseq
    %v3927 = vshrl.u32 %v3926, 7
    %v3928 = vsub.s32 %v3675, %v3927
    %v3929 = vrot.slane %v3158, %v3928
    %v3930 = vsel %vm3680, %v3929, %v3925
    %v3931 = vlaneseq
    %v3932 = vshrl.u32 %v3931, 7
    %v3933 = vsub.s32 %v3682, %v3932
    %v3934 = vrot.slane %v3159, %v3933
    %v3935 = vsel %vm3687, %v3934, %v3930
    %v3936 = vlaneseq
    %v3937 = vshrl.u32 %v3936, 7
    %v3938 = vsub.s32 %v3689, %v3937
    %v3939 = vrot.slane %v3160, %v3938
    %v3940 = vsel %vm3694, %v3939, %v3935
    %v3941 = vlaneseq
    %v3942 = vshrl.u32 %v3941, 7
    %v3943 = vsub.s32 %v3696, %v3942
    %v3944 = vrot.slane %v3161, %v3943
    %v3945 = vsel %vm3701, %v3944, %v3940
    %v3946 = vlaneseq
    %v3947 = vshrl.u32 %v3946, 7
    %v3948 = vsub.s32 %v3703, %v3947
    %v3949 = vrot.slane %v3162, %v3948
    %v3950 = vsel %vm3708, %v3949, %v3945
    %v3951 = vlaneseq
    %v3952 = vshrl.u32 %v3951, 7
    %v3953 = vsub.s32 %v3710, %v3952
    %v3954 = vrot.slane %v3163, %v3953
    %v3955 = vsel %vm3715, %v3954, %v3950
    %v3956 = vlaneseq
    %v3957 = vshrl.u32 %v3956, 7
    %v3958 = vsub.s32 %v3717, %v3957
    %v3959 = vrot.slane %v3164, %v3958
    %v3960 = vsel %vm3722, %v3959, %v3955
    %v3961 = vlaneseq
    %v3962 = vshrl.u32 %v3961, 7
    %v3963 = vsub.s32 %v3614, %v3962
    %v3964 = vrot.slane %v3165, %v3963
    %v3965 = vlaneseq
    %v3966 = vshrl.u32 %v3965, 7
    %v3967 = vsub.s32 %v3619, %v3966
    %v3968 = vrot.slane %v3166, %v3967
    %v3969 = vsel %vm3624, %v3968, %v3964
    %v3970 = vlaneseq
    %v3971 = vshrl.u32 %v3970, 7
    %v3972 = vsub.s32 %v3626, %v3971
    %v3973 = vrot.slane %v3167, %v3972
    %v3974 = vsel %vm3631, %v3973, %v3969
    %v3975 = vlaneseq
    %v3976 = vshrl.u32 %v3975, 7
    %v3977 = vsub.s32 %v3633, %v3976
    %v3978 = vrot.slane %v3168, %v3977
    %v3979 = vsel %vm3638, %v3978, %v3974
    %v3980 = vlaneseq
    %v3981 = vshrl.u32 %v3980, 7
    %v3982 = vsub.s32 %v3640, %v3981
    %v3983 = vrot.slane %v3169, %v3982
    %v3984 = vsel %vm3645, %v3983, %v3979
    %v3985 = vlaneseq
    %v3986 = vshrl.u32 %v3985, 7
    %v3987 = vsub.s32 %v3647, %v3986
    %v3988 = vrot.slane %v3170, %v3987
    %v3989 = vsel %vm3652, %v3988, %v3984
    %v3990 = vlaneseq
    %v3991 = vshrl.u32 %v3990, 7
    %v3992 = vsub.s32 %v3654, %v3991
    %v3993 = vrot.slane %v3171, %v3992
    %v3994 = vsel %vm3659, %v3993, %v3989
    %v3995 = vlaneseq
    %v3996 = vshrl.u32 %v3995, 7
    %v3997 = vsub.s32 %v3661, %v3996
    %v3998 = vrot.slane %v3172, %v3997
    %v3999 = vsel %vm3666, %v3998, %v3994
    %v4000 = vlaneseq
    %v4001 = vshrl.u32 %v4000, 7
    %v4002 = vsub.s32 %v3668, %v4001
    %v4003 = vrot.slane %v3173, %v4002
    %v4004 = vsel %vm3673, %v4003, %v3999
    %v4005 = vlaneseq
    %v4006 = vshrl.u32 %v4005, 7
    %v4007 = vsub.s32 %v3675, %v4006
    %v4008 = vrot.slane %v3174, %v4007
    %v4009 = vsel %vm3680, %v4008, %v4004
    %v4010 = vlaneseq
    %v4011 = vshrl.u32 %v4010, 7
    %v4012 = vsub.s32 %v3682, %v4011
    %v4013 = vrot.slane %v3175, %v4012
    %v4014 = vsel %vm3687, %v4013, %v4009
    %v4015 = vlaneseq
    %v4016 = vshrl.u32 %v4015, 7
    %v4017 = vsub.s32 %v3689, %v4016
    %v4018 = vrot.slane %v3176, %v4017
    %v4019 = vsel %vm3694, %v4018, %v4014
    %v4020 = vlaneseq
    %v4021 = vshrl.u32 %v4020, 7
    %v4022 = vsub.s32 %v3696, %v4021
    %v4023 = vrot.slane %v3177, %v4022
    %v4024 = vsel %vm3701, %v4023, %v4019
    %v4025 = vlaneseq
    %v4026 = vshrl.u32 %v4025, 7
    %v4027 = vsub.s32 %v3703, %v4026
    %v4028 = vrot.slane %v3178, %v4027
    %v4029 = vsel %vm3708, %v4028, %v4024
    %v4030 = vlaneseq
    %v4031 = vshrl.u32 %v4030, 7
    %v4032 = vsub.s32 %v3710, %v4031
    %v4033 = vrot.slane %v3179, %v4032
    %v4034 = vsel %vm3715, %v4033, %v4029
    %v4035 = vlaneseq
    %v4036 = vshrl.u32 %v4035, 7
    %v4037 = vsub.s32 %v3717, %v4036
    %v4038 = vrot.slane %v3180, %v4037
    %v4039 = vsel %vm3722, %v4038, %v4034
    %v4040 = vlaneseq
    %v4041 = vshrl.u32 %v4040, 7
    %v4042 = vsub.s32 %v3614, %v4041
    %v4043 = vrot.slane %v3181, %v4042
    %v4044 = vlaneseq
    %v4045 = vshrl.u32 %v4044, 7
    %v4046 = vsub.s32 %v3619, %v4045
    %v4047 = vrot.slane %v3182, %v4046
    %v4048 = vsel %vm3624, %v4047, %v4043
    %v4049 = vlaneseq
    %v4050 = vshrl.u32 %v4049, 7
    %v4051 = vsub.s32 %v3626, %v4050
    %v4052 = vrot.slane %v3183, %v4051
    %v4053 = vsel %vm3631, %v4052, %v4048
    %v4054 = vlaneseq
    %v4055 = vshrl.u32 %v4054, 7
    %v4056 = vsub.s32 %v3633, %v4055
    %v4057 = vrot.slane %v3184, %v4056
    %v4058 = vsel %vm3638, %v4057, %v4053
    %v4059 = vlaneseq
    %v4060 = vshrl.u32 %v4059, 7
    %v4061 = vsub.s32 %v3640, %v4060
    %v4062 = vrot.slane %v3185, %v4061
    %v4063 = vsel %vm3645, %v4062, %v4058
    %v4064 = vlaneseq
    %v4065 = vshrl.u32 %v4064, 7
    %v4066 = vsub.s32 %v3647, %v4065
    %v4067 = vrot.slane %v3186, %v4066
    %v4068 = vsel %vm3652, %v4067, %v4063
    %v4069 = vlaneseq
    %v4070 = vshrl.u32 %v4069, 7
    %v4071 = vsub.s32 %v3654, %v4070
    %v4072 = vrot.slane %v3187, %v4071
    %v4073 = vsel %vm3659, %v4072, %v4068
    %v4074 = vlaneseq
    %v4075 = vshrl.u32 %v4074, 7
    %v4076 = vsub.s32 %v3661, %v4075
    %v4077 = vrot.slane %v3188, %v4076
    %v4078 = vsel %vm3666, %v4077, %v4073
    %v4079 = vlaneseq
    %v4080 = vshrl.u32 %v4079, 7
    %v4081 = vsub.s32 %v3668, %v4080
    %v4082 = vrot.slane %v3189, %v4081
    %v4083 = vsel %vm3673, %v4082, %v4078
    %v4084 = vlaneseq
    %v4085 = vshrl.u32 %v4084, 7
    %v4086 = vsub.s32 %v3675, %v4085
    %v4087 = vrot.slane %v3190, %v4086
    %v4088 = vsel %vm3680, %v4087, %v4083
    %v4089 = vlaneseq
    %v4090 = vshrl.u32 %v4089, 7
    %v4091 = vsub.s32 %v3682, %v4090
    %v4092 = vrot.slane %v3191, %v4091
    %v4093 = vsel %vm3687, %v4092, %v4088
    %v4094 = vlaneseq
    %v4095 = vshrl.u32 %v4094, 7
    %v4096 = vsub.s32 %v3689, %v4095
    %v4097 = vrot.slane %v3192, %v4096
    %v4098 = vsel %vm3694, %v4097, %v4093
    %v4099 = vlaneseq
    %v4100 = vshrl.u32 %v4099, 7
    %v4101 = vsub.s32 %v3696, %v4100
    %v4102 = vrot.slane %v3193, %v4101
    %v4103 = vsel %vm3701, %v4102, %v4098
    %v4104 = vlaneseq
    %v4105 = vshrl.u32 %v4104, 7
    %v4106 = vsub.s32 %v3703, %v4105
    %v4107 = vrot.slane %v3194, %v4106
    %v4108 = vsel %vm3708, %v4107, %v4103
    %v4109 = vlaneseq
    %v4110 = vshrl.u32 %v4109, 7
    %v4111 = vsub.s32 %v3710, %v4110
    %v4112 = vrot.slane %v3195, %v4111
    %v4113 = vsel %vm3715, %v4112, %v4108
    %v4114 = vlaneseq
    %v4115 = vshrl.u32 %v4114, 7
    %v4116 = vsub.s32 %v3717, %v4115
    %v4117 = vrot.slane %v3196, %v4116
    %v4118 = vsel %vm3722, %v4117, %v4113
    %v4119 = vlaneseq
    %v4120 = vshrl.u32 %v4119, 7
    %v4121 = vsub.s32 %v3614, %v4120
    %v4122 = vrot.slane %v3197, %v4121
    %v4123 = vlaneseq
    %v4124 = vshrl.u32 %v4123, 7
    %v4125 = vsub.s32 %v3619, %v4124
    %v4126 = vrot.slane %v3198, %v4125
    %v4127 = vsel %vm3624, %v4126, %v4122
    %v4128 = vlaneseq
    %v4129 = vshrl.u32 %v4128, 7
    %v4130 = vsub.s32 %v3626, %v4129
    %v4131 = vrot.slane %v3199, %v4130
    %v4132 = vsel %vm3631, %v4131, %v4127
    %v4133 = vlaneseq
    %v4134 = vshrl.u32 %v4133, 7
    %v4135 = vsub.s32 %v3633, %v4134
    %v4136 = vrot.slane %v3200, %v4135
    %v4137 = vsel %vm3638, %v4136, %v4132
    %v4138 = vlaneseq
    %v4139 = vshrl.u32 %v4138, 7
    %v4140 = vsub.s32 %v3640, %v4139
    %v4141 = vrot.slane %v3201, %v4140
    %v4142 = vsel %vm3645, %v4141, %v4137
    %v4143 = vlaneseq
    %v4144 = vshrl.u32 %v4143, 7
    %v4145 = vsub.s32 %v3647, %v4144
    %v4146 = vrot.slane %v3202, %v4145
    %v4147 = vsel %vm3652, %v4146, %v4142
    %v4148 = vlaneseq
    %v4149 = vshrl.u32 %v4148, 7
    %v4150 = vsub.s32 %v3654, %v4149
    %v4151 = vrot.slane %v3203, %v4150
    %v4152 = vsel %vm3659, %v4151, %v4147
    %v4153 = vlaneseq
    %v4154 = vshrl.u32 %v4153, 7
    %v4155 = vsub.s32 %v3661, %v4154
    %v4156 = vrot.slane %v3204, %v4155
    %v4157 = vsel %vm3666, %v4156, %v4152
    %v4158 = vlaneseq
    %v4159 = vshrl.u32 %v4158, 7
    %v4160 = vsub.s32 %v3668, %v4159
    %v4161 = vrot.slane %v3205, %v4160
    %v4162 = vsel %vm3673, %v4161, %v4157
    %v4163 = vlaneseq
    %v4164 = vshrl.u32 %v4163, 7
    %v4165 = vsub.s32 %v3675, %v4164
    %v4166 = vrot.slane %v3206, %v4165
    %v4167 = vsel %vm3680, %v4166, %v4162
    %v4168 = vlaneseq
    %v4169 = vshrl.u32 %v4168, 7
    %v4170 = vsub.s32 %v3682, %v4169
    %v4171 = vrot.slane %v3207, %v4170
    %v4172 = vsel %vm3687, %v4171, %v4167
    %v4173 = vlaneseq
    %v4174 = vshrl.u32 %v4173, 7
    %v4175 = vsub.s32 %v3689, %v4174
    %v4176 = vrot.slane %v3208, %v4175
    %v4177 = vsel %vm3694, %v4176, %v4172
    %v4178 = vlaneseq
    %v4179 = vshrl.u32 %v4178, 7
    %v4180 = vsub.s32 %v3696, %v4179
    %v4181 = vrot.slane %v3209, %v4180
    %v4182 = vsel %vm3701, %v4181, %v4177
    %v4183 = vlaneseq
    %v4184 = vshrl.u32 %v4183, 7
    %v4185 = vsub.s32 %v3703, %v4184
    %v4186 = vrot.slane %v3210, %v4185
    %v4187 = vsel %vm3708, %v4186, %v4182
    %v4188 = vlaneseq
    %v4189 = vshrl.u32 %v4188, 7
    %v4190 = vsub.s32 %v3710, %v4189
    %v4191 = vrot.slane %v3211, %v4190
    %v4192 = vsel %vm3715, %v4191, %v4187
    %v4193 = vlaneseq
    %v4194 = vshrl.u32 %v4193, 7
    %v4195 = vsub.s32 %v3717, %v4194
    %v4196 = vrot.slane %v3212, %v4195
    %v4197 = vsel %vm3722, %v4196, %v4192
    %v4198 = vlaneseq
    %v4199 = vshrl.u32 %v4198, 7
    %v4200 = vsub.s32 %v3614, %v4199
    %v4201 = vrot.slane %v3213, %v4200
    %v4202 = vlaneseq
    %v4203 = vshrl.u32 %v4202, 7
    %v4204 = vsub.s32 %v3619, %v4203
    %v4205 = vrot.slane %v3214, %v4204
    %v4206 = vsel %vm3624, %v4205, %v4201
    %v4207 = vlaneseq
    %v4208 = vshrl.u32 %v4207, 7
    %v4209 = vsub.s32 %v3626, %v4208
    %v4210 = vrot.slane %v3215, %v4209
    %v4211 = vsel %vm3631, %v4210, %v4206
    %v4212 = vlaneseq
    %v4213 = vshrl.u32 %v4212, 7
    %v4214 = vsub.s32 %v3633, %v4213
    %v4215 = vrot.slane %v3216, %v4214
    %v4216 = vsel %vm3638, %v4215, %v4211
    %v4217 = vlaneseq
    %v4218 = vshrl.u32 %v4217, 7
    %v4219 = vsub.s32 %v3640, %v4218
    %v4220 = vrot.slane %v3217, %v4219
    %v4221 = vsel %vm3645, %v4220, %v4216
    %v4222 = vlaneseq
    %v4223 = vshrl.u32 %v4222, 7
    %v4224 = vsub.s32 %v3647, %v4223
    %v4225 = vrot.slane %v3218, %v4224
    %v4226 = vsel %vm3652, %v4225, %v4221
    %v4227 = vlaneseq
    %v4228 = vshrl.u32 %v4227, 7
    %v4229 = vsub.s32 %v3654, %v4228
    %v4230 = vrot.slane %v3219, %v4229
    %v4231 = vsel %vm3659, %v4230, %v4226
    %v4232 = vlaneseq
    %v4233 = vshrl.u32 %v4232, 7
    %v4234 = vsub.s32 %v3661, %v4233
    %v4235 = vrot.slane %v3220, %v4234
    %v4236 = vsel %vm3666, %v4235, %v4231
    %v4237 = vlaneseq
    %v4238 = vshrl.u32 %v4237, 7
    %v4239 = vsub.s32 %v3668, %v4238
    %v4240 = vrot.slane %v3221, %v4239
    %v4241 = vsel %vm3673, %v4240, %v4236
    %v4242 = vlaneseq
    %v4243 = vshrl.u32 %v4242, 7
    %v4244 = vsub.s32 %v3675, %v4243
    %v4245 = vrot.slane %v3222, %v4244
    %v4246 = vsel %vm3680, %v4245, %v4241
    %v4247 = vlaneseq
    %v4248 = vshrl.u32 %v4247, 7
    %v4249 = vsub.s32 %v3682, %v4248
    %v4250 = vrot.slane %v3223, %v4249
    %v4251 = vsel %vm3687, %v4250, %v4246
    %v4252 = vlaneseq
    %v4253 = vshrl.u32 %v4252, 7
    %v4254 = vsub.s32 %v3689, %v4253
    %v4255 = vrot.slane %v3224, %v4254
    %v4256 = vsel %vm3694, %v4255, %v4251
    %v4257 = vlaneseq
    %v4258 = vshrl.u32 %v4257, 7
    %v4259 = vsub.s32 %v3696, %v4258
    %v4260 = vrot.slane %v3225, %v4259
    %v4261 = vsel %vm3701, %v4260, %v4256
    %v4262 = vlaneseq
    %v4263 = vshrl.u32 %v4262, 7
    %v4264 = vsub.s32 %v3703, %v4263
    %v4265 = vrot.slane %v3226, %v4264
    %v4266 = vsel %vm3708, %v4265, %v4261
    %v4267 = vlaneseq
    %v4268 = vshrl.u32 %v4267, 7
    %v4269 = vsub.s32 %v3710, %v4268
    %v4270 = vrot.slane %v3227, %v4269
    %v4271 = vsel %vm3715, %v4270, %v4266
    %v4272 = vlaneseq
    %v4273 = vshrl.u32 %v4272, 7
    %v4274 = vsub.s32 %v3717, %v4273
    %v4275 = vrot.slane %v3228, %v4274
    %v4276 = vsel %vm3722, %v4275, %v4271
    %v4277 = vlaneseq
    %v4278 = vshrl.u32 %v4277, 7
    %v4279 = vsub.s32 %v3614, %v4278
    %v4280 = vrot.slane %v3229, %v4279
    %v4281 = vlaneseq
    %v4282 = vshrl.u32 %v4281, 7
    %v4283 = vsub.s32 %v3619, %v4282
    %v4284 = vrot.slane %v3230, %v4283
    %v4285 = vsel %vm3624, %v4284, %v4280
    %v4286 = vlaneseq
    %v4287 = vshrl.u32 %v4286, 7
    %v4288 = vsub.s32 %v3626, %v4287
    %v4289 = vrot.slane %v3231, %v4288
    %v4290 = vsel %vm3631, %v4289, %v4285
    %v4291 = vlaneseq
    %v4292 = vshrl.u32 %v4291, 7
    %v4293 = vsub.s32 %v3633, %v4292
    %v4294 = vrot.slane %v3232, %v4293
    %v4295 = vsel %vm3638, %v4294, %v4290
    %v4296 = vlaneseq
    %v4297 = vshrl.u32 %v4296, 7
    %v4298 = vsub.s32 %v3640, %v4297
    %v4299 = vrot.slane %v3233, %v4298
    %v4300 = vsel %vm3645, %v4299, %v4295
    %v4301 = vlaneseq
    %v4302 = vshrl.u32 %v4301, 7
    %v4303 = vsub.s32 %v3647, %v4302
    %v4304 = vrot.slane %v3234, %v4303
    %v4305 = vsel %vm3652, %v4304, %v4300
    %v4306 = vlaneseq
    %v4307 = vshrl.u32 %v4306, 7
    %v4308 = vsub.s32 %v3654, %v4307
    %v4309 = vrot.slane %v3235, %v4308
    %v4310 = vsel %vm3659, %v4309, %v4305
    %v4311 = vlaneseq
    %v4312 = vshrl.u32 %v4311, 7
    %v4313 = vsub.s32 %v3661, %v4312
    %v4314 = vrot.slane %v3236, %v4313
    %v4315 = vsel %vm3666, %v4314, %v4310
    %v4316 = vlaneseq
    %v4317 = vshrl.u32 %v4316, 7
    %v4318 = vsub.s32 %v3668, %v4317
    %v4319 = vrot.slane %v3237, %v4318
    %v4320 = vsel %vm3673, %v4319, %v4315
    %v4321 = vlaneseq
    %v4322 = vshrl.u32 %v4321, 7
    %v4323 = vsub.s32 %v3675, %v4322
    %v4324 = vrot.slane %v3238, %v4323
    %v4325 = vsel %vm3680, %v4324, %v4320
    %v4326 = vlaneseq
    %v4327 = vshrl.u32 %v4326, 7
    %v4328 = vsub.s32 %v3682, %v4327
    %v4329 = vrot.slane %v3239, %v4328
    %v4330 = vsel %vm3687, %v4329, %v4325
    %v4331 = vlaneseq
    %v4332 = vshrl.u32 %v4331, 7
    %v4333 = vsub.s32 %v3689, %v4332
    %v4334 = vrot.slane %v3240, %v4333
    %v4335 = vsel %vm3694, %v4334, %v4330
    %v4336 = vlaneseq
    %v4337 = vshrl.u32 %v4336, 7
    %v4338 = vsub.s32 %v3696, %v4337
    %v4339 = vrot.slane %v3241, %v4338
    %v4340 = vsel %vm3701, %v4339, %v4335
    %v4341 = vlaneseq
    %v4342 = vshrl.u32 %v4341, 7
    %v4343 = vsub.s32 %v3703, %v4342
    %v4344 = vrot.slane %v3242, %v4343
    %v4345 = vsel %vm3708, %v4344, %v4340
    %v4346 = vlaneseq
    %v4347 = vshrl.u32 %v4346, 7
    %v4348 = vsub.s32 %v3710, %v4347
    %v4349 = vrot.slane %v3243, %v4348
    %v4350 = vsel %vm3715, %v4349, %v4345
    %v4351 = vlaneseq
    %v4352 = vshrl.u32 %v4351, 7
    %v4353 = vsub.s32 %v3717, %v4352
    %v4354 = vrot.slane %v3244, %v4353
    %v4355 = vsel %vm3722, %v4354, %v4350
    %v4356 = vlaneseq
    %v4357 = vshrl.u32 %v4356, 7
    %v4358 = vsub.s32 %v3614, %v4357
    %v4359 = vrot.slane %v3245, %v4358
    %v4360 = vlaneseq
    %v4361 = vshrl.u32 %v4360, 7
    %v4362 = vsub.s32 %v3619, %v4361
    %v4363 = vrot.slane %v3246, %v4362
    %v4364 = vsel %vm3624, %v4363, %v4359
    %v4365 = vlaneseq
    %v4366 = vshrl.u32 %v4365, 7
    %v4367 = vsub.s32 %v3626, %v4366
    %v4368 = vrot.slane %v3247, %v4367
    %v4369 = vsel %vm3631, %v4368, %v4364
    %v4370 = vlaneseq
    %v4371 = vshrl.u32 %v4370, 7
    %v4372 = vsub.s32 %v3633, %v4371
    %v4373 = vrot.slane %v3248, %v4372
    %v4374 = vsel %vm3638, %v4373, %v4369
    %v4375 = vlaneseq
    %v4376 = vshrl.u32 %v4375, 7
    %v4377 = vsub.s32 %v3640, %v4376
    %v4378 = vrot.slane %v3249, %v4377
    %v4379 = vsel %vm3645, %v4378, %v4374
    %v4380 = vlaneseq
    %v4381 = vshrl.u32 %v4380, 7
    %v4382 = vsub.s32 %v3647, %v4381
    %v4383 = vrot.slane %v3250, %v4382
    %v4384 = vsel %vm3652, %v4383, %v4379
    %v4385 = vlaneseq
    %v4386 = vshrl.u32 %v4385, 7
    %v4387 = vsub.s32 %v3654, %v4386
    %v4388 = vrot.slane %v3251, %v4387
    %v4389 = vsel %vm3659, %v4388, %v4384
    %v4390 = vlaneseq
    %v4391 = vshrl.u32 %v4390, 7
    %v4392 = vsub.s32 %v3661, %v4391
    %v4393 = vrot.slane %v3252, %v4392
    %v4394 = vsel %vm3666, %v4393, %v4389
    %v4395 = vlaneseq
    %v4396 = vshrl.u32 %v4395, 7
    %v4397 = vsub.s32 %v3668, %v4396
    %v4398 = vrot.slane %v3253, %v4397
    %v4399 = vsel %vm3673, %v4398, %v4394
    %v4400 = vlaneseq
    %v4401 = vshrl.u32 %v4400, 7
    %v4402 = vsub.s32 %v3675, %v4401
    %v4403 = vrot.slane %v3254, %v4402
    %v4404 = vsel %vm3680, %v4403, %v4399
    %v4405 = vlaneseq
    %v4406 = vshrl.u32 %v4405, 7
    %v4407 = vsub.s32 %v3682, %v4406
    %v4408 = vrot.slane %v3255, %v4407
    %v4409 = vsel %vm3687, %v4408, %v4404
    %v4410 = vlaneseq
    %v4411 = vshrl.u32 %v4410, 7
    %v4412 = vsub.s32 %v3689, %v4411
    %v4413 = vrot.slane %v3256, %v4412
    %v4414 = vsel %vm3694, %v4413, %v4409
    %v4415 = vlaneseq
    %v4416 = vshrl.u32 %v4415, 7
    %v4417 = vsub.s32 %v3696, %v4416
    %v4418 = vrot.slane %v3257, %v4417
    %v4419 = vsel %vm3701, %v4418, %v4414
    %v4420 = vlaneseq
    %v4421 = vshrl.u32 %v4420, 7
    %v4422 = vsub.s32 %v3703, %v4421
    %v4423 = vrot.slane %v3258, %v4422
    %v4424 = vsel %vm3708, %v4423, %v4419
    %v4425 = vlaneseq
    %v4426 = vshrl.u32 %v4425, 7
    %v4427 = vsub.s32 %v3710, %v4426
    %v4428 = vrot.slane %v3259, %v4427
    %v4429 = vsel %vm3715, %v4428, %v4424
    %v4430 = vlaneseq
    %v4431 = vshrl.u32 %v4430, 7
    %v4432 = vsub.s32 %v3717, %v4431
    %v4433 = vrot.slane %v3260, %v4432
    %v4434 = vsel %vm3722, %v4433, %v4429
    %v4435 = vlaneseq
    %v4436 = vshrl.u32 %v4435, 7
    %v4437 = vsub.s32 %v3614, %v4436
    %v4438 = vrot.slane %v3261, %v4437
    %v4439 = vlaneseq
    %v4440 = vshrl.u32 %v4439, 7
    %v4441 = vsub.s32 %v3619, %v4440
    %v4442 = vrot.slane %v3262, %v4441
    %v4443 = vsel %vm3624, %v4442, %v4438
    %v4444 = vlaneseq
    %v4445 = vshrl.u32 %v4444, 7
    %v4446 = vsub.s32 %v3626, %v4445
    %v4447 = vrot.slane %v3263, %v4446
    %v4448 = vsel %vm3631, %v4447, %v4443
    %v4449 = vlaneseq
    %v4450 = vshrl.u32 %v4449, 7
    %v4451 = vsub.s32 %v3633, %v4450
    %v4452 = vrot.slane %v3264, %v4451
    %v4453 = vsel %vm3638, %v4452, %v4448
    %v4454 = vlaneseq
    %v4455 = vshrl.u32 %v4454, 7
    %v4456 = vsub.s32 %v3640, %v4455
    %v4457 = vrot.slane %v3265, %v4456
    %v4458 = vsel %vm3645, %v4457, %v4453
    %v4459 = vlaneseq
    %v4460 = vshrl.u32 %v4459, 7
    %v4461 = vsub.s32 %v3647, %v4460
    %v4462 = vrot.slane %v3266, %v4461
    %v4463 = vsel %vm3652, %v4462, %v4458
    %v4464 = vlaneseq
    %v4465 = vshrl.u32 %v4464, 7
    %v4466 = vsub.s32 %v3654, %v4465
    %v4467 = vrot.slane %v3267, %v4466
    %v4468 = vsel %vm3659, %v4467, %v4463
    %v4469 = vlaneseq
    %v4470 = vshrl.u32 %v4469, 7
    %v4471 = vsub.s32 %v3661, %v4470
    %v4472 = vrot.slane %v3268, %v4471
    %v4473 = vsel %vm3666, %v4472, %v4468
    %v4474 = vlaneseq
    %v4475 = vshrl.u32 %v4474, 7
    %v4476 = vsub.s32 %v3668, %v4475
    %v4477 = vrot.slane %v3269, %v4476
    %v4478 = vsel %vm3673, %v4477, %v4473
    %v4479 = vlaneseq
    %v4480 = vshrl.u32 %v4479, 7
    %v4481 = vsub.s32 %v3675, %v4480
    %v4482 = vrot.slane %v3270, %v4481
    %v4483 = vsel %vm3680, %v4482, %v4478
    %v4484 = vlaneseq
    %v4485 = vshrl.u32 %v4484, 7
    %v4486 = vsub.s32 %v3682, %v4485
    %v4487 = vrot.slane %v3271, %v4486
    %v4488 = vsel %vm3687, %v4487, %v4483
    %v4489 = vlaneseq
    %v4490 = vshrl.u32 %v4489, 7
    %v4491 = vsub.s32 %v3689, %v4490
    %v4492 = vrot.slane %v3272, %v4491
    %v4493 = vsel %vm3694, %v4492, %v4488
    %v4494 = vlaneseq
    %v4495 = vshrl.u32 %v4494, 7
    %v4496 = vsub.s32 %v3696, %v4495
    %v4497 = vrot.slane %v3273, %v4496
    %v4498 = vsel %vm3701, %v4497, %v4493
    %v4499 = vlaneseq
    %v4500 = vshrl.u32 %v4499, 7
    %v4501 = vsub.s32 %v3703, %v4500
    %v4502 = vrot.slane %v3274, %v4501
    %v4503 = vsel %vm3708, %v4502, %v4498
    %v4504 = vlaneseq
    %v4505 = vshrl.u32 %v4504, 7
    %v4506 = vsub.s32 %v3710, %v4505
    %v4507 = vrot.slane %v3275, %v4506
    %v4508 = vsel %vm3715, %v4507, %v4503
    %v4509 = vlaneseq
    %v4510 = vshrl.u32 %v4509, 7
    %v4511 = vsub.s32 %v3717, %v4510
    %v4512 = vrot.slane %v3276, %v4511
    %v4513 = vsel %vm3722, %v4512, %v4508
    %v4514 = vlaneseq
    %v4515 = vshrl.u32 %v4514, 7
    %v4516 = vsub.s32 %v3614, %v4515
    %v4517 = vrot.slane %v3277, %v4516
    %v4518 = vlaneseq
    %v4519 = vshrl.u32 %v4518, 7
    %v4520 = vsub.s32 %v3619, %v4519
    %v4521 = vrot.slane %v3278, %v4520
    %v4522 = vsel %vm3624, %v4521, %v4517
    %v4523 = vlaneseq
    %v4524 = vshrl.u32 %v4523, 7
    %v4525 = vsub.s32 %v3626, %v4524
    %v4526 = vrot.slane %v3279, %v4525
    %v4527 = vsel %vm3631, %v4526, %v4522
    %v4528 = vlaneseq
    %v4529 = vshrl.u32 %v4528, 7
    %v4530 = vsub.s32 %v3633, %v4529
    %v4531 = vrot.slane %v3280, %v4530
    %v4532 = vsel %vm3638, %v4531, %v4527
    %v4533 = vlaneseq
    %v4534 = vshrl.u32 %v4533, 7
    %v4535 = vsub.s32 %v3640, %v4534
    %v4536 = vrot.slane %v3281, %v4535
    %v4537 = vsel %vm3645, %v4536, %v4532
    %v4538 = vlaneseq
    %v4539 = vshrl.u32 %v4538, 7
    %v4540 = vsub.s32 %v3647, %v4539
    %v4541 = vrot.slane %v3282, %v4540
    %v4542 = vsel %vm3652, %v4541, %v4537
    %v4543 = vlaneseq
    %v4544 = vshrl.u32 %v4543, 7
    %v4545 = vsub.s32 %v3654, %v4544
    %v4546 = vrot.slane %v3283, %v4545
    %v4547 = vsel %vm3659, %v4546, %v4542
    %v4548 = vlaneseq
    %v4549 = vshrl.u32 %v4548, 7
    %v4550 = vsub.s32 %v3661, %v4549
    %v4551 = vrot.slane %v3284, %v4550
    %v4552 = vsel %vm3666, %v4551, %v4547
    %v4553 = vlaneseq
    %v4554 = vshrl.u32 %v4553, 7
    %v4555 = vsub.s32 %v3668, %v4554
    %v4556 = vrot.slane %v3285, %v4555
    %v4557 = vsel %vm3673, %v4556, %v4552
    %v4558 = vlaneseq
    %v4559 = vshrl.u32 %v4558, 7
    %v4560 = vsub.s32 %v3675, %v4559
    %v4561 = vrot.slane %v3286, %v4560
    %v4562 = vsel %vm3680, %v4561, %v4557
    %v4563 = vlaneseq
    %v4564 = vshrl.u32 %v4563, 7
    %v4565 = vsub.s32 %v3682, %v4564
    %v4566 = vrot.slane %v3287, %v4565
    %v4567 = vsel %vm3687, %v4566, %v4562
    %v4568 = vlaneseq
    %v4569 = vshrl.u32 %v4568, 7
    %v4570 = vsub.s32 %v3689, %v4569
    %v4571 = vrot.slane %v3288, %v4570
    %v4572 = vsel %vm3694, %v4571, %v4567
    %v4573 = vlaneseq
    %v4574 = vshrl.u32 %v4573, 7
    %v4575 = vsub.s32 %v3696, %v4574
    %v4576 = vrot.slane %v3289, %v4575
    %v4577 = vsel %vm3701, %v4576, %v4572
    %v4578 = vlaneseq
    %v4579 = vshrl.u32 %v4578, 7
    %v4580 = vsub.s32 %v3703, %v4579
    %v4581 = vrot.slane %v3290, %v4580
    %v4582 = vsel %vm3708, %v4581, %v4577
    %v4583 = vlaneseq
    %v4584 = vshrl.u32 %v4583, 7
    %v4585 = vsub.s32 %v3710, %v4584
    %v4586 = vrot.slane %v3291, %v4585
    %v4587 = vsel %vm3715, %v4586, %v4582
    %v4588 = vlaneseq
    %v4589 = vshrl.u32 %v4588, 7
    %v4590 = vsub.s32 %v3717, %v4589
    %v4591 = vrot.slane %v3292, %v4590
    %v4592 = vsel %vm3722, %v4591, %v4587
    %v4593 = vlaneseq
    %v4594 = vshrl.u32 %v4593, 7
    %v4595 = vsub.s32 %v3614, %v4594
    %v4596 = vrot.slane %v3293, %v4595
    %v4597 = vlaneseq
    %v4598 = vshrl.u32 %v4597, 7
    %v4599 = vsub.s32 %v3619, %v4598
    %v4600 = vrot.slane %v3294, %v4599
    %v4601 = vsel %vm3624, %v4600, %v4596
    %v4602 = vlaneseq
    %v4603 = vshrl.u32 %v4602, 7
    %v4604 = vsub.s32 %v3626, %v4603
    %v4605 = vrot.slane %v3295, %v4604
    %v4606 = vsel %vm3631, %v4605, %v4601
    %v4607 = vlaneseq
    %v4608 = vshrl.u32 %v4607, 7
    %v4609 = vsub.s32 %v3633, %v4608
    %v4610 = vrot.slane %v3296, %v4609
    %v4611 = vsel %vm3638, %v4610, %v4606
    %v4612 = vlaneseq
    %v4613 = vshrl.u32 %v4612, 7
    %v4614 = vsub.s32 %v3640, %v4613
    %v4615 = vrot.slane %v3297, %v4614
    %v4616 = vsel %vm3645, %v4615, %v4611
    %v4617 = vlaneseq
    %v4618 = vshrl.u32 %v4617, 7
    %v4619 = vsub.s32 %v3647, %v4618
    %v4620 = vrot.slane %v3298, %v4619
    %v4621 = vsel %vm3652, %v4620, %v4616
    %v4622 = vlaneseq
    %v4623 = vshrl.u32 %v4622, 7
    %v4624 = vsub.s32 %v3654, %v4623
    %v4625 = vrot.slane %v3299, %v4624
    %v4626 = vsel %vm3659, %v4625, %v4621
    %v4627 = vlaneseq
    %v4628 = vshrl.u32 %v4627, 7
    %v4629 = vsub.s32 %v3661, %v4628
    %v4630 = vrot.slane %v3300, %v4629
    %v4631 = vsel %vm3666, %v4630, %v4626
    %v4632 = vlaneseq
    %v4633 = vshrl.u32 %v4632, 7
    %v4634 = vsub.s32 %v3668, %v4633
    %v4635 = vrot.slane %v3301, %v4634
    %v4636 = vsel %vm3673, %v4635, %v4631
    %v4637 = vlaneseq
    %v4638 = vshrl.u32 %v4637, 7
    %v4639 = vsub.s32 %v3675, %v4638
    %v4640 = vrot.slane %v3302, %v4639
    %v4641 = vsel %vm3680, %v4640, %v4636
    %v4642 = vlaneseq
    %v4643 = vshrl.u32 %v4642, 7
    %v4644 = vsub.s32 %v3682, %v4643
    %v4645 = vrot.slane %v3303, %v4644
    %v4646 = vsel %vm3687, %v4645, %v4641
    %v4647 = vlaneseq
    %v4648 = vshrl.u32 %v4647, 7
    %v4649 = vsub.s32 %v3689, %v4648
    %v4650 = vrot.slane %v3304, %v4649
    %v4651 = vsel %vm3694, %v4650, %v4646
    %v4652 = vlaneseq
    %v4653 = vshrl.u32 %v4652, 7
    %v4654 = vsub.s32 %v3696, %v4653
    %v4655 = vrot.slane %v3305, %v4654
    %v4656 = vsel %vm3701, %v4655, %v4651
    %v4657 = vlaneseq
    %v4658 = vshrl.u32 %v4657, 7
    %v4659 = vsub.s32 %v3703, %v4658
    %v4660 = vrot.slane %v3306, %v4659
    %v4661 = vsel %vm3708, %v4660, %v4656
    %v4662 = vlaneseq
    %v4663 = vshrl.u32 %v4662, 7
    %v4664 = vsub.s32 %v3710, %v4663
    %v4665 = vrot.slane %v3307, %v4664
    %v4666 = vsel %vm3715, %v4665, %v4661
    %v4667 = vlaneseq
    %v4668 = vshrl.u32 %v4667, 7
    %v4669 = vsub.s32 %v3717, %v4668
    %v4670 = vrot.slane %v3308, %v4669
    %v4671 = vsel %vm3722, %v4670, %v4666
    %v4672 = vlaneseq
    %v4673 = vshrl.u32 %v4672, 7
    %v4674 = vsub.s32 %v3614, %v4673
    %v4675 = vrot.slane %v3309, %v4674
    %v4676 = vlaneseq
    %v4677 = vshrl.u32 %v4676, 7
    %v4678 = vsub.s32 %v3619, %v4677
    %v4679 = vrot.slane %v3310, %v4678
    %v4680 = vsel %vm3624, %v4679, %v4675
    %v4681 = vlaneseq
    %v4682 = vshrl.u32 %v4681, 7
    %v4683 = vsub.s32 %v3626, %v4682
    %v4684 = vrot.slane %v3311, %v4683
    %v4685 = vsel %vm3631, %v4684, %v4680
    %v4686 = vlaneseq
    %v4687 = vshrl.u32 %v4686, 7
    %v4688 = vsub.s32 %v3633, %v4687
    %v4689 = vrot.slane %v3312, %v4688
    %v4690 = vsel %vm3638, %v4689, %v4685
    %v4691 = vlaneseq
    %v4692 = vshrl.u32 %v4691, 7
    %v4693 = vsub.s32 %v3640, %v4692
    %v4694 = vrot.slane %v3313, %v4693
    %v4695 = vsel %vm3645, %v4694, %v4690
    %v4696 = vlaneseq
    %v4697 = vshrl.u32 %v4696, 7
    %v4698 = vsub.s32 %v3647, %v4697
    %v4699 = vrot.slane %v3314, %v4698
    %v4700 = vsel %vm3652, %v4699, %v4695
    %v4701 = vlaneseq
    %v4702 = vshrl.u32 %v4701, 7
    %v4703 = vsub.s32 %v3654, %v4702
    %v4704 = vrot.slane %v3315, %v4703
    %v4705 = vsel %vm3659, %v4704, %v4700
    %v4706 = vlaneseq
    %v4707 = vshrl.u32 %v4706, 7
    %v4708 = vsub.s32 %v3661, %v4707
    %v4709 = vrot.slane %v3316, %v4708
    %v4710 = vsel %vm3666, %v4709, %v4705
    %v4711 = vlaneseq
    %v4712 = vshrl.u32 %v4711, 7
    %v4713 = vsub.s32 %v3668, %v4712
    %v4714 = vrot.slane %v3317, %v4713
    %v4715 = vsel %vm3673, %v4714, %v4710
    %v4716 = vlaneseq
    %v4717 = vshrl.u32 %v4716, 7
    %v4718 = vsub.s32 %v3675, %v4717
    %v4719 = vrot.slane %v3318, %v4718
    %v4720 = vsel %vm3680, %v4719, %v4715
    %v4721 = vlaneseq
    %v4722 = vshrl.u32 %v4721, 7
    %v4723 = vsub.s32 %v3682, %v4722
    %v4724 = vrot.slane %v3319, %v4723
    %v4725 = vsel %vm3687, %v4724, %v4720
    %v4726 = vlaneseq
    %v4727 = vshrl.u32 %v4726, 7
    %v4728 = vsub.s32 %v3689, %v4727
    %v4729 = vrot.slane %v3320, %v4728
    %v4730 = vsel %vm3694, %v4729, %v4725
    %v4731 = vlaneseq
    %v4732 = vshrl.u32 %v4731, 7
    %v4733 = vsub.s32 %v3696, %v4732
    %v4734 = vrot.slane %v3321, %v4733
    %v4735 = vsel %vm3701, %v4734, %v4730
    %v4736 = vlaneseq
    %v4737 = vshrl.u32 %v4736, 7
    %v4738 = vsub.s32 %v3703, %v4737
    %v4739 = vrot.slane %v3322, %v4738
    %v4740 = vsel %vm3708, %v4739, %v4735
    %v4741 = vlaneseq
    %v4742 = vshrl.u32 %v4741, 7
    %v4743 = vsub.s32 %v3710, %v4742
    %v4744 = vrot.slane %v3323, %v4743
    %v4745 = vsel %vm3715, %v4744, %v4740
    %v4746 = vlaneseq
    %v4747 = vshrl.u32 %v4746, 7
    %v4748 = vsub.s32 %v3717, %v4747
    %v4749 = vrot.slane %v3324, %v4748
    %v4750 = vsel %vm3722, %v4749, %v4745
    %v4751 = vlaneseq
    %v4752 = vshrl.u32 %v4751, 7
    %v4753 = vsub.s32 %v3614, %v4752
    %v4754 = vrot.slane %v3325, %v4753
    %v4755 = vlaneseq
    %v4756 = vshrl.u32 %v4755, 7
    %v4757 = vsub.s32 %v3619, %v4756
    %v4758 = vrot.slane %v3326, %v4757
    %v4759 = vsel %vm3624, %v4758, %v4754
    %v4760 = vlaneseq
    %v4761 = vshrl.u32 %v4760, 7
    %v4762 = vsub.s32 %v3626, %v4761
    %v4763 = vrot.slane %v3327, %v4762
    %v4764 = vsel %vm3631, %v4763, %v4759
    %v4765 = vlaneseq
    %v4766 = vshrl.u32 %v4765, 7
    %v4767 = vsub.s32 %v3633, %v4766
    %v4768 = vrot.slane %v3328, %v4767
    %v4769 = vsel %vm3638, %v4768, %v4764
    %v4770 = vlaneseq
    %v4771 = vshrl.u32 %v4770, 7
    %v4772 = vsub.s32 %v3640, %v4771
    %v4773 = vrot.slane %v3329, %v4772
    %v4774 = vsel %vm3645, %v4773, %v4769
    %v4775 = vlaneseq
    %v4776 = vshrl.u32 %v4775, 7
    %v4777 = vsub.s32 %v3647, %v4776
    %v4778 = vrot.slane %v3330, %v4777
    %v4779 = vsel %vm3652, %v4778, %v4774
    %v4780 = vlaneseq
    %v4781 = vshrl.u32 %v4780, 7
    %v4782 = vsub.s32 %v3654, %v4781
    %v4783 = vrot.slane %v3331, %v4782
    %v4784 = vsel %vm3659, %v4783, %v4779
    %v4785 = vlaneseq
    %v4786 = vshrl.u32 %v4785, 7
    %v4787 = vsub.s32 %v3661, %v4786
    %v4788 = vrot.slane %v3332, %v4787
    %v4789 = vsel %vm3666, %v4788, %v4784
    %v4790 = vlaneseq
    %v4791 = vshrl.u32 %v4790, 7
    %v4792 = vsub.s32 %v3668, %v4791
    %v4793 = vrot.slane %v3333, %v4792
    %v4794 = vsel %vm3673, %v4793, %v4789
    %v4795 = vlaneseq
    %v4796 = vshrl.u32 %v4795, 7
    %v4797 = vsub.s32 %v3675, %v4796
    %v4798 = vrot.slane %v3334, %v4797
    %v4799 = vsel %vm3680, %v4798, %v4794
    %v4800 = vlaneseq
    %v4801 = vshrl.u32 %v4800, 7
    %v4802 = vsub.s32 %v3682, %v4801
    %v4803 = vrot.slane %v3335, %v4802
    %v4804 = vsel %vm3687, %v4803, %v4799
    %v4805 = vlaneseq
    %v4806 = vshrl.u32 %v4805, 7
    %v4807 = vsub.s32 %v3689, %v4806
    %v4808 = vrot.slane %v3336, %v4807
    %v4809 = vsel %vm3694, %v4808, %v4804
    %v4810 = vlaneseq
    %v4811 = vshrl.u32 %v4810, 7
    %v4812 = vsub.s32 %v3696, %v4811
    %v4813 = vrot.slane %v3337, %v4812
    %v4814 = vsel %vm3701, %v4813, %v4809
    %v4815 = vlaneseq
    %v4816 = vshrl.u32 %v4815, 7
    %v4817 = vsub.s32 %v3703, %v4816
    %v4818 = vrot.slane %v3338, %v4817
    %v4819 = vsel %vm3708, %v4818, %v4814
    %v4820 = vlaneseq
    %v4821 = vshrl.u32 %v4820, 7
    %v4822 = vsub.s32 %v3710, %v4821
    %v4823 = vrot.slane %v3339, %v4822
    %v4824 = vsel %vm3715, %v4823, %v4819
    %v4825 = vlaneseq
    %v4826 = vshrl.u32 %v4825, 7
    %v4827 = vsub.s32 %v3717, %v4826
    %v4828 = vrot.slane %v3340, %v4827
    %v4829 = vsel %vm3722, %v4828, %v4824
    %v4830 = vlaneseq
    %v4831 = vshrl.u32 %v4830, 7
    %v4832 = vsub.s32 %v3614, %v4831
    %v4833 = vrot.slane %v3341, %v4832
    %v4834 = vlaneseq
    %v4835 = vshrl.u32 %v4834, 7
    %v4836 = vsub.s32 %v3619, %v4835
    %v4837 = vrot.slane %v3342, %v4836
    %v4838 = vsel %vm3624, %v4837, %v4833
    %v4839 = vlaneseq
    %v4840 = vshrl.u32 %v4839, 7
    %v4841 = vsub.s32 %v3626, %v4840
    %v4842 = vrot.slane %v3343, %v4841
    %v4843 = vsel %vm3631, %v4842, %v4838
    %v4844 = vlaneseq
    %v4845 = vshrl.u32 %v4844, 7
    %v4846 = vsub.s32 %v3633, %v4845
    %v4847 = vrot.slane %v3344, %v4846
    %v4848 = vsel %vm3638, %v4847, %v4843
    %v4849 = vlaneseq
    %v4850 = vshrl.u32 %v4849, 7
    %v4851 = vsub.s32 %v3640, %v4850
    %v4852 = vrot.slane %v3345, %v4851
    %v4853 = vsel %vm3645, %v4852, %v4848
    %v4854 = vlaneseq
    %v4855 = vshrl.u32 %v4854, 7
    %v4856 = vsub.s32 %v3647, %v4855
    %v4857 = vrot.slane %v3346, %v4856
    %v4858 = vsel %vm3652, %v4857, %v4853
    %v4859 = vlaneseq
    %v4860 = vshrl.u32 %v4859, 7
    %v4861 = vsub.s32 %v3654, %v4860
    %v4862 = vrot.slane %v3347, %v4861
    %v4863 = vsel %vm3659, %v4862, %v4858
    %v4864 = vlaneseq
    %v4865 = vshrl.u32 %v4864, 7
    %v4866 = vsub.s32 %v3661, %v4865
    %v4867 = vrot.slane %v3348, %v4866
    %v4868 = vsel %vm3666, %v4867, %v4863
    %v4869 = vlaneseq
    %v4870 = vshrl.u32 %v4869, 7
    %v4871 = vsub.s32 %v3668, %v4870
    %v4872 = vrot.slane %v3349, %v4871
    %v4873 = vsel %vm3673, %v4872, %v4868
    %v4874 = vlaneseq
    %v4875 = vshrl.u32 %v4874, 7
    %v4876 = vsub.s32 %v3675, %v4875
    %v4877 = vrot.slane %v3350, %v4876
    %v4878 = vsel %vm3680, %v4877, %v4873
    %v4879 = vlaneseq
    %v4880 = vshrl.u32 %v4879, 7
    %v4881 = vsub.s32 %v3682, %v4880
    %v4882 = vrot.slane %v3351, %v4881
    %v4883 = vsel %vm3687, %v4882, %v4878
    %v4884 = vlaneseq
    %v4885 = vshrl.u32 %v4884, 7
    %v4886 = vsub.s32 %v3689, %v4885
    %v4887 = vrot.slane %v3352, %v4886
    %v4888 = vsel %vm3694, %v4887, %v4883
    %v4889 = vlaneseq
    %v4890 = vshrl.u32 %v4889, 7
    %v4891 = vsub.s32 %v3696, %v4890
    %v4892 = vrot.slane %v3353, %v4891
    %v4893 = vsel %vm3701, %v4892, %v4888
    %v4894 = vlaneseq
    %v4895 = vshrl.u32 %v4894, 7
    %v4896 = vsub.s32 %v3703, %v4895
    %v4897 = vrot.slane %v3354, %v4896
    %v4898 = vsel %vm3708, %v4897, %v4893
    %v4899 = vlaneseq
    %v4900 = vshrl.u32 %v4899, 7
    %v4901 = vsub.s32 %v3710, %v4900
    %v4902 = vrot.slane %v3355, %v4901
    %v4903 = vsel %vm3715, %v4902, %v4898
    %v4904 = vlaneseq
    %v4905 = vshrl.u32 %v4904, 7
    %v4906 = vsub.s32 %v3717, %v4905
    %v4907 = vrot.slane %v3356, %v4906
    %v4908 = vsel %vm3722, %v4907, %v4903
    %v4909 = vlaneseq
    %v4910 = vshrl.u32 %v4909, 7
    %v4911 = vsub.s32 %v3614, %v4910
    %v4912 = vrot.slane %v3357, %v4911
    %v4913 = vlaneseq
    %v4914 = vshrl.u32 %v4913, 7
    %v4915 = vsub.s32 %v3619, %v4914
    %v4916 = vrot.slane %v3358, %v4915
    %v4917 = vsel %vm3624, %v4916, %v4912
    %v4918 = vlaneseq
    %v4919 = vshrl.u32 %v4918, 7
    %v4920 = vsub.s32 %v3626, %v4919
    %v4921 = vrot.slane %v3359, %v4920
    %v4922 = vsel %vm3631, %v4921, %v4917
    %v4923 = vlaneseq
    %v4924 = vshrl.u32 %v4923, 7
    %v4925 = vsub.s32 %v3633, %v4924
    %v4926 = vrot.slane %v3360, %v4925
    %v4927 = vsel %vm3638, %v4926, %v4922
    %v4928 = vlaneseq
    %v4929 = vshrl.u32 %v4928, 7
    %v4930 = vsub.s32 %v3640, %v4929
    %v4931 = vrot.slane %v3361, %v4930
    %v4932 = vsel %vm3645, %v4931, %v4927
    %v4933 = vlaneseq
    %v4934 = vshrl.u32 %v4933, 7
    %v4935 = vsub.s32 %v3647, %v4934
    %v4936 = vrot.slane %v3362, %v4935
    %v4937 = vsel %vm3652, %v4936, %v4932
    %v4938 = vlaneseq
    %v4939 = vshrl.u32 %v4938, 7
    %v4940 = vsub.s32 %v3654, %v4939
    %v4941 = vrot.slane %v3363, %v4940
    %v4942 = vsel %vm3659, %v4941, %v4937
    %v4943 = vlaneseq
    %v4944 = vshrl.u32 %v4943, 7
    %v4945 = vsub.s32 %v3661, %v4944
    %v4946 = vrot.slane %v3364, %v4945
    %v4947 = vsel %vm3666, %v4946, %v4942
    %v4948 = vlaneseq
    %v4949 = vshrl.u32 %v4948, 7
    %v4950 = vsub.s32 %v3668, %v4949
    %v4951 = vrot.slane %v3365, %v4950
    %v4952 = vsel %vm3673, %v4951, %v4947
    %v4953 = vlaneseq
    %v4954 = vshrl.u32 %v4953, 7
    %v4955 = vsub.s32 %v3675, %v4954
    %v4956 = vrot.slane %v3366, %v4955
    %v4957 = vsel %vm3680, %v4956, %v4952
    %v4958 = vlaneseq
    %v4959 = vshrl.u32 %v4958, 7
    %v4960 = vsub.s32 %v3682, %v4959
    %v4961 = vrot.slane %v3367, %v4960
    %v4962 = vsel %vm3687, %v4961, %v4957
    %v4963 = vlaneseq
    %v4964 = vshrl.u32 %v4963, 7
    %v4965 = vsub.s32 %v3689, %v4964
    %v4966 = vrot.slane %v3368, %v4965
    %v4967 = vsel %vm3694, %v4966, %v4962
    %v4968 = vlaneseq
    %v4969 = vshrl.u32 %v4968, 7
    %v4970 = vsub.s32 %v3696, %v4969
    %v4971 = vrot.slane %v3369, %v4970
    %v4972 = vsel %vm3701, %v4971, %v4967
    %v4973 = vlaneseq
    %v4974 = vshrl.u32 %v4973, 7
    %v4975 = vsub.s32 %v3703, %v4974
    %v4976 = vrot.slane %v3370, %v4975
    %v4977 = vsel %vm3708, %v4976, %v4972
    %v4978 = vlaneseq
    %v4979 = vshrl.u32 %v4978, 7
    %v4980 = vsub.s32 %v3710, %v4979
    %v4981 = vrot.slane %v3371, %v4980
    %v4982 = vsel %vm3715, %v4981, %v4977
    %v4983 = vlaneseq
    %v4984 = vshrl.u32 %v4983, 7
    %v4985 = vsub.s32 %v3717, %v4984
    %v4986 = vrot.slane %v3372, %v4985
    %v4987 = vsel %vm3722, %v4986, %v4982
    %v4988 = vlaneseq
    %v4989 = vshrl.u32 %v4988, 7
    %v4990 = vsub.s32 %v3614, %v4989
    %v4991 = vrot.slane %v3373, %v4990
    %v4992 = vlaneseq
    %v4993 = vshrl.u32 %v4992, 7
    %v4994 = vsub.s32 %v3619, %v4993
    %v4995 = vrot.slane %v3374, %v4994
    %v4996 = vsel %vm3624, %v4995, %v4991
    %v4997 = vlaneseq
    %v4998 = vshrl.u32 %v4997, 7
    %v4999 = vsub.s32 %v3626, %v4998
    %v5000 = vrot.slane %v3375, %v4999
    %v5001 = vsel %vm3631, %v5000, %v4996
    %v5002 = vlaneseq
    %v5003 = vshrl.u32 %v5002, 7
    %v5004 = vsub.s32 %v3633, %v5003
    %v5005 = vrot.slane %v3376, %v5004
    %v5006 = vsel %vm3638, %v5005, %v5001
    %v5007 = vlaneseq
    %v5008 = vshrl.u32 %v5007, 7
    %v5009 = vsub.s32 %v3640, %v5008
    %v5010 = vrot.slane %v3377, %v5009
    %v5011 = vsel %vm3645, %v5010, %v5006
    %v5012 = vlaneseq
    %v5013 = vshrl.u32 %v5012, 7
    %v5014 = vsub.s32 %v3647, %v5013
    %v5015 = vrot.slane %v3378, %v5014
    %v5016 = vsel %vm3652, %v5015, %v5011
    %v5017 = vlaneseq
    %v5018 = vshrl.u32 %v5017, 7
    %v5019 = vsub.s32 %v3654, %v5018
    %v5020 = vrot.slane %v3379, %v5019
    %v5021 = vsel %vm3659, %v5020, %v5016
    %v5022 = vlaneseq
    %v5023 = vshrl.u32 %v5022, 7
    %v5024 = vsub.s32 %v3661, %v5023
    %v5025 = vrot.slane %v3380, %v5024
    %v5026 = vsel %vm3666, %v5025, %v5021
    %v5027 = vlaneseq
    %v5028 = vshrl.u32 %v5027, 7
    %v5029 = vsub.s32 %v3668, %v5028
    %v5030 = vrot.slane %v3381, %v5029
    %v5031 = vsel %vm3673, %v5030, %v5026
    %v5032 = vlaneseq
    %v5033 = vshrl.u32 %v5032, 7
    %v5034 = vsub.s32 %v3675, %v5033
    %v5035 = vrot.slane %v3382, %v5034
    %v5036 = vsel %vm3680, %v5035, %v5031
    %v5037 = vlaneseq
    %v5038 = vshrl.u32 %v5037, 7
    %v5039 = vsub.s32 %v3682, %v5038
    %v5040 = vrot.slane %v3383, %v5039
    %v5041 = vsel %vm3687, %v5040, %v5036
    %v5042 = vlaneseq
    %v5043 = vshrl.u32 %v5042, 7
    %v5044 = vsub.s32 %v3689, %v5043
    %v5045 = vrot.slane %v3384, %v5044
    %v5046 = vsel %vm3694, %v5045, %v5041
    %v5047 = vlaneseq
    %v5048 = vshrl.u32 %v5047, 7
    %v5049 = vsub.s32 %v3696, %v5048
    %v5050 = vrot.slane %v3385, %v5049
    %v5051 = vsel %vm3701, %v5050, %v5046
    %v5052 = vlaneseq
    %v5053 = vshrl.u32 %v5052, 7
    %v5054 = vsub.s32 %v3703, %v5053
    %v5055 = vrot.slane %v3386, %v5054
    %v5056 = vsel %vm3708, %v5055, %v5051
    %v5057 = vlaneseq
    %v5058 = vshrl.u32 %v5057, 7
    %v5059 = vsub.s32 %v3710, %v5058
    %v5060 = vrot.slane %v3387, %v5059
    %v5061 = vsel %vm3715, %v5060, %v5056
    %v5062 = vlaneseq
    %v5063 = vshrl.u32 %v5062, 7
    %v5064 = vsub.s32 %v3717, %v5063
    %v5065 = vrot.slane %v3388, %v5064
    %v5066 = vsel %vm3722, %v5065, %v5061
    %v5067 = vlaneseq
    %v5068 = vshrl.u32 %v5067, 7
    %v5069 = vsub.s32 %v3614, %v5068
    %v5070 = vrot.slane %v3389, %v5069
    %v5071 = vlaneseq
    %v5072 = vshrl.u32 %v5071, 7
    %v5073 = vsub.s32 %v3619, %v5072
    %v5074 = vrot.slane %v3390, %v5073
    %v5075 = vsel %vm3624, %v5074, %v5070
    %v5076 = vlaneseq
    %v5077 = vshrl.u32 %v5076, 7
    %v5078 = vsub.s32 %v3626, %v5077
    %v5079 = vrot.slane %v3391, %v5078
    %v5080 = vsel %vm3631, %v5079, %v5075
    %v5081 = vlaneseq
    %v5082 = vshrl.u32 %v5081, 7
    %v5083 = vsub.s32 %v3633, %v5082
    %v5084 = vrot.slane %v3392, %v5083
    %v5085 = vsel %vm3638, %v5084, %v5080
    %v5086 = vlaneseq
    %v5087 = vshrl.u32 %v5086, 7
    %v5088 = vsub.s32 %v3640, %v5087
    %v5089 = vrot.slane %v3393, %v5088
    %v5090 = vsel %vm3645, %v5089, %v5085
    %v5091 = vlaneseq
    %v5092 = vshrl.u32 %v5091, 7
    %v5093 = vsub.s32 %v3647, %v5092
    %v5094 = vrot.slane %v3394, %v5093
    %v5095 = vsel %vm3652, %v5094, %v5090
    %v5096 = vlaneseq
    %v5097 = vshrl.u32 %v5096, 7
    %v5098 = vsub.s32 %v3654, %v5097
    %v5099 = vrot.slane %v3395, %v5098
    %v5100 = vsel %vm3659, %v5099, %v5095
    %v5101 = vlaneseq
    %v5102 = vshrl.u32 %v5101, 7
    %v5103 = vsub.s32 %v3661, %v5102
    %v5104 = vrot.slane %v3396, %v5103
    %v5105 = vsel %vm3666, %v5104, %v5100
    %v5106 = vlaneseq
    %v5107 = vshrl.u32 %v5106, 7
    %v5108 = vsub.s32 %v3668, %v5107
    %v5109 = vrot.slane %v3397, %v5108
    %v5110 = vsel %vm3673, %v5109, %v5105
    %v5111 = vlaneseq
    %v5112 = vshrl.u32 %v5111, 7
    %v5113 = vsub.s32 %v3675, %v5112
    %v5114 = vrot.slane %v3398, %v5113
    %v5115 = vsel %vm3680, %v5114, %v5110
    %v5116 = vlaneseq
    %v5117 = vshrl.u32 %v5116, 7
    %v5118 = vsub.s32 %v3682, %v5117
    %v5119 = vrot.slane %v3399, %v5118
    %v5120 = vsel %vm3687, %v5119, %v5115
    %v5121 = vlaneseq
    %v5122 = vshrl.u32 %v5121, 7
    %v5123 = vsub.s32 %v3689, %v5122
    %v5124 = vrot.slane %v3400, %v5123
    %v5125 = vsel %vm3694, %v5124, %v5120
    %v5126 = vlaneseq
    %v5127 = vshrl.u32 %v5126, 7
    %v5128 = vsub.s32 %v3696, %v5127
    %v5129 = vrot.slane %v3401, %v5128
    %v5130 = vsel %vm3701, %v5129, %v5125
    %v5131 = vlaneseq
    %v5132 = vshrl.u32 %v5131, 7
    %v5133 = vsub.s32 %v3703, %v5132
    %v5134 = vrot.slane %v3402, %v5133
    %v5135 = vsel %vm3708, %v5134, %v5130
    %v5136 = vlaneseq
    %v5137 = vshrl.u32 %v5136, 7
    %v5138 = vsub.s32 %v3710, %v5137
    %v5139 = vrot.slane %v3403, %v5138
    %v5140 = vsel %vm3715, %v5139, %v5135
    %v5141 = vlaneseq
    %v5142 = vshrl.u32 %v5141, 7
    %v5143 = vsub.s32 %v3717, %v5142
    %v5144 = vrot.slane %v3404, %v5143
    %v5145 = vsel %vm3722, %v5144, %v5140
    %v5146 = vlaneseq
    %v5147 = vshrl.u32 %v5146, 7
    %v5148 = vsub.s32 %v3614, %v5147
    %v5149 = vrot.slane %v3405, %v5148
    %v5150 = vlaneseq
    %v5151 = vshrl.u32 %v5150, 7
    %v5152 = vsub.s32 %v3619, %v5151
    %v5153 = vrot.slane %v3406, %v5152
    %v5154 = vsel %vm3624, %v5153, %v5149
    %v5155 = vlaneseq
    %v5156 = vshrl.u32 %v5155, 7
    %v5157 = vsub.s32 %v3626, %v5156
    %v5158 = vrot.slane %v3407, %v5157
    %v5159 = vsel %vm3631, %v5158, %v5154
    %v5160 = vlaneseq
    %v5161 = vshrl.u32 %v5160, 7
    %v5162 = vsub.s32 %v3633, %v5161
    %v5163 = vrot.slane %v3408, %v5162
    %v5164 = vsel %vm3638, %v5163, %v5159
    %v5165 = vlaneseq
    %v5166 = vshrl.u32 %v5165, 7
    %v5167 = vsub.s32 %v3640, %v5166
    %v5168 = vrot.slane %v3409, %v5167
    %v5169 = vsel %vm3645, %v5168, %v5164
    %v5170 = vlaneseq
    %v5171 = vshrl.u32 %v5170, 7
    %v5172 = vsub.s32 %v3647, %v5171
    %v5173 = vrot.slane %v3410, %v5172
    %v5174 = vsel %vm3652, %v5173, %v5169
    %v5175 = vlaneseq
    %v5176 = vshrl.u32 %v5175, 7
    %v5177 = vsub.s32 %v3654, %v5176
    %v5178 = vrot.slane %v3411, %v5177
    %v5179 = vsel %vm3659, %v5178, %v5174
    %v5180 = vlaneseq
    %v5181 = vshrl.u32 %v5180, 7
    %v5182 = vsub.s32 %v3661, %v5181
    %v5183 = vrot.slane %v3412, %v5182
    %v5184 = vsel %vm3666, %v5183, %v5179
    %v5185 = vlaneseq
    %v5186 = vshrl.u32 %v5185, 7
    %v5187 = vsub.s32 %v3668, %v5186
    %v5188 = vrot.slane %v3413, %v5187
    %v5189 = vsel %vm3673, %v5188, %v5184
    %v5190 = vlaneseq
    %v5191 = vshrl.u32 %v5190, 7
    %v5192 = vsub.s32 %v3675, %v5191
    %v5193 = vrot.slane %v3414, %v5192
    %v5194 = vsel %vm3680, %v5193, %v5189
    %v5195 = vlaneseq
    %v5196 = vshrl.u32 %v5195, 7
    %v5197 = vsub.s32 %v3682, %v5196
    %v5198 = vrot.slane %v3415, %v5197
    %v5199 = vsel %vm3687, %v5198, %v5194
    %v5200 = vlaneseq
    %v5201 = vshrl.u32 %v5200, 7
    %v5202 = vsub.s32 %v3689, %v5201
    %v5203 = vrot.slane %v3416, %v5202
    %v5204 = vsel %vm3694, %v5203, %v5199
    %v5205 = vlaneseq
    %v5206 = vshrl.u32 %v5205, 7
    %v5207 = vsub.s32 %v3696, %v5206
    %v5208 = vrot.slane %v3417, %v5207
    %v5209 = vsel %vm3701, %v5208, %v5204
    %v5210 = vlaneseq
    %v5211 = vshrl.u32 %v5210, 7
    %v5212 = vsub.s32 %v3703, %v5211
    %v5213 = vrot.slane %v3418, %v5212
    %v5214 = vsel %vm3708, %v5213, %v5209
    %v5215 = vlaneseq
    %v5216 = vshrl.u32 %v5215, 7
    %v5217 = vsub.s32 %v3710, %v5216
    %v5218 = vrot.slane %v3419, %v5217
    %v5219 = vsel %vm3715, %v5218, %v5214
    %v5220 = vlaneseq
    %v5221 = vshrl.u32 %v5220, 7
    %v5222 = vsub.s32 %v3717, %v5221
    %v5223 = vrot.slane %v3420, %v5222
    %v5224 = vsel %vm3722, %v5223, %v5219
    %v5225 = vlaneseq
    %v5226 = vshrl.u32 %v5225, 7
    %v5227 = vsub.s32 %v3614, %v5226
    %v5228 = vrot.slane %v3421, %v5227
    %v5229 = vlaneseq
    %v5230 = vshrl.u32 %v5229, 7
    %v5231 = vsub.s32 %v3619, %v5230
    %v5232 = vrot.slane %v3422, %v5231
    %v5233 = vsel %vm3624, %v5232, %v5228
    %v5234 = vlaneseq
    %v5235 = vshrl.u32 %v5234, 7
    %v5236 = vsub.s32 %v3626, %v5235
    %v5237 = vrot.slane %v3423, %v5236
    %v5238 = vsel %vm3631, %v5237, %v5233
    %v5239 = vlaneseq
    %v5240 = vshrl.u32 %v5239, 7
    %v5241 = vsub.s32 %v3633, %v5240
    %v5242 = vrot.slane %v3424, %v5241
    %v5243 = vsel %vm3638, %v5242, %v5238
    %v5244 = vlaneseq
    %v5245 = vshrl.u32 %v5244, 7
    %v5246 = vsub.s32 %v3640, %v5245
    %v5247 = vrot.slane %v3425, %v5246
    %v5248 = vsel %vm3645, %v5247, %v5243
    %v5249 = vlaneseq
    %v5250 = vshrl.u32 %v5249, 7
    %v5251 = vsub.s32 %v3647, %v5250
    %v5252 = vrot.slane %v3426, %v5251
    %v5253 = vsel %vm3652, %v5252, %v5248
    %v5254 = vlaneseq
    %v5255 = vshrl.u32 %v5254, 7
    %v5256 = vsub.s32 %v3654, %v5255
    %v5257 = vrot.slane %v3427, %v5256
    %v5258 = vsel %vm3659, %v5257, %v5253
    %v5259 = vlaneseq
    %v5260 = vshrl.u32 %v5259, 7
    %v5261 = vsub.s32 %v3661, %v5260
    %v5262 = vrot.slane %v3428, %v5261
    %v5263 = vsel %vm3666, %v5262, %v5258
    %v5264 = vlaneseq
    %v5265 = vshrl.u32 %v5264, 7
    %v5266 = vsub.s32 %v3668, %v5265
    %v5267 = vrot.slane %v3429, %v5266
    %v5268 = vsel %vm3673, %v5267, %v5263
    %v5269 = vlaneseq
    %v5270 = vshrl.u32 %v5269, 7
    %v5271 = vsub.s32 %v3675, %v5270
    %v5272 = vrot.slane %v3430, %v5271
    %v5273 = vsel %vm3680, %v5272, %v5268
    %v5274 = vlaneseq
    %v5275 = vshrl.u32 %v5274, 7
    %v5276 = vsub.s32 %v3682, %v5275
    %v5277 = vrot.slane %v3431, %v5276
    %v5278 = vsel %vm3687, %v5277, %v5273
    %v5279 = vlaneseq
    %v5280 = vshrl.u32 %v5279, 7
    %v5281 = vsub.s32 %v3689, %v5280
    %v5282 = vrot.slane %v3432, %v5281
    %v5283 = vsel %vm3694, %v5282, %v5278
    %v5284 = vlaneseq
    %v5285 = vshrl.u32 %v5284, 7
    %v5286 = vsub.s32 %v3696, %v5285
    %v5287 = vrot.slane %v3433, %v5286
    %v5288 = vsel %vm3701, %v5287, %v5283
    %v5289 = vlaneseq
    %v5290 = vshrl.u32 %v5289, 7
    %v5291 = vsub.s32 %v3703, %v5290
    %v5292 = vrot.slane %v3434, %v5291
    %v5293 = vsel %vm3708, %v5292, %v5288
    %v5294 = vlaneseq
    %v5295 = vshrl.u32 %v5294, 7
    %v5296 = vsub.s32 %v3710, %v5295
    %v5297 = vrot.slane %v3435, %v5296
    %v5298 = vsel %vm3715, %v5297, %v5293
    %v5299 = vlaneseq
    %v5300 = vshrl.u32 %v5299, 7
    %v5301 = vsub.s32 %v3717, %v5300
    %v5302 = vrot.slane %v3436, %v5301
    %v5303 = vsel %vm3722, %v5302, %v5298
    %v5304 = vlaneseq
    %v5305 = vshrl.u32 %v5304, 7
    %v5306 = vsub.s32 %v3614, %v5305
    %v5307 = vrot.slane %v3437, %v5306
    %v5308 = vlaneseq
    %v5309 = vshrl.u32 %v5308, 7
    %v5310 = vsub.s32 %v3619, %v5309
    %v5311 = vrot.slane %v3438, %v5310
    %v5312 = vsel %vm3624, %v5311, %v5307
    %v5313 = vlaneseq
    %v5314 = vshrl.u32 %v5313, 7
    %v5315 = vsub.s32 %v3626, %v5314
    %v5316 = vrot.slane %v3439, %v5315
    %v5317 = vsel %vm3631, %v5316, %v5312
    %v5318 = vlaneseq
    %v5319 = vshrl.u32 %v5318, 7
    %v5320 = vsub.s32 %v3633, %v5319
    %v5321 = vrot.slane %v3440, %v5320
    %v5322 = vsel %vm3638, %v5321, %v5317
    %v5323 = vlaneseq
    %v5324 = vshrl.u32 %v5323, 7
    %v5325 = vsub.s32 %v3640, %v5324
    %v5326 = vrot.slane %v3441, %v5325
    %v5327 = vsel %vm3645, %v5326, %v5322
    %v5328 = vlaneseq
    %v5329 = vshrl.u32 %v5328, 7
    %v5330 = vsub.s32 %v3647, %v5329
    %v5331 = vrot.slane %v3442, %v5330
    %v5332 = vsel %vm3652, %v5331, %v5327
    %v5333 = vlaneseq
    %v5334 = vshrl.u32 %v5333, 7
    %v5335 = vsub.s32 %v3654, %v5334
    %v5336 = vrot.slane %v3443, %v5335
    %v5337 = vsel %vm3659, %v5336, %v5332
    %v5338 = vlaneseq
    %v5339 = vshrl.u32 %v5338, 7
    %v5340 = vsub.s32 %v3661, %v5339
    %v5341 = vrot.slane %v3444, %v5340
    %v5342 = vsel %vm3666, %v5341, %v5337
    %v5343 = vlaneseq
    %v5344 = vshrl.u32 %v5343, 7
    %v5345 = vsub.s32 %v3668, %v5344
    %v5346 = vrot.slane %v3445, %v5345
    %v5347 = vsel %vm3673, %v5346, %v5342
    %v5348 = vlaneseq
    %v5349 = vshrl.u32 %v5348, 7
    %v5350 = vsub.s32 %v3675, %v5349
    %v5351 = vrot.slane %v3446, %v5350
    %v5352 = vsel %vm3680, %v5351, %v5347
    %v5353 = vlaneseq
    %v5354 = vshrl.u32 %v5353, 7
    %v5355 = vsub.s32 %v3682, %v5354
    %v5356 = vrot.slane %v3447, %v5355
    %v5357 = vsel %vm3687, %v5356, %v5352
    %v5358 = vlaneseq
    %v5359 = vshrl.u32 %v5358, 7
    %v5360 = vsub.s32 %v3689, %v5359
    %v5361 = vrot.slane %v3448, %v5360
    %v5362 = vsel %vm3694, %v5361, %v5357
    %v5363 = vlaneseq
    %v5364 = vshrl.u32 %v5363, 7
    %v5365 = vsub.s32 %v3696, %v5364
    %v5366 = vrot.slane %v3449, %v5365
    %v5367 = vsel %vm3701, %v5366, %v5362
    %v5368 = vlaneseq
    %v5369 = vshrl.u32 %v5368, 7
    %v5370 = vsub.s32 %v3703, %v5369
    %v5371 = vrot.slane %v3450, %v5370
    %v5372 = vsel %vm3708, %v5371, %v5367
    %v5373 = vlaneseq
    %v5374 = vshrl.u32 %v5373, 7
    %v5375 = vsub.s32 %v3710, %v5374
    %v5376 = vrot.slane %v3451, %v5375
    %v5377 = vsel %vm3715, %v5376, %v5372
    %v5378 = vlaneseq
    %v5379 = vshrl.u32 %v5378, 7
    %v5380 = vsub.s32 %v3717, %v5379
    %v5381 = vrot.slane %v3452, %v5380
    %v5382 = vsel %vm3722, %v5381, %v5377
    %v5383 = vlaneseq
    %v5384 = vshrl.u32 %v5383, 7
    %v5385 = vsub.s32 %v3614, %v5384
    %v5386 = vrot.slane %v3453, %v5385
    %v5387 = vlaneseq
    %v5388 = vshrl.u32 %v5387, 7
    %v5389 = vsub.s32 %v3619, %v5388
    %v5390 = vrot.slane %v3454, %v5389
    %v5391 = vsel %vm3624, %v5390, %v5386
    %v5392 = vlaneseq
    %v5393 = vshrl.u32 %v5392, 7
    %v5394 = vsub.s32 %v3626, %v5393
    %v5395 = vrot.slane %v3455, %v5394
    %v5396 = vsel %vm3631, %v5395, %v5391
    %v5397 = vlaneseq
    %v5398 = vshrl.u32 %v5397, 7
    %v5399 = vsub.s32 %v3633, %v5398
    %v5400 = vrot.slane %v3456, %v5399
    %v5401 = vsel %vm3638, %v5400, %v5396
    %v5402 = vlaneseq
    %v5403 = vshrl.u32 %v5402, 7
    %v5404 = vsub.s32 %v3640, %v5403
    %v5405 = vrot.slane %v3457, %v5404
    %v5406 = vsel %vm3645, %v5405, %v5401
    %v5407 = vlaneseq
    %v5408 = vshrl.u32 %v5407, 7
    %v5409 = vsub.s32 %v3647, %v5408
    %v5410 = vrot.slane %v3458, %v5409
    %v5411 = vsel %vm3652, %v5410, %v5406
    %v5412 = vlaneseq
    %v5413 = vshrl.u32 %v5412, 7
    %v5414 = vsub.s32 %v3654, %v5413
    %v5415 = vrot.slane %v3459, %v5414
    %v5416 = vsel %vm3659, %v5415, %v5411
    %v5417 = vlaneseq
    %v5418 = vshrl.u32 %v5417, 7
    %v5419 = vsub.s32 %v3661, %v5418
    %v5420 = vrot.slane %v3460, %v5419
    %v5421 = vsel %vm3666, %v5420, %v5416
    %v5422 = vlaneseq
    %v5423 = vshrl.u32 %v5422, 7
    %v5424 = vsub.s32 %v3668, %v5423
    %v5425 = vrot.slane %v3461, %v5424
    %v5426 = vsel %vm3673, %v5425, %v5421
    %v5427 = vlaneseq
    %v5428 = vshrl.u32 %v5427, 7
    %v5429 = vsub.s32 %v3675, %v5428
    %v5430 = vrot.slane %v3462, %v5429
    %v5431 = vsel %vm3680, %v5430, %v5426
    %v5432 = vlaneseq
    %v5433 = vshrl.u32 %v5432, 7
    %v5434 = vsub.s32 %v3682, %v5433
    %v5435 = vrot.slane %v3463, %v5434
    %v5436 = vsel %vm3687, %v5435, %v5431
    %v5437 = vlaneseq
    %v5438 = vshrl.u32 %v5437, 7
    %v5439 = vsub.s32 %v3689, %v5438
    %v5440 = vrot.slane %v3464, %v5439
    %v5441 = vsel %vm3694, %v5440, %v5436
    %v5442 = vlaneseq
    %v5443 = vshrl.u32 %v5442, 7
    %v5444 = vsub.s32 %v3696, %v5443
    %v5445 = vrot.slane %v3465, %v5444
    %v5446 = vsel %vm3701, %v5445, %v5441
    %v5447 = vlaneseq
    %v5448 = vshrl.u32 %v5447, 7
    %v5449 = vsub.s32 %v3703, %v5448
    %v5450 = vrot.slane %v3466, %v5449
    %v5451 = vsel %vm3708, %v5450, %v5446
    %v5452 = vlaneseq
    %v5453 = vshrl.u32 %v5452, 7
    %v5454 = vsub.s32 %v3710, %v5453
    %v5455 = vrot.slane %v3467, %v5454
    %v5456 = vsel %vm3715, %v5455, %v5451
    %v5457 = vlaneseq
    %v5458 = vshrl.u32 %v5457, 7
    %v5459 = vsub.s32 %v3717, %v5458
    %v5460 = vrot.slane %v3468, %v5459
    %v5461 = vsel %vm3722, %v5460, %v5456
    %v5462 = vlaneseq
    %v5463 = vshrl.u32 %v5462, 7
    %v5464 = vsub.s32 %v3614, %v5463
    %v5465 = vrot.slane %v3469, %v5464
    %v5466 = vlaneseq
    %v5467 = vshrl.u32 %v5466, 7
    %v5468 = vsub.s32 %v3619, %v5467
    %v5469 = vrot.slane %v3470, %v5468
    %v5470 = vsel %vm3624, %v5469, %v5465
    %v5471 = vlaneseq
    %v5472 = vshrl.u32 %v5471, 7
    %v5473 = vsub.s32 %v3626, %v5472
    %v5474 = vrot.slane %v3471, %v5473
    %v5475 = vsel %vm3631, %v5474, %v5470
    %v5476 = vlaneseq
    %v5477 = vshrl.u32 %v5476, 7
    %v5478 = vsub.s32 %v3633, %v5477
    %v5479 = vrot.slane %v3472, %v5478
    %v5480 = vsel %vm3638, %v5479, %v5475
    %v5481 = vlaneseq
    %v5482 = vshrl.u32 %v5481, 7
    %v5483 = vsub.s32 %v3640, %v5482
    %v5484 = vrot.slane %v3473, %v5483
    %v5485 = vsel %vm3645, %v5484, %v5480
    %v5486 = vlaneseq
    %v5487 = vshrl.u32 %v5486, 7
    %v5488 = vsub.s32 %v3647, %v5487
    %v5489 = vrot.slane %v3474, %v5488
    %v5490 = vsel %vm3652, %v5489, %v5485
    %v5491 = vlaneseq
    %v5492 = vshrl.u32 %v5491, 7
    %v5493 = vsub.s32 %v3654, %v5492
    %v5494 = vrot.slane %v3475, %v5493
    %v5495 = vsel %vm3659, %v5494, %v5490
    %v5496 = vlaneseq
    %v5497 = vshrl.u32 %v5496, 7
    %v5498 = vsub.s32 %v3661, %v5497
    %v5499 = vrot.slane %v3476, %v5498
    %v5500 = vsel %vm3666, %v5499, %v5495
    %v5501 = vlaneseq
    %v5502 = vshrl.u32 %v5501, 7
    %v5503 = vsub.s32 %v3668, %v5502
    %v5504 = vrot.slane %v3477, %v5503
    %v5505 = vsel %vm3673, %v5504, %v5500
    %v5506 = vlaneseq
    %v5507 = vshrl.u32 %v5506, 7
    %v5508 = vsub.s32 %v3675, %v5507
    %v5509 = vrot.slane %v3478, %v5508
    %v5510 = vsel %vm3680, %v5509, %v5505
    %v5511 = vlaneseq
    %v5512 = vshrl.u32 %v5511, 7
    %v5513 = vsub.s32 %v3682, %v5512
    %v5514 = vrot.slane %v3479, %v5513
    %v5515 = vsel %vm3687, %v5514, %v5510
    %v5516 = vlaneseq
    %v5517 = vshrl.u32 %v5516, 7
    %v5518 = vsub.s32 %v3689, %v5517
    %v5519 = vrot.slane %v3480, %v5518
    %v5520 = vsel %vm3694, %v5519, %v5515
    %v5521 = vlaneseq
    %v5522 = vshrl.u32 %v5521, 7
    %v5523 = vsub.s32 %v3696, %v5522
    %v5524 = vrot.slane %v3481, %v5523
    %v5525 = vsel %vm3701, %v5524, %v5520
    %v5526 = vlaneseq
    %v5527 = vshrl.u32 %v5526, 7
    %v5528 = vsub.s32 %v3703, %v5527
    %v5529 = vrot.slane %v3482, %v5528
    %v5530 = vsel %vm3708, %v5529, %v5525
    %v5531 = vlaneseq
    %v5532 = vshrl.u32 %v5531, 7
    %v5533 = vsub.s32 %v3710, %v5532
    %v5534 = vrot.slane %v3483, %v5533
    %v5535 = vsel %vm3715, %v5534, %v5530
    %v5536 = vlaneseq
    %v5537 = vshrl.u32 %v5536, 7
    %v5538 = vsub.s32 %v3717, %v5537
    %v5539 = vrot.slane %v3484, %v5538
    %v5540 = vsel %vm3722, %v5539, %v5535
    %v5541 = vlaneseq
    %v5542 = vshrl.u32 %v5541, 7
    %v5543 = vsub.s32 %v3614, %v5542
    %v5544 = vrot.slane %v3485, %v5543
    %v5545 = vlaneseq
    %v5546 = vshrl.u32 %v5545, 7
    %v5547 = vsub.s32 %v3619, %v5546
    %v5548 = vrot.slane %v3486, %v5547
    %v5549 = vsel %vm3624, %v5548, %v5544
    %v5550 = vlaneseq
    %v5551 = vshrl.u32 %v5550, 7
    %v5552 = vsub.s32 %v3626, %v5551
    %v5553 = vrot.slane %v3487, %v5552
    %v5554 = vsel %vm3631, %v5553, %v5549
    %v5555 = vlaneseq
    %v5556 = vshrl.u32 %v5555, 7
    %v5557 = vsub.s32 %v3633, %v5556
    %v5558 = vrot.slane %v3488, %v5557
    %v5559 = vsel %vm3638, %v5558, %v5554
    %v5560 = vlaneseq
    %v5561 = vshrl.u32 %v5560, 7
    %v5562 = vsub.s32 %v3640, %v5561
    %v5563 = vrot.slane %v3489, %v5562
    %v5564 = vsel %vm3645, %v5563, %v5559
    %v5565 = vlaneseq
    %v5566 = vshrl.u32 %v5565, 7
    %v5567 = vsub.s32 %v3647, %v5566
    %v5568 = vrot.slane %v3490, %v5567
    %v5569 = vsel %vm3652, %v5568, %v5564
    %v5570 = vlaneseq
    %v5571 = vshrl.u32 %v5570, 7
    %v5572 = vsub.s32 %v3654, %v5571
    %v5573 = vrot.slane %v3491, %v5572
    %v5574 = vsel %vm3659, %v5573, %v5569
    %v5575 = vlaneseq
    %v5576 = vshrl.u32 %v5575, 7
    %v5577 = vsub.s32 %v3661, %v5576
    %v5578 = vrot.slane %v3492, %v5577
    %v5579 = vsel %vm3666, %v5578, %v5574
    %v5580 = vlaneseq
    %v5581 = vshrl.u32 %v5580, 7
    %v5582 = vsub.s32 %v3668, %v5581
    %v5583 = vrot.slane %v3493, %v5582
    %v5584 = vsel %vm3673, %v5583, %v5579
    %v5585 = vlaneseq
    %v5586 = vshrl.u32 %v5585, 7
    %v5587 = vsub.s32 %v3675, %v5586
    %v5588 = vrot.slane %v3494, %v5587
    %v5589 = vsel %vm3680, %v5588, %v5584
    %v5590 = vlaneseq
    %v5591 = vshrl.u32 %v5590, 7
    %v5592 = vsub.s32 %v3682, %v5591
    %v5593 = vrot.slane %v3495, %v5592
    %v5594 = vsel %vm3687, %v5593, %v5589
    %v5595 = vlaneseq
    %v5596 = vshrl.u32 %v5595, 7
    %v5597 = vsub.s32 %v3689, %v5596
    %v5598 = vrot.slane %v3496, %v5597
    %v5599 = vsel %vm3694, %v5598, %v5594
    %v5600 = vlaneseq
    %v5601 = vshrl.u32 %v5600, 7
    %v5602 = vsub.s32 %v3696, %v5601
    %v5603 = vrot.slane %v3497, %v5602
    %v5604 = vsel %vm3701, %v5603, %v5599
    %v5605 = vlaneseq
    %v5606 = vshrl.u32 %v5605, 7
    %v5607 = vsub.s32 %v3703, %v5606
    %v5608 = vrot.slane %v3498, %v5607
    %v5609 = vsel %vm3708, %v5608, %v5604
    %v5610 = vlaneseq
    %v5611 = vshrl.u32 %v5610, 7
    %v5612 = vsub.s32 %v3710, %v5611
    %v5613 = vrot.slane %v3499, %v5612
    %v5614 = vsel %vm3715, %v5613, %v5609
    %v5615 = vlaneseq
    %v5616 = vshrl.u32 %v5615, 7
    %v5617 = vsub.s32 %v3717, %v5616
    %v5618 = vrot.slane %v3500, %v5617
    %v5619 = vsel %vm3722, %v5618, %v5614
    %v5620 = vlaneseq
    %v5621 = vshrl.u32 %v5620, 7
    %v5622 = vsub.s32 %v3614, %v5621
    %v5623 = vrot.slane %v3501, %v5622
    %v5624 = vlaneseq
    %v5625 = vshrl.u32 %v5624, 7
    %v5626 = vsub.s32 %v3619, %v5625
    %v5627 = vrot.slane %v3502, %v5626
    %v5628 = vsel %vm3624, %v5627, %v5623
    %v5629 = vlaneseq
    %v5630 = vshrl.u32 %v5629, 7
    %v5631 = vsub.s32 %v3626, %v5630
    %v5632 = vrot.slane %v3503, %v5631
    %v5633 = vsel %vm3631, %v5632, %v5628
    %v5634 = vlaneseq
    %v5635 = vshrl.u32 %v5634, 7
    %v5636 = vsub.s32 %v3633, %v5635
    %v5637 = vrot.slane %v3504, %v5636
    %v5638 = vsel %vm3638, %v5637, %v5633
    %v5639 = vlaneseq
    %v5640 = vshrl.u32 %v5639, 7
    %v5641 = vsub.s32 %v3640, %v5640
    %v5642 = vrot.slane %v3505, %v5641
    %v5643 = vsel %vm3645, %v5642, %v5638
    %v5644 = vlaneseq
    %v5645 = vshrl.u32 %v5644, 7
    %v5646 = vsub.s32 %v3647, %v5645
    %v5647 = vrot.slane %v3506, %v5646
    %v5648 = vsel %vm3652, %v5647, %v5643
    %v5649 = vlaneseq
    %v5650 = vshrl.u32 %v5649, 7
    %v5651 = vsub.s32 %v3654, %v5650
    %v5652 = vrot.slane %v3507, %v5651
    %v5653 = vsel %vm3659, %v5652, %v5648
    %v5654 = vlaneseq
    %v5655 = vshrl.u32 %v5654, 7
    %v5656 = vsub.s32 %v3661, %v5655
    %v5657 = vrot.slane %v3508, %v5656
    %v5658 = vsel %vm3666, %v5657, %v5653
    %v5659 = vlaneseq
    %v5660 = vshrl.u32 %v5659, 7
    %v5661 = vsub.s32 %v3668, %v5660
    %v5662 = vrot.slane %v3509, %v5661
    %v5663 = vsel %vm3673, %v5662, %v5658
    %v5664 = vlaneseq
    %v5665 = vshrl.u32 %v5664, 7
    %v5666 = vsub.s32 %v3675, %v5665
    %v5667 = vrot.slane %v3510, %v5666
    %v5668 = vsel %vm3680, %v5667, %v5663
    %v5669 = vlaneseq
    %v5670 = vshrl.u32 %v5669, 7
    %v5671 = vsub.s32 %v3682, %v5670
    %v5672 = vrot.slane %v3511, %v5671
    %v5673 = vsel %vm3687, %v5672, %v5668
    %v5674 = vlaneseq
    %v5675 = vshrl.u32 %v5674, 7
    %v5676 = vsub.s32 %v3689, %v5675
    %v5677 = vrot.slane %v3512, %v5676
    %v5678 = vsel %vm3694, %v5677, %v5673
    %v5679 = vlaneseq
    %v5680 = vshrl.u32 %v5679, 7
    %v5681 = vsub.s32 %v3696, %v5680
    %v5682 = vrot.slane %v3513, %v5681
    %v5683 = vsel %vm3701, %v5682, %v5678
    %v5684 = vlaneseq
    %v5685 = vshrl.u32 %v5684, 7
    %v5686 = vsub.s32 %v3703, %v5685
    %v5687 = vrot.slane %v3514, %v5686
    %v5688 = vsel %vm3708, %v5687, %v5683
    %v5689 = vlaneseq
    %v5690 = vshrl.u32 %v5689, 7
    %v5691 = vsub.s32 %v3710, %v5690
    %v5692 = vrot.slane %v3515, %v5691
    %v5693 = vsel %vm3715, %v5692, %v5688
    %v5694 = vlaneseq
    %v5695 = vshrl.u32 %v5694, 7
    %v5696 = vsub.s32 %v3717, %v5695
    %v5697 = vrot.slane %v3516, %v5696
    %v5698 = vsel %vm3722, %v5697, %v5693
    %v5699 = vlaneseq
    %v5700 = vshrl.u32 %v5699, 7
    %v5701 = vsub.s32 %v3614, %v5700
    %v5702 = vrot.slane %v3517, %v5701
    %v5703 = vlaneseq
    %v5704 = vshrl.u32 %v5703, 7
    %v5705 = vsub.s32 %v3619, %v5704
    %v5706 = vrot.slane %v3518, %v5705
    %v5707 = vsel %vm3624, %v5706, %v5702
    %v5708 = vlaneseq
    %v5709 = vshrl.u32 %v5708, 7
    %v5710 = vsub.s32 %v3626, %v5709
    %v5711 = vrot.slane %v3519, %v5710
    %v5712 = vsel %vm3631, %v5711, %v5707
    %v5713 = vlaneseq
    %v5714 = vshrl.u32 %v5713, 7
    %v5715 = vsub.s32 %v3633, %v5714
    %v5716 = vrot.slane %v3520, %v5715
    %v5717 = vsel %vm3638, %v5716, %v5712
    %v5718 = vlaneseq
    %v5719 = vshrl.u32 %v5718, 7
    %v5720 = vsub.s32 %v3640, %v5719
    %v5721 = vrot.slane %v3521, %v5720
    %v5722 = vsel %vm3645, %v5721, %v5717
    %v5723 = vlaneseq
    %v5724 = vshrl.u32 %v5723, 7
    %v5725 = vsub.s32 %v3647, %v5724
    %v5726 = vrot.slane %v3522, %v5725
    %v5727 = vsel %vm3652, %v5726, %v5722
    %v5728 = vlaneseq
    %v5729 = vshrl.u32 %v5728, 7
    %v5730 = vsub.s32 %v3654, %v5729
    %v5731 = vrot.slane %v3523, %v5730
    %v5732 = vsel %vm3659, %v5731, %v5727
    %v5733 = vlaneseq
    %v5734 = vshrl.u32 %v5733, 7
    %v5735 = vsub.s32 %v3661, %v5734
    %v5736 = vrot.slane %v3524, %v5735
    %v5737 = vsel %vm3666, %v5736, %v5732
    %v5738 = vlaneseq
    %v5739 = vshrl.u32 %v5738, 7
    %v5740 = vsub.s32 %v3668, %v5739
    %v5741 = vrot.slane %v3525, %v5740
    %v5742 = vsel %vm3673, %v5741, %v5737
    %v5743 = vlaneseq
    %v5744 = vshrl.u32 %v5743, 7
    %v5745 = vsub.s32 %v3675, %v5744
    %v5746 = vrot.slane %v3526, %v5745
    %v5747 = vsel %vm3680, %v5746, %v5742
    %v5748 = vlaneseq
    %v5749 = vshrl.u32 %v5748, 7
    %v5750 = vsub.s32 %v3682, %v5749
    %v5751 = vrot.slane %v3527, %v5750
    %v5752 = vsel %vm3687, %v5751, %v5747
    %v5753 = vlaneseq
    %v5754 = vshrl.u32 %v5753, 7
    %v5755 = vsub.s32 %v3689, %v5754
    %v5756 = vrot.slane %v3528, %v5755
    %v5757 = vsel %vm3694, %v5756, %v5752
    %v5758 = vlaneseq
    %v5759 = vshrl.u32 %v5758, 7
    %v5760 = vsub.s32 %v3696, %v5759
    %v5761 = vrot.slane %v3529, %v5760
    %v5762 = vsel %vm3701, %v5761, %v5757
    %v5763 = vlaneseq
    %v5764 = vshrl.u32 %v5763, 7
    %v5765 = vsub.s32 %v3703, %v5764
    %v5766 = vrot.slane %v3530, %v5765
    %v5767 = vsel %vm3708, %v5766, %v5762
    %v5768 = vlaneseq
    %v5769 = vshrl.u32 %v5768, 7
    %v5770 = vsub.s32 %v3710, %v5769
    %v5771 = vrot.slane %v3531, %v5770
    %v5772 = vsel %vm3715, %v5771, %v5767
    %v5773 = vlaneseq
    %v5774 = vshrl.u32 %v5773, 7
    %v5775 = vsub.s32 %v3717, %v5774
    %v5776 = vrot.slane %v3532, %v5775
    %v5777 = vsel %vm3722, %v5776, %v5772
    %v5778 = vlaneseq
    %v5779 = vshrl.u32 %v5778, 7
    %v5780 = vsub.s32 %v3614, %v5779
    %v5781 = vrot.slane %v3533, %v5780
    %v5782 = vlaneseq
    %v5783 = vshrl.u32 %v5782, 7
    %v5784 = vsub.s32 %v3619, %v5783
    %v5785 = vrot.slane %v3534, %v5784
    %v5786 = vsel %vm3624, %v5785, %v5781
    %v5787 = vlaneseq
    %v5788 = vshrl.u32 %v5787, 7
    %v5789 = vsub.s32 %v3626, %v5788
    %v5790 = vrot.slane %v3535, %v5789
    %v5791 = vsel %vm3631, %v5790, %v5786
    %v5792 = vlaneseq
    %v5793 = vshrl.u32 %v5792, 7
    %v5794 = vsub.s32 %v3633, %v5793
    %v5795 = vrot.slane %v3536, %v5794
    %v5796 = vsel %vm3638, %v5795, %v5791
    %v5797 = vlaneseq
    %v5798 = vshrl.u32 %v5797, 7
    %v5799 = vsub.s32 %v3640, %v5798
    %v5800 = vrot.slane %v3537, %v5799
    %v5801 = vsel %vm3645, %v5800, %v5796
    %v5802 = vlaneseq
    %v5803 = vshrl.u32 %v5802, 7
    %v5804 = vsub.s32 %v3647, %v5803
    %v5805 = vrot.slane %v3538, %v5804
    %v5806 = vsel %vm3652, %v5805, %v5801
    %v5807 = vlaneseq
    %v5808 = vshrl.u32 %v5807, 7
    %v5809 = vsub.s32 %v3654, %v5808
    %v5810 = vrot.slane %v3539, %v5809
    %v5811 = vsel %vm3659, %v5810, %v5806
    %v5812 = vlaneseq
    %v5813 = vshrl.u32 %v5812, 7
    %v5814 = vsub.s32 %v3661, %v5813
    %v5815 = vrot.slane %v3540, %v5814
    %v5816 = vsel %vm3666, %v5815, %v5811
    %v5817 = vlaneseq
    %v5818 = vshrl.u32 %v5817, 7
    %v5819 = vsub.s32 %v3668, %v5818
    %v5820 = vrot.slane %v3541, %v5819
    %v5821 = vsel %vm3673, %v5820, %v5816
    %v5822 = vlaneseq
    %v5823 = vshrl.u32 %v5822, 7
    %v5824 = vsub.s32 %v3675, %v5823
    %v5825 = vrot.slane %v3542, %v5824
    %v5826 = vsel %vm3680, %v5825, %v5821
    %v5827 = vlaneseq
    %v5828 = vshrl.u32 %v5827, 7
    %v5829 = vsub.s32 %v3682, %v5828
    %v5830 = vrot.slane %v3543, %v5829
    %v5831 = vsel %vm3687, %v5830, %v5826
    %v5832 = vlaneseq
    %v5833 = vshrl.u32 %v5832, 7
    %v5834 = vsub.s32 %v3689, %v5833
    %v5835 = vrot.slane %v3544, %v5834
    %v5836 = vsel %vm3694, %v5835, %v5831
    %v5837 = vlaneseq
    %v5838 = vshrl.u32 %v5837, 7
    %v5839 = vsub.s32 %v3696, %v5838
    %v5840 = vrot.slane %v3545, %v5839
    %v5841 = vsel %vm3701, %v5840, %v5836
    %v5842 = vlaneseq
    %v5843 = vshrl.u32 %v5842, 7
    %v5844 = vsub.s32 %v3703, %v5843
    %v5845 = vrot.slane %v3546, %v5844
    %v5846 = vsel %vm3708, %v5845, %v5841
    %v5847 = vlaneseq
    %v5848 = vshrl.u32 %v5847, 7
    %v5849 = vsub.s32 %v3710, %v5848
    %v5850 = vrot.slane %v3547, %v5849
    %v5851 = vsel %vm3715, %v5850, %v5846
    %v5852 = vlaneseq
    %v5853 = vshrl.u32 %v5852, 7
    %v5854 = vsub.s32 %v3717, %v5853
    %v5855 = vrot.slane %v3548, %v5854
    %v5856 = vsel %vm3722, %v5855, %v5851
    %v5857 = vlaneseq
    %v5858 = vshrl.u32 %v5857, 7
    %v5859 = vsub.s32 %v3614, %v5858
    %v5860 = vrot.slane %v3549, %v5859
    %v5861 = vlaneseq
    %v5862 = vshrl.u32 %v5861, 7
    %v5863 = vsub.s32 %v3619, %v5862
    %v5864 = vrot.slane %v3550, %v5863
    %v5865 = vsel %vm3624, %v5864, %v5860
    %v5866 = vlaneseq
    %v5867 = vshrl.u32 %v5866, 7
    %v5868 = vsub.s32 %v3626, %v5867
    %v5869 = vrot.slane %v3551, %v5868
    %v5870 = vsel %vm3631, %v5869, %v5865
    %v5871 = vlaneseq
    %v5872 = vshrl.u32 %v5871, 7
    %v5873 = vsub.s32 %v3633, %v5872
    %v5874 = vrot.slane %v3552, %v5873
    %v5875 = vsel %vm3638, %v5874, %v5870
    %v5876 = vlaneseq
    %v5877 = vshrl.u32 %v5876, 7
    %v5878 = vsub.s32 %v3640, %v5877
    %v5879 = vrot.slane %v3553, %v5878
    %v5880 = vsel %vm3645, %v5879, %v5875
    %v5881 = vlaneseq
    %v5882 = vshrl.u32 %v5881, 7
    %v5883 = vsub.s32 %v3647, %v5882
    %v5884 = vrot.slane %v3554, %v5883
    %v5885 = vsel %vm3652, %v5884, %v5880
    %v5886 = vlaneseq
    %v5887 = vshrl.u32 %v5886, 7
    %v5888 = vsub.s32 %v3654, %v5887
    %v5889 = vrot.slane %v3555, %v5888
    %v5890 = vsel %vm3659, %v5889, %v5885
    %v5891 = vlaneseq
    %v5892 = vshrl.u32 %v5891, 7
    %v5893 = vsub.s32 %v3661, %v5892
    %v5894 = vrot.slane %v3556, %v5893
    %v5895 = vsel %vm3666, %v5894, %v5890
    %v5896 = vlaneseq
    %v5897 = vshrl.u32 %v5896, 7
    %v5898 = vsub.s32 %v3668, %v5897
    %v5899 = vrot.slane %v3557, %v5898
    %v5900 = vsel %vm3673, %v5899, %v5895
    %v5901 = vlaneseq
    %v5902 = vshrl.u32 %v5901, 7
    %v5903 = vsub.s32 %v3675, %v5902
    %v5904 = vrot.slane %v3558, %v5903
    %v5905 = vsel %vm3680, %v5904, %v5900
    %v5906 = vlaneseq
    %v5907 = vshrl.u32 %v5906, 7
    %v5908 = vsub.s32 %v3682, %v5907
    %v5909 = vrot.slane %v3559, %v5908
    %v5910 = vsel %vm3687, %v5909, %v5905
    %v5911 = vlaneseq
    %v5912 = vshrl.u32 %v5911, 7
    %v5913 = vsub.s32 %v3689, %v5912
    %v5914 = vrot.slane %v3560, %v5913
    %v5915 = vsel %vm3694, %v5914, %v5910
    %v5916 = vlaneseq
    %v5917 = vshrl.u32 %v5916, 7
    %v5918 = vsub.s32 %v3696, %v5917
    %v5919 = vrot.slane %v3561, %v5918
    %v5920 = vsel %vm3701, %v5919, %v5915
    %v5921 = vlaneseq
    %v5922 = vshrl.u32 %v5921, 7
    %v5923 = vsub.s32 %v3703, %v5922
    %v5924 = vrot.slane %v3562, %v5923
    %v5925 = vsel %vm3708, %v5924, %v5920
    %v5926 = vlaneseq
    %v5927 = vshrl.u32 %v5926, 7
    %v5928 = vsub.s32 %v3710, %v5927
    %v5929 = vrot.slane %v3563, %v5928
    %v5930 = vsel %vm3715, %v5929, %v5925
    %v5931 = vlaneseq
    %v5932 = vshrl.u32 %v5931, 7
    %v5933 = vsub.s32 %v3717, %v5932
    %v5934 = vrot.slane %v3564, %v5933
    %v5935 = vsel %vm3722, %v5934, %v5930
    %v5936 = vlaneseq
    %v5937 = vshrl.u32 %v5936, 7
    %v5938 = vsub.s32 %v3614, %v5937
    %v5939 = vrot.slane %v3565, %v5938
    %v5940 = vlaneseq
    %v5941 = vshrl.u32 %v5940, 7
    %v5942 = vsub.s32 %v3619, %v5941
    %v5943 = vrot.slane %v3566, %v5942
    %v5944 = vsel %vm3624, %v5943, %v5939
    %v5945 = vlaneseq
    %v5946 = vshrl.u32 %v5945, 7
    %v5947 = vsub.s32 %v3626, %v5946
    %v5948 = vrot.slane %v3567, %v5947
    %v5949 = vsel %vm3631, %v5948, %v5944
    %v5950 = vlaneseq
    %v5951 = vshrl.u32 %v5950, 7
    %v5952 = vsub.s32 %v3633, %v5951
    %v5953 = vrot.slane %v3568, %v5952
    %v5954 = vsel %vm3638, %v5953, %v5949
    %v5955 = vlaneseq
    %v5956 = vshrl.u32 %v5955, 7
    %v5957 = vsub.s32 %v3640, %v5956
    %v5958 = vrot.slane %v3569, %v5957
    %v5959 = vsel %vm3645, %v5958, %v5954
    %v5960 = vlaneseq
    %v5961 = vshrl.u32 %v5960, 7
    %v5962 = vsub.s32 %v3647, %v5961
    %v5963 = vrot.slane %v3570, %v5962
    %v5964 = vsel %vm3652, %v5963, %v5959
    %v5965 = vlaneseq
    %v5966 = vshrl.u32 %v5965, 7
    %v5967 = vsub.s32 %v3654, %v5966
    %v5968 = vrot.slane %v3571, %v5967
    %v5969 = vsel %vm3659, %v5968, %v5964
    %v5970 = vlaneseq
    %v5971 = vshrl.u32 %v5970, 7
    %v5972 = vsub.s32 %v3661, %v5971
    %v5973 = vrot.slane %v3572, %v5972
    %v5974 = vsel %vm3666, %v5973, %v5969
    %v5975 = vlaneseq
    %v5976 = vshrl.u32 %v5975, 7
    %v5977 = vsub.s32 %v3668, %v5976
    %v5978 = vrot.slane %v3573, %v5977
    %v5979 = vsel %vm3673, %v5978, %v5974
    %v5980 = vlaneseq
    %v5981 = vshrl.u32 %v5980, 7
    %v5982 = vsub.s32 %v3675, %v5981
    %v5983 = vrot.slane %v3574, %v5982
    %v5984 = vsel %vm3680, %v5983, %v5979
    %v5985 = vlaneseq
    %v5986 = vshrl.u32 %v5985, 7
    %v5987 = vsub.s32 %v3682, %v5986
    %v5988 = vrot.slane %v3575, %v5987
    %v5989 = vsel %vm3687, %v5988, %v5984
    %v5990 = vlaneseq
    %v5991 = vshrl.u32 %v5990, 7
    %v5992 = vsub.s32 %v3689, %v5991
    %v5993 = vrot.slane %v3576, %v5992
    %v5994 = vsel %vm3694, %v5993, %v5989
    %v5995 = vlaneseq
    %v5996 = vshrl.u32 %v5995, 7
    %v5997 = vsub.s32 %v3696, %v5996
    %v5998 = vrot.slane %v3577, %v5997
    %v5999 = vsel %vm3701, %v5998, %v5994
    %v6000 = vlaneseq
    %v6001 = vshrl.u32 %v6000, 7
    %v6002 = vsub.s32 %v3703, %v6001
    %v6003 = vrot.slane %v3578, %v6002
    %v6004 = vsel %vm3708, %v6003, %v5999
    %v6005 = vlaneseq
    %v6006 = vshrl.u32 %v6005, 7
    %v6007 = vsub.s32 %v3710, %v6006
    %v6008 = vrot.slane %v3579, %v6007
    %v6009 = vsel %vm3715, %v6008, %v6004
    %v6010 = vlaneseq
    %v6011 = vshrl.u32 %v6010, 7
    %v6012 = vsub.s32 %v3717, %v6011
    %v6013 = vrot.slane %v3580, %v6012
    %v6014 = vsel %vm3722, %v6013, %v6009
    %v6015 = vlaneseq
    %v6016 = vshrl.u32 %v6015, 7
    %v6017 = vsub.s32 %v3614, %v6016
    %v6018 = vrot.slane %v3581, %v6017
    %v6019 = vlaneseq
    %v6020 = vshrl.u32 %v6019, 7
    %v6021 = vsub.s32 %v3619, %v6020
    %v6022 = vrot.slane %v3582, %v6021
    %v6023 = vsel %vm3624, %v6022, %v6018
    %v6024 = vlaneseq
    %v6025 = vshrl.u32 %v6024, 7
    %v6026 = vsub.s32 %v3626, %v6025
    %v6027 = vrot.slane %v3583, %v6026
    %v6028 = vsel %vm3631, %v6027, %v6023
    %v6029 = vlaneseq
    %v6030 = vshrl.u32 %v6029, 7
    %v6031 = vsub.s32 %v3633, %v6030
    %v6032 = vrot.slane %v3584, %v6031
    %v6033 = vsel %vm3638, %v6032, %v6028
    %v6034 = vlaneseq
    %v6035 = vshrl.u32 %v6034, 7
    %v6036 = vsub.s32 %v3640, %v6035
    %v6037 = vrot.slane %v3585, %v6036
    %v6038 = vsel %vm3645, %v6037, %v6033
    %v6039 = vlaneseq
    %v6040 = vshrl.u32 %v6039, 7
    %v6041 = vsub.s32 %v3647, %v6040
    %v6042 = vrot.slane %v3586, %v6041
    %v6043 = vsel %vm3652, %v6042, %v6038
    %v6044 = vlaneseq
    %v6045 = vshrl.u32 %v6044, 7
    %v6046 = vsub.s32 %v3654, %v6045
    %v6047 = vrot.slane %v3587, %v6046
    %v6048 = vsel %vm3659, %v6047, %v6043
    %v6049 = vlaneseq
    %v6050 = vshrl.u32 %v6049, 7
    %v6051 = vsub.s32 %v3661, %v6050
    %v6052 = vrot.slane %v3588, %v6051
    %v6053 = vsel %vm3666, %v6052, %v6048
    %v6054 = vlaneseq
    %v6055 = vshrl.u32 %v6054, 7
    %v6056 = vsub.s32 %v3668, %v6055
    %v6057 = vrot.slane %v3589, %v6056
    %v6058 = vsel %vm3673, %v6057, %v6053
    %v6059 = vlaneseq
    %v6060 = vshrl.u32 %v6059, 7
    %v6061 = vsub.s32 %v3675, %v6060
    %v6062 = vrot.slane %v3590, %v6061
    %v6063 = vsel %vm3680, %v6062, %v6058
    %v6064 = vlaneseq
    %v6065 = vshrl.u32 %v6064, 7
    %v6066 = vsub.s32 %v3682, %v6065
    %v6067 = vrot.slane %v3591, %v6066
    %v6068 = vsel %vm3687, %v6067, %v6063
    %v6069 = vlaneseq
    %v6070 = vshrl.u32 %v6069, 7
    %v6071 = vsub.s32 %v3689, %v6070
    %v6072 = vrot.slane %v3592, %v6071
    %v6073 = vsel %vm3694, %v6072, %v6068
    %v6074 = vlaneseq
    %v6075 = vshrl.u32 %v6074, 7
    %v6076 = vsub.s32 %v3696, %v6075
    %v6077 = vrot.slane %v3593, %v6076
    %v6078 = vsel %vm3701, %v6077, %v6073
    %v6079 = vlaneseq
    %v6080 = vshrl.u32 %v6079, 7
    %v6081 = vsub.s32 %v3703, %v6080
    %v6082 = vrot.slane %v3594, %v6081
    %v6083 = vsel %vm3708, %v6082, %v6078
    %v6084 = vlaneseq
    %v6085 = vshrl.u32 %v6084, 7
    %v6086 = vsub.s32 %v3710, %v6085
    %v6087 = vrot.slane %v3595, %v6086
    %v6088 = vsel %vm3715, %v6087, %v6083
    %v6089 = vlaneseq
    %v6090 = vshrl.u32 %v6089, 7
    %v6091 = vsub.s32 %v3717, %v6090
    %v6092 = vrot.slane %v3596, %v6091
    %v6093 = vsel %vm3722, %v6092, %v6088
    %v6094 = vlaneseq
    %v6095 = vshrl.u32 %v6094, 7
    %v6096 = vsub.s32 %v3614, %v6095
    %v6097 = vrot.slane %v3597, %v6096
    %v6098 = vlaneseq
    %v6099 = vshrl.u32 %v6098, 7
    %v6100 = vsub.s32 %v3619, %v6099
    %v6101 = vrot.slane %v3598, %v6100
    %v6102 = vsel %vm3624, %v6101, %v6097
    %v6103 = vlaneseq
    %v6104 = vshrl.u32 %v6103, 7
    %v6105 = vsub.s32 %v3626, %v6104
    %v6106 = vrot.slane %v3599, %v6105
    %v6107 = vsel %vm3631, %v6106, %v6102
    %v6108 = vlaneseq
    %v6109 = vshrl.u32 %v6108, 7
    %v6110 = vsub.s32 %v3633, %v6109
    %v6111 = vrot.slane %v3600, %v6110
    %v6112 = vsel %vm3638, %v6111, %v6107
    %v6113 = vlaneseq
    %v6114 = vshrl.u32 %v6113, 7
    %v6115 = vsub.s32 %v3640, %v6114
    %v6116 = vrot.slane %v3601, %v6115
    %v6117 = vsel %vm3645, %v6116, %v6112
    %v6118 = vlaneseq
    %v6119 = vshrl.u32 %v6118, 7
    %v6120 = vsub.s32 %v3647, %v6119
    %v6121 = vrot.slane %v3602, %v6120
    %v6122 = vsel %vm3652, %v6121, %v6117
    %v6123 = vlaneseq
    %v6124 = vshrl.u32 %v6123, 7
    %v6125 = vsub.s32 %v3654, %v6124
    %v6126 = vrot.slane %v3603, %v6125
    %v6127 = vsel %vm3659, %v6126, %v6122
    %v6128 = vlaneseq
    %v6129 = vshrl.u32 %v6128, 7
    %v6130 = vsub.s32 %v3661, %v6129
    %v6131 = vrot.slane %v3604, %v6130
    %v6132 = vsel %vm3666, %v6131, %v6127
    %v6133 = vlaneseq
    %v6134 = vshrl.u32 %v6133, 7
    %v6135 = vsub.s32 %v3668, %v6134
    %v6136 = vrot.slane %v3605, %v6135
    %v6137 = vsel %vm3673, %v6136, %v6132
    %v6138 = vlaneseq
    %v6139 = vshrl.u32 %v6138, 7
    %v6140 = vsub.s32 %v3675, %v6139
    %v6141 = vrot.slane %v3606, %v6140
    %v6142 = vsel %vm3680, %v6141, %v6137
    %v6143 = vlaneseq
    %v6144 = vshrl.u32 %v6143, 7
    %v6145 = vsub.s32 %v3682, %v6144
    %v6146 = vrot.slane %v3607, %v6145
    %v6147 = vsel %vm3687, %v6146, %v6142
    %v6148 = vlaneseq
    %v6149 = vshrl.u32 %v6148, 7
    %v6150 = vsub.s32 %v3689, %v6149
    %v6151 = vrot.slane %v3608, %v6150
    %v6152 = vsel %vm3694, %v6151, %v6147
    %v6153 = vlaneseq
    %v6154 = vshrl.u32 %v6153, 7
    %v6155 = vsub.s32 %v3696, %v6154
    %v6156 = vrot.slane %v3609, %v6155
    %v6157 = vsel %vm3701, %v6156, %v6152
    %v6158 = vlaneseq
    %v6159 = vshrl.u32 %v6158, 7
    %v6160 = vsub.s32 %v3703, %v6159
    %v6161 = vrot.slane %v3610, %v6160
    %v6162 = vsel %vm3708, %v6161, %v6157
    %v6163 = vlaneseq
    %v6164 = vshrl.u32 %v6163, 7
    %v6165 = vsub.s32 %v3710, %v6164
    %v6166 = vrot.slane %v3611, %v6165
    %v6167 = vsel %vm3715, %v6166, %v6162
    %v6168 = vlaneseq
    %v6169 = vshrl.u32 %v6168, 7
    %v6170 = vsub.s32 %v3717, %v6169
    %v6171 = vrot.slane %v3612, %v6170
    %v6172 = vsel %vm3722, %v6171, %v6167
    %vm6173 = vcmask 1041409
    %v6174 = vsel %vm6173, %v4987, %v3723
    %v6175 = vsel %vm6173, %v5066, %v3802
    %v6176 = vsel %vm6173, %v5145, %v3881
    %v6177 = vsel %vm6173, %v5224, %v3960
    %v6178 = vsel %vm6173, %v5303, %v4039
    %v6179 = vsel %vm6173, %v5382, %v4118
    %v6180 = vsel %vm6173, %v5461, %v4197
    %v6181 = vsel %vm6173, %v5540, %v4276
    %v6182 = vsel %vm6173, %v5619, %v4355
    %v6183 = vsel %vm6173, %v5698, %v4434
    %v6184 = vsel %vm6173, %v5777, %v4513
    %v6185 = vsel %vm6173, %v5856, %v4592
    %v6186 = vsel %vm6173, %v5935, %v4671
    %v6187 = vsel %vm6173, %v6014, %v4750
    %v6188 = vsel %vm6173, %v6093, %v4829
    %v6189 = vsel %vm6173, %v6172, %v4908
    %v6190 = vpack.c.b16 %v6174, %v6174
    %v6191 = vpack.c.b16 %v6175, %v6175
    %v6192 = vpack.c.b16 %v6176, %v6176
    %v6193 = vpack.c.b16 %v6177, %v6177
    %v6194 = vpack.c.b16 %v6178, %v6178
    %v6195 = vpack.c.b16 %v6179, %v6179
    %v6196 = vpack.c.b16 %v6180, %v6180
    %v6197 = vpack.c.b16 %v6181, %v6181
    %v6198 = vpack.c.b16 %v6182, %v6182
    %v6199 = vpack.c.b16 %v6183, %v6183
    %v6200 = vpack.c.b16 %v6184, %v6184
    %v6201 = vpack.c.b16 %v6185, %v6185
    %v6202 = vpack.c.b16 %v6186, %v6186
    %v6203 = vpack.c.b16 %v6187, %v6187
    %v6204 = vpack.c.b16 %v6188, %v6188
    %v6205 = vpack.c.b16 %v6189, %v6189
    %v6734 = vunpack.c.l.b16 %v2333
    %v6735 = vunpack.c.h.b16 %v2333
    %v6736 = vunpack.c.l.b16 %v2334
    %v6737 = vunpack.c.h.b16 %v2334
    %v6738 = vunpack.c.l.b16 %v2335
    %v6739 = vunpack.c.h.b16 %v2335
    %v6740 = vunpack.c.l.b16 %v2336
    %v6741 = vunpack.c.h.b16 %v2336
    %v6742 = vunpack.c.l.b16 %v2337
    %v6743 = vunpack.c.h.b16 %v2337
    %v6744 = vunpack.c.l.b16 %v2338
    %v6745 = vunpack.c.h.b16 %v2338
    %v6746 = vunpack.c.l.b16 %v2339
    %v6747 = vunpack.c.h.b16 %v2339
    %v6748 = vunpack.c.l.b16 %v2340
    %v6749 = vunpack.c.h.b16 %v2340
    %v6750 = vunpack.c.l.b16 %v2341
    %v6751 = vunpack.c.h.b16 %v2341
    %v6752 = vunpack.c.l.b16 %v2342
    %v6753 = vunpack.c.h.b16 %v2342
    %v6754 = vunpack.c.l.b16 %v2343
    %v6755 = vunpack.c.h.b16 %v2343
    %v6756 = vunpack.c.l.b16 %v2344
    %v6757 = vunpack.c.h.b16 %v2344
    %v6758 = vunpack.c.l.b16 %v2345
    %v6759 = vunpack.c.h.b16 %v2345
    %v6760 = vunpack.c.l.b16 %v2346
    %v6761 = vunpack.c.h.b16 %v2346
    %v6762 = vunpack.c.l.b16 %v2347
    %v6763 = vunpack.c.h.b16 %v2347
    %v6764 = vunpack.c.l.b16 %v2348
    %v6765 = vunpack.c.h.b16 %v2348
    %v6766 = vunpack.c.l.b16 %v2349
    %v6767 = vunpack.c.h.b16 %v2349
    %v6768 = vunpack.c.l.b16 %v2350
    %v6769 = vunpack.c.h.b16 %v2350
    %v6770 = vunpack.c.l.b16 %v2351
    %v6771 = vunpack.c.h.b16 %v2351
    %v6772 = vunpack.c.l.b16 %v2352
    %v6773 = vunpack.c.h.b16 %v2352
    %v6774 = vunpack.c.l.b16 %v2353
    %v6775 = vunpack.c.h.b16 %v2353
    %v6776 = vunpack.c.l.b16 %v2354
    %v6777 = vunpack.c.h.b16 %v2354
    %v6778 = vunpack.c.l.b16 %v2355
    %v6779 = vunpack.c.h.b16 %v2355
    %v6780 = vunpack.c.l.b16 %v2356
    %v6781 = vunpack.c.h.b16 %v2356
    %v6782 = vunpack.c.l.b16 %v2357
    %v6783 = vunpack.c.h.b16 %v2357
    %v6784 = vunpack.c.l.b16 %v2358
    %v6785 = vunpack.c.h.b16 %v2358
    %v6786 = vunpack.c.l.b16 %v2359
    %v6787 = vunpack.c.h.b16 %v2359
    %v6788 = vunpack.c.l.b16 %v2360
    %v6789 = vunpack.c.h.b16 %v2360
    %v6790 = vunpack.c.l.b16 %v2361
    %v6791 = vunpack.c.h.b16 %v2361
    %v6792 = vunpack.c.l.b16 %v2362
    %v6793 = vunpack.c.h.b16 %v2362
    %v6794 = vunpack.c.l.b16 %v2363
    %v6795 = vunpack.c.h.b16 %v2363
    %v6796 = vunpack.c.l.b16 %v2364
    %v6797 = vunpack.c.h.b16 %v2364
    %v6798 = vunpack.c.l.b16 %v2365
    %v6799 = vunpack.c.h.b16 %v2365
    %v6800 = vunpack.c.l.b16 %v2366
    %v6801 = vunpack.c.h.b16 %v2366
    %v6802 = vunpack.c.l.b16 %v2367
    %v6803 = vunpack.c.h.b16 %v2367
    %v6804 = vunpack.c.l.b16 %v2368
    %v6805 = vunpack.c.h.b16 %v2368
    %v6806 = vunpack.c.l.b16 %v2369
    %v6807 = vunpack.c.h.b16 %v2369
    %v6808 = vunpack.c.l.b16 %v2370
    %v6809 = vunpack.c.h.b16 %v2370
    %v6810 = vunpack.c.l.b16 %v2371
    %v6811 = vunpack.c.h.b16 %v2371
    %v6812 = vunpack.c.l.b16 %v2372
    %v6813 = vunpack.c.h.b16 %v2372
    %v6814 = vunpack.c.l.b16 %v2373
    %v6815 = vunpack.c.h.b16 %v2373
    %v6816 = vunpack.c.l.b16 %v2374
    %v6817 = vunpack.c.h.b16 %v2374
    %v6818 = vunpack.c.l.b16 %v2375
    %v6819 = vunpack.c.h.b16 %v2375
    %v6820 = vunpack.c.l.b16 %v2376
    %v6821 = vunpack.c.h.b16 %v2376
    %v6822 = vunpack.c.l.b16 %v2377
    %v6823 = vunpack.c.h.b16 %v2377
    %v6824 = vunpack.c.l.b16 %v2378
    %v6825 = vunpack.c.h.b16 %v2378
    %v6826 = vunpack.c.l.b16 %v2379
    %v6827 = vunpack.c.h.b16 %v2379
    %v6828 = vunpack.c.l.b16 %v2380
    %v6829 = vunpack.c.h.b16 %v2380
    %v6830 = vunpack.c.l.b16 %v2381
    %v6831 = vunpack.c.h.b16 %v2381
    %v6832 = vunpack.c.l.b16 %v2382
    %v6833 = vunpack.c.h.b16 %v2382
    %v6834 = vunpack.c.l.b16 %v2383
    %v6835 = vunpack.c.h.b16 %v2383
    %v6836 = vunpack.c.l.b16 %v2384
    %v6837 = vunpack.c.h.b16 %v2384
    %v6838 = vunpack.c.l.b16 %v2385
    %v6839 = vunpack.c.h.b16 %v2385
    %v6840 = vunpack.c.l.b16 %v2386
    %v6841 = vunpack.c.h.b16 %v2386
    %v6842 = vunpack.c.l.b16 %v2387
    %v6843 = vunpack.c.h.b16 %v2387
    %v6844 = vunpack.c.l.b16 %v2388
    %v6845 = vunpack.c.h.b16 %v2388
    %v6846 = vunpack.c.l.b16 %v2389
    %v6847 = vunpack.c.h.b16 %v2389
    %v6848 = vunpack.c.l.b16 %v2390
    %v6849 = vunpack.c.h.b16 %v2390
    %v6850 = vunpack.c.l.b16 %v2391
    %v6851 = vunpack.c.h.b16 %v2391
    %v6852 = vunpack.c.l.b16 %v2392
    %v6853 = vunpack.c.h.b16 %v2392
    %v6854 = vunpack.c.l.b16 %v2393
    %v6855 = vunpack.c.h.b16 %v2393
    %v6856 = vunpack.c.l.b16 %v2394
    %v6857 = vunpack.c.h.b16 %v2394
    %v6858 = vunpack.c.l.b16 %v2395
    %v6859 = vunpack.c.h.b16 %v2395
    %v6860 = vunpack.c.l.b16 %v2396
    %v6861 = vunpack.c.h.b16 %v2396
    %v6862 = vunpack.c.l.b16 %v2397
    %v6863 = vunpack.c.h.b16 %v2397
    %v6864 = vunpack.c.l.b16 %v2398
    %v6865 = vunpack.c.h.b16 %v2398
    %v6866 = vunpack.c.l.b16 %v2399
    %v6867 = vunpack.c.h.b16 %v2399
    %v6868 = vunpack.c.l.b16 %v2400
    %v6869 = vunpack.c.h.b16 %v2400
    %v6870 = vunpack.c.l.b16 %v2401
    %v6871 = vunpack.c.h.b16 %v2401
    %v6872 = vunpack.c.l.b16 %v2402
    %v6873 = vunpack.c.h.b16 %v2402
    %v6874 = vunpack.c.l.b16 %v2403
    %v6875 = vunpack.c.h.b16 %v2403
    %v6876 = vunpack.c.l.b16 %v2404
    %v6877 = vunpack.c.h.b16 %v2404
    %v6878 = vunpack.c.l.b16 %v2405
    %v6879 = vunpack.c.h.b16 %v2405
    %v6880 = vunpack.c.l.b16 %v2406
    %v6881 = vunpack.c.h.b16 %v2406
    %v6882 = vunpack.c.l.b16 %v2407
    %v6883 = vunpack.c.h.b16 %v2407
    %v6884 = vunpack.c.l.b16 %v2408
    %v6885 = vunpack.c.h.b16 %v2408
    %v6886 = vunpack.c.l.b16 %v2409
    %v6887 = vunpack.c.h.b16 %v2409
    %v6888 = vunpack.c.l.b16 %v2410
    %v6889 = vunpack.c.h.b16 %v2410
    %v6890 = vunpack.c.l.b16 %v2411
    %v6891 = vunpack.c.h.b16 %v2411
    %v6892 = vunpack.c.l.b16 %v2412
    %v6893 = vunpack.c.h.b16 %v2412
    %v6894 = vunpack.c.l.b16 %v2413
    %v6895 = vunpack.c.h.b16 %v2413
    %v6896 = vunpack.c.l.b16 %v2414
    %v6897 = vunpack.c.h.b16 %v2414
    %v6898 = vunpack.c.l.b16 %v2415
    %v6899 = vunpack.c.h.b16 %v2415
    %v6900 = vunpack.c.l.b16 %v2416
    %v6901 = vunpack.c.h.b16 %v2416
    %v6902 = vunpack.c.l.b16 %v2417
    %v6903 = vunpack.c.h.b16 %v2417
    %v6904 = vunpack.c.l.b16 %v2418
    %v6905 = vunpack.c.h.b16 %v2418
    %v6906 = vunpack.c.l.b16 %v2419
    %v6907 = vunpack.c.h.b16 %v2419
    %v6908 = vunpack.c.l.b16 %v2420
    %v6909 = vunpack.c.h.b16 %v2420
    %v6910 = vunpack.c.l.b16 %v2421
    %v6911 = vunpack.c.h.b16 %v2421
    %v6912 = vunpack.c.l.b16 %v2422
    %v6913 = vunpack.c.h.b16 %v2422
    %v6914 = vunpack.c.l.b16 %v2423
    %v6915 = vunpack.c.h.b16 %v2423
    %v6916 = vunpack.c.l.b16 %v2424
    %v6917 = vunpack.c.h.b16 %v2424
    %v6918 = vunpack.c.l.b16 %v2425
    %v6919 = vunpack.c.h.b16 %v2425
    %v6920 = vunpack.c.l.b16 %v2426
    %v6921 = vunpack.c.h.b16 %v2426
    %v6922 = vunpack.c.l.b16 %v2427
    %v6923 = vunpack.c.h.b16 %v2427
    %v6924 = vunpack.c.l.b16 %v2428
    %v6925 = vunpack.c.h.b16 %v2428
    %v6926 = vunpack.c.l.b16 %v2429
    %v6927 = vunpack.c.h.b16 %v2429
    %v6928 = vunpack.c.l.b16 %v2430
    %v6929 = vunpack.c.h.b16 %v2430
    %v6930 = vunpack.c.l.b16 %v2431
    %v6931 = vunpack.c.h.b16 %v2431
    %v6932 = vunpack.c.l.b16 %v2432
    %v6933 = vunpack.c.h.b16 %v2432
    %v6934 = vunpack.c.l.b16 %v2433
    %v6935 = vunpack.c.h.b16 %v2433
    %v6936 = vunpack.c.l.b16 %v2434
    %v6937 = vunpack.c.h.b16 %v2434
    %v6938 = vunpack.c.l.b16 %v2435
    %v6939 = vunpack.c.h.b16 %v2435
    %v6940 = vunpack.c.l.b16 %v2436
    %v6941 = vunpack.c.h.b16 %v2436
    %v6942 = vunpack.c.l.b16 %v2437
    %v6943 = vunpack.c.h.b16 %v2437
    %v6944 = vunpack.c.l.b16 %v2438
    %v6945 = vunpack.c.h.b16 %v2438
    %v6946 = vunpack.c.l.b16 %v2439
    %v6947 = vunpack.c.h.b16 %v2439
    %v6948 = vunpack.c.l.b16 %v2440
    %v6949 = vunpack.c.h.b16 %v2440
    %v6950 = vunpack.c.l.b16 %v2441
    %v6951 = vunpack.c.h.b16 %v2441
    %v6952 = vunpack.c.l.b16 %v2442
    %v6953 = vunpack.c.h.b16 %v2442
    %v6954 = vunpack.c.l.b16 %v2443
    %v6955 = vunpack.c.h.b16 %v2443
    %v6956 = vunpack.c.l.b16 %v2444
    %v6957 = vunpack.c.h.b16 %v2444
    %v6958 = vunpack.c.l.b16 %v2445
    %v6959 = vunpack.c.h.b16 %v2445
    %v6960 = vunpack.c.l.b16 %v2446
    %v6961 = vunpack.c.h.b16 %v2446
    %v6962 = vunpack.c.l.b16 %v2447
    %v6963 = vunpack.c.h.b16 %v2447
    %v6964 = vunpack.c.l.b16 %v2448
    %v6965 = vunpack.c.h.b16 %v2448
    %v6966 = vunpack.c.l.b16 %v2449
    %v6967 = vunpack.c.h.b16 %v2449
    %v6968 = vunpack.c.l.b16 %v2450
    %v6969 = vunpack.c.h.b16 %v2450
    %v6970 = vunpack.c.l.b16 %v2451
    %v6971 = vunpack.c.h.b16 %v2451
    %v6972 = vunpack.c.l.b16 %v2452
    %v6973 = vunpack.c.h.b16 %v2452
    %v6974 = vunpack.c.l.b16 %v2453
    %v6975 = vunpack.c.h.b16 %v2453
    %v6976 = vunpack.c.l.b16 %v2454
    %v6977 = vunpack.c.h.b16 %v2454
    %v6978 = vunpack.c.l.b16 %v2455
    %v6979 = vunpack.c.h.b16 %v2455
    %v6980 = vunpack.c.l.b16 %v2456
    %v6981 = vunpack.c.h.b16 %v2456
    %v6982 = vunpack.c.l.b16 %v2457
    %v6983 = vunpack.c.h.b16 %v2457
    %v6984 = vunpack.c.l.b16 %v2458
    %v6985 = vunpack.c.h.b16 %v2458
    %v6986 = vunpack.c.l.b16 %v2459
    %v6987 = vunpack.c.h.b16 %v2459
    %v6988 = vunpack.c.l.b16 %v2460
    %v6989 = vunpack.c.h.b16 %v2460
    %v6990 = vunpack.c.l.b16 %v2461
    %v6991 = vunpack.c.h.b16 %v2461
    %v6992 = vunpack.c.l.b16 %v2462
    %v6993 = vunpack.c.h.b16 %v2462
    %v6994 = vunpack.c.l.b16 %v2463
    %v6995 = vunpack.c.h.b16 %v2463
    %v6996 = vunpack.c.l.b16 %v2464
    %v6997 = vunpack.c.h.b16 %v2464
    %v6998 = vunpack.c.l.b16 %v2465
    %v6999 = vunpack.c.h.b16 %v2465
    %v7000 = vunpack.c.l.b16 %v2466
    %v7001 = vunpack.c.h.b16 %v2466
    %v7002 = vunpack.c.l.b16 %v2467
    %v7003 = vunpack.c.h.b16 %v2467
    %v7004 = vunpack.c.l.b16 %v2468
    %v7005 = vunpack.c.h.b16 %v2468
    %v7006 = vunpack.c.l.b16 %v2469
    %v7007 = vunpack.c.h.b16 %v2469
    %v7008 = vunpack.c.l.b16 %v2470
    %v7009 = vunpack.c.h.b16 %v2470
    %v7010 = vunpack.c.l.b16 %v2471
    %v7011 = vunpack.c.h.b16 %v2471
    %v7012 = vunpack.c.l.b16 %v2472
    %v7013 = vunpack.c.h.b16 %v2472
    %v7014 = vunpack.c.l.b16 %v2473
    %v7015 = vunpack.c.h.b16 %v2473
    %v7016 = vunpack.c.l.b16 %v2474
    %v7017 = vunpack.c.h.b16 %v2474
    %v7018 = vunpack.c.l.b16 %v2475
    %v7019 = vunpack.c.h.b16 %v2475
    %v7020 = vunpack.c.l.b16 %v2476
    %v7021 = vunpack.c.h.b16 %v2476
    %v7022 = vunpack.c.l.b16 %v2477
    %v7023 = vunpack.c.h.b16 %v2477
    %v7024 = vunpack.c.l.b16 %v2478
    %v7025 = vunpack.c.h.b16 %v2478
    %v7026 = vunpack.c.l.b16 %v2479
    %v7027 = vunpack.c.h.b16 %v2479
    %v7028 = vunpack.c.l.b16 %v2480
    %v7029 = vunpack.c.h.b16 %v2480
    %v7030 = vunpack.c.l.b16 %v2481
    %v7031 = vunpack.c.h.b16 %v2481
    %v7032 = vunpack.c.l.b16 %v2482
    %v7033 = vunpack.c.h.b16 %v2482
    %v7034 = vunpack.c.l.b16 %v2483
    %v7035 = vunpack.c.h.b16 %v2483
    %v7036 = vunpack.c.l.b16 %v2484
    %v7037 = vunpack.c.h.b16 %v2484
    %v7038 = vunpack.c.l.b16 %v2485
    %v7039 = vunpack.c.h.b16 %v2485
    %v7040 = vunpack.c.l.b16 %v2486
    %v7041 = vunpack.c.h.b16 %v2486
    %v7042 = vunpack.c.l.b16 %v2487
    %v7043 = vunpack.c.h.b16 %v2487
    %v7044 = vunpack.c.l.b16 %v2488
    %v7045 = vunpack.c.h.b16 %v2488
    %v7046 = vunpack.c.l.b16 %v2489
    %v7047 = vunpack.c.h.b16 %v2489
    %v7048 = vunpack.c.l.b16 %v2490
    %v7049 = vunpack.c.h.b16 %v2490
    %v7050 = vunpack.c.l.b16 %v2491
    %v7051 = vunpack.c.h.b16 %v2491
    %v7052 = vunpack.c.l.b16 %v2492
    %v7053 = vunpack.c.h.b16 %v2492
    %v7054 = vunpack.c.l.b16 %v2493
    %v7055 = vunpack.c.h.b16 %v2493
    %v7056 = vunpack.c.l.b16 %v2494
    %v7057 = vunpack.c.h.b16 %v2494
    %v7058 = vunpack.c.l.b16 %v2495
    %v7059 = vunpack.c.h.b16 %v2495
    %v7060 = vunpack.c.l.b16 %v2496
    %v7061 = vunpack.c.h.b16 %v2496
    %v7062 = vunpack.c.l.b16 %v2497
    %v7063 = vunpack.c.h.b16 %v2497
    %v7064 = vunpack.c.l.b16 %v2498
    %v7065 = vunpack.c.h.b16 %v2498
    %v7066 = vunpack.c.l.b16 %v2499
    %v7067 = vunpack.c.h.b16 %v2499
    %v7068 = vunpack.c.l.b16 %v2500
    %v7069 = vunpack.c.h.b16 %v2500
    %v7070 = vunpack.c.l.b16 %v2501
    %v7071 = vunpack.c.h.b16 %v2501
    %v7072 = vunpack.c.l.b16 %v2502
    %v7073 = vunpack.c.h.b16 %v2502
    %v7074 = vunpack.c.l.b16 %v2503
    %v7075 = vunpack.c.h.b16 %v2503
    %v7076 = vunpack.c.l.b16 %v2504
    %v7077 = vunpack.c.h.b16 %v2504
    %v7078 = vunpack.c.l.b16 %v2505
    %v7079 = vunpack.c.h.b16 %v2505
    %v7080 = vunpack.c.l.b16 %v2506
    %v7081 = vunpack.c.h.b16 %v2506
    %v7082 = vunpack.c.l.b16 %v2507
    %v7083 = vunpack.c.h.b16 %v2507
    %v7084 = vunpack.c.l.b16 %v2508
    %v7085 = vunpack.c.h.b16 %v2508
    %v7086 = vunpack.c.l.b16 %v2509
    %v7087 = vunpack.c.h.b16 %v2509
    %v7088 = vunpack.c.l.b16 %v2510
    %v7089 = vunpack.c.h.b16 %v2510
    %v7090 = vunpack.c.l.b16 %v2511
    %v7091 = vunpack.c.h.b16 %v2511
    %v7092 = vunpack.c.l.b16 %v2512
    %v7093 = vunpack.c.h.b16 %v2512
    %v7094 = vunpack.c.l.b16 %v2513
    %v7095 = vunpack.c.h.b16 %v2513
    %v7096 = vunpack.c.l.b16 %v2514
    %v7097 = vunpack.c.h.b16 %v2514
    %v7098 = vunpack.c.l.b16 %v2515
    %v7099 = vunpack.c.h.b16 %v2515
    %v7100 = vunpack.c.l.b16 %v2516
    %v7101 = vunpack.c.h.b16 %v2516
    %v7102 = vunpack.c.l.b16 %v2517
    %v7103 = vunpack.c.h.b16 %v2517
    %v7104 = vunpack.c.l.b16 %v2518
    %v7105 = vunpack.c.h.b16 %v2518
    %v7106 = vunpack.c.l.b16 %v2519
    %v7107 = vunpack.c.h.b16 %v2519
    %v7108 = vunpack.c.l.b16 %v2520
    %v7109 = vunpack.c.h.b16 %v2520
    %v7110 = vunpack.c.l.b16 %v2521
    %v7111 = vunpack.c.h.b16 %v2521
    %v7112 = vunpack.c.l.b16 %v2522
    %v7113 = vunpack.c.h.b16 %v2522
    %v7114 = vunpack.c.l.b16 %v2523
    %v7115 = vunpack.c.h.b16 %v2523
    %v7116 = vunpack.c.l.b16 %v2524
    %v7117 = vunpack.c.h.b16 %v2524
    %v7118 = vunpack.c.l.b16 %v2525
    %v7119 = vunpack.c.h.b16 %v2525
    %v7120 = vunpack.c.l.b16 %v2526
    %v7121 = vunpack.c.h.b16 %v2526
    %v7122 = vunpack.c.l.b16 %v2527
    %v7123 = vunpack.c.h.b16 %v2527
    %v7124 = vunpack.c.l.b16 %v2528
    %v7125 = vunpack.c.h.b16 %v2528
    %v7126 = vunpack.c.l.b16 %v2529
    %v7127 = vunpack.c.h.b16 %v2529
    %v7128 = vunpack.c.l.b16 %v2530
    %v7129 = vunpack.c.h.b16 %v2530
    %v7130 = vunpack.c.l.b16 %v2531
    %v7131 = vunpack.c.h.b16 %v2531
    %v7132 = vunpack.c.l.b16 %v2532
    %v7133 = vunpack.c.h.b16 %v2532
    %v7134 = vunpack.c.l.b16 %v2533
    %v7135 = vunpack.c.h.b16 %v2533
    %v7136 = vunpack.c.l.b16 %v2534
    %v7137 = vunpack.c.h.b16 %v2534
    %v7138 = vunpack.c.l.b16 %v2535
    %v7139 = vunpack.c.h.b16 %v2535
    %v7140 = vunpack.c.l.b16 %v2536
    %v7141 = vunpack.c.h.b16 %v2536
    %v7142 = vunpack.c.l.b16 %v2537
    %v7143 = vunpack.c.h.b16 %v2537
    %v7144 = vunpack.c.l.b16 %v2538
    %v7145 = vunpack.c.h.b16 %v2538
    %v7146 = vunpack.c.l.b16 %v2539
    %v7147 = vunpack.c.h.b16 %v2539
    %v7148 = vunpack.c.l.b16 %v2540
    %v7149 = vunpack.c.h.b16 %v2540
    %v7150 = vunpack.c.l.b16 %v2541
    %v7151 = vunpack.c.h.b16 %v2541
    %v7152 = vunpack.c.l.b16 %v2542
    %v7153 = vunpack.c.h.b16 %v2542
    %v7154 = vunpack.c.l.b16 %v2543
    %v7155 = vunpack.c.h.b16 %v2543
    %v7156 = vunpack.c.l.b16 %v2544
    %v7157 = vunpack.c.h.b16 %v2544
    %v7158 = vunpack.c.l.b16 %v2545
    %v7159 = vunpack.c.h.b16 %v2545
    %v7160 = vunpack.c.l.b16 %v2546
    %v7161 = vunpack.c.h.b16 %v2546
    %v7162 = vunpack.c.l.b16 %v2547
    %v7163 = vunpack.c.h.b16 %v2547
    %v7164 = vunpack.c.l.b16 %v2548
    %v7165 = vunpack.c.h.b16 %v2548
    %v7166 = vunpack.c.l.b16 %v2549
    %v7167 = vunpack.c.h.b16 %v2549
    %v7168 = vunpack.c.l.b16 %v2550
    %v7169 = vunpack.c.h.b16 %v2550
    %v7170 = vunpack.c.l.b16 %v2551
    %v7171 = vunpack.c.h.b16 %v2551
    %v7172 = vunpack.c.l.b16 %v2552
    %v7173 = vunpack.c.h.b16 %v2552
    %v7174 = vunpack.c.l.b16 %v2553
    %v7175 = vunpack.c.h.b16 %v2553
    %v7176 = vunpack.c.l.b16 %v2554
    %v7177 = vunpack.c.h.b16 %v2554
    %v7178 = vunpack.c.l.b16 %v2555
    %v7179 = vunpack.c.h.b16 %v2555
    %v7180 = vunpack.c.l.b16 %v2556
    %v7181 = vunpack.c.h.b16 %v2556
    %v7182 = vunpack.c.l.b16 %v2557
    %v7183 = vunpack.c.h.b16 %v2557
    %v7184 = vunpack.c.l.b16 %v2558
    %v7185 = vunpack.c.h.b16 %v2558
    %v7186 = vunpack.c.l.b16 %v2559
    %v7187 = vunpack.c.h.b16 %v2559
    %v7188 = vunpack.c.l.b16 %v2560
    %v7189 = vunpack.c.h.b16 %v2560
    %v7190 = vunpack.c.l.b16 %v2561
    %v7191 = vunpack.c.h.b16 %v2561
    %v7192 = vunpack.c.l.b16 %v2562
    %v7193 = vunpack.c.h.b16 %v2562
    %v7194 = vunpack.c.l.b16 %v2563
    %v7195 = vunpack.c.h.b16 %v2563
    %v7196 = vunpack.c.l.b16 %v2564
    %v7197 = vunpack.c.h.b16 %v2564
    %v7198 = vunpack.c.l.b16 %v2565
    %v7199 = vunpack.c.h.b16 %v2565
    %v7200 = vunpack.c.l.b16 %v2566
    %v7201 = vunpack.c.h.b16 %v2566
    %v7202 = vunpack.c.l.b16 %v2567
    %v7203 = vunpack.c.h.b16 %v2567
    %v7204 = vunpack.c.l.b16 %v2568
    %v7205 = vunpack.c.h.b16 %v2568
    %v7206 = vunpack.c.l.b16 %v2569
    %v7207 = vunpack.c.h.b16 %v2569
    %v7208 = vunpack.c.l.b16 %v2570
    %v7209 = vunpack.c.h.b16 %v2570
    %v7210 = vunpack.c.l.b16 %v2571
    %v7211 = vunpack.c.h.b16 %v2571
    %v7212 = vunpack.c.l.b16 %v2572
    %v7213 = vunpack.c.h.b16 %v2572
    %v7214 = vunpack.c.l.b16 %v2573
    %v7215 = vunpack.c.h.b16 %v2573
    %v7216 = vunpack.c.l.b16 %v2574
    %v7217 = vunpack.c.h.b16 %v2574
    %v7218 = vunpack.c.l.b16 %v2575
    %v7219 = vunpack.c.h.b16 %v2575
    %v7220 = vunpack.c.l.b16 %v2576
    %v7221 = vunpack.c.h.b16 %v2576
    %v7222 = vunpack.c.l.b16 %v2577
    %v7223 = vunpack.c.h.b16 %v2577
    %v7224 = vunpack.c.l.b16 %v2578
    %v7225 = vunpack.c.h.b16 %v2578
    %v7226 = vunpack.c.l.b16 %v2579
    %v7227 = vunpack.c.h.b16 %v2579
    %v7228 = vunpack.c.l.b16 %v2580
    %v7229 = vunpack.c.h.b16 %v2580
    %v7230 = vunpack.c.l.b16 %v2581
    %v7231 = vunpack.c.h.b16 %v2581
    %v7232 = vunpack.c.l.b16 %v2582
    %v7233 = vunpack.c.h.b16 %v2582
    %v7234 = vunpack.c.l.b16 %v2583
    %v7235 = vunpack.c.h.b16 %v2583
    %v7236 = vunpack.c.l.b16 %v2584
    %v7237 = vunpack.c.h.b16 %v2584
    %v7238 = vunpack.c.l.b16 %v2585
    %v7239 = vunpack.c.h.b16 %v2585
    %v7240 = vunpack.c.l.b16 %v2586
    %v7241 = vunpack.c.h.b16 %v2586
    %v7242 = vunpack.c.l.b16 %v2587
    %v7243 = vunpack.c.h.b16 %v2587
    %v7244 = vunpack.c.l.b16 %v2588
    %v7245 = vunpack.c.h.b16 %v2588
    %v7246 = vunpack.c.l.b16 %v2589
    %v7247 = vunpack.c.h.b16 %v2589
    %v7248 = vunpack.c.l.b16 %v2590
    %v7249 = vunpack.c.h.b16 %v2590
    %v7250 = vunpack.c.l.b16 %v2591
    %v7251 = vunpack.c.h.b16 %v2591
    %v7252 = vunpack.c.l.b16 %v2592
    %v7253 = vunpack.c.h.b16 %v2592
    %v7254 = vunpack.c.l.b16 %v2593
    %v7255 = vunpack.c.h.b16 %v2593
    %v7256 = vunpack.c.l.b16 %v2594
    %v7257 = vunpack.c.h.b16 %v2594
    %v7258 = vunpack.c.l.b16 %v2595
    %v7259 = vunpack.c.h.b16 %v2595
    %v7260 = vunpack.c.l.b16 %v2596
    %v7261 = vunpack.c.h.b16 %v2596
    %v7262 = vunpack.c.l.b16 %v2597
    %v7263 = vunpack.c.h.b16 %v2597
    %v7264 = vunpack.c.l.b16 %v2598
    %v7265 = vunpack.c.h.b16 %v2598
    %v7266 = vunpack.c.l.b16 %v2599
    %v7267 = vunpack.c.h.b16 %v2599
    %v7268 = vunpack.c.l.b16 %v2600
    %v7269 = vunpack.c.h.b16 %v2600
    %v7270 = vunpack.c.l.b16 %v2601
    %v7271 = vunpack.c.h.b16 %v2601
    %v7272 = vunpack.c.l.b16 %v2602
    %v7273 = vunpack.c.h.b16 %v2602
    %v7274 = vunpack.c.l.b16 %v2603
    %v7275 = vunpack.c.h.b16 %v2603
    %v7276 = vunpack.c.l.b16 %v2604
    %v7277 = vunpack.c.h.b16 %v2604
    %v7278 = vunpack.c.l.b16 %v2605
    %v7279 = vunpack.c.h.b16 %v2605
    %v7280 = vunpack.c.l.b16 %v2606
    %v7281 = vunpack.c.h.b16 %v2606
    %v7282 = vunpack.c.l.b16 %v2607
    %v7283 = vunpack.c.h.b16 %v2607
    %v7284 = vunpack.c.l.b16 %v2608
    %v7285 = vunpack.c.h.b16 %v2608
    %v7286 = vunpack.c.l.b16 %v2609
    %v7287 = vunpack.c.h.b16 %v2609
    %v7288 = vunpack.c.l.b16 %v2610
    %v7289 = vunpack.c.h.b16 %v2610
    %v7290 = vunpack.c.l.b16 %v2611
    %v7291 = vunpack.c.h.b16 %v2611
    %v7292 = vunpack.c.l.b16 %v2612
    %v7293 = vunpack.c.h.b16 %v2612
    %v7294 = vunpack.c.l.b16 %v2613
    %v7295 = vunpack.c.h.b16 %v2613
    %v7296 = vunpack.c.l.b16 %v2614
    %v7297 = vunpack.c.h.b16 %v2614
    %v7298 = vunpack.c.l.b16 %v2615
    %v7299 = vunpack.c.h.b16 %v2615
    %v7300 = vunpack.c.l.b16 %v2616
    %v7301 = vunpack.c.h.b16 %v2616
    %v7302 = vunpack.c.l.b16 %v2617
    %v7303 = vunpack.c.h.b16 %v2617
    %v7304 = vunpack.c.l.b16 %v2618
    %v7305 = vunpack.c.h.b16 %v2618
    %v7306 = vunpack.c.l.b16 %v2619
    %v7307 = vunpack.c.h.b16 %v2619
    %v7308 = vunpack.c.l.b16 %v2620
    %v7309 = vunpack.c.h.b16 %v2620
    %v7310 = vunpack.c.l.b16 %v2621
    %v7311 = vunpack.c.h.b16 %v2621
    %v7312 = vunpack.c.l.b16 %v2622
    %v7313 = vunpack.c.h.b16 %v2622
    %v7314 = vunpack.c.l.b16 %v2623
    %v7315 = vunpack.c.h.b16 %v2623
    %v7316 = vunpack.c.l.b16 %v2624
    %v7317 = vunpack.c.h.b16 %v2624
    %v7318 = vunpack.c.l.b16 %v2625
    %v7319 = vunpack.c.h.b16 %v2625
    %v7320 = vunpack.c.l.b16 %v2626
    %v7321 = vunpack.c.h.b16 %v2626
    %v7322 = vunpack.c.l.b16 %v2627
    %v7323 = vunpack.c.h.b16 %v2627
    %v7324 = vunpack.c.l.b16 %v2628
    %v7325 = vunpack.c.h.b16 %v2628
    %v7326 = vunpack.c.l.b16 %v2629
    %v7327 = vunpack.c.h.b16 %v2629
    %v7328 = vunpack.c.l.b16 %v2630
    %v7329 = vunpack.c.h.b16 %v2630
    %v7330 = vunpack.c.l.b16 %v2631
    %v7331 = vunpack.c.h.b16 %v2631
    %v7332 = vunpack.c.l.b16 %v2632
    %v7333 = vunpack.c.h.b16 %v2632
    %v7334 = vunpack.c.l.b16 %v2633
    %v7335 = vunpack.c.h.b16 %v2633
    %v7336 = vunpack.c.l.b16 %v2634
    %v7337 = vunpack.c.h.b16 %v2634
    %v7338 = vunpack.c.l.b16 %v2635
    %v7339 = vunpack.c.h.b16 %v2635
    %v7340 = vunpack.c.l.b16 %v2636
    %v7341 = vunpack.c.h.b16 %v2636
    %v7342 = vunpack.c.l.b16 %v2637
    %v7343 = vunpack.c.h.b16 %v2637
    %v7344 = vunpack.c.l.b16 %v2638
    %v7345 = vunpack.c.h.b16 %v2638
    %v7346 = vunpack.c.l.b16 %v2639
    %v7347 = vunpack.c.h.b16 %v2639
    %v7348 = vunpack.c.l.b16 %v2640
    %v7349 = vunpack.c.h.b16 %v2640
    %v7350 = vunpack.c.l.b16 %v2641
    %v7351 = vunpack.c.h.b16 %v2641
    %v7352 = vunpack.c.l.b16 %v2642
    %v7353 = vunpack.c.h.b16 %v2642
    %v7354 = vunpack.c.l.b16 %v2643
    %v7355 = vunpack.c.h.b16 %v2643
    %v7356 = vunpack.c.l.b16 %v2644
    %v7357 = vunpack.c.h.b16 %v2644
    %v7358 = vunpack.c.l.b16 %v2645
    %v7359 = vunpack.c.h.b16 %v2645
    %v7360 = vunpack.c.l.b16 %v2646
    %v7361 = vunpack.c.h.b16 %v2646
    %v7362 = vunpack.c.l.b16 %v2647
    %v7363 = vunpack.c.h.b16 %v2647
    %v7364 = vunpack.c.l.b16 %v2648
    %v7365 = vunpack.c.h.b16 %v2648
    %v7366 = vunpack.c.l.b16 %v2649
    %v7367 = vunpack.c.h.b16 %v2649
    %v7368 = vunpack.c.l.b16 %v2650
    %v7369 = vunpack.c.h.b16 %v2650
    %v7370 = vunpack.c.l.b16 %v2651
    %v7371 = vunpack.c.h.b16 %v2651
    %v7372 = vunpack.c.l.b16 %v2652
    %v7373 = vunpack.c.h.b16 %v2652
    %v7374 = vunpack.c.l.b16 %v2653
    %v7375 = vunpack.c.h.b16 %v2653
    %v7376 = vunpack.c.l.b16 %v2654
    %v7377 = vunpack.c.h.b16 %v2654
    %v7378 = vunpack.c.l.b16 %v2655
    %v7379 = vunpack.c.h.b16 %v2655
    %v7380 = vunpack.c.l.b16 %v2656
    %v7381 = vunpack.c.h.b16 %v2656
    %v7382 = vunpack.c.l.b16 %v2657
    %v7383 = vunpack.c.h.b16 %v2657
    %v7384 = vunpack.c.l.b16 %v2658
    %v7385 = vunpack.c.h.b16 %v2658
    %v7386 = vunpack.c.l.b16 %v2659
    %v7387 = vunpack.c.h.b16 %v2659
    %v7388 = vunpack.c.l.b16 %v2660
    %v7389 = vunpack.c.h.b16 %v2660
    %v7390 = vunpack.c.l.b16 %v2661
    %v7391 = vunpack.c.h.b16 %v2661
    %v7392 = vunpack.c.l.b16 %v2662
    %v7393 = vunpack.c.h.b16 %v2662
    %v7394 = vunpack.c.l.b16 %v2663
    %v7395 = vunpack.c.h.b16 %v2663
    %v7396 = vunpack.c.l.b16 %v2664
    %v7397 = vunpack.c.h.b16 %v2664
    %v7398 = vunpack.c.l.b16 %v2665
    %v7399 = vunpack.c.h.b16 %v2665
    %v7400 = vunpack.c.l.b16 %v2666
    %v7401 = vunpack.c.h.b16 %v2666
    %v7402 = vunpack.c.l.b16 %v2667
    %v7403 = vunpack.c.h.b16 %v2667
    %v7404 = vunpack.c.l.b16 %v2668
    %v7405 = vunpack.c.h.b16 %v2668
    %v7406 = vunpack.c.l.b16 %v2669
    %v7407 = vunpack.c.h.b16 %v2669
    %v7408 = vunpack.c.l.b16 %v2670
    %v7409 = vunpack.c.h.b16 %v2670
    %v7410 = vunpack.c.l.b16 %v2671
    %v7411 = vunpack.c.h.b16 %v2671
    %v7412 = vunpack.c.l.b16 %v2672
    %v7413 = vunpack.c.h.b16 %v2672
    %v7414 = vunpack.c.l.b16 %v2673
    %v7415 = vunpack.c.h.b16 %v2673
    %v7416 = vunpack.c.l.b16 %v2674
    %v7417 = vunpack.c.h.b16 %v2674
    %v7418 = vunpack.c.l.b16 %v2675
    %v7419 = vunpack.c.h.b16 %v2675
    %v7420 = vunpack.c.l.b16 %v2676
    %v7421 = vunpack.c.h.b16 %v2676
    %v7422 = vunpack.c.l.b16 %v2677
    %v7423 = vunpack.c.h.b16 %v2677
    %v7424 = vunpack.c.l.b16 %v2678
    %v7425 = vunpack.c.h.b16 %v2678
    %v7426 = vunpack.c.l.b16 %v2679
    %v7427 = vunpack.c.h.b16 %v2679
    %v7428 = vunpack.c.l.b16 %v2680
    %v7429 = vunpack.c.h.b16 %v2680
    %v7430 = vunpack.c.l.b16 %v2681
    %v7431 = vunpack.c.h.b16 %v2681
    %v7432 = vunpack.c.l.b16 %v2682
    %v7433 = vunpack.c.h.b16 %v2682
    %v7434 = vunpack.c.l.b16 %v2683
    %v7435 = vunpack.c.h.b16 %v2683
    %v7436 = vunpack.c.l.b16 %v2684
    %v7437 = vunpack.c.h.b16 %v2684
    %v7438 = vunpack.c.l.b16 %v2685
    %v7439 = vunpack.c.h.b16 %v2685
    %v7440 = vunpack.c.l.b16 %v2686
    %v7441 = vunpack.c.h.b16 %v2686
    %v7442 = vunpack.c.l.b16 %v2687
    %v7443 = vunpack.c.h.b16 %v2687
    %v7444 = vunpack.c.l.b16 %v2688
    %v7445 = vunpack.c.h.b16 %v2688
    %v7446 = vunpack.c.l.b16 %v2689
    %v7447 = vunpack.c.h.b16 %v2689
    %v7448 = vunpack.c.l.b16 %v2690
    %v7449 = vunpack.c.h.b16 %v2690
    %v7450 = vunpack.c.l.b16 %v2691
    %v7451 = vunpack.c.h.b16 %v2691
    %v7452 = vunpack.c.l.b16 %v2692
    %v7453 = vunpack.c.h.b16 %v2692
    %v7454 = vunpack.c.l.b16 %v2693
    %v7455 = vunpack.c.h.b16 %v2693
    %v7456 = vunpack.c.l.b16 %v2694
    %v7457 = vunpack.c.h.b16 %v2694
    %v7458 = vunpack.c.l.b16 %v2695
    %v7459 = vunpack.c.h.b16 %v2695
    %v7460 = vunpack.c.l.b16 %v2696
    %v7461 = vunpack.c.h.b16 %v2696
    %v7462 = vunpack.c.l.b16 %v2697
    %v7463 = vunpack.c.h.b16 %v2697
    %v7464 = vunpack.c.l.b16 %v2698
    %v7465 = vunpack.c.h.b16 %v2698
    %v7466 = vunpack.c.l.b16 %v2699
    %v7467 = vunpack.c.h.b16 %v2699
    %v7468 = vunpack.c.l.b16 %v2700
    %v7469 = vunpack.c.h.b16 %v2700
    %v7470 = vunpack.c.l.b16 %v2701
    %v7471 = vunpack.c.h.b16 %v2701
    %v7472 = vunpack.c.l.b16 %v2702
    %v7473 = vunpack.c.h.b16 %v2702
    %v7474 = vunpack.c.l.b16 %v2703
    %v7475 = vunpack.c.h.b16 %v2703
    %v7476 = vunpack.c.l.b16 %v2704
    %v7477 = vunpack.c.h.b16 %v2704
    %v7478 = vunpack.c.l.b16 %v2705
    %v7479 = vunpack.c.h.b16 %v2705
    %v7480 = vunpack.c.l.b16 %v2706
    %v7481 = vunpack.c.h.b16 %v2706
    %v7482 = vunpack.c.l.b16 %v2707
    %v7483 = vunpack.c.h.b16 %v2707
    %v7484 = vunpack.c.l.b16 %v2708
    %v7485 = vunpack.c.h.b16 %v2708
    %v7486 = vunpack.c.l.b16 %v2709
    %v7487 = vunpack.c.h.b16 %v2709
    %v7488 = vunpack.c.l.b16 %v2710
    %v7489 = vunpack.c.h.b16 %v2710
    %v7490 = vunpack.c.l.b16 %v2711
    %v7491 = vunpack.c.h.b16 %v2711
    %v7492 = vunpack.c.l.b16 %v2712
    %v7493 = vunpack.c.h.b16 %v2712
    %v7494 = vunpack.c.l.b16 %v2713
    %v7495 = vunpack.c.h.b16 %v2713
    %v7496 = vunpack.c.l.b16 %v2714
    %v7497 = vunpack.c.h.b16 %v2714
    %v7498 = vunpack.c.l.b16 %v2715
    %v7499 = vunpack.c.h.b16 %v2715
    %v7500 = vunpack.c.l.b16 %v2716
    %v7501 = vunpack.c.h.b16 %v2716
    %v7502 = vunpack.c.l.b16 %v2717
    %v7503 = vunpack.c.h.b16 %v2717
    %v7504 = vunpack.c.l.b16 %v2718
    %v7505 = vunpack.c.h.b16 %v2718
    %v7506 = vunpack.c.l.b16 %v2719
    %v7507 = vunpack.c.h.b16 %v2719
    %v7508 = vunpack.c.l.b16 %v2720
    %v7509 = vunpack.c.h.b16 %v2720
    %v7510 = vunpack.c.l.b16 %v2721
    %v7511 = vunpack.c.h.b16 %v2721
    %v7512 = vunpack.c.l.b16 %v2722
    %v7513 = vunpack.c.h.b16 %v2722
    %v7514 = vunpack.c.l.b16 %v2723
    %v7515 = vunpack.c.h.b16 %v2723
    %v7516 = vunpack.c.l.b16 %v2724
    %v7517 = vunpack.c.h.b16 %v2724
    %v7518 = vunpack.c.l.b16 %v2725
    %v7519 = vunpack.c.h.b16 %v2725
    %v7520 = vunpack.c.l.b16 %v2726
    %v7521 = vunpack.c.h.b16 %v2726
    %v7522 = vunpack.c.l.b16 %v2727
    %v7523 = vunpack.c.h.b16 %v2727
    %v7524 = vunpack.c.l.b16 %v2728
    %v7525 = vunpack.c.h.b16 %v2728
    %v7526 = vunpack.c.l.b16 %v2729
    %v7527 = vunpack.c.h.b16 %v2729
    %v7528 = vunpack.c.l.b16 %v2730
    %v7529 = vunpack.c.h.b16 %v2730
    %v7530 = vunpack.c.l.b16 %v2731
    %v7531 = vunpack.c.h.b16 %v2731
    %v7532 = vunpack.c.l.b16 %v2732
    %v7533 = vunpack.c.h.b16 %v2732
    %v7534 = vunpack.c.l.b16 %v2733
    %v7535 = vunpack.c.h.b16 %v2733
    %v7536 = vunpack.c.l.b16 %v2734
    %v7537 = vunpack.c.h.b16 %v2734
    %v7538 = vunpack.c.l.b16 %v2735
    %v7539 = vunpack.c.h.b16 %v2735
    %v7540 = vunpack.c.l.b16 %v2736
    %v7541 = vunpack.c.h.b16 %v2736
    %v7542 = vunpack.c.l.b16 %v2737
    %v7543 = vunpack.c.h.b16 %v2737
    %v7544 = vunpack.c.l.b16 %v2738
    %v7545 = vunpack.c.h.b16 %v2738
    %v7546 = vunpack.c.l.b16 %v2739
    %v7547 = vunpack.c.h.b16 %v2739
    %v7548 = vunpack.c.l.b16 %v2740
    %v7549 = vunpack.c.h.b16 %v2740
    %v7550 = vunpack.c.l.b16 %v2741
    %v7551 = vunpack.c.h.b16 %v2741
    %v7552 = vunpack.c.l.b16 %v2742
    %v7553 = vunpack.c.h.b16 %v2742
    %v7554 = vunpack.c.l.b16 %v2743
    %v7555 = vunpack.c.h.b16 %v2743
    %v7556 = vunpack.c.l.b16 %v2744
    %v7557 = vunpack.c.h.b16 %v2744
    %v7558 = vunpack.c.l.b16 %v2745
    %v7559 = vunpack.c.h.b16 %v2745
    %v7560 = vunpack.c.l.b16 %v2746
    %v7561 = vunpack.c.h.b16 %v2746
    %v7562 = vunpack.c.l.b16 %v2747
    %v7563 = vunpack.c.h.b16 %v2747
    %v7564 = vunpack.c.l.b16 %v2748
    %v7565 = vunpack.c.h.b16 %v2748
    %v7566 = vunpack.c.l.b16 %v2749
    %v7567 = vunpack.c.h.b16 %v2749
    %v7568 = vunpack.c.l.b16 %v2750
    %v7569 = vunpack.c.h.b16 %v2750
    %v7570 = vunpack.c.l.b16 %v2751
    %v7571 = vunpack.c.h.b16 %v2751
    %v7572 = vunpack.c.l.b16 %v2752
    %v7573 = vunpack.c.h.b16 %v2752
    %v7574 = vunpack.c.l.b16 %v2753
    %v7575 = vunpack.c.h.b16 %v2753
    %v7576 = vunpack.c.l.b16 %v2754
    %v7577 = vunpack.c.h.b16 %v2754
    %v7578 = vunpack.c.l.b16 %v2755
    %v7579 = vunpack.c.h.b16 %v2755
    %v7580 = vunpack.c.l.b16 %v2756
    %v7581 = vunpack.c.h.b16 %v2756
    %v7582 = vunpack.c.l.b16 %v2757
    %v7583 = vunpack.c.h.b16 %v2757
    %v7584 = vunpack.c.l.b16 %v2758
    %v7585 = vunpack.c.h.b16 %v2758
    %v7586 = vunpack.c.l.b16 %v2759
    %v7587 = vunpack.c.h.b16 %v2759
    %v7588 = vunpack.c.l.b16 %v2760
    %v7589 = vunpack.c.h.b16 %v2760
    %v7590 = vunpack.c.l.b16 %v2761
    %v7591 = vunpack.c.h.b16 %v2761
    %v7592 = vunpack.c.l.b16 %v2762
    %v7593 = vunpack.c.h.b16 %v2762
    %v7594 = vunpack.c.l.b16 %v2763
    %v7595 = vunpack.c.h.b16 %v2763
    %v7596 = vunpack.c.l.b16 %v2764
    %v7597 = vunpack.c.h.b16 %v2764
    %v7598 = vunpack.c.l.b16 %v2765
    %v7599 = vunpack.c.h.b16 %v2765
    %v7600 = vunpack.c.l.b16 %v2766
    %v7601 = vunpack.c.h.b16 %v2766
    %v7602 = vunpack.c.l.b16 %v2767
    %v7603 = vunpack.c.h.b16 %v2767
    %v7604 = vunpack.c.l.b16 %v2768
    %v7605 = vunpack.c.h.b16 %v2768
    %v7606 = vunpack.c.l.b16 %v2769
    %v7607 = vunpack.c.h.b16 %v2769
    %v7608 = vunpack.c.l.b16 %v2770
    %v7609 = vunpack.c.h.b16 %v2770
    %v7610 = vunpack.c.l.b16 %v2771
    %v7611 = vunpack.c.h.b16 %v2771
    %v7612 = vunpack.c.l.b16 %v2772
    %v7613 = vunpack.c.h.b16 %v2772
    %v7614 = vunpack.c.l.b16 %v2773
    %v7615 = vunpack.c.h.b16 %v2773
    %v7616 = vunpack.c.l.b16 %v2774
    %v7617 = vunpack.c.h.b16 %v2774
    %v7618 = vunpack.c.l.b16 %v2775
    %v7619 = vunpack.c.h.b16 %v2775
    %v7620 = vunpack.c.l.b16 %v2776
    %v7621 = vunpack.c.h.b16 %v2776
    %v7622 = vunpack.c.l.b16 %v2777
    %v7623 = vunpack.c.h.b16 %v2777
    %v7624 = vunpack.c.l.b16 %v2778
    %v7625 = vunpack.c.h.b16 %v2778
    %v7626 = vunpack.c.l.b16 %v2779
    %v7627 = vunpack.c.h.b16 %v2779
    %v7628 = vunpack.c.l.b16 %v2780
    %v7629 = vunpack.c.h.b16 %v2780
    %v7630 = vunpack.c.l.b16 %v2781
    %v7631 = vunpack.c.h.b16 %v2781
    %v7632 = vunpack.c.l.b16 %v2782
    %v7633 = vunpack.c.h.b16 %v2782
    %v7634 = vunpack.c.l.b16 %v2783
    %v7635 = vunpack.c.h.b16 %v2783
    %v7636 = vunpack.c.l.b16 %v2784
    %v7637 = vunpack.c.h.b16 %v2784
    %v7638 = vunpack.c.l.b16 %v2785
    %v7639 = vunpack.c.h.b16 %v2785
    %v7640 = vunpack.c.l.b16 %v2786
    %v7641 = vunpack.c.h.b16 %v2786
    %v7642 = vunpack.c.l.b16 %v2787
    %v7643 = vunpack.c.h.b16 %v2787
    %v7644 = vunpack.c.l.b16 %v2788
    %v7645 = vunpack.c.h.b16 %v2788
    %v7646 = vunpack.c.l.b16 %v2789
    %v7647 = vunpack.c.h.b16 %v2789
    %v7648 = vunpack.c.l.b16 %v2790
    %v7649 = vunpack.c.h.b16 %v2790
    %v7650 = vunpack.c.l.b16 %v2791
    %v7651 = vunpack.c.h.b16 %v2791
    %v7652 = vunpack.c.l.b16 %v2792
    %v7653 = vunpack.c.h.b16 %v2792
    %v7654 = vunpack.c.l.b16 %v2793
    %v7655 = vunpack.c.h.b16 %v2793
    %v7656 = vunpack.c.l.b16 %v2794
    %v7657 = vunpack.c.h.b16 %v2794
    %v7658 = vunpack.c.l.b16 %v2795
    %v7659 = vunpack.c.h.b16 %v2795
    %v7660 = vunpack.c.l.b16 %v2796
    %v7661 = vunpack.c.h.b16 %v2796
    %v7662 = vunpack.c.l.b16 %v2797
    %v7663 = vunpack.c.h.b16 %v2797
    %v7664 = vunpack.c.l.b16 %v2798
    %v7665 = vunpack.c.h.b16 %v2798
    %v7666 = vunpack.c.l.b16 %v2799
    %v7667 = vunpack.c.h.b16 %v2799
    %v7668 = vunpack.c.l.b16 %v2800
    %v7669 = vunpack.c.h.b16 %v2800
    %v7670 = vunpack.c.l.b16 %v2801
    %v7671 = vunpack.c.h.b16 %v2801
    %v7672 = vunpack.c.l.b16 %v2802
    %v7673 = vunpack.c.h.b16 %v2802
    %v7674 = vunpack.c.l.b16 %v2803
    %v7675 = vunpack.c.h.b16 %v2803
    %v7676 = vunpack.c.l.b16 %v2804
    %v7677 = vunpack.c.h.b16 %v2804
    %v7678 = vunpack.c.l.b16 %v2805
    %v7679 = vunpack.c.h.b16 %v2805
    %v7680 = vunpack.c.l.b16 %v2806
    %v7681 = vunpack.c.h.b16 %v2806
    %v7682 = vunpack.c.l.b16 %v2807
    %v7683 = vunpack.c.h.b16 %v2807
    %v7684 = vunpack.c.l.b16 %v2808
    %v7685 = vunpack.c.h.b16 %v2808
    %v7686 = vunpack.c.l.b16 %v2809
    %v7687 = vunpack.c.h.b16 %v2809
    %v7688 = vunpack.c.l.b16 %v2810
    %v7689 = vunpack.c.h.b16 %v2810
    %v7690 = vunpack.c.l.b16 %v2811
    %v7691 = vunpack.c.h.b16 %v2811
    %v7692 = vunpack.c.l.b16 %v2812
    %v7693 = vunpack.c.h.b16 %v2812
    %v7694 = vunpack.c.l.b16 %v2813
    %v7695 = vunpack.c.h.b16 %v2813
    %v7696 = vunpack.c.l.b16 %v2814
    %v7697 = vunpack.c.h.b16 %v2814
    %v7698 = vunpack.c.l.b16 %v2815
    %v7699 = vunpack.c.h.b16 %v2815
    %v7700 = vunpack.c.l.b16 %v2816
    %v7701 = vunpack.c.h.b16 %v2816
    %v7702 = vunpack.c.l.b16 %v2817
    %v7703 = vunpack.c.h.b16 %v2817
    %v7704 = vunpack.c.l.b16 %v2818
    %v7705 = vunpack.c.h.b16 %v2818
    %v7706 = vunpack.c.l.b16 %v2819
    %v7707 = vunpack.c.h.b16 %v2819
    %v7708 = vunpack.c.l.b16 %v2820
    %v7709 = vunpack.c.h.b16 %v2820
    %v7710 = vunpack.c.l.b16 %v2821
    %v7711 = vunpack.c.h.b16 %v2821
    %v7712 = vunpack.c.l.b16 %v2822
    %v7713 = vunpack.c.h.b16 %v2822
    %v7714 = vunpack.c.l.b16 %v2823
    %v7715 = vunpack.c.h.b16 %v2823
    %v7716 = vunpack.c.l.b16 %v2824
    %v7717 = vunpack.c.h.b16 %v2824
    %v7718 = vunpack.c.l.b16 %v2825
    %v7719 = vunpack.c.h.b16 %v2825
    %v7720 = vunpack.c.l.b16 %v2826
    %v7721 = vunpack.c.h.b16 %v2826
    %v7722 = vunpack.c.l.b16 %v2827
    %v7723 = vunpack.c.h.b16 %v2827
    %v7724 = vunpack.c.l.b16 %v2828
    %v7725 = vunpack.c.h.b16 %v2828
    %v7726 = vunpack.c.l.b16 %v2829
    %v7727 = vunpack.c.h.b16 %v2829
    %v7728 = vunpack.c.l.b16 %v2830
    %v7729 = vunpack.c.h.b16 %v2830
    %v7730 = vunpack.c.l.b16 %v2831
    %v7731 = vunpack.c.h.b16 %v2831
    %v7732 = vunpack.c.l.b16 %v2832
    %v7733 = vunpack.c.h.b16 %v2832
    %v7734 = vunpack.c.l.b16 %v2833
    %v7735 = vunpack.c.h.b16 %v2833
    %v7736 = vunpack.c.l.b16 %v2834
    %v7737 = vunpack.c.h.b16 %v2834
    %v7738 = vunpack.c.l.b16 %v2835
    %v7739 = vunpack.c.h.b16 %v2835
    %v7740 = vunpack.c.l.b16 %v2836
    %v7741 = vunpack.c.h.b16 %v2836
    %v7742 = vunpack.c.l.b16 %v2837
    %v7743 = vunpack.c.h.b16 %v2837
    %v7744 = vunpack.c.l.b16 %v2838
    %v7745 = vunpack.c.h.b16 %v2838
    %v7746 = vunpack.c.l.b16 %v2839
    %v7747 = vunpack.c.h.b16 %v2839
    %v7748 = vunpack.c.l.b16 %v2840
    %v7749 = vunpack.c.h.b16 %v2840
    %v7750 = vunpack.c.l.b16 %v2841
    %v7751 = vunpack.c.h.b16 %v2841
    %v7752 = vunpack.c.l.b16 %v2842
    %v7753 = vunpack.c.h.b16 %v2842
    %v7754 = vunpack.c.l.b16 %v2843
    %v7755 = vunpack.c.h.b16 %v2843
    %v7756 = vunpack.c.l.b16 %v2844
    %v7757 = vunpack.c.h.b16 %v2844
    %v7758 = vpack.c.b16 %v6738, %v6734
    %v7759 = vpack.c.b16 %v6739, %v6735
    %v7760 = vpack.c.b16 %v6740, %v6736
    %v7761 = vpack.c.b16 %v6741, %v6737
    %v7762 = vpack.c.b16 %v6746, %v6742
    %v7763 = vpack.c.b16 %v6747, %v6743
    %v7764 = vpack.c.b16 %v6748, %v6744
    %v7765 = vpack.c.b16 %v6749, %v6745
    %v7766 = vpack.c.b16 %v6754, %v6750
    %v7767 = vpack.c.b16 %v6755, %v6751
    %v7768 = vpack.c.b16 %v6756, %v6752
    %v7769 = vpack.c.b16 %v6757, %v6753
    %v7770 = vpack.c.b16 %v6762, %v6758
    %v7771 = vpack.c.b16 %v6763, %v6759
    %v7772 = vpack.c.b16 %v6764, %v6760
    %v7773 = vpack.c.b16 %v6765, %v6761
    %v7774 = vpack.c.b16 %v6770, %v6766
    %v7775 = vpack.c.b16 %v6771, %v6767
    %v7776 = vpack.c.b16 %v6772, %v6768
    %v7777 = vpack.c.b16 %v6773, %v6769
    %v7778 = vpack.c.b16 %v6778, %v6774
    %v7779 = vpack.c.b16 %v6779, %v6775
    %v7780 = vpack.c.b16 %v6780, %v6776
    %v7781 = vpack.c.b16 %v6781, %v6777
    %v7782 = vpack.c.b16 %v6786, %v6782
    %v7783 = vpack.c.b16 %v6787, %v6783
    %v7784 = vpack.c.b16 %v6788, %v6784
    %v7785 = vpack.c.b16 %v6789, %v6785
    %v7786 = vpack.c.b16 %v6794, %v6790
    %v7787 = vpack.c.b16 %v6795, %v6791
    %v7788 = vpack.c.b16 %v6796, %v6792
    %v7789 = vpack.c.b16 %v6797, %v6793
    %v7790 = vpack.c.b16 %v6802, %v6798
    %v7791 = vpack.c.b16 %v6803, %v6799
    %v7792 = vpack.c.b16 %v6804, %v6800
    %v7793 = vpack.c.b16 %v6805, %v6801
    %v7794 = vpack.c.b16 %v6810, %v6806
    %v7795 = vpack.c.b16 %v6811, %v6807
    %v7796 = vpack.c.b16 %v6812, %v6808
    %v7797 = vpack.c.b16 %v6813, %v6809
    %v7798 = vpack.c.b16 %v6818, %v6814
    %v7799 = vpack.c.b16 %v6819, %v6815
    %v7800 = vpack.c.b16 %v6820, %v6816
    %v7801 = vpack.c.b16 %v6821, %v6817
    %v7802 = vpack.c.b16 %v6826, %v6822
    %v7803 = vpack.c.b16 %v6827, %v6823
    %v7804 = vpack.c.b16 %v6828, %v6824
    %v7805 = vpack.c.b16 %v6829, %v6825
    %v7806 = vpack.c.b16 %v6834, %v6830
    %v7807 = vpack.c.b16 %v6835, %v6831
    %v7808 = vpack.c.b16 %v6836, %v6832
    %v7809 = vpack.c.b16 %v6837, %v6833
    %v7810 = vpack.c.b16 %v6842, %v6838
    %v7811 = vpack.c.b16 %v6843, %v6839
    %v7812 = vpack.c.b16 %v6844, %v6840
    %v7813 = vpack.c.b16 %v6845, %v6841
    %v7814 = vpack.c.b16 %v6850, %v6846
    %v7815 = vpack.c.b16 %v6851, %v6847
    %v7816 = vpack.c.b16 %v6852, %v6848
    %v7817 = vpack.c.b16 %v6853, %v6849
    %v7818 = vpack.c.b16 %v6858, %v6854
    %v7819 = vpack.c.b16 %v6859, %v6855
    %v7820 = vpack.c.b16 %v6860, %v6856
    %v7821 = vpack.c.b16 %v6861, %v6857
    %v7822 = vpack.c.b16 %v6866, %v6862
    %v7823 = vpack.c.b16 %v6867, %v6863
    %v7824 = vpack.c.b16 %v6868, %v6864
    %v7825 = vpack.c.b16 %v6869, %v6865
    %v7826 = vpack.c.b16 %v6874, %v6870
    %v7827 = vpack.c.b16 %v6875, %v6871
    %v7828 = vpack.c.b16 %v6876, %v6872
    %v7829 = vpack.c.b16 %v6877, %v6873
    %v7830 = vpack.c.b16 %v6882, %v6878
    %v7831 = vpack.c.b16 %v6883, %v6879
    %v7832 = vpack.c.b16 %v6884, %v6880
    %v7833 = vpack.c.b16 %v6885, %v6881
    %v7834 = vpack.c.b16 %v6890, %v6886
    %v7835 = vpack.c.b16 %v6891, %v6887
    %v7836 = vpack.c.b16 %v6892, %v6888
    %v7837 = vpack.c.b16 %v6893, %v6889
    %v7838 = vpack.c.b16 %v6898, %v6894
    %v7839 = vpack.c.b16 %v6899, %v6895
    %v7840 = vpack.c.b16 %v6900, %v6896
    %v7841 = vpack.c.b16 %v6901, %v6897
    %v7842 = vpack.c.b16 %v6906, %v6902
    %v7843 = vpack.c.b16 %v6907, %v6903
    %v7844 = vpack.c.b16 %v6908, %v6904
    %v7845 = vpack.c.b16 %v6909, %v6905
    %v7846 = vpack.c.b16 %v6914, %v6910
    %v7847 = vpack.c.b16 %v6915, %v6911
    %v7848 = vpack.c.b16 %v6916, %v6912
    %v7849 = vpack.c.b16 %v6917, %v6913
    %v7850 = vpack.c.b16 %v6922, %v6918
    %v7851 = vpack.c.b16 %v6923, %v6919
    %v7852 = vpack.c.b16 %v6924, %v6920
    %v7853 = vpack.c.b16 %v6925, %v6921
    %v7854 = vpack.c.b16 %v6930, %v6926
    %v7855 = vpack.c.b16 %v6931, %v6927
    %v7856 = vpack.c.b16 %v6932, %v6928
    %v7857 = vpack.c.b16 %v6933, %v6929
    %v7858 = vpack.c.b16 %v6938, %v6934
    %v7859 = vpack.c.b16 %v6939, %v6935
    %v7860 = vpack.c.b16 %v6940, %v6936
    %v7861 = vpack.c.b16 %v6941, %v6937
    %v7862 = vpack.c.b16 %v6946, %v6942
    %v7863 = vpack.c.b16 %v6947, %v6943
    %v7864 = vpack.c.b16 %v6948, %v6944
    %v7865 = vpack.c.b16 %v6949, %v6945
    %v7866 = vpack.c.b16 %v6954, %v6950
    %v7867 = vpack.c.b16 %v6955, %v6951
    %v7868 = vpack.c.b16 %v6956, %v6952
    %v7869 = vpack.c.b16 %v6957, %v6953
    %v7870 = vpack.c.b16 %v6962, %v6958
    %v7871 = vpack.c.b16 %v6963, %v6959
    %v7872 = vpack.c.b16 %v6964, %v6960
    %v7873 = vpack.c.b16 %v6965, %v6961
    %v7874 = vpack.c.b16 %v6970, %v6966
    %v7875 = vpack.c.b16 %v6971, %v6967
    %v7876 = vpack.c.b16 %v6972, %v6968
    %v7877 = vpack.c.b16 %v6973, %v6969
    %v7878 = vpack.c.b16 %v6978, %v6974
    %v7879 = vpack.c.b16 %v6979, %v6975
    %v7880 = vpack.c.b16 %v6980, %v6976
    %v7881 = vpack.c.b16 %v6981, %v6977
    %v7882 = vpack.c.b16 %v6986, %v6982
    %v7883 = vpack.c.b16 %v6987, %v6983
    %v7884 = vpack.c.b16 %v6988, %v6984
    %v7885 = vpack.c.b16 %v6989, %v6985
    %v7886 = vpack.c.b16 %v6994, %v6990
    %v7887 = vpack.c.b16 %v6995, %v6991
    %v7888 = vpack.c.b16 %v6996, %v6992
    %v7889 = vpack.c.b16 %v6997, %v6993
    %v7890 = vpack.c.b16 %v7002, %v6998
    %v7891 = vpack.c.b16 %v7003, %v6999
    %v7892 = vpack.c.b16 %v7004, %v7000
    %v7893 = vpack.c.b16 %v7005, %v7001
    %v7894 = vpack.c.b16 %v7010, %v7006
    %v7895 = vpack.c.b16 %v7011, %v7007
    %v7896 = vpack.c.b16 %v7012, %v7008
    %v7897 = vpack.c.b16 %v7013, %v7009
    %v7898 = vpack.c.b16 %v7018, %v7014
    %v7899 = vpack.c.b16 %v7019, %v7015
    %v7900 = vpack.c.b16 %v7020, %v7016
    %v7901 = vpack.c.b16 %v7021, %v7017
    %v7902 = vpack.c.b16 %v7026, %v7022
    %v7903 = vpack.c.b16 %v7027, %v7023
    %v7904 = vpack.c.b16 %v7028, %v7024
    %v7905 = vpack.c.b16 %v7029, %v7025
    %v7906 = vpack.c.b16 %v7034, %v7030
    %v7907 = vpack.c.b16 %v7035, %v7031
    %v7908 = vpack.c.b16 %v7036, %v7032
    %v7909 = vpack.c.b16 %v7037, %v7033
    %v7910 = vpack.c.b16 %v7042, %v7038
    %v7911 = vpack.c.b16 %v7043, %v7039
    %v7912 = vpack.c.b16 %v7044, %v7040
    %v7913 = vpack.c.b16 %v7045, %v7041
    %v7914 = vpack.c.b16 %v7050, %v7046
    %v7915 = vpack.c.b16 %v7051, %v7047
    %v7916 = vpack.c.b16 %v7052, %v7048
    %v7917 = vpack.c.b16 %v7053, %v7049
    %v7918 = vpack.c.b16 %v7058, %v7054
    %v7919 = vpack.c.b16 %v7059, %v7055
    %v7920 = vpack.c.b16 %v7060, %v7056
    %v7921 = vpack.c.b16 %v7061, %v7057
    %v7922 = vpack.c.b16 %v7066, %v7062
    %v7923 = vpack.c.b16 %v7067, %v7063
    %v7924 = vpack.c.b16 %v7068, %v7064
    %v7925 = vpack.c.b16 %v7069, %v7065
    %v7926 = vpack.c.b16 %v7074, %v7070
    %v7927 = vpack.c.b16 %v7075, %v7071
    %v7928 = vpack.c.b16 %v7076, %v7072
    %v7929 = vpack.c.b16 %v7077, %v7073
    %v7930 = vpack.c.b16 %v7082, %v7078
    %v7931 = vpack.c.b16 %v7083, %v7079
    %v7932 = vpack.c.b16 %v7084, %v7080
    %v7933 = vpack.c.b16 %v7085, %v7081
    %v7934 = vpack.c.b16 %v7090, %v7086
    %v7935 = vpack.c.b16 %v7091, %v7087
    %v7936 = vpack.c.b16 %v7092, %v7088
    %v7937 = vpack.c.b16 %v7093, %v7089
    %v7938 = vpack.c.b16 %v7098, %v7094
    %v7939 = vpack.c.b16 %v7099, %v7095
    %v7940 = vpack.c.b16 %v7100, %v7096
    %v7941 = vpack.c.b16 %v7101, %v7097
    %v7942 = vpack.c.b16 %v7106, %v7102
    %v7943 = vpack.c.b16 %v7107, %v7103
    %v7944 = vpack.c.b16 %v7108, %v7104
    %v7945 = vpack.c.b16 %v7109, %v7105
    %v7946 = vpack.c.b16 %v7114, %v7110
    %v7947 = vpack.c.b16 %v7115, %v7111
    %v7948 = vpack.c.b16 %v7116, %v7112
    %v7949 = vpack.c.b16 %v7117, %v7113
    %v7950 = vpack.c.b16 %v7122, %v7118
    %v7951 = vpack.c.b16 %v7123, %v7119
    %v7952 = vpack.c.b16 %v7124, %v7120
    %v7953 = vpack.c.b16 %v7125, %v7121
    %v7954 = vpack.c.b16 %v7130, %v7126
    %v7955 = vpack.c.b16 %v7131, %v7127
    %v7956 = vpack.c.b16 %v7132, %v7128
    %v7957 = vpack.c.b16 %v7133, %v7129
    %v7958 = vpack.c.b16 %v7138, %v7134
    %v7959 = vpack.c.b16 %v7139, %v7135
    %v7960 = vpack.c.b16 %v7140, %v7136
    %v7961 = vpack.c.b16 %v7141, %v7137
    %v7962 = vpack.c.b16 %v7146, %v7142
    %v7963 = vpack.c.b16 %v7147, %v7143
    %v7964 = vpack.c.b16 %v7148, %v7144
    %v7965 = vpack.c.b16 %v7149, %v7145
    %v7966 = vpack.c.b16 %v7154, %v7150
    %v7967 = vpack.c.b16 %v7155, %v7151
    %v7968 = vpack.c.b16 %v7156, %v7152
    %v7969 = vpack.c.b16 %v7157, %v7153
    %v7970 = vpack.c.b16 %v7162, %v7158
    %v7971 = vpack.c.b16 %v7163, %v7159
    %v7972 = vpack.c.b16 %v7164, %v7160
    %v7973 = vpack.c.b16 %v7165, %v7161
    %v7974 = vpack.c.b16 %v7170, %v7166
    %v7975 = vpack.c.b16 %v7171, %v7167
    %v7976 = vpack.c.b16 %v7172, %v7168
    %v7977 = vpack.c.b16 %v7173, %v7169
    %v7978 = vpack.c.b16 %v7178, %v7174
    %v7979 = vpack.c.b16 %v7179, %v7175
    %v7980 = vpack.c.b16 %v7180, %v7176
    %v7981 = vpack.c.b16 %v7181, %v7177
    %v7982 = vpack.c.b16 %v7186, %v7182
    %v7983 = vpack.c.b16 %v7187, %v7183
    %v7984 = vpack.c.b16 %v7188, %v7184
    %v7985 = vpack.c.b16 %v7189, %v7185
    %v7986 = vpack.c.b16 %v7194, %v7190
    %v7987 = vpack.c.b16 %v7195, %v7191
    %v7988 = vpack.c.b16 %v7196, %v7192
    %v7989 = vpack.c.b16 %v7197, %v7193
    %v7990 = vpack.c.b16 %v7202, %v7198
    %v7991 = vpack.c.b16 %v7203, %v7199
    %v7992 = vpack.c.b16 %v7204, %v7200
    %v7993 = vpack.c.b16 %v7205, %v7201
    %v7994 = vpack.c.b16 %v7210, %v7206
    %v7995 = vpack.c.b16 %v7211, %v7207
    %v7996 = vpack.c.b16 %v7212, %v7208
    %v7997 = vpack.c.b16 %v7213, %v7209
    %v7998 = vpack.c.b16 %v7218, %v7214
    %v7999 = vpack.c.b16 %v7219, %v7215
    %v8000 = vpack.c.b16 %v7220, %v7216
    %v8001 = vpack.c.b16 %v7221, %v7217
    %v8002 = vpack.c.b16 %v7226, %v7222
    %v8003 = vpack.c.b16 %v7227, %v7223
    %v8004 = vpack.c.b16 %v7228, %v7224
    %v8005 = vpack.c.b16 %v7229, %v7225
    %v8006 = vpack.c.b16 %v7234, %v7230
    %v8007 = vpack.c.b16 %v7235, %v7231
    %v8008 = vpack.c.b16 %v7236, %v7232
    %v8009 = vpack.c.b16 %v7237, %v7233
    %v8010 = vpack.c.b16 %v7242, %v7238
    %v8011 = vpack.c.b16 %v7243, %v7239
    %v8012 = vpack.c.b16 %v7244, %v7240
    %v8013 = vpack.c.b16 %v7245, %v7241
    %v8014 = vpack.c.b16 %v7250, %v7246
    %v8015 = vpack.c.b16 %v7251, %v7247
    %v8016 = vpack.c.b16 %v7252, %v7248
    %v8017 = vpack.c.b16 %v7253, %v7249
    %v8018 = vpack.c.b16 %v7258, %v7254
    %v8019 = vpack.c.b16 %v7259, %v7255
    %v8020 = vpack.c.b16 %v7260, %v7256
    %v8021 = vpack.c.b16 %v7261, %v7257
    %v8022 = vpack.c.b16 %v7266, %v7262
    %v8023 = vpack.c.b16 %v7267, %v7263
    %v8024 = vpack.c.b16 %v7268, %v7264
    %v8025 = vpack.c.b16 %v7269, %v7265
    %v8026 = vpack.c.b16 %v7274, %v7270
    %v8027 = vpack.c.b16 %v7275, %v7271
    %v8028 = vpack.c.b16 %v7276, %v7272
    %v8029 = vpack.c.b16 %v7277, %v7273
    %v8030 = vpack.c.b16 %v7282, %v7278
    %v8031 = vpack.c.b16 %v7283, %v7279
    %v8032 = vpack.c.b16 %v7284, %v7280
    %v8033 = vpack.c.b16 %v7285, %v7281
    %v8034 = vpack.c.b16 %v7290, %v7286
    %v8035 = vpack.c.b16 %v7291, %v7287
    %v8036 = vpack.c.b16 %v7292, %v7288
    %v8037 = vpack.c.b16 %v7293, %v7289
    %v8038 = vpack.c.b16 %v7298, %v7294
    %v8039 = vpack.c.b16 %v7299, %v7295
    %v8040 = vpack.c.b16 %v7300, %v7296
    %v8041 = vpack.c.b16 %v7301, %v7297
    %v8042 = vpack.c.b16 %v7306, %v7302
    %v8043 = vpack.c.b16 %v7307, %v7303
    %v8044 = vpack.c.b16 %v7308, %v7304
    %v8045 = vpack.c.b16 %v7309, %v7305
    %v8046 = vpack.c.b16 %v7314, %v7310
    %v8047 = vpack.c.b16 %v7315, %v7311
    %v8048 = vpack.c.b16 %v7316, %v7312
    %v8049 = vpack.c.b16 %v7317, %v7313
    %v8050 = vpack.c.b16 %v7322, %v7318
    %v8051 = vpack.c.b16 %v7323, %v7319
    %v8052 = vpack.c.b16 %v7324, %v7320
    %v8053 = vpack.c.b16 %v7325, %v7321
    %v8054 = vpack.c.b16 %v7330, %v7326
    %v8055 = vpack.c.b16 %v7331, %v7327
    %v8056 = vpack.c.b16 %v7332, %v7328
    %v8057 = vpack.c.b16 %v7333, %v7329
    %v8058 = vpack.c.b16 %v7338, %v7334
    %v8059 = vpack.c.b16 %v7339, %v7335
    %v8060 = vpack.c.b16 %v7340, %v7336
    %v8061 = vpack.c.b16 %v7341, %v7337
    %v8062 = vpack.c.b16 %v7346, %v7342
    %v8063 = vpack.c.b16 %v7347, %v7343
    %v8064 = vpack.c.b16 %v7348, %v7344
    %v8065 = vpack.c.b16 %v7349, %v7345
    %v8066 = vpack.c.b16 %v7354, %v7350
    %v8067 = vpack.c.b16 %v7355, %v7351
    %v8068 = vpack.c.b16 %v7356, %v7352
    %v8069 = vpack.c.b16 %v7357, %v7353
    %v8070 = vpack.c.b16 %v7362, %v7358
    %v8071 = vpack.c.b16 %v7363, %v7359
    %v8072 = vpack.c.b16 %v7364, %v7360
    %v8073 = vpack.c.b16 %v7365, %v7361
    %v8074 = vpack.c.b16 %v7370, %v7366
    %v8075 = vpack.c.b16 %v7371, %v7367
    %v8076 = vpack.c.b16 %v7372, %v7368
    %v8077 = vpack.c.b16 %v7373, %v7369
    %v8078 = vpack.c.b16 %v7378, %v7374
    %v8079 = vpack.c.b16 %v7379, %v7375
    %v8080 = vpack.c.b16 %v7380, %v7376
    %v8081 = vpack.c.b16 %v7381, %v7377
    %v8082 = vpack.c.b16 %v7386, %v7382
    %v8083 = vpack.c.b16 %v7387, %v7383
    %v8084 = vpack.c.b16 %v7388, %v7384
    %v8085 = vpack.c.b16 %v7389, %v7385
    %v8086 = vpack.c.b16 %v7394, %v7390
    %v8087 = vpack.c.b16 %v7395, %v7391
    %v8088 = vpack.c.b16 %v7396, %v7392
    %v8089 = vpack.c.b16 %v7397, %v7393
    %v8090 = vpack.c.b16 %v7402, %v7398
    %v8091 = vpack.c.b16 %v7403, %v7399
    %v8092 = vpack.c.b16 %v7404, %v7400
    %v8093 = vpack.c.b16 %v7405, %v7401
    %v8094 = vpack.c.b16 %v7410, %v7406
    %v8095 = vpack.c.b16 %v7411, %v7407
    %v8096 = vpack.c.b16 %v7412, %v7408
    %v8097 = vpack.c.b16 %v7413, %v7409
    %v8098 = vpack.c.b16 %v7418, %v7414
    %v8099 = vpack.c.b16 %v7419, %v7415
    %v8100 = vpack.c.b16 %v7420, %v7416
    %v8101 = vpack.c.b16 %v7421, %v7417
    %v8102 = vpack.c.b16 %v7426, %v7422
    %v8103 = vpack.c.b16 %v7427, %v7423
    %v8104 = vpack.c.b16 %v7428, %v7424
    %v8105 = vpack.c.b16 %v7429, %v7425
    %v8106 = vpack.c.b16 %v7434, %v7430
    %v8107 = vpack.c.b16 %v7435, %v7431
    %v8108 = vpack.c.b16 %v7436, %v7432
    %v8109 = vpack.c.b16 %v7437, %v7433
    %v8110 = vpack.c.b16 %v7442, %v7438
    %v8111 = vpack.c.b16 %v7443, %v7439
    %v8112 = vpack.c.b16 %v7444, %v7440
    %v8113 = vpack.c.b16 %v7445, %v7441
    %v8114 = vpack.c.b16 %v7450, %v7446
    %v8115 = vpack.c.b16 %v7451, %v7447
    %v8116 = vpack.c.b16 %v7452, %v7448
    %v8117 = vpack.c.b16 %v7453, %v7449
    %v8118 = vpack.c.b16 %v7458, %v7454
    %v8119 = vpack.c.b16 %v7459, %v7455
    %v8120 = vpack.c.b16 %v7460, %v7456
    %v8121 = vpack.c.b16 %v7461, %v7457
    %v8122 = vpack.c.b16 %v7466, %v7462
    %v8123 = vpack.c.b16 %v7467, %v7463
    %v8124 = vpack.c.b16 %v7468, %v7464
    %v8125 = vpack.c.b16 %v7469, %v7465
    %v8126 = vpack.c.b16 %v7474, %v7470
    %v8127 = vpack.c.b16 %v7475, %v7471
    %v8128 = vpack.c.b16 %v7476, %v7472
    %v8129 = vpack.c.b16 %v7477, %v7473
    %v8130 = vpack.c.b16 %v7482, %v7478
    %v8131 = vpack.c.b16 %v7483, %v7479
    %v8132 = vpack.c.b16 %v7484, %v7480
    %v8133 = vpack.c.b16 %v7485, %v7481
    %v8134 = vpack.c.b16 %v7490, %v7486
    %v8135 = vpack.c.b16 %v7491, %v7487
    %v8136 = vpack.c.b16 %v7492, %v7488
    %v8137 = vpack.c.b16 %v7493, %v7489
    %v8138 = vpack.c.b16 %v7498, %v7494
    %v8139 = vpack.c.b16 %v7499, %v7495
    %v8140 = vpack.c.b16 %v7500, %v7496
    %v8141 = vpack.c.b16 %v7501, %v7497
    %v8142 = vpack.c.b16 %v7506, %v7502
    %v8143 = vpack.c.b16 %v7507, %v7503
    %v8144 = vpack.c.b16 %v7508, %v7504
    %v8145 = vpack.c.b16 %v7509, %v7505
    %v8146 = vpack.c.b16 %v7514, %v7510
    %v8147 = vpack.c.b16 %v7515, %v7511
    %v8148 = vpack.c.b16 %v7516, %v7512
    %v8149 = vpack.c.b16 %v7517, %v7513
    %v8150 = vpack.c.b16 %v7522, %v7518
    %v8151 = vpack.c.b16 %v7523, %v7519
    %v8152 = vpack.c.b16 %v7524, %v7520
    %v8153 = vpack.c.b16 %v7525, %v7521
    %v8154 = vpack.c.b16 %v7530, %v7526
    %v8155 = vpack.c.b16 %v7531, %v7527
    %v8156 = vpack.c.b16 %v7532, %v7528
    %v8157 = vpack.c.b16 %v7533, %v7529
    %v8158 = vpack.c.b16 %v7538, %v7534
    %v8159 = vpack.c.b16 %v7539, %v7535
    %v8160 = vpack.c.b16 %v7540, %v7536
    %v8161 = vpack.c.b16 %v7541, %v7537
    %v8162 = vpack.c.b16 %v7546, %v7542
    %v8163 = vpack.c.b16 %v7547, %v7543
    %v8164 = vpack.c.b16 %v7548, %v7544
    %v8165 = vpack.c.b16 %v7549, %v7545
    %v8166 = vpack.c.b16 %v7554, %v7550
    %v8167 = vpack.c.b16 %v7555, %v7551
    %v8168 = vpack.c.b16 %v7556, %v7552
    %v8169 = vpack.c.b16 %v7557, %v7553
    %v8170 = vpack.c.b16 %v7562, %v7558
    %v8171 = vpack.c.b16 %v7563, %v7559
    %v8172 = vpack.c.b16 %v7564, %v7560
    %v8173 = vpack.c.b16 %v7565, %v7561
    %v8174 = vpack.c.b16 %v7570, %v7566
    %v8175 = vpack.c.b16 %v7571, %v7567
    %v8176 = vpack.c.b16 %v7572, %v7568
    %v8177 = vpack.c.b16 %v7573, %v7569
    %v8178 = vpack.c.b16 %v7578, %v7574
    %v8179 = vpack.c.b16 %v7579, %v7575
    %v8180 = vpack.c.b16 %v7580, %v7576
    %v8181 = vpack.c.b16 %v7581, %v7577
    %v8182 = vpack.c.b16 %v7586, %v7582
    %v8183 = vpack.c.b16 %v7587, %v7583
    %v8184 = vpack.c.b16 %v7588, %v7584
    %v8185 = vpack.c.b16 %v7589, %v7585
    %v8186 = vpack.c.b16 %v7594, %v7590
    %v8187 = vpack.c.b16 %v7595, %v7591
    %v8188 = vpack.c.b16 %v7596, %v7592
    %v8189 = vpack.c.b16 %v7597, %v7593
    %v8190 = vpack.c.b16 %v7602, %v7598
    %v8191 = vpack.c.b16 %v7603, %v7599
    %v8192 = vpack.c.b16 %v7604, %v7600
    %v8193 = vpack.c.b16 %v7605, %v7601
    %v8194 = vpack.c.b16 %v7610, %v7606
    %v8195 = vpack.c.b16 %v7611, %v7607
    %v8196 = vpack.c.b16 %v7612, %v7608
    %v8197 = vpack.c.b16 %v7613, %v7609
    %v8198 = vpack.c.b16 %v7618, %v7614
    %v8199 = vpack.c.b16 %v7619, %v7615
    %v8200 = vpack.c.b16 %v7620, %v7616
    %v8201 = vpack.c.b16 %v7621, %v7617
    %v8202 = vpack.c.b16 %v7626, %v7622
    %v8203 = vpack.c.b16 %v7627, %v7623
    %v8204 = vpack.c.b16 %v7628, %v7624
    %v8205 = vpack.c.b16 %v7629, %v7625
    %v8206 = vpack.c.b16 %v7634, %v7630
    %v8207 = vpack.c.b16 %v7635, %v7631
    %v8208 = vpack.c.b16 %v7636, %v7632
    %v8209 = vpack.c.b16 %v7637, %v7633
    %v8210 = vpack.c.b16 %v7642, %v7638
    %v8211 = vpack.c.b16 %v7643, %v7639
    %v8212 = vpack.c.b16 %v7644, %v7640
    %v8213 = vpack.c.b16 %v7645, %v7641
    %v8214 = vpack.c.b16 %v7650, %v7646
    %v8215 = vpack.c.b16 %v7651, %v7647
    %v8216 = vpack.c.b16 %v7652, %v7648
    %v8217 = vpack.c.b16 %v7653, %v7649
    %v8218 = vpack.c.b16 %v7658, %v7654
    %v8219 = vpack.c.b16 %v7659, %v7655
    %v8220 = vpack.c.b16 %v7660, %v7656
    %v8221 = vpack.c.b16 %v7661, %v7657
    %v8222 = vpack.c.b16 %v7666, %v7662
    %v8223 = vpack.c.b16 %v7667, %v7663
    %v8224 = vpack.c.b16 %v7668, %v7664
    %v8225 = vpack.c.b16 %v7669, %v7665
    %v8226 = vpack.c.b16 %v7674, %v7670
    %v8227 = vpack.c.b16 %v7675, %v7671
    %v8228 = vpack.c.b16 %v7676, %v7672
    %v8229 = vpack.c.b16 %v7677, %v7673
    %v8230 = vpack.c.b16 %v7682, %v7678
    %v8231 = vpack.c.b16 %v7683, %v7679
    %v8232 = vpack.c.b16 %v7684, %v7680
    %v8233 = vpack.c.b16 %v7685, %v7681
    %v8234 = vpack.c.b16 %v7690, %v7686
    %v8235 = vpack.c.b16 %v7691, %v7687
    %v8236 = vpack.c.b16 %v7692, %v7688
    %v8237 = vpack.c.b16 %v7693, %v7689
    %v8238 = vpack.c.b16 %v7698, %v7694
    %v8239 = vpack.c.b16 %v7699, %v7695
    %v8240 = vpack.c.b16 %v7700, %v7696
    %v8241 = vpack.c.b16 %v7701, %v7697
    %v8242 = vpack.c.b16 %v7706, %v7702
    %v8243 = vpack.c.b16 %v7707, %v7703
    %v8244 = vpack.c.b16 %v7708, %v7704
    %v8245 = vpack.c.b16 %v7709, %v7705
    %v8246 = vpack.c.b16 %v7714, %v7710
    %v8247 = vpack.c.b16 %v7715, %v7711
    %v8248 = vpack.c.b16 %v7716, %v7712
    %v8249 = vpack.c.b16 %v7717, %v7713
    %v8250 = vpack.c.b16 %v7722, %v7718
    %v8251 = vpack.c.b16 %v7723, %v7719
    %v8252 = vpack.c.b16 %v7724, %v7720
    %v8253 = vpack.c.b16 %v7725, %v7721
    %v8254 = vpack.c.b16 %v7730, %v7726
    %v8255 = vpack.c.b16 %v7731, %v7727
    %v8256 = vpack.c.b16 %v7732, %v7728
    %v8257 = vpack.c.b16 %v7733, %v7729
    %v8258 = vpack.c.b16 %v7738, %v7734
    %v8259 = vpack.c.b16 %v7739, %v7735
    %v8260 = vpack.c.b16 %v7740, %v7736
    %v8261 = vpack.c.b16 %v7741, %v7737
    %v8262 = vpack.c.b16 %v7746, %v7742
    %v8263 = vpack.c.b16 %v7747, %v7743
    %v8264 = vpack.c.b16 %v7748, %v7744
    %v8265 = vpack.c.b16 %v7749, %v7745
    %v8266 = vpack.c.b16 %v7754, %v7750
    %v8267 = vpack.c.b16 %v7755, %v7751
    %v8268 = vpack.c.b16 %v7756, %v7752
    %v8269 = vpack.c.b16 %v7757, %v7753
    %8782 = vmatprep.subr.bf16.mxu0 %v7759
    %8783 = vmatpush1.bf16.msra.mxu0 %v7758
    %8784 = vmatprep.subr.bf16.mxu0 %v7763
    %8785 = vmatpush1.bf16.msra.mxu0 %v7762
    %8786 = vmatprep.subr.bf16.mxu0 %v7767
    %8787 = vmatpush1.bf16.msra.mxu0 %v7766
    %8788 = vmatprep.subr.bf16.mxu0 %v7771
    %8789 = vmatpush1.bf16.msra.mxu0 %v7770
    %8790 = vmatprep.subr.bf16.mxu0 %v7775
    %8791 = vmatpush1.bf16.msra.mxu0 %v7774
    %8792 = vmatprep.subr.bf16.mxu0 %v7779
    %8793 = vmatpush1.bf16.msra.mxu0 %v7778
    %8794 = vmatprep.subr.bf16.mxu0 %v7783
    %8795 = vmatpush1.bf16.msra.mxu0 %v7782
    %8796 = vmatprep.subr.bf16.mxu0 %v7787
    %8797 = vmatpush1.bf16.msra.mxu0 %v7786
    %8798 = vmatprep.subr.bf16.mxu0 %v7791
    %8799 = vmatpush1.bf16.msra.mxu0 %v7790
    %8800 = vmatprep.subr.bf16.mxu0 %v7795
    %8801 = vmatpush1.bf16.msra.mxu0 %v7794
    %8802 = vmatprep.subr.bf16.mxu0 %v7799
    %8803 = vmatpush1.bf16.msra.mxu0 %v7798
    %8804 = vmatprep.subr.bf16.mxu0 %v7803
    %8805 = vmatpush1.bf16.msra.mxu0 %v7802
    %8806 = vmatprep.subr.bf16.mxu0 %v7807
    %8807 = vmatpush1.bf16.msra.mxu0 %v7806
    %8808 = vmatprep.subr.bf16.mxu0 %v7811
    %8809 = vmatpush1.bf16.msra.mxu0 %v7810
    %8810 = vmatprep.subr.bf16.mxu0 %v7815
    %8811 = vmatpush1.bf16.msra.mxu0 %v7814
    %8812 = vmatprep.subr.bf16.mxu0 %v7819
    %8813 = vmatpush1.bf16.msra.mxu0 %v7818
    %8814 = vmatprep.mubr.bf16.mxu0 %v6191
    %8815 = vmatmul.mubr.bf16.gmra.mrb[0].mxu0 %v6190
    %v8816 = vpop.f32.mrb[0].mxu0
    %v8817 = vadd.f32 0.0, %v8816
    %v8818 = vpop.f32.mrb[0].mxu0
    %v8819 = vadd.f32 0.0, %v8818
    %v8820 = vpop.f32.mrb[0].mxu0
    %v8821 = vpop.f32.mrb[0].mxu0
    %8822 = vdwg.mxu0
    %8823 = vmatprep.subr.bf16.mxu0 %v7823
    %8824 = vmatpush1.bf16.msra.mxu0 %v7822
    %8825 = vmatprep.subr.bf16.mxu0 %v7827
    %8826 = vmatpush1.bf16.msra.mxu0 %v7826
    %8827 = vmatprep.subr.bf16.mxu0 %v7831
    %8828 = vmatpush1.bf16.msra.mxu0 %v7830
    %8829 = vmatprep.subr.bf16.mxu0 %v7835
    %8830 = vmatpush1.bf16.msra.mxu0 %v7834
    %8831 = vmatprep.subr.bf16.mxu0 %v7839
    %8832 = vmatpush1.bf16.msra.mxu0 %v7838
    %8833 = vmatprep.subr.bf16.mxu0 %v7843
    %8834 = vmatpush1.bf16.msra.mxu0 %v7842
    %8835 = vmatprep.subr.bf16.mxu0 %v7847
    %8836 = vmatpush1.bf16.msra.mxu0 %v7846
    %8837 = vmatprep.subr.bf16.mxu0 %v7851
    %8838 = vmatpush1.bf16.msra.mxu0 %v7850
    %8839 = vmatprep.subr.bf16.mxu0 %v7855
    %8840 = vmatpush1.bf16.msra.mxu0 %v7854
    %8841 = vmatprep.subr.bf16.mxu0 %v7859
    %8842 = vmatpush1.bf16.msra.mxu0 %v7858
    %8843 = vmatprep.subr.bf16.mxu0 %v7863
    %8844 = vmatpush1.bf16.msra.mxu0 %v7862
    %8845 = vmatprep.subr.bf16.mxu0 %v7867
    %8846 = vmatpush1.bf16.msra.mxu0 %v7866
    %8847 = vmatprep.subr.bf16.mxu0 %v7871
    %8848 = vmatpush1.bf16.msra.mxu0 %v7870
    %8849 = vmatprep.subr.bf16.mxu0 %v7875
    %8850 = vmatpush1.bf16.msra.mxu0 %v7874
    %8851 = vmatprep.subr.bf16.mxu0 %v7879
    %8852 = vmatpush1.bf16.msra.mxu0 %v7878
    %8853 = vmatprep.subr.bf16.mxu0 %v7883
    %8854 = vmatpush1.bf16.msra.mxu0 %v7882
    %8855 = vmatprep.mubr.bf16.mxu0 %v6193
    %8856 = vmatmul.mubr.bf16.gmra.mrb[0].mxu0 %v6192
    %v8857 = vpop.f32.mrb[0].mxu0
    %v8858 = vadd.f32 %v8817, %v8857
    %v8859 = vpop.f32.mrb[0].mxu0
    %v8860 = vadd.f32 %v8819, %v8859
    %v8861 = vpop.f32.mrb[0].mxu0
    %v8862 = vpop.f32.mrb[0].mxu0
    %8863 = vdwg.mxu0
    %8864 = vmatprep.subr.bf16.mxu0 %v7887
    %8865 = vmatpush1.bf16.msra.mxu0 %v7886
    %8866 = vmatprep.subr.bf16.mxu0 %v7891
    %8867 = vmatpush1.bf16.msra.mxu0 %v7890
    %8868 = vmatprep.subr.bf16.mxu0 %v7895
    %8869 = vmatpush1.bf16.msra.mxu0 %v7894
    %8870 = vmatprep.subr.bf16.mxu0 %v7899
    %8871 = vmatpush1.bf16.msra.mxu0 %v7898
    %8872 = vmatprep.subr.bf16.mxu0 %v7903
    %8873 = vmatpush1.bf16.msra.mxu0 %v7902
    %8874 = vmatprep.subr.bf16.mxu0 %v7907
    %8875 = vmatpush1.bf16.msra.mxu0 %v7906
    %8876 = vmatprep.subr.bf16.mxu0 %v7911
    %8877 = vmatpush1.bf16.msra.mxu0 %v7910
    %8878 = vmatprep.subr.bf16.mxu0 %v7915
    %8879 = vmatpush1.bf16.msra.mxu0 %v7914
    %8880 = vmatprep.subr.bf16.mxu0 %v7919
    %8881 = vmatpush1.bf16.msra.mxu0 %v7918
    %8882 = vmatprep.subr.bf16.mxu0 %v7923
    %8883 = vmatpush1.bf16.msra.mxu0 %v7922
    %8884 = vmatprep.subr.bf16.mxu0 %v7927
    %8885 = vmatpush1.bf16.msra.mxu0 %v7926
    %8886 = vmatprep.subr.bf16.mxu0 %v7931
    %8887 = vmatpush1.bf16.msra.mxu0 %v7930
    %8888 = vmatprep.subr.bf16.mxu0 %v7935
    %8889 = vmatpush1.bf16.msra.mxu0 %v7934
    %8890 = vmatprep.subr.bf16.mxu0 %v7939
    %8891 = vmatpush1.bf16.msra.mxu0 %v7938
    %8892 = vmatprep.subr.bf16.mxu0 %v7943
    %8893 = vmatpush1.bf16.msra.mxu0 %v7942
    %8894 = vmatprep.subr.bf16.mxu0 %v7947
    %8895 = vmatpush1.bf16.msra.mxu0 %v7946
    %8896 = vmatprep.mubr.bf16.mxu0 %v6195
    %8897 = vmatmul.mubr.bf16.gmra.mrb[0].mxu0 %v6194
    %v8898 = vpop.f32.mrb[0].mxu0
    %v8899 = vadd.f32 %v8858, %v8898
    %v8900 = vpop.f32.mrb[0].mxu0
    %v8901 = vadd.f32 %v8860, %v8900
    %v8902 = vpop.f32.mrb[0].mxu0
    %v8903 = vpop.f32.mrb[0].mxu0
    %8904 = vdwg.mxu0
    %8905 = vmatprep.subr.bf16.mxu0 %v7951
    %8906 = vmatpush1.bf16.msra.mxu0 %v7950
    %8907 = vmatprep.subr.bf16.mxu0 %v7955
    %8908 = vmatpush1.bf16.msra.mxu0 %v7954
    %8909 = vmatprep.subr.bf16.mxu0 %v7959
    %8910 = vmatpush1.bf16.msra.mxu0 %v7958
    %8911 = vmatprep.subr.bf16.mxu0 %v7963
    %8912 = vmatpush1.bf16.msra.mxu0 %v7962
    %8913 = vmatprep.subr.bf16.mxu0 %v7967
    %8914 = vmatpush1.bf16.msra.mxu0 %v7966
    %8915 = vmatprep.subr.bf16.mxu0 %v7971
    %8916 = vmatpush1.bf16.msra.mxu0 %v7970
    %8917 = vmatprep.subr.bf16.mxu0 %v7975
    %8918 = vmatpush1.bf16.msra.mxu0 %v7974
    %8919 = vmatprep.subr.bf16.mxu0 %v7979
    %8920 = vmatpush1.bf16.msra.mxu0 %v7978
    %8921 = vmatprep.subr.bf16.mxu0 %v7983
    %8922 = vmatpush1.bf16.msra.mxu0 %v7982
    %8923 = vmatprep.subr.bf16.mxu0 %v7987
    %8924 = vmatpush1.bf16.msra.mxu0 %v7986
    %8925 = vmatprep.subr.bf16.mxu0 %v7991
    %8926 = vmatpush1.bf16.msra.mxu0 %v7990
    %8927 = vmatprep.subr.bf16.mxu0 %v7995
    %8928 = vmatpush1.bf16.msra.mxu0 %v7994
    %8929 = vmatprep.subr.bf16.mxu0 %v7999
    %8930 = vmatpush1.bf16.msra.mxu0 %v7998
    %8931 = vmatprep.subr.bf16.mxu0 %v8003
    %8932 = vmatpush1.bf16.msra.mxu0 %v8002
    %8933 = vmatprep.subr.bf16.mxu0 %v8007
    %8934 = vmatpush1.bf16.msra.mxu0 %v8006
    %8935 = vmatprep.subr.bf16.mxu0 %v8011
    %8936 = vmatpush1.bf16.msra.mxu0 %v8010
    %8937 = vmatprep.mubr.bf16.mxu0 %v6197
    %8938 = vmatmul.mubr.bf16.gmra.mrb[0].mxu0 %v6196
    %v8939 = vpop.f32.mrb[0].mxu0
    %v8940 = vadd.f32 %v8899, %v8939
    %v8941 = vpop.f32.mrb[0].mxu0
    %v8942 = vadd.f32 %v8901, %v8941
    %v8943 = vpop.f32.mrb[0].mxu0
    %v8944 = vpop.f32.mrb[0].mxu0
    %8945 = vdwg.mxu0
    %8946 = vmatprep.subr.bf16.mxu0 %v8015
    %8947 = vmatpush1.bf16.msra.mxu0 %v8014
    %8948 = vmatprep.subr.bf16.mxu0 %v8019
    %8949 = vmatpush1.bf16.msra.mxu0 %v8018
    %8950 = vmatprep.subr.bf16.mxu0 %v8023
    %8951 = vmatpush1.bf16.msra.mxu0 %v8022
    %8952 = vmatprep.subr.bf16.mxu0 %v8027
    %8953 = vmatpush1.bf16.msra.mxu0 %v8026
    %8954 = vmatprep.subr.bf16.mxu0 %v8031
    %8955 = vmatpush1.bf16.msra.mxu0 %v8030
    %8956 = vmatprep.subr.bf16.mxu0 %v8035
    %8957 = vmatpush1.bf16.msra.mxu0 %v8034
    %8958 = vmatprep.subr.bf16.mxu0 %v8039
    %8959 = vmatpush1.bf16.msra.mxu0 %v8038
    %8960 = vmatprep.subr.bf16.mxu0 %v8043
    %8961 = vmatpush1.bf16.msra.mxu0 %v8042
    %8962 = vmatprep.subr.bf16.mxu0 %v8047
    %8963 = vmatpush1.bf16.msra.mxu0 %v8046
    %8964 = vmatprep.subr.bf16.mxu0 %v8051
    %8965 = vmatpush1.bf16.msra.mxu0 %v8050
    %8966 = vmatprep.subr.bf16.mxu0 %v8055
    %8967 = vmatpush1.bf16.msra.mxu0 %v8054
    %8968 = vmatprep.subr.bf16.mxu0 %v8059
    %8969 = vmatpush1.bf16.msra.mxu0 %v8058
    %8970 = vmatprep.subr.bf16.mxu0 %v8063
    %8971 = vmatpush1.bf16.msra.mxu0 %v8062
    %8972 = vmatprep.subr.bf16.mxu0 %v8067
    %8973 = vmatpush1.bf16.msra.mxu0 %v8066
    %8974 = vmatprep.subr.bf16.mxu0 %v8071
    %8975 = vmatpush1.bf16.msra.mxu0 %v8070
    %8976 = vmatprep.subr.bf16.mxu0 %v8075
    %8977 = vmatpush1.bf16.msra.mxu0 %v8074
    %8978 = vmatprep.mubr.bf16.mxu0 %v6199
    %8979 = vmatmul.mubr.bf16.gmra.mrb[0].mxu0 %v6198
    %v8980 = vpop.f32.mrb[0].mxu0
    %v8981 = vadd.f32 %v8940, %v8980
    %v8982 = vpop.f32.mrb[0].mxu0
    %v8983 = vadd.f32 %v8942, %v8982
    %v8984 = vpop.f32.mrb[0].mxu0
    %v8985 = vpop.f32.mrb[0].mxu0
    %8986 = vdwg.mxu0
    %8987 = vmatprep.subr.bf16.mxu0 %v8079
    %8988 = vmatpush1.bf16.msra.mxu0 %v8078
    %8989 = vmatprep.subr.bf16.mxu0 %v8083
    %8990 = vmatpush1.bf16.msra.mxu0 %v8082
    %8991 = vmatprep.subr.bf16.mxu0 %v8087
    %8992 = vmatpush1.bf16.msra.mxu0 %v8086
    %8993 = vmatprep.subr.bf16.mxu0 %v8091
    %8994 = vmatpush1.bf16.msra.mxu0 %v8090
    %8995 = vmatprep.subr.bf16.mxu0 %v8095
    %8996 = vmatpush1.bf16.msra.mxu0 %v8094
    %8997 = vmatprep.subr.bf16.mxu0 %v8099
    %8998 = vmatpush1.bf16.msra.mxu0 %v8098
    %8999 = vmatprep.subr.bf16.mxu0 %v8103
    %9000 = vmatpush1.bf16.msra.mxu0 %v8102
    %9001 = vmatprep.subr.bf16.mxu0 %v8107
    %9002 = vmatpush1.bf16.msra.mxu0 %v8106
    %9003 = vmatprep.subr.bf16.mxu0 %v8111
    %9004 = vmatpush1.bf16.msra.mxu0 %v8110
    %9005 = vmatprep.subr.bf16.mxu0 %v8115
    %9006 = vmatpush1.bf16.msra.mxu0 %v8114
    %9007 = vmatprep.subr.bf16.mxu0 %v8119
    %9008 = vmatpush1.bf16.msra.mxu0 %v8118
    %9009 = vmatprep.subr.bf16.mxu0 %v8123
    %9010 = vmatpush1.bf16.msra.mxu0 %v8122
    %9011 = vmatprep.subr.bf16.mxu0 %v8127
    %9012 = vmatpush1.bf16.msra.mxu0 %v8126
    %9013 = vmatprep.subr.bf16.mxu0 %v8131
    %9014 = vmatpush1.bf16.msra.mxu0 %v8130
    %9015 = vmatprep.subr.bf16.mxu0 %v8135
    %9016 = vmatpush1.bf16.msra.mxu0 %v8134
    %9017 = vmatprep.subr.bf16.mxu0 %v8139
    %9018 = vmatpush1.bf16.msra.mxu0 %v8138
    %9019 = vmatprep.mubr.bf16.mxu0 %v6201
    %9020 = vmatmul.mubr.bf16.gmra.mrb[0].mxu0 %v6200
    %v9021 = vpop.f32.mrb[0].mxu0
    %v9022 = vadd.f32 %v8981, %v9021
    %v9023 = vpop.f32.mrb[0].mxu0
    %v9024 = vadd.f32 %v8983, %v9023
    %v9025 = vpop.f32.mrb[0].mxu0
    %v9026 = vpop.f32.mrb[0].mxu0
    %9027 = vdwg.mxu0
    %9028 = vmatprep.subr.bf16.mxu0 %v8143
    %9029 = vmatpush1.bf16.msra.mxu0 %v8142
    %9030 = vmatprep.subr.bf16.mxu0 %v8147
    %9031 = vmatpush1.bf16.msra.mxu0 %v8146
    %9032 = vmatprep.subr.bf16.mxu0 %v8151
    %9033 = vmatpush1.bf16.msra.mxu0 %v8150
    %9034 = vmatprep.subr.bf16.mxu0 %v8155
    %9035 = vmatpush1.bf16.msra.mxu0 %v8154
    %9036 = vmatprep.subr.bf16.mxu0 %v8159
    %9037 = vmatpush1.bf16.msra.mxu0 %v8158
    %9038 = vmatprep.subr.bf16.mxu0 %v8163
    %9039 = vmatpush1.bf16.msra.mxu0 %v8162
    %9040 = vmatprep.subr.bf16.mxu0 %v8167
    %9041 = vmatpush1.bf16.msra.mxu0 %v8166
    %9042 = vmatprep.subr.bf16.mxu0 %v8171
    %9043 = vmatpush1.bf16.msra.mxu0 %v8170
    %9044 = vmatprep.subr.bf16.mxu0 %v8175
    %9045 = vmatpush1.bf16.msra.mxu0 %v8174
    %9046 = vmatprep.subr.bf16.mxu0 %v8179
    %9047 = vmatpush1.bf16.msra.mxu0 %v8178
    %9048 = vmatprep.subr.bf16.mxu0 %v8183
    %9049 = vmatpush1.bf16.msra.mxu0 %v8182
    %9050 = vmatprep.subr.bf16.mxu0 %v8187
    %9051 = vmatpush1.bf16.msra.mxu0 %v8186
    %9052 = vmatprep.subr.bf16.mxu0 %v8191
    %9053 = vmatpush1.bf16.msra.mxu0 %v8190
    %9054 = vmatprep.subr.bf16.mxu0 %v8195
    %9055 = vmatpush1.bf16.msra.mxu0 %v8194
    %9056 = vmatprep.subr.bf16.mxu0 %v8199
    %9057 = vmatpush1.bf16.msra.mxu0 %v8198
    %9058 = vmatprep.subr.bf16.mxu0 %v8203
    %9059 = vmatpush1.bf16.msra.mxu0 %v8202
    %9060 = vmatprep.mubr.bf16.mxu0 %v6203
    %9061 = vmatmul.mubr.bf16.gmra.mrb[0].mxu0 %v6202
    %v9062 = vpop.f32.mrb[0].mxu0
    %v9063 = vadd.f32 %v9022, %v9062
    %v9064 = vpop.f32.mrb[0].mxu0
    %v9065 = vadd.f32 %v9024, %v9064
    %v9066 = vpop.f32.mrb[0].mxu0
    %v9067 = vpop.f32.mrb[0].mxu0
    %9068 = vdwg.mxu0
    %9069 = vmatprep.subr.bf16.mxu0 %v8207
    %9070 = vmatpush1.bf16.msra.mxu0 %v8206
    %9071 = vmatprep.subr.bf16.mxu0 %v8211
    %9072 = vmatpush1.bf16.msra.mxu0 %v8210
    %9073 = vmatprep.subr.bf16.mxu0 %v8215
    %9074 = vmatpush1.bf16.msra.mxu0 %v8214
    %9075 = vmatprep.subr.bf16.mxu0 %v8219
    %9076 = vmatpush1.bf16.msra.mxu0 %v8218
    %9077 = vmatprep.subr.bf16.mxu0 %v8223
    %9078 = vmatpush1.bf16.msra.mxu0 %v8222
    %9079 = vmatprep.subr.bf16.mxu0 %v8227
    %9080 = vmatpush1.bf16.msra.mxu0 %v8226
    %9081 = vmatprep.subr.bf16.mxu0 %v8231
    %9082 = vmatpush1.bf16.msra.mxu0 %v8230
    %9083 = vmatprep.subr.bf16.mxu0 %v8235
    %9084 = vmatpush1.bf16.msra.mxu0 %v8234
    %9085 = vmatprep.subr.bf16.mxu0 %v8239
    %9086 = vmatpush1.bf16.msra.mxu0 %v8238
    %9087 = vmatprep.subr.bf16.mxu0 %v8243
    %9088 = vmatpush1.bf16.msra.mxu0 %v8242
    %9089 = vmatprep.subr.bf16.mxu0 %v8247
    %9090 = vmatpush1.bf16.msra.mxu0 %v8246
    %9091 = vmatprep.subr.bf16.mxu0 %v8251
    %9092 = vmatpush1.bf16.msra.mxu0 %v8250
    %9093 = vmatprep.subr.bf16.mxu0 %v8255
    %9094 = vmatpush1.bf16.msra.mxu0 %v8254
    %9095 = vmatprep.subr.bf16.mxu0 %v8259
    %9096 = vmatpush1.bf16.msra.mxu0 %v8258
    %9097 = vmatprep.subr.bf16.mxu0 %v8263
    %9098 = vmatpush1.bf16.msra.mxu0 %v8262
    %9099 = vmatprep.subr.bf16.mxu0 %v8267
    %9100 = vmatpush1.bf16.msra.mxu0 %v8266
    %9101 = vmatprep.mubr.bf16.mxu0 %v6205
    %9102 = vmatmul.mubr.bf16.gmra.mrb[0].mxu0 %v6204
    %v9103 = vpop.f32.mrb[0].mxu0
    %v9104 = vadd.f32 %v9063, %v9103
    %v9105 = vpop.f32.mrb[0].mxu0
    %v9106 = vadd.f32 %v9065, %v9105
    %v9107 = vpop.f32.mrb[0].mxu0
    %v9108 = vpop.f32.mrb[0].mxu0
    %9109 = vdwg.mxu0
    %9110 = vmatprep.subr.bf16.mxu0 %v7761
    %9111 = vmatpush1.bf16.msra.mxu0 %v7760
    %9112 = vmatprep.subr.bf16.mxu0 %v7765
    %9113 = vmatpush1.bf16.msra.mxu0 %v7764
    %9114 = vmatprep.subr.bf16.mxu0 %v7769
    %9115 = vmatpush1.bf16.msra.mxu0 %v7768
    %9116 = vmatprep.subr.bf16.mxu0 %v7773
    %9117 = vmatpush1.bf16.msra.mxu0 %v7772
    %9118 = vmatprep.subr.bf16.mxu0 %v7777
    %9119 = vmatpush1.bf16.msra.mxu0 %v7776
    %9120 = vmatprep.subr.bf16.mxu0 %v7781
    %9121 = vmatpush1.bf16.msra.mxu0 %v7780
    %9122 = vmatprep.subr.bf16.mxu0 %v7785
    %9123 = vmatpush1.bf16.msra.mxu0 %v7784
    %9124 = vmatprep.subr.bf16.mxu0 %v7789
    %9125 = vmatpush1.bf16.msra.mxu0 %v7788
    %9126 = vmatprep.subr.bf16.mxu0 %v7793
    %9127 = vmatpush1.bf16.msra.mxu0 %v7792
    %9128 = vmatprep.subr.bf16.mxu0 %v7797
    %9129 = vmatpush1.bf16.msra.mxu0 %v7796
    %9130 = vmatprep.subr.bf16.mxu0 %v7801
    %9131 = vmatpush1.bf16.msra.mxu0 %v7800
    %9132 = vmatprep.subr.bf16.mxu0 %v7805
    %9133 = vmatpush1.bf16.msra.mxu0 %v7804
    %9134 = vmatprep.subr.bf16.mxu0 %v7809
    %9135 = vmatpush1.bf16.msra.mxu0 %v7808
    %9136 = vmatprep.subr.bf16.mxu0 %v7813
    %9137 = vmatpush1.bf16.msra.mxu0 %v7812
    %9138 = vmatprep.subr.bf16.mxu0 %v7817
    %9139 = vmatpush1.bf16.msra.mxu0 %v7816
    %9140 = vmatprep.subr.bf16.mxu0 %v7821
    %9141 = vmatpush1.bf16.msra.mxu0 %v7820
    %9142 = vmatprep.mubr.bf16.mxu0 %v6191
    %9143 = vmatmul.mubr.bf16.gmra.mrb[0].mxu0 %v6190
    %v9144 = vpop.f32.mrb[0].mxu0
    %v9145 = vadd.f32 0.0, %v9144
    %v9146 = vpop.f32.mrb[0].mxu0
    %v9147 = vadd.f32 0.0, %v9146
    %v9148 = vpop.f32.mrb[0].mxu0
    %v9149 = vpop.f32.mrb[0].mxu0
    %9150 = vdwg.mxu0
    %9151 = vmatprep.subr.bf16.mxu0 %v7825
    %9152 = vmatpush1.bf16.msra.mxu0 %v7824
    %9153 = vmatprep.subr.bf16.mxu0 %v7829
    %9154 = vmatpush1.bf16.msra.mxu0 %v7828
    %9155 = vmatprep.subr.bf16.mxu0 %v7833
    %9156 = vmatpush1.bf16.msra.mxu0 %v7832
    %9157 = vmatprep.subr.bf16.mxu0 %v7837
    %9158 = vmatpush1.bf16.msra.mxu0 %v7836
    %9159 = vmatprep.subr.bf16.mxu0 %v7841
    %9160 = vmatpush1.bf16.msra.mxu0 %v7840
    %9161 = vmatprep.subr.bf16.mxu0 %v7845
    %9162 = vmatpush1.bf16.msra.mxu0 %v7844
    %9163 = vmatprep.subr.bf16.mxu0 %v7849
    %9164 = vmatpush1.bf16.msra.mxu0 %v7848
    %9165 = vmatprep.subr.bf16.mxu0 %v7853
    %9166 = vmatpush1.bf16.msra.mxu0 %v7852
    %9167 = vmatprep.subr.bf16.mxu0 %v7857
    %9168 = vmatpush1.bf16.msra.mxu0 %v7856
    %9169 = vmatprep.subr.bf16.mxu0 %v7861
    %9170 = vmatpush1.bf16.msra.mxu0 %v7860
    %9171 = vmatprep.subr.bf16.mxu0 %v7865
    %9172 = vmatpush1.bf16.msra.mxu0 %v7864
    %9173 = vmatprep.subr.bf16.mxu0 %v7869
    %9174 = vmatpush1.bf16.msra.mxu0 %v7868
    %9175 = vmatprep.subr.bf16.mxu0 %v7873
    %9176 = vmatpush1.bf16.msra.mxu0 %v7872
    %9177 = vmatprep.subr.bf16.mxu0 %v7877
    %9178 = vmatpush1.bf16.msra.mxu0 %v7876
    %9179 = vmatprep.subr.bf16.mxu0 %v7881
    %9180 = vmatpush1.bf16.msra.mxu0 %v7880
    %9181 = vmatprep.subr.bf16.mxu0 %v7885
    %9182 = vmatpush1.bf16.msra.mxu0 %v7884
    %9183 = vmatprep.mubr.bf16.mxu0 %v6193
    %9184 = vmatmul.mubr.bf16.gmra.mrb[0].mxu0 %v6192
    %v9185 = vpop.f32.mrb[0].mxu0
    %v9186 = vadd.f32 %v9145, %v9185
    %v9187 = vpop.f32.mrb[0].mxu0
    %v9188 = vadd.f32 %v9147, %v9187
    %v9189 = vpop.f32.mrb[0].mxu0
    %v9190 = vpop.f32.mrb[0].mxu0
    %9191 = vdwg.mxu0
    %9192 = vmatprep.subr.bf16.mxu0 %v7889
    %9193 = vmatpush1.bf16.msra.mxu0 %v7888
    %9194 = vmatprep.subr.bf16.mxu0 %v7893
    %9195 = vmatpush1.bf16.msra.mxu0 %v7892
    %9196 = vmatprep.subr.bf16.mxu0 %v7897
    %9197 = vmatpush1.bf16.msra.mxu0 %v7896
    %9198 = vmatprep.subr.bf16.mxu0 %v7901
    %9199 = vmatpush1.bf16.msra.mxu0 %v7900
    %9200 = vmatprep.subr.bf16.mxu0 %v7905
    %9201 = vmatpush1.bf16.msra.mxu0 %v7904
    %9202 = vmatprep.subr.bf16.mxu0 %v7909
    %9203 = vmatpush1.bf16.msra.mxu0 %v7908
    %9204 = vmatprep.subr.bf16.mxu0 %v7913
    %9205 = vmatpush1.bf16.msra.mxu0 %v7912
    %9206 = vmatprep.subr.bf16.mxu0 %v7917
    %9207 = vmatpush1.bf16.msra.mxu0 %v7916
    %9208 = vmatprep.subr.bf16.mxu0 %v7921
    %9209 = vmatpush1.bf16.msra.mxu0 %v7920
    %9210 = vmatprep.subr.bf16.mxu0 %v7925
    %9211 = vmatpush1.bf16.msra.mxu0 %v7924
    %9212 = vmatprep.subr.bf16.mxu0 %v7929
    %9213 = vmatpush1.bf16.msra.mxu0 %v7928
    %9214 = vmatprep.subr.bf16.mxu0 %v7933
    %9215 = vmatpush1.bf16.msra.mxu0 %v7932
    %9216 = vmatprep.subr.bf16.mxu0 %v7937
    %9217 = vmatpush1.bf16.msra.mxu0 %v7936
    %9218 = vmatprep.subr.bf16.mxu0 %v7941
    %9219 = vmatpush1.bf16.msra.mxu0 %v7940
    %9220 = vmatprep.subr.bf16.mxu0 %v7945
    %9221 = vmatpush1.bf16.msra.mxu0 %v7944
    %9222 = vmatprep.subr.bf16.mxu0 %v7949
    %9223 = vmatpush1.bf16.msra.mxu0 %v7948
    %9224 = vmatprep.mubr.bf16.mxu0 %v6195
    %9225 = vmatmul.mubr.bf16.gmra.mrb[0].mxu0 %v6194
    %v9226 = vpop.f32.mrb[0].mxu0
    %v9227 = vadd.f32 %v9186, %v9226
    %v9228 = vpop.f32.mrb[0].mxu0
    %v9229 = vadd.f32 %v9188, %v9228
    %v9230 = vpop.f32.mrb[0].mxu0
    %v9231 = vpop.f32.mrb[0].mxu0
    %9232 = vdwg.mxu0
    %9233 = vmatprep.subr.bf16.mxu0 %v7953
    %9234 = vmatpush1.bf16.msra.mxu0 %v7952
    %9235 = vmatprep.subr.bf16.mxu0 %v7957
    %9236 = vmatpush1.bf16.msra.mxu0 %v7956
    %9237 = vmatprep.subr.bf16.mxu0 %v7961
    %9238 = vmatpush1.bf16.msra.mxu0 %v7960
    %9239 = vmatprep.subr.bf16.mxu0 %v7965
    %9240 = vmatpush1.bf16.msra.mxu0 %v7964
    %9241 = vmatprep.subr.bf16.mxu0 %v7969
    %9242 = vmatpush1.bf16.msra.mxu0 %v7968
    %9243 = vmatprep.subr.bf16.mxu0 %v7973
    %9244 = vmatpush1.bf16.msra.mxu0 %v7972
    %9245 = vmatprep.subr.bf16.mxu0 %v7977
    %9246 = vmatpush1.bf16.msra.mxu0 %v7976
    %9247 = vmatprep.subr.bf16.mxu0 %v7981
    %9248 = vmatpush1.bf16.msra.mxu0 %v7980
    %9249 = vmatprep.subr.bf16.mxu0 %v7985
    %9250 = vmatpush1.bf16.msra.mxu0 %v7984
    %9251 = vmatprep.subr.bf16.mxu0 %v7989
    %9252 = vmatpush1.bf16.msra.mxu0 %v7988
    %9253 = vmatprep.subr.bf16.mxu0 %v7993
    %9254 = vmatpush1.bf16.msra.mxu0 %v7992
    %9255 = vmatprep.subr.bf16.mxu0 %v7997
    %9256 = vmatpush1.bf16.msra.mxu0 %v7996
    %9257 = vmatprep.subr.bf16.mxu0 %v8001
    %9258 = vmatpush1.bf16.msra.mxu0 %v8000
    %9259 = vmatprep.subr.bf16.mxu0 %v8005
    %9260 = vmatpush1.bf16.msra.mxu0 %v8004
    %9261 = vmatprep.subr.bf16.mxu0 %v8009
    %9262 = vmatpush1.bf16.msra.mxu0 %v8008
    %9263 = vmatprep.subr.bf16.mxu0 %v8013
    %9264 = vmatpush1.bf16.msra.mxu0 %v8012
    %9265 = vmatprep.mubr.bf16.mxu0 %v6197
    %9266 = vmatmul.mubr.bf16.gmra.mrb[0].mxu0 %v6196
    %v9267 = vpop.f32.mrb[0].mxu0
    %v9268 = vadd.f32 %v9227, %v9267
    %v9269 = vpop.f32.mrb[0].mxu0
    %v9270 = vadd.f32 %v9229, %v9269
    %v9271 = vpop.f32.mrb[0].mxu0
    %v9272 = vpop.f32.mrb[0].mxu0
    %9273 = vdwg.mxu0
    %9274 = vmatprep.subr.bf16.mxu0 %v8017
    %9275 = vmatpush1.bf16.msra.mxu0 %v8016
    %9276 = vmatprep.subr.bf16.mxu0 %v8021
    %9277 = vmatpush1.bf16.msra.mxu0 %v8020
    %9278 = vmatprep.subr.bf16.mxu0 %v8025
    %9279 = vmatpush1.bf16.msra.mxu0 %v8024
    %9280 = vmatprep.subr.bf16.mxu0 %v8029
    %9281 = vmatpush1.bf16.msra.mxu0 %v8028
    %9282 = vmatprep.subr.bf16.mxu0 %v8033
    %9283 = vmatpush1.bf16.msra.mxu0 %v8032
    %9284 = vmatprep.subr.bf16.mxu0 %v8037
    %9285 = vmatpush1.bf16.msra.mxu0 %v8036
    %9286 = vmatprep.subr.bf16.mxu0 %v8041
    %9287 = vmatpush1.bf16.msra.mxu0 %v8040
    %9288 = vmatprep.subr.bf16.mxu0 %v8045
    %9289 = vmatpush1.bf16.msra.mxu0 %v8044
    %9290 = vmatprep.subr.bf16.mxu0 %v8049
    %9291 = vmatpush1.bf16.msra.mxu0 %v8048
    %9292 = vmatprep.subr.bf16.mxu0 %v8053
    %9293 = vmatpush1.bf16.msra.mxu0 %v8052
    %9294 = vmatprep.subr.bf16.mxu0 %v8057
    %9295 = vmatpush1.bf16.msra.mxu0 %v8056
    %9296 = vmatprep.subr.bf16.mxu0 %v8061
    %9297 = vmatpush1.bf16.msra.mxu0 %v8060
    %9298 = vmatprep.subr.bf16.mxu0 %v8065
    %9299 = vmatpush1.bf16.msra.mxu0 %v8064
    %9300 = vmatprep.subr.bf16.mxu0 %v8069
    %9301 = vmatpush1.bf16.msra.mxu0 %v8068
    %9302 = vmatprep.subr.bf16.mxu0 %v8073
    %9303 = vmatpush1.bf16.msra.mxu0 %v8072
    %9304 = vmatprep.subr.bf16.mxu0 %v8077
    %9305 = vmatpush1.bf16.msra.mxu0 %v8076
    %9306 = vmatprep.mubr.bf16.mxu0 %v6199
    %9307 = vmatmul.mubr.bf16.gmra.mrb[0].mxu0 %v6198
    %v9308 = vpop.f32.mrb[0].mxu0
    %v9309 = vadd.f32 %v9268, %v9308
    %v9310 = vpop.f32.mrb[0].mxu0
    %v9311 = vadd.f32 %v9270, %v9310
    %v9312 = vpop.f32.mrb[0].mxu0
    %v9313 = vpop.f32.mrb[0].mxu0
    %9314 = vdwg.mxu0
    %9315 = vmatprep.subr.bf16.mxu0 %v8081
    %9316 = vmatpush1.bf16.msra.mxu0 %v8080
    %9317 = vmatprep.subr.bf16.mxu0 %v8085
    %9318 = vmatpush1.bf16.msra.mxu0 %v8084
    %9319 = vmatprep.subr.bf16.mxu0 %v8089
    %9320 = vmatpush1.bf16.msra.mxu0 %v8088
    %9321 = vmatprep.subr.bf16.mxu0 %v8093
    %9322 = vmatpush1.bf16.msra.mxu0 %v8092
    %9323 = vmatprep.subr.bf16.mxu0 %v8097
    %9324 = vmatpush1.bf16.msra.mxu0 %v8096
    %9325 = vmatprep.subr.bf16.mxu0 %v8101
    %9326 = vmatpush1.bf16.msra.mxu0 %v8100
    %9327 = vmatprep.subr.bf16.mxu0 %v8105
    %9328 = vmatpush1.bf16.msra.mxu0 %v8104
    %9329 = vmatprep.subr.bf16.mxu0 %v8109
    %9330 = vmatpush1.bf16.msra.mxu0 %v8108
    %9331 = vmatprep.subr.bf16.mxu0 %v8113
    %9332 = vmatpush1.bf16.msra.mxu0 %v8112
    %9333 = vmatprep.subr.bf16.mxu0 %v8117
    %9334 = vmatpush1.bf16.msra.mxu0 %v8116
    %9335 = vmatprep.subr.bf16.mxu0 %v8121
    %9336 = vmatpush1.bf16.msra.mxu0 %v8120
    %9337 = vmatprep.subr.bf16.mxu0 %v8125
    %9338 = vmatpush1.bf16.msra.mxu0 %v8124
    %9339 = vmatprep.subr.bf16.mxu0 %v8129
    %9340 = vmatpush1.bf16.msra.mxu0 %v8128
    %9341 = vmatprep.subr.bf16.mxu0 %v8133
    %9342 = vmatpush1.bf16.msra.mxu0 %v8132
    %9343 = vmatprep.subr.bf16.mxu0 %v8137
    %9344 = vmatpush1.bf16.msra.mxu0 %v8136
    %9345 = vmatprep.subr.bf16.mxu0 %v8141
    %9346 = vmatpush1.bf16.msra.mxu0 %v8140
    %9347 = vmatprep.mubr.bf16.mxu0 %v6201
    %9348 = vmatmul.mubr.bf16.gmra.mrb[0].mxu0 %v6200
    %v9349 = vpop.f32.mrb[0].mxu0
    %v9350 = vadd.f32 %v9309, %v9349
    %v9351 = vpop.f32.mrb[0].mxu0
    %v9352 = vadd.f32 %v9311, %v9351
    %v9353 = vpop.f32.mrb[0].mxu0
    %v9354 = vpop.f32.mrb[0].mxu0
    %9355 = vdwg.mxu0
    %9356 = vmatprep.subr.bf16.mxu0 %v8145
    %9357 = vmatpush1.bf16.msra.mxu0 %v8144
    %9358 = vmatprep.subr.bf16.mxu0 %v8149
    %9359 = vmatpush1.bf16.msra.mxu0 %v8148
    %9360 = vmatprep.subr.bf16.mxu0 %v8153
    %9361 = vmatpush1.bf16.msra.mxu0 %v8152
    %9362 = vmatprep.subr.bf16.mxu0 %v8157
    %9363 = vmatpush1.bf16.msra.mxu0 %v8156
    %9364 = vmatprep.subr.bf16.mxu0 %v8161
    %9365 = vmatpush1.bf16.msra.mxu0 %v8160
    %9366 = vmatprep.subr.bf16.mxu0 %v8165
    %9367 = vmatpush1.bf16.msra.mxu0 %v8164
    %9368 = vmatprep.subr.bf16.mxu0 %v8169
    %9369 = vmatpush1.bf16.msra.mxu0 %v8168
    %9370 = vmatprep.subr.bf16.mxu0 %v8173
    %9371 = vmatpush1.bf16.msra.mxu0 %v8172
    %9372 = vmatprep.subr.bf16.mxu0 %v8177
    %9373 = vmatpush1.bf16.msra.mxu0 %v8176
    %9374 = vmatprep.subr.bf16.mxu0 %v8181
    %9375 = vmatpush1.bf16.msra.mxu0 %v8180
    %9376 = vmatprep.subr.bf16.mxu0 %v8185
    %9377 = vmatpush1.bf16.msra.mxu0 %v8184
    %9378 = vmatprep.subr.bf16.mxu0 %v8189
    %9379 = vmatpush1.bf16.msra.mxu0 %v8188
    %9380 = vmatprep.subr.bf16.mxu0 %v8193
    %9381 = vmatpush1.bf16.msra.mxu0 %v8192
    %9382 = vmatprep.subr.bf16.mxu0 %v8197
    %9383 = vmatpush1.bf16.msra.mxu0 %v8196
    %9384 = vmatprep.subr.bf16.mxu0 %v8201
    %9385 = vmatpush1.bf16.msra.mxu0 %v8200
    %9386 = vmatprep.subr.bf16.mxu0 %v8205
    %9387 = vmatpush1.bf16.msra.mxu0 %v8204
    %9388 = vmatprep.mubr.bf16.mxu0 %v6203
    %9389 = vmatmul.mubr.bf16.gmra.mrb[0].mxu0 %v6202
    %v9390 = vpop.f32.mrb[0].mxu0
    %v9391 = vadd.f32 %v9350, %v9390
    %v9392 = vpop.f32.mrb[0].mxu0
    %v9393 = vadd.f32 %v9352, %v9392
    %v9394 = vpop.f32.mrb[0].mxu0
    %v9395 = vpop.f32.mrb[0].mxu0
    %9396 = vdwg.mxu0
    %9397 = vmatprep.subr.bf16.mxu0 %v8209
    %9398 = vmatpush1.bf16.msra.mxu0 %v8208
    %9399 = vmatprep.subr.bf16.mxu0 %v8213
    %9400 = vmatpush1.bf16.msra.mxu0 %v8212
    %9401 = vmatprep.subr.bf16.mxu0 %v8217
    %9402 = vmatpush1.bf16.msra.mxu0 %v8216
    %9403 = vmatprep.subr.bf16.mxu0 %v8221
    %9404 = vmatpush1.bf16.msra.mxu0 %v8220
    %9405 = vmatprep.subr.bf16.mxu0 %v8225
    %9406 = vmatpush1.bf16.msra.mxu0 %v8224
    %9407 = vmatprep.subr.bf16.mxu0 %v8229
    %9408 = vmatpush1.bf16.msra.mxu0 %v8228
    %9409 = vmatprep.subr.bf16.mxu0 %v8233
    %9410 = vmatpush1.bf16.msra.mxu0 %v8232
    %9411 = vmatprep.subr.bf16.mxu0 %v8237
    %9412 = vmatpush1.bf16.msra.mxu0 %v8236
    %9413 = vmatprep.subr.bf16.mxu0 %v8241
    %9414 = vmatpush1.bf16.msra.mxu0 %v8240
    %9415 = vmatprep.subr.bf16.mxu0 %v8245
    %9416 = vmatpush1.bf16.msra.mxu0 %v8244
    %9417 = vmatprep.subr.bf16.mxu0 %v8249
    %9418 = vmatpush1.bf16.msra.mxu0 %v8248
    %9419 = vmatprep.subr.bf16.mxu0 %v8253
    %9420 = vmatpush1.bf16.msra.mxu0 %v8252
    %9421 = vmatprep.subr.bf16.mxu0 %v8257
    %9422 = vmatpush1.bf16.msra.mxu0 %v8256
    %9423 = vmatprep.subr.bf16.mxu0 %v8261
    %9424 = vmatpush1.bf16.msra.mxu0 %v8260
    %9425 = vmatprep.subr.bf16.mxu0 %v8265
    %9426 = vmatpush1.bf16.msra.mxu0 %v8264
    %9427 = vmatprep.subr.bf16.mxu0 %v8269
    %9428 = vmatpush1.bf16.msra.mxu0 %v8268
    %9429 = vmatprep.mubr.bf16.mxu0 %v6205
    %9430 = vmatmul.mubr.bf16.gmra.mrb[0].mxu0 %v6204
    %v9431 = vpop.f32.mrb[0].mxu0
    %v9432 = vadd.f32 %v9391, %v9431
    %v9433 = vpop.f32.mrb[0].mxu0
    %v9434 = vadd.f32 %v9393, %v9433
    %v9435 = vpop.f32.mrb[0].mxu0
    %v9436 = vpop.f32.mrb[0].mxu0
    %9437 = vdwg.mxu0
    %v9442 = vcombine.low %v9104, %v9106
    %v9443 = vcombine.low %v9432, %v9434
    %v9445 = vunpack.c.l.s4 1983009808
    %v9446 = vunpack.c.0.s8 %v9445
    %v9447 = vlaneseq
    %v9448 = vshrl.u32 %v9447, 7
    %v9449 = vsub.s32 %v9446, %v9448
    %v9450 = vrot.slane %v9442, %v9449
    %v9452 = vunpack.c.l.s4 1983009808
    %v9453 = vunpack.c.0.s8 %v9452
    %v9454 = vlaneseq
    %v9455 = vshrl.u32 %v9454, 7
    %v9456 = vsub.s32 %v9453, %v9455
    %v9457 = vrot.slane %v9443, %v9456
    %v9458 = vcombine.low %v9450, %v9457
    %v9460 = vadd.f32 %v2076, %v9458
    %9461 = vst [vmem:[#allocation2] sm:$0xff] %v9460
    // Predicated region
    $region26: #{tpu_custom_call.1} parent=1 // pred_check
      %p9462 = pneg %p22
    $region27: #{tpu_custom_call.1} parent=1 // pred_check_branch
      %9464 = sbr.rel (%p9462) target = $region29
    $region28: #{tpu_custom_call.1} parent=1 // pred_region
      %v9465 = vld [vmem:[#allocation2] sm:$0xff]
      %v9466 = vld [vmem:[%s2] sm:$0xf]
      %v9468 = vlaneseq
      %v9469 = vshrl.u32 %v9468, 7
      %v9470 = vsub.s32 0, %v9469
      %v9471 = vrot.slane %v9466, %v9470
      %v9472 = vlaneseq
      %v9473 = vshrl.u32 %v9472, 7
      %v9474 = vsub.s32 1, %v9473
      %v9475 = vrot.slane %v9466, %v9474
      %v9476 = vlaneseq
      %v9477 = vshrl.u32 %v9476, 7
      %v9478 = vsub.s32 2, %v9477
      %v9479 = vrot.slane %v9466, %v9478
      %v9480 = vlaneseq
      %v9481 = vshrl.u32 %v9480, 7
      %v9482 = vsub.s32 3, %v9481
      %v9483 = vrot.slane %v9466, %v9482
      %v9484 = vcombine.low %v9471, %v9475
      %v9485 = vcombine.low %v9479, %v9483
      %v9487 = vunpack.c.l.s4 1983009808
      %v9488 = vunpack.c.0.s8 %v9487
      %v9489 = vlaneseq
      %v9490 = vshrl.u32 %v9489, 7
      %v9491 = vsub.s32 %v9488, %v9490
      %v9492 = vrot.slane %v9484, %v9491
      %v9494 = vunpack.c.l.s4 1983009808
      %v9495 = vunpack.c.0.s8 %v9494
      %v9496 = vlaneseq
      %v9497 = vshrl.u32 %v9496, 7
      %v9498 = vsub.s32 %v9495, %v9497
      %v9499 = vrot.slane %v9485, %v9498
      %v9500 = vcombine.low %v9492, %v9499
      %v9502 = vadd.f32 %v9465, %v9500
      %vm9503 = vcmp.gt.f32.partialorder %v9502, 0.0
      %v9504 = vmul.f32 %v9502, 0.1
      %v9505 = vsel %vm9503, %v9502, %v9504
      %v9507 = vcombine.high %v9505, %v9505
      %v9509 = vunpack.c.l.s4 1983009808
      %v9510 = vunpack.c.0.s8 %v9509
      %v9511 = vlaneseq
      %v9512 = vshrl.u32 %v9511, 7
      %v9513 = vsub.s32 %v9510, %v9512
      %v9514 = vrot.slane %v9505, %v9513
      %v9516 = vunpack.c.l.s4 1983009808
      %v9517 = vunpack.c.0.s8 %v9516
      %v9518 = vlaneseq
      %v9519 = vshrl.u32 %v9518, 7
      %v9520 = vsub.s32 %v9517, %v9519
      %v9521 = vrot.slane %v9507, %v9520
      %v9522 = vcombine.high %v9514, %v9514
      %v9523 = vcombine.high %v9521, %v9521
      %v9528 = vpack.c.bf16 %v9514, %v9514
      %v9529 = vpack.c.bf16 %v9522, %v9522
      %v9530 = vpack.c.bf16 %v9521, %v9521
      %v9531 = vpack.c.bf16 %v9523, %v9523
      %v9532 = vld [vmem:[%s3] sm:$0xf]
      %v9533 = vld [vmem:[%s3 + $0x4] sm:$0xf]
      %v9534 = vld [vmem:[%s3 + $0x8] sm:$0xf]
      %v9535 = vld [vmem:[%s3 + $0xc] sm:$0xf]
      %v9536 = vld [vmem:[%s3 + $0x10] sm:$0xf]
      %v9537 = vld [vmem:[%s3 + $0x14] sm:$0xf]
      %v9538 = vld [vmem:[%s3 + $0x18] sm:$0xf]
      %v9539 = vld [vmem:[%s3 + $0x1c] sm:$0xf]
      %v9540 = vld [vmem:[%s3 + $0x20] sm:$0xf]
      %v9541 = vld [vmem:[%s3 + $0x24] sm:$0xf]
      %v9542 = vld [vmem:[%s3 + $0x28] sm:$0xf]
      %v9543 = vld [vmem:[%s3 + $0x2c] sm:$0xf]
      %v9544 = vld [vmem:[%s3 + $0x30] sm:$0xf]
      %v9545 = vld [vmem:[%s3 + $0x34] sm:$0xf]
      %v9546 = vld [vmem:[%s3 + $0x38] sm:$0xf]
      %v9547 = vld [vmem:[%s3 + $0x3c] sm:$0xf]
      %v9548 = vld [vmem:[%s3 + $0x40] sm:$0xf]
      %v9549 = vld [vmem:[%s3 + $0x44] sm:$0xf]
      %v9550 = vld [vmem:[%s3 + $0x48] sm:$0xf]
      %v9551 = vld [vmem:[%s3 + $0x4c] sm:$0xf]
      %v9552 = vld [vmem:[%s3 + $0x50] sm:$0xf]
      %v9553 = vld [vmem:[%s3 + $0x54] sm:$0xf]
      %v9554 = vld [vmem:[%s3 + $0x58] sm:$0xf]
      %v9555 = vld [vmem:[%s3 + $0x5c] sm:$0xf]
      %v9556 = vld [vmem:[%s3 + $0x60] sm:$0xf]
      %v9557 = vld [vmem:[%s3 + $0x64] sm:$0xf]
      %v9558 = vld [vmem:[%s3 + $0x68] sm:$0xf]
      %v9559 = vld [vmem:[%s3 + $0x6c] sm:$0xf]
      %v9560 = vld [vmem:[%s3 + $0x70] sm:$0xf]
      %v9561 = vld [vmem:[%s3 + $0x74] sm:$0xf]
      %v9562 = vld [vmem:[%s3 + $0x78] sm:$0xf]
      %v9563 = vld [vmem:[%s3 + $0x7c] sm:$0xf]
      %v9564 = vld [vmem:[%s3 + $0x80] sm:$0xf]
      %v9565 = vld [vmem:[%s3 + $0x84] sm:$0xf]
      %v9566 = vld [vmem:[%s3 + $0x88] sm:$0xf]
      %v9567 = vld [vmem:[%s3 + $0x8c] sm:$0xf]
      %v9568 = vld [vmem:[%s3 + $0x90] sm:$0xf]
      %v9569 = vld [vmem:[%s3 + $0x94] sm:$0xf]
      %v9570 = vld [vmem:[%s3 + $0x98] sm:$0xf]
      %v9571 = vld [vmem:[%s3 + $0x9c] sm:$0xf]
      %v9572 = vld [vmem:[%s3 + $0xa0] sm:$0xf]
      %v9573 = vld [vmem:[%s3 + $0xa4] sm:$0xf]
      %v9574 = vld [vmem:[%s3 + $0xa8] sm:$0xf]
      %v9575 = vld [vmem:[%s3 + $0xac] sm:$0xf]
      %v9576 = vld [vmem:[%s3 + $0xb0] sm:$0xf]
      %v9577 = vld [vmem:[%s3 + $0xb4] sm:$0xf]
      %v9578 = vld [vmem:[%s3 + $0xb8] sm:$0xf]
      %v9579 = vld [vmem:[%s3 + $0xbc] sm:$0xf]
      %v9580 = vld [vmem:[%s3 + $0xc0] sm:$0xf]
      %v9581 = vld [vmem:[%s3 + $0xc4] sm:$0xf]
      %v9582 = vld [vmem:[%s3 + $0xc8] sm:$0xf]
      %v9583 = vld [vmem:[%s3 + $0xcc] sm:$0xf]
      %v9584 = vld [vmem:[%s3 + $0xd0] sm:$0xf]
      %v9585 = vld [vmem:[%s3 + $0xd4] sm:$0xf]
      %v9586 = vld [vmem:[%s3 + $0xd8] sm:$0xf]
      %v9587 = vld [vmem:[%s3 + $0xdc] sm:$0xf]
      %v9588 = vld [vmem:[%s3 + $0xe0] sm:$0xf]
      %v9589 = vld [vmem:[%s3 + $0xe4] sm:$0xf]
      %v9590 = vld [vmem:[%s3 + $0xe8] sm:$0xf]
      %v9591 = vld [vmem:[%s3 + $0xec] sm:$0xf]
      %v9592 = vld [vmem:[%s3 + $0xf0] sm:$0xf]
      %v9593 = vld [vmem:[%s3 + $0xf4] sm:$0xf]
      %v9594 = vld [vmem:[%s3 + $0xf8] sm:$0xf]
      %v9595 = vld [vmem:[%s3 + $0xfc] sm:$0xf]
      %v9596 = vld [vmem:[%s4] sm:$0x1]
      %v9598 = vlaneseq
      %v9599 = vshrl.u32 %v9598, 7
      %v9600 = vsub.s32 0, %v9599
      %v9601 = vrot.slane %v9596, %v9600
      %v9667 = vunpack.c.l.b16 %v9532
      %v9668 = vunpack.c.l.b16 %v9533
      %v9669 = vunpack.c.l.b16 %v9534
      %v9670 = vunpack.c.l.b16 %v9535
      %v9671 = vunpack.c.l.b16 %v9536
      %v9672 = vunpack.c.l.b16 %v9537
      %v9673 = vunpack.c.l.b16 %v9538
      %v9674 = vunpack.c.l.b16 %v9539
      %v9675 = vunpack.c.l.b16 %v9540
      %v9676 = vunpack.c.l.b16 %v9541
      %v9677 = vunpack.c.l.b16 %v9542
      %v9678 = vunpack.c.l.b16 %v9543
      %v9679 = vunpack.c.l.b16 %v9544
      %v9680 = vunpack.c.l.b16 %v9545
      %v9681 = vunpack.c.l.b16 %v9546
      %v9682 = vunpack.c.l.b16 %v9547
      %v9683 = vunpack.c.l.b16 %v9548
      %v9684 = vunpack.c.l.b16 %v9549
      %v9685 = vunpack.c.l.b16 %v9550
      %v9686 = vunpack.c.l.b16 %v9551
      %v9687 = vunpack.c.l.b16 %v9552
      %v9688 = vunpack.c.l.b16 %v9553
      %v9689 = vunpack.c.l.b16 %v9554
      %v9690 = vunpack.c.l.b16 %v9555
      %v9691 = vunpack.c.l.b16 %v9556
      %v9692 = vunpack.c.l.b16 %v9557
      %v9693 = vunpack.c.l.b16 %v9558
      %v9694 = vunpack.c.l.b16 %v9559
      %v9695 = vunpack.c.l.b16 %v9560
      %v9696 = vunpack.c.l.b16 %v9561
      %v9697 = vunpack.c.l.b16 %v9562
      %v9698 = vunpack.c.l.b16 %v9563
      %v9699 = vunpack.c.l.b16 %v9564
      %v9700 = vunpack.c.l.b16 %v9565
      %v9701 = vunpack.c.l.b16 %v9566
      %v9702 = vunpack.c.l.b16 %v9567
      %v9703 = vunpack.c.l.b16 %v9568
      %v9704 = vunpack.c.l.b16 %v9569
      %v9705 = vunpack.c.l.b16 %v9570
      %v9706 = vunpack.c.l.b16 %v9571
      %v9707 = vunpack.c.l.b16 %v9572
      %v9708 = vunpack.c.l.b16 %v9573
      %v9709 = vunpack.c.l.b16 %v9574
      %v9710 = vunpack.c.l.b16 %v9575
      %v9711 = vunpack.c.l.b16 %v9576
      %v9712 = vunpack.c.l.b16 %v9577
      %v9713 = vunpack.c.l.b16 %v9578
      %v9714 = vunpack.c.l.b16 %v9579
      %v9715 = vunpack.c.l.b16 %v9580
      %v9716 = vunpack.c.l.b16 %v9581
      %v9717 = vunpack.c.l.b16 %v9582
      %v9718 = vunpack.c.l.b16 %v9583
      %v9719 = vunpack.c.l.b16 %v9584
      %v9720 = vunpack.c.l.b16 %v9585
      %v9721 = vunpack.c.l.b16 %v9586
      %v9722 = vunpack.c.l.b16 %v9587
      %v9723 = vunpack.c.l.b16 %v9588
      %v9724 = vunpack.c.l.b16 %v9589
      %v9725 = vunpack.c.l.b16 %v9590
      %v9726 = vunpack.c.l.b16 %v9591
      %v9727 = vunpack.c.l.b16 %v9592
      %v9728 = vunpack.c.l.b16 %v9593
      %v9729 = vunpack.c.l.b16 %v9594
      %v9730 = vunpack.c.l.b16 %v9595
      %v9731 = vpack.c.b16 %v9668, %v9667
      %v9732 = vpack.c.b16 %v9670, %v9669
      %v9733 = vpack.c.b16 %v9672, %v9671
      %v9734 = vpack.c.b16 %v9674, %v9673
      %v9735 = vpack.c.b16 %v9676, %v9675
      %v9736 = vpack.c.b16 %v9678, %v9677
      %v9737 = vpack.c.b16 %v9680, %v9679
      %v9738 = vpack.c.b16 %v9682, %v9681
      %v9739 = vpack.c.b16 %v9684, %v9683
      %v9740 = vpack.c.b16 %v9686, %v9685
      %v9741 = vpack.c.b16 %v9688, %v9687
      %v9742 = vpack.c.b16 %v9690, %v9689
      %v9743 = vpack.c.b16 %v9692, %v9691
      %v9744 = vpack.c.b16 %v9694, %v9693
      %v9745 = vpack.c.b16 %v9696, %v9695
      %v9746 = vpack.c.b16 %v9698, %v9697
      %v9747 = vpack.c.b16 %v9700, %v9699
      %v9748 = vpack.c.b16 %v9702, %v9701
      %v9749 = vpack.c.b16 %v9704, %v9703
      %v9750 = vpack.c.b16 %v9706, %v9705
      %v9751 = vpack.c.b16 %v9708, %v9707
      %v9752 = vpack.c.b16 %v9710, %v9709
      %v9753 = vpack.c.b16 %v9712, %v9711
      %v9754 = vpack.c.b16 %v9714, %v9713
      %v9755 = vpack.c.b16 %v9716, %v9715
      %v9756 = vpack.c.b16 %v9718, %v9717
      %v9757 = vpack.c.b16 %v9720, %v9719
      %v9758 = vpack.c.b16 %v9722, %v9721
      %v9759 = vpack.c.b16 %v9724, %v9723
      %v9760 = vpack.c.b16 %v9726, %v9725
      %v9761 = vpack.c.b16 %v9728, %v9727
      %v9762 = vpack.c.b16 %v9730, %v9729
      %9795 = vmatprep.subr.bf16.mxu0 0
      %9796 = vmatpush1.bf16.msra.mxu0 %v9731
      %9797 = vmatprep.subr.bf16.mxu0 0
      %9798 = vmatpush1.bf16.msra.mxu0 %v9732
      %9799 = vmatprep.subr.bf16.mxu0 0
      %9800 = vmatpush1.bf16.msra.mxu0 %v9733
      %9801 = vmatprep.subr.bf16.mxu0 0
      %9802 = vmatpush1.bf16.msra.mxu0 %v9734
      %9803 = vmatprep.subr.bf16.mxu0 0
      %9804 = vmatpush1.bf16.msra.mxu0 %v9735
      %9805 = vmatprep.subr.bf16.mxu0 0
      %9806 = vmatpush1.bf16.msra.mxu0 %v9736
      %9807 = vmatprep.subr.bf16.mxu0 0
      %9808 = vmatpush1.bf16.msra.mxu0 %v9737
      %9809 = vmatprep.subr.bf16.mxu0 0
      %9810 = vmatpush1.bf16.msra.mxu0 %v9738
      %9811 = vmatprep.subr.bf16.mxu0 0
      %9812 = vmatpush1.bf16.msra.mxu0 %v9739
      %9813 = vmatprep.subr.bf16.mxu0 0
      %9814 = vmatpush1.bf16.msra.mxu0 %v9740
      %9815 = vmatprep.subr.bf16.mxu0 0
      %9816 = vmatpush1.bf16.msra.mxu0 %v9741
      %9817 = vmatprep.subr.bf16.mxu0 0
      %9818 = vmatpush1.bf16.msra.mxu0 %v9742
      %9819 = vmatprep.subr.bf16.mxu0 0
      %9820 = vmatpush1.bf16.msra.mxu0 %v9743
      %9821 = vmatprep.subr.bf16.mxu0 0
      %9822 = vmatpush1.bf16.msra.mxu0 %v9744
      %9823 = vmatprep.subr.bf16.mxu0 0
      %9824 = vmatpush1.bf16.msra.mxu0 %v9745
      %9825 = vmatprep.subr.bf16.mxu0 0
      %9826 = vmatpush1.bf16.msra.mxu0 %v9746
      %9827 = vmatprep.mubr.bf16.mxu0 %v9529
      %9828 = vmatmul.mubr.bf16.gmra.mrb[0].mxu0 %v9528
      %v9829 = vpop.f32.mrb[0].mxu0
      %v9830 = vadd.f32 %v9601, %v9829
      %v9831 = vpop.f32.mrb[0].mxu0
      %v9832 = vpop.f32.mrb[0].mxu0
      %v9833 = vpop.f32.mrb[0].mxu0
      %9834 = vdwg.mxu0
      %9835 = vmatprep.subr.bf16.mxu0 0
      %9836 = vmatpush1.bf16.msra.mxu0 %v9747
      %9837 = vmatprep.subr.bf16.mxu0 0
      %9838 = vmatpush1.bf16.msra.mxu0 %v9748
      %9839 = vmatprep.subr.bf16.mxu0 0
      %9840 = vmatpush1.bf16.msra.mxu0 %v9749
      %9841 = vmatprep.subr.bf16.mxu0 0
      %9842 = vmatpush1.bf16.msra.mxu0 %v9750
      %9843 = vmatprep.subr.bf16.mxu0 0
      %9844 = vmatpush1.bf16.msra.mxu0 %v9751
      %9845 = vmatprep.subr.bf16.mxu0 0
      %9846 = vmatpush1.bf16.msra.mxu0 %v9752
      %9847 = vmatprep.subr.bf16.mxu0 0
      %9848 = vmatpush1.bf16.msra.mxu0 %v9753
      %9849 = vmatprep.subr.bf16.mxu0 0
      %9850 = vmatpush1.bf16.msra.mxu0 %v9754
      %9851 = vmatprep.subr.bf16.mxu0 0
      %9852 = vmatpush1.bf16.msra.mxu0 %v9755
      %9853 = vmatprep.subr.bf16.mxu0 0
      %9854 = vmatpush1.bf16.msra.mxu0 %v9756
      %9855 = vmatprep.subr.bf16.mxu0 0
      %9856 = vmatpush1.bf16.msra.mxu0 %v9757
      %9857 = vmatprep.subr.bf16.mxu0 0
      %9858 = vmatpush1.bf16.msra.mxu0 %v9758
      %9859 = vmatprep.subr.bf16.mxu0 0
      %9860 = vmatpush1.bf16.msra.mxu0 %v9759
      %9861 = vmatprep.subr.bf16.mxu0 0
      %9862 = vmatpush1.bf16.msra.mxu0 %v9760
      %9863 = vmatprep.subr.bf16.mxu0 0
      %9864 = vmatpush1.bf16.msra.mxu0 %v9761
      %9865 = vmatprep.subr.bf16.mxu0 0
      %9866 = vmatpush1.bf16.msra.mxu0 %v9762
      %9867 = vmatprep.mubr.bf16.mxu0 %v9531
      %9868 = vmatmul.mubr.bf16.gmra.mrb[0].mxu0 %v9530
      %v9869 = vpop.f32.mrb[0].mxu0
      %v9870 = vadd.f32 %v9830, %v9869
      %v9871 = vpop.f32.mrb[0].mxu0
      %v9872 = vpop.f32.mrb[0].mxu0
      %v9873 = vpop.f32.mrb[0].mxu0
      %9874 = vdwg.mxu0
      %9875 = vst [vmem:[#allocation3] sm:$0x3] %v9870
    $region29: #{tpu_custom_call.1} parent=1 // pred_fallthru
      _
    // Predicated region
    $region30: #{tpu_custom_call.1} parent=1 // pred_check
      _
    $region31: #{tpu_custom_call.1} parent=1 // pred_check_branch
      %9877 = sbr.rel (0) target = $region33
    $region32: #{tpu_custom_call.1} parent=1 // pred_region
      %s9879 = ssub.s32 32, 32
      %9880 = vsyncadd [#allocation4], %s9879
      %s9882 = sshll.u32 [#allocation3], 4
      %s9883 = int_to_ptr.vmem [resolvable:$true] %s9882
      %9885 = dma.vmem_to_hbm [thread:$0]  %s9883, 32, %s5, [#allocation4]
    $region33: #{tpu_custom_call.1} parent=1 // pred_fallthru
      _
    // Predicated region
    $region34: #{tpu_custom_call.1} parent=1 // pred_check
      _
    $region35: #{tpu_custom_call.1} parent=1 // pred_check_branch
      %9887 = sbr.rel (0) target = $region37
    $region36: #{tpu_custom_call.1} parent=1 // pred_region
      %9888 = dma.done [#allocation4], 32
    $region37: #{tpu_custom_call.1} parent=1 // pred_fallthru
      _
    %9889 = vsyncpa [#allocation4], 1

</llo_original>
